<compile_context>
chip_gen: v7x
topology: tpu7x:2x2x1
jax: 0.10.0
libtpu: 0.0.40
codegen_flags: <defaults>
</compile_context>

<pallas_src>
import jax
import jax.numpy as jnp
from jax.experimental import pallas as pl
from jax.experimental.pallas import tpu as pltpu

LRELU_SLOPE = 0.2
BN_EPS = 1e-5
LANE = 128


# --------------------------------------------------------------------------- #
# Pallas kernels
# --------------------------------------------------------------------------- #
def _conv_block_kernel(x_ref, w_ref, b_ref, o_ref):
    """Fused im2col-conv: MXU matmul (bf16 in / f32 acc) + bias + LeakyReLU."""
    y = jnp.dot(x_ref[...], w_ref[...], preferred_element_type=jnp.float32)
    y = y + b_ref[...]
    o_ref[...] = jnp.where(y >= 0, y, LRELU_SLOPE * y).astype(o_ref.dtype)


def _conv_head_kernel(p_ref, w4_ref, b4_ref, hw_ref, hb_ref, o_ref):
    """Fused final conv layer + both Linear heads.

    p_ref : (P, N, K)    layer-4 im2col patches, spatial-position major
    w4_ref: (K, 128)     folded conv-4 weight (BN scale folded in)
    b4_ref: (1, 128)     folded conv-4 bias (BN shift)
    hw_ref: (P, 128, H)  per-spatial-position head weights (head1 col0, head2 col1)
    hb_ref: (1, H)       head biases
    o_ref : (N, H)       fused head output (column 0 = branch1, column 1 = branch2)
    """
    P = p_ref.shape[0]
    acc = jnp.zeros(o_ref.shape, jnp.float32)
    for p in range(P):  # static unroll, P = ds*ds (4 for 32x32 images)
        y = jnp.dot(p_ref[p], w4_ref[...], preferred_element_type=jnp.float32)
        y = y + b4_ref[...]
        y = jnp.where(y >= 0, y, LRELU_SLOPE * y)
        acc = acc + jnp.dot(
            y.astype(jnp.bfloat16), hw_ref[p], preferred_element_type=jnp.float32
        )
    o_ref[...] = acc + hb_ref[...]


# --------------------------------------------------------------------------- #
# Pallas wrappers
# --------------------------------------------------------------------------- #
def conv_block_pallas(patches, w_mat, bias_row):
    """patches: (M, K) bf16, w_mat: (K, 128) bf16, bias_row: (1, 128) f32."""
    M, K = patches.shape
    Cp = w_mat.shape[1]
    # Tile M only when it is big enough to matter (layer 1); "parallel" lets
    # v7x split the row tiles across its two TensorCores.
    tm = 512 if (M % 512 == 0 and M >= 1024) else M
    grid = (M // tm,)
    flops = 2 * M * K * Cp
    bytes_accessed = (
        M * K * patches.dtype.itemsize
        + K * Cp * w_mat.dtype.itemsize
        + M * Cp * 2
        + Cp * 4
    )
    return pl.pallas_call(
        _conv_block_kernel,
        out_shape=jax.ShapeDtypeStruct((M, Cp), jnp.bfloat16),
        grid=grid,
        in_specs=[
            pl.BlockSpec((tm, K), lambda i: (i, 0)),
            pl.BlockSpec((K, Cp), lambda i: (0, 0)),
            pl.BlockSpec((1, Cp), lambda i: (0, 0)),
        ],
        out_specs=pl.BlockSpec((tm, Cp), lambda i: (i, 0)),
        compiler_params=pltpu.CompilerParams(dimension_semantics=("parallel",)),
        cost_estimate=pl.CostEstimate(
            flops=flops, transcendentals=0, bytes_accessed=bytes_accessed
        ),
    )(patches, w_mat, bias_row)


def conv_head_pallas(patches_p, w4, b4, head_w, head_b):
    """Fused layer-4 conv + two heads.

    patches_p: (P, N, K) bf16, w4: (K, 128) bf16, b4: (1, 128) f32,
    head_w: (P, 128, H) bf16, head_b: (1, H) f32 -> (N, H) f32.
    """
    P, N, K = patches_p.shape
    Cp = w4.shape[1]
    O = head_w.shape[-1]
    flops = 2 * P * N * K * Cp + 2 * P * N * Cp * O
    bytes_accessed = (
        patches_p.size * 2 + w4.size * 2 + head_w.size * 2 + Cp * 4 + O * 4 + N * O * 4
    )
    return pl.pallas_call(
        _conv_head_kernel,
        out_shape=jax.ShapeDtypeStruct((N, O), jnp.float32),
        grid=(1,),
        in_specs=[
            pl.BlockSpec((P, N, K), lambda i: (0, 0, 0)),
            pl.BlockSpec((K, Cp), lambda i: (0, 0)),
            pl.BlockSpec((1, Cp), lambda i: (0, 0)),
            pl.BlockSpec((P, Cp, O), lambda i: (0, 0, 0)),
            pl.BlockSpec((1, O), lambda i: (0, 0)),
        ],
        out_specs=pl.BlockSpec((N, O), lambda i: (0, 0)),
        compiler_params=pltpu.CompilerParams(dimension_semantics=("arbitrary",)),
        cost_estimate=pl.CostEstimate(
            flops=flops, transcendentals=0, bytes_accessed=bytes_accessed
        ),
    )(patches_p, w4, b4, head_w, head_b)


# --------------------------------------------------------------------------- #
# JAX glue: im2col, parameter init and one-time preparation, forward
# --------------------------------------------------------------------------- #
def im2col(x_nhwc, k=3, stride=2, pad=1):
    """Returns (N, Ho, Wo, k*k*C) patches in (kh, kw, c) column order."""
    N, H, W, C = x_nhwc.shape
    Ho = (H + 2 * pad - k) // stride + 1
    Wo = (W + 2 * pad - k) // stride + 1
    xp = jnp.pad(x_nhwc, ((0, 0), (pad, pad), (pad, pad), (0, 0)))
    cols = []
    for kh in range(k):
        for kw in range(k):
            cols.append(
                xp[:, kh : kh + stride * (Ho - 1) + 1 : stride,
                      kw : kw + stride * (Wo - 1) + 1 : stride, :]
            )
    patches = jnp.concatenate(cols, axis=-1)  # (N, Ho, Wo, k*k*C)
    return patches, (N, Ho, Wo)


def init_params(key, image_size=32, channels=3):
    """Matches PyTorch _initialize_weights (kaiming_normal * 0.1, etc.)."""
    chans = [channels, 16, 32, 64, 128]
    keys = jax.random.split(key, 10)
    ki = 0
    params = {"conv_w": [], "bn_gamma": [], "bn_beta": []}
    for l in range(4):
        cin, cout = chans[l], chans[l + 1]
        std = (2.0 / (cin * 9)) ** 0.5 * 0.1
        params["conv_w"].append(
            jax.random.normal(keys[ki], (cout, cin, 3, 3), jnp.float32) * std
        )
        ki += 1
    params["conv1_b"] = jnp.zeros((16,), jnp.float32)
    for c in (32, 64, 128):
        params["bn_gamma"].append(
            (1.0 + 0.02 * jax.random.normal(keys[ki], (c,), jnp.float32)) * 0.1
        )
        ki += 1
        params["bn_beta"].append(jnp.zeros((c,), jnp.float32))
    ds = image_size // 2 ** 4
    D = 128 * ds * ds
    std = (2.0 / D) ** 0.5 * 0.1
    params["w1"] = jax.random.normal(keys[ki], (1, D), jnp.float32) * std
    ki += 1
    params["w2"] = jax.random.normal(keys[ki], (1, D), jnp.float32) * std
    ki += 1
    params["b1"] = jnp.zeros((1,), jnp.float32)
    params["b2"] = jnp.zeros((1,), jnp.float32)
    return params


def prepare_params(params):
    """One-time prep: fold BN/bias into weights, pad to 128 lanes, cast bf16."""
    prep = {"conv_w": [], "conv_b": []}

    # Layer 1: conv with bias, no BN.
    w = params["conv_w"][0]                                   # (16, 3, 3, 3)
    cout = w.shape[0]
    wm = jnp.transpose(w, (2, 3, 1, 0)).reshape(-1, cout)     # (27, 16), (kh,kw,cin) rows
    wm = jnp.pad(wm, ((0, 0), (0, LANE - cout)))
    b = jnp.pad(params["conv1_b"], (0, LANE - cout)).reshape(1, LANE)
    prep["conv_w"].append(wm.astype(jnp.bfloat16))
    prep["conv_b"].append(b.astype(jnp.float32))

    # Layers 2-4: conv (no bias) + eval-mode BN folded into weights/bias.
    for l in range(1, 4):
        w = params["conv_w"][l]                               # (Cout, Cin, 3, 3)
        cout, cin = w.shape[0], w.shape[1]
        gamma = params["bn_gamma"][l - 1]
        beta = params["bn_beta"][l - 1]
        scale = gamma / jnp.sqrt(1.0 + BN_EPS)                # running_var = 1
        shift = beta                                          # running_mean = 0
        wt = jnp.transpose(w, (2, 3, 1, 0)) * scale           # fold scale into Cout cols
        wt = jnp.pad(wt, ((0, 0), (0, 0), (0, LANE - cin), (0, LANE - cout)))
        wm = wt.reshape(9 * LANE, LANE)                       # zero rows for padded Cin
        b = jnp.pad(shift, (0, LANE - cout)).reshape(1, LANE)
        prep["conv_w"].append(wm.astype(jnp.bfloat16))
        prep["conv_b"].append(b.astype(jnp.float32))

    # Fused heads: torch flattens NCHW (c,h,w); our layer-4 features are
    # spatial-position-major (p = h*ds + w), channels last.  Rearrange the head
    # weight rows once here into (P, C, heads).
    D = params["w1"].shape[1]                                 # 128 * ds * ds
    ds = int(round((D // LANE) ** 0.5))
    P = ds * ds

    def to_pc(wrow):                                          # (D,) (c,h,w) -> (P, C)
        return wrow.reshape(LANE, ds, ds).transpose(1, 2, 0).reshape(P, LANE)

    hw = jnp.stack([to_pc(params["w1"][0]), to_pc(params["w2"][0])], axis=-1)
    hw = jnp.pad(hw, ((0, 0), (0, 0), (0, LANE - 2)))         # (P, 128, 128)
    hb = jnp.pad(
        jnp.stack([params["b1"][0], params["b2"][0]]), (0, LANE - 2)
    ).reshape(1, LANE)
    prep["head_w"] = hw.astype(jnp.bfloat16)
    prep["head_b"] = hb.astype(jnp.float32)
    return prep


def forward(inputs, target, prep):
    """inputs/target: (B, C, H, W) f32. Returns (out1, out2), each (B, 1) f32."""
    B = inputs.shape[0]
    x = jnp.concatenate([inputs, target], axis=0)             # branch-batched (2B,...)
    x = jnp.transpose(x, (0, 2, 3, 1)).astype(jnp.bfloat16)   # NCHW -> NHWC, bf16

    # Conv layers 1-3: im2col (XLA) + fused matmul/bias/LeakyReLU (Pallas).
    for l in range(3):
        patches, (N, Ho, Wo) = im2col(x)
        K = patches.shape[-1]
        out = conv_block_pallas(
            patches.reshape(N * Ho * Wo, K), prep["conv_w"][l], prep["conv_b"][l]
        )
        x = out.reshape(N, Ho, Wo, LANE)                      # channels stay 128-padded

    # Conv layer 4 + both Linear heads fused in one Pallas call.
    patches, (N, Ho, Wo) = im2col(x)
    K4 = patches.shape[-1]
    patches_p = jnp.transpose(patches.reshape(N, Ho * Wo, K4), (1, 0, 2))  # (P, 2B, K4)
    heads = conv_head_pallas(
        patches_p, prep["conv_w"][3], prep["conv_b"][3], prep["head_w"], prep["head_b"]
    )                                                          # (2B, 128) f32

    out1 = heads[:B, 0:1]                                     # branch1 on inputs
    out2 = heads[B:, 1:2]                                     # branch2 on target
    return out1, out2


# --------------------------------------------------------------------------- #
if __name__ == "__main__":
    key = jax.random.PRNGKey(0)
    k_in, k_tg, k_par = jax.random.split(key, 3)
    B, C, S = 2, 3, 32
    inputs = jax.random.normal(k_in, (B, C, S, S), jnp.float32)
    target = jax.random.normal(k_tg, (B, C, S, S), jnp.float32)

    params = init_params(k_par, image_size=S, channels=C)
    prep = prepare_params(params)          # one-time weight prep (hoisted out of forward)

    fwd = jax.jit(forward)
    out1, out2 = fwd(inputs, target, prep)
    jax.block_until_ready((out1, out2))

    assert out1.shape == (B, 1) and out2.shape == (B, 1)
    assert out1.dtype == jnp.float32 and out2.dtype == jnp.float32
    print("KERNEL_OK")
</pallas_src>

<mosaic_0001>
module attributes {stable_mosaic.version = 11 : i64} {
  func.func @_conv_block_kernel(%arg0: i32, %arg1: memref<512x27xbf16, #tpu.memory_space<vmem>>, %arg2: memref<27x128xbf16, #tpu.memory_space<vmem>>, %arg3: memref<1x128xf32, #tpu.memory_space<vmem>>, %arg4: memref<512x128xbf16, #tpu.memory_space<vmem>>) attributes {dimension_semantics = [#tpu.dimension_semantics<parallel>], iteration_bounds = array<i64: 2>, scalar_prefetch = 0 : i64, scratch_operands = 0 : i64, tpu.core_type = #tpu.core_type<tc>, window_params = [{transform_indices = @transform_0, window_bounds = array<i64: 512, 27>}, {pipeline_mode = #tpu.pipeline_mode<synchronous>, transform_indices = @transform_1, window_bounds = array<i64: 27, 128>}, {pipeline_mode = #tpu.pipeline_mode<synchronous>, transform_indices = @transform_2, window_bounds = array<i64: 1, 128>}, {transform_indices = @transform_3, window_bounds = array<i64: 512, 128>}]} {
    %c0 = arith.constant 0 : index
    %c0_0 = arith.constant 0 : index
    %0 = vector.load %arg1[%c0, %c0_0] : memref<512x27xbf16, #tpu.memory_space<vmem>>, vector<512x27xbf16>
    %c0_1 = arith.constant 0 : index
    %c0_2 = arith.constant 0 : index
    %1 = vector.load %arg2[%c0_1, %c0_2] : memref<27x128xbf16, #tpu.memory_space<vmem>>, vector<27x128xbf16>
    %cst = arith.constant dense<0.000000e+00> : vector<512x128xf32>
    %2 = tpu.matmul %0, %1, %cst {dimension_numbers = #tpu.dot_dimension_numbers<[1], [0], [0], [1], [0, 0, 1, 1], [], []>} : vector<512x27xbf16>, vector<27x128xbf16>, vector<512x128xf32> -> vector<512x128xf32>
    %c0_3 = arith.constant 0 : index
    %c0_4 = arith.constant 0 : index
    %3 = vector.load %arg3[%c0_3, %c0_4] : memref<1x128xf32, #tpu.memory_space<vmem>>, vector<1x128xf32>
    %4 = vector.broadcast %3 : vector<1x128xf32> to vector<512x128xf32>
    %5 = arith.addf %2, %4 : vector<512x128xf32>
    %cst_5 = arith.constant 0.000000e+00 : f32
    %6 = vector.broadcast %cst_5 : f32 to vector<512x128xf32>
    %7 = arith.cmpf oge, %5, %6 : vector<512x128xf32>
    %cst_6 = arith.constant 2.000000e-01 : f32
    %8 = vector.broadcast %cst_6 : f32 to vector<512x128xf32>
    %9 = arith.mulf %8, %5 : vector<512x128xf32>
    %10 = arith.select %7, %5, %9 : vector<512x128xi1>, vector<512x128xf32>
    %11 = arith.truncf %10 : vector<512x128xf32> to vector<512x128xbf16>
    %c0_7 = arith.constant 0 : index
    %c0_8 = arith.constant 0 : index
    %12 = vector.load %arg4[%c0_7, %c0_8] : memref<512x128xbf16, #tpu.memory_space<vmem>>, vector<512x128xbf16>
    tpu.vector_store %arg4[%c0_7, %c0_8], %11 {strides = array<i32>} : memref<512x128xbf16, #tpu.memory_space<vmem>>, vector<512x128xbf16>,
    return
  }
  func.func @transform_0(%arg0: i32) -> (i32, i32) {
    %c0_i32 = arith.constant 0 : i32
    %c0_i32_0 = arith.constant 0 : i32
    return %arg0, %c0_i32 : i32, i32
  }
  func.func @transform_1(%arg0: i32) -> (i32, i32) {
    %c0_i32 = arith.constant 0 : i32
    %c0_i32_0 = arith.constant 0 : i32
    %c0_i32_1 = arith.constant 0 : i32
    return %c0_i32, %c0_i32_0 : i32, i32
  }
  func.func @transform_2(%arg0: i32) -> (i32, i32) {
    %c0_i32 = arith.constant 0 : i32
    %c0_i32_0 = arith.constant 0 : i32
    %c0_i32_1 = arith.constant 0 : i32
    return %c0_i32, %c0_i32_0 : i32, i32
  }
  func.func @transform_3(%arg0: i32) -> (i32, i32) {
    %c0_i32 = arith.constant 0 : i32
    %c0_i32_0 = arith.constant 0 : i32
    return %arg0, %c0_i32 : i32, i32
  }
}

module attributes {stable_mosaic.version = 11 : i64} {
  func.func @_conv_block_kernel(%arg0: i32, %arg1: memref<256x1152xbf16, #tpu.memory_space<vmem>>, %arg2: memref<1152x128xbf16, #tpu.memory_space<vmem>>, %arg3: memref<1x128xf32, #tpu.memory_space<vmem>>, %arg4: memref<256x128xbf16, #tpu.memory_space<vmem>>) attributes {dimension_semantics = [#tpu.dimension_semantics<parallel>], iteration_bounds = array<i64: 1>, scalar_prefetch = 0 : i64, scratch_operands = 0 : i64, tpu.core_type = #tpu.core_type<tc>, window_params = [{transform_indices = @transform_0, window_bounds = array<i64: 256, 1152>}, {pipeline_mode = #tpu.pipeline_mode<synchronous>, transform_indices = @transform_1, window_bounds = array<i64: 1152, 128>}, {pipeline_mode = #tpu.pipeline_mode<synchronous>, transform_indices = @transform_2, window_bounds = array<i64: 1, 128>}, {transform_indices = @transform_3, window_bounds = array<i64: 256, 128>}]} {
    %c0 = arith.constant 0 : index
    %c0_0 = arith.constant 0 : index
    %0 = vector.load %arg1[%c0, %c0_0] : memref<256x1152xbf16, #tpu.memory_space<vmem>>, vector<256x1152xbf16>
    %c0_1 = arith.constant 0 : index
    %c0_2 = arith.constant 0 : index
    %1 = vector.load %arg2[%c0_1, %c0_2] : memref<1152x128xbf16, #tpu.memory_space<vmem>>, vector<1152x128xbf16>
    %cst = arith.constant dense<0.000000e+00> : vector<256x128xf32>
    %2 = tpu.matmul %0, %1, %cst {dimension_numbers = #tpu.dot_dimension_numbers<[1], [0], [0], [1], [0, 0, 1, 1], [], []>} : vector<256x1152xbf16>, vector<1152x128xbf16>, vector<256x128xf32> -> vector<256x128xf32>
    %c0_3 = arith.constant 0 : index
    %c0_4 = arith.constant 0 : index
    %3 = vector.load %arg3[%c0_3, %c0_4] : memref<1x128xf32, #tpu.memory_space<vmem>>, vector<1x128xf32>
    %4 = vector.broadcast %3 : vector<1x128xf32> to vector<256x128xf32>
    %5 = arith.addf %2, %4 : vector<256x128xf32>
    %cst_5 = arith.constant 0.000000e+00 : f32
    %6 = vector.broadcast %cst_5 : f32 to vector<256x128xf32>
    %7 = arith.cmpf oge, %5, %6 : vector<256x128xf32>
    %cst_6 = arith.constant 2.000000e-01 : f32
    %8 = vector.broadcast %cst_6 : f32 to vector<256x128xf32>
    %9 = arith.mulf %8, %5 : vector<256x128xf32>
    %10 = arith.select %7, %5, %9 : vector<256x128xi1>, vector<256x128xf32>
    %11 = arith.truncf %10 : vector<256x128xf32> to vector<256x128xbf16>
    %c0_7 = arith.constant 0 : index
    %c0_8 = arith.constant 0 : index
    %12 = vector.load %arg4[%c0_7, %c0_8] : memref<256x128xbf16, #tpu.memory_space<vmem>>, vector<256x128xbf16>
    tpu.vector_store %arg4[%c0_7, %c0_8], %11 {strides = array<i32>} : memref<256x128xbf16, #tpu.memory_space<vmem>>, vector<256x128xbf16>,
    return
  }
  func.func @transform_0(%arg0: i32) -> (i32, i32) {
    %c0_i32 = arith.constant 0 : i32
    %c0_i32_0 = arith.constant 0 : i32
    return %arg0, %c0_i32 : i32, i32
  }
  func.func @transform_1(%arg0: i32) -> (i32, i32) {
    %c0_i32 = arith.constant 0 : i32
    %c0_i32_0 = arith.constant 0 : i32
    %c0_i32_1 = arith.constant 0 : i32
    return %c0_i32, %c0_i32_0 : i32, i32
  }
  func.func @transform_2(%arg0: i32) -> (i32, i32) {
    %c0_i32 = arith.constant 0 : i32
    %c0_i32_0 = arith.constant 0 : i32
    %c0_i32_1 = arith.constant 0 : i32
    return %c0_i32, %c0_i32_0 : i32, i32
  }
  func.func @transform_3(%arg0: i32) -> (i32, i32) {
    %c0_i32 = arith.constant 0 : i32
    %c0_i32_0 = arith.constant 0 : i32
    return %arg0, %c0_i32 : i32, i32
  }
}

module attributes {stable_mosaic.version = 11 : i64} {
  func.func @_conv_block_kernel(%arg0: i32, %arg1: memref<64x1152xbf16, #tpu.memory_space<vmem>>, %arg2: memref<1152x128xbf16, #tpu.memory_space<vmem>>, %arg3: memref<1x128xf32, #tpu.memory_space<vmem>>, %arg4: memref<64x128xbf16, #tpu.memory_space<vmem>>) attributes {dimension_semantics = [#tpu.dimension_semantics<parallel>], iteration_bounds = array<i64: 1>, scalar_prefetch = 0 : i64, scratch_operands = 0 : i64, tpu.core_type = #tpu.core_type<tc>, window_params = [{transform_indices = @transform_0, window_bounds = array<i64: 64, 1152>}, {pipeline_mode = #tpu.pipeline_mode<synchronous>, transform_indices = @transform_1, window_bounds = array<i64: 1152, 128>}, {pipeline_mode = #tpu.pipeline_mode<synchronous>, transform_indices = @transform_2, window_bounds = array<i64: 1, 128>}, {transform_indices = @transform_3, window_bounds = array<i64: 64, 128>}]} {
    %c0 = arith.constant 0 : index
    %c0_0 = arith.constant 0 : index
    %0 = vector.load %arg1[%c0, %c0_0] : memref<64x1152xbf16, #tpu.memory_space<vmem>>, vector<64x1152xbf16>
    %c0_1 = arith.constant 0 : index
    %c0_2 = arith.constant 0 : index
    %1 = vector.load %arg2[%c0_1, %c0_2] : memref<1152x128xbf16, #tpu.memory_space<vmem>>, vector<1152x128xbf16>
    %cst = arith.constant dense<0.000000e+00> : vector<64x128xf32>
    %2 = tpu.matmul %0, %1, %cst {dimension_numbers = #tpu.dot_dimension_numbers<[1], [0], [0], [1], [0, 0, 1, 1], [], []>} : vector<64x1152xbf16>, vector<1152x128xbf16>, vector<64x128xf32> -> vector<64x128xf32>
    %c0_3 = arith.constant 0 : index
    %c0_4 = arith.constant 0 : index
    %3 = vector.load %arg3[%c0_3, %c0_4] : memref<1x128xf32, #tpu.memory_space<vmem>>, vector<1x128xf32>
    %4 = vector.broadcast %3 : vector<1x128xf32> to vector<64x128xf32>
    %5 = arith.addf %2, %4 : vector<64x128xf32>
    %cst_5 = arith.constant 0.000000e+00 : f32
    %6 = vector.broadcast %cst_5 : f32 to vector<64x128xf32>
    %7 = arith.cmpf oge, %5, %6 : vector<64x128xf32>
    %cst_6 = arith.constant 2.000000e-01 : f32
    %8 = vector.broadcast %cst_6 : f32 to vector<64x128xf32>
    %9 = arith.mulf %8, %5 : vector<64x128xf32>
    %10 = arith.select %7, %5, %9 : vector<64x128xi1>, vector<64x128xf32>
    %11 = arith.truncf %10 : vector<64x128xf32> to vector<64x128xbf16>
    %c0_7 = arith.constant 0 : index
    %c0_8 = arith.constant 0 : index
    %12 = vector.load %arg4[%c0_7, %c0_8] : memref<64x128xbf16, #tpu.memory_space<vmem>>, vector<64x128xbf16>
    tpu.vector_store %arg4[%c0_7, %c0_8], %11 {strides = array<i32>} : memref<64x128xbf16, #tpu.memory_space<vmem>>, vector<64x128xbf16>,
    return
  }
  func.func @transform_0(%arg0: i32) -> (i32, i32) {
    %c0_i32 = arith.constant 0 : i32
    %c0_i32_0 = arith.constant 0 : i32
    return %arg0, %c0_i32 : i32, i32
  }
  func.func @transform_1(%arg0: i32) -> (i32, i32) {
    %c0_i32 = arith.constant 0 : i32
    %c0_i32_0 = arith.constant 0 : i32
    %c0_i32_1 = arith.constant 0 : i32
    return %c0_i32, %c0_i32_0 : i32, i32
  }
  func.func @transform_2(%arg0: i32) -> (i32, i32) {
    %c0_i32 = arith.constant 0 : i32
    %c0_i32_0 = arith.constant 0 : i32
    %c0_i32_1 = arith.constant 0 : i32
    return %c0_i32, %c0_i32_0 : i32, i32
  }
  func.func @transform_3(%arg0: i32) -> (i32, i32) {
    %c0_i32 = arith.constant 0 : i32
    %c0_i32_0 = arith.constant 0 : i32
    return %arg0, %c0_i32 : i32, i32
  }
}

module attributes {stable_mosaic.version = 11 : i64} {
  func.func @_conv_head_kernel(%arg0: i32, %arg1: memref<4x4x1152xbf16, #tpu.memory_space<vmem>>, %arg2: memref<1152x128xbf16, #tpu.memory_space<vmem>>, %arg3: memref<1x128xf32, #tpu.memory_space<vmem>>, %arg4: memref<4x128x128xbf16, #tpu.memory_space<vmem>>, %arg5: memref<1x128xf32, #tpu.memory_space<vmem>>, %arg6: memref<4x128xf32, #tpu.memory_space<vmem>>) attributes {dimension_semantics = [#tpu.dimension_semantics<arbitrary>], iteration_bounds = array<i64: 1>, scalar_prefetch = 0 : i64, scratch_operands = 0 : i64, tpu.core_type = #tpu.core_type<tc>, window_params = [{pipeline_mode = #tpu.pipeline_mode<synchronous>, transform_indices = @transform_0, window_bounds = array<i64: 4, 4, 1152>}, {pipeline_mode = #tpu.pipeline_mode<synchronous>, transform_indices = @transform_1, window_bounds = array<i64: 1152, 128>}, {pipeline_mode = #tpu.pipeline_mode<synchronous>, transform_indices = @transform_2, window_bounds = array<i64: 1, 128>}, {pipeline_mode = #tpu.pipeline_mode<synchronous>, transform_indices = @transform_3, window_bounds = array<i64: 4, 128, 128>}, {pipeline_mode = #tpu.pipeline_mode<synchronous>, transform_indices = @transform_4, window_bounds = array<i64: 1, 128>}, {pipeline_mode = #tpu.pipeline_mode<synchronous>, transform_indices = @transform_5, window_bounds = array<i64: 4, 128>}]} {
    %cst = arith.constant 0.000000e+00 : f32
    %0 = vector.broadcast %cst : f32 to vector<4x128xf32>
    %c0 = arith.constant 0 : index
    %c0_0 = arith.constant 0 : index
    %c0_1 = arith.constant 0 : index
    %1 = vector.load %arg1[%c0, %c0_0, %c0_1] : memref<4x4x1152xbf16, #tpu.memory_space<vmem>>, vector<1x4x1152xbf16>
    %2 = vector.shape_cast %1 : vector<1x4x1152xbf16> to vector<4x1152xbf16>
    %c0_2 = arith.constant 0 : index
    %c0_3 = arith.constant 0 : index
    %3 = vector.load %arg2[%c0_2, %c0_3] : memref<1152x128xbf16, #tpu.memory_space<vmem>>, vector<1152x128xbf16>
    %cst_4 = arith.constant dense<0.000000e+00> : vector<4x128xf32>
    %4 = tpu.matmul %2, %3, %cst_4 {dimension_numbers = #tpu.dot_dimension_numbers<[1], [0], [0], [1], [0, 0, 1, 1], [], []>} : vector<4x1152xbf16>, vector<1152x128xbf16>, vector<4x128xf32> -> vector<4x128xf32>
    %c0_5 = arith.constant 0 : index
    %c0_6 = arith.constant 0 : index
    %5 = vector.load %arg3[%c0_5, %c0_6] : memref<1x128xf32, #tpu.memory_space<vmem>>, vector<1x128xf32>
    %6 = vector.broadcast %5 : vector<1x128xf32> to vector<4x128xf32>
    %7 = arith.addf %4, %6 : vector<4x128xf32>
    %cst_7 = arith.constant 0.000000e+00 : f32
    %8 = vector.broadcast %cst_7 : f32 to vector<4x128xf32>
    %9 = arith.cmpf oge, %7, %8 : vector<4x128xf32>
    %cst_8 = arith.constant 2.000000e-01 : f32
    %10 = vector.broadcast %cst_8 : f32 to vector<4x128xf32>
    %11 = arith.mulf %10, %7 : vector<4x128xf32>
    %12 = arith.select %9, %7, %11 : vector<4x128xi1>, vector<4x128xf32>
    %13 = arith.truncf %12 : vector<4x128xf32> to vector<4x128xbf16>
    %c0_9 = arith.constant 0 : index
    %c0_10 = arith.constant 0 : index
    %c0_11 = arith.constant 0 : index
    %14 = vector.load %arg4[%c0_9, %c0_10, %c0_11] : memref<4x128x128xbf16, #tpu.memory_space<vmem>>, vector<1x128x128xbf16>
    %15 = vector.shape_cast %14 : vector<1x128x128xbf16> to vector<128x128xbf16>
    %cst_12 = arith.constant dense<0.000000e+00> : vector<4x128xf32>
    %16 = tpu.matmul %13, %15, %cst_12 {dimension_numbers = #tpu.dot_dimension_numbers<[1], [0], [0], [1], [0, 0, 1, 1], [], []>} : vector<4x128xbf16>, vector<128x128xbf16>, vector<4x128xf32> -> vector<4x128xf32>
    %17 = arith.addf %0, %16 : vector<4x128xf32>
    %c1 = arith.constant 1 : index
    %c0_13 = arith.constant 0 : index
    %c0_14 = arith.constant 0 : index
    %18 = vector.load %arg1[%c1, %c0_13, %c0_14] : memref<4x4x1152xbf16, #tpu.memory_space<vmem>>, vector<1x4x1152xbf16>
    %19 = vector.shape_cast %18 : vector<1x4x1152xbf16> to vector<4x1152xbf16>
    %c0_15 = arith.constant 0 : index
    %c0_16 = arith.constant 0 : index
    %20 = vector.load %arg2[%c0_15, %c0_16] : memref<1152x128xbf16, #tpu.memory_space<vmem>>, vector<1152x128xbf16>
    %cst_17 = arith.constant dense<0.000000e+00> : vector<4x128xf32>
    %21 = tpu.matmul %19, %20, %cst_17 {dimension_numbers = #tpu.dot_dimension_numbers<[1], [0], [0], [1], [0, 0, 1, 1], [], []>} : vector<4x1152xbf16>, vector<1152x128xbf16>, vector<4x128xf32> -> vector<4x128xf32>
    %c0_18 = arith.constant 0 : index
    %c0_19 = arith.constant 0 : index
    %22 = vector.load %arg3[%c0_18, %c0_19] : memref<1x128xf32, #tpu.memory_space<vmem>>, vector<1x128xf32>
    %23 = vector.broadcast %22 : vector<1x128xf32> to vector<4x128xf32>
    %24 = arith.addf %21, %23 : vector<4x128xf32>
    %cst_20 = arith.constant 0.000000e+00 : f32
    %25 = vector.broadcast %cst_20 : f32 to vector<4x128xf32>
    %26 = arith.cmpf oge, %24, %25 : vector<4x128xf32>
    %cst_21 = arith.constant 2.000000e-01 : f32
    %27 = vector.broadcast %cst_21 : f32 to vector<4x128xf32>
    %28 = arith.mulf %27, %24 : vector<4x128xf32>
    %29 = arith.select %26, %24, %28 : vector<4x128xi1>, vector<4x128xf32>
    %30 = arith.truncf %29 : vector<4x128xf32> to vector<4x128xbf16>
    %c1_22 = arith.constant 1 : index
    %c0_23 = arith.constant 0 : index
    %c0_24 = arith.constant 0 : index
    %31 = vector.load %arg4[%c1_22, %c0_23, %c0_24] : memref<4x128x128xbf16, #tpu.memory_space<vmem>>, vector<1x128x128xbf16>
    %32 = vector.shape_cast %31 : vector<1x128x128xbf16> to vector<128x128xbf16>
    %cst_25 = arith.constant dense<0.000000e+00> : vector<4x128xf32>
    %33 = tpu.matmul %30, %32, %cst_25 {dimension_numbers = #tpu.dot_dimension_numbers<[1], [0], [0], [1], [0, 0, 1, 1], [], []>} : vector<4x128xbf16>, vector<128x128xbf16>, vector<4x128xf32> -> vector<4x128xf32>
    %34 = arith.addf %17, %33 : vector<4x128xf32>
    %c2 = arith.constant 2 : index
    %c0_26 = arith.constant 0 : index
    %c0_27 = arith.constant 0 : index
    %35 = vector.load %arg1[%c2, %c0_26, %c0_27] : memref<4x4x1152xbf16, #tpu.memory_space<vmem>>, vector<1x4x1152xbf16>
    %36 = vector.shape_cast %35 : vector<1x4x1152xbf16> to vector<4x1152xbf16>
    %c0_28 = arith.constant 0 : index
    %c0_29 = arith.constant 0 : index
    %37 = vector.load %arg2[%c0_28, %c0_29] : memref<1152x128xbf16, #tpu.memory_space<vmem>>, vector<1152x128xbf16>
    %cst_30 = arith.constant dense<0.000000e+00> : vector<4x128xf32>
    %38 = tpu.matmul %36, %37, %cst_30 {dimension_numbers = #tpu.dot_dimension_numbers<[1], [0], [0], [1], [0, 0, 1, 1], [], []>} : vector<4x1152xbf16>, vector<1152x128xbf16>, vector<4x128xf32> -> vector<4x128xf32>
    %c0_31 = arith.constant 0 : index
    %c0_32 = arith.constant 0 : index
    %39 = vector.load %arg3[%c0_31, %c0_32] : memref<1x128xf32, #tpu.memory_space<vmem>>, vector<1x128xf32>
    %40 = vector.broadcast %39 : vector<1x128xf32> to vector<4x128xf32>
    %41 = arith.addf %38, %40 : vector<4x128xf32>
    %cst_33 = arith.constant 0.000000e+00 : f32
    %42 = vector.broadcast %cst_33 : f32 to vector<4x128xf32>
    %43 = arith.cmpf oge, %41, %42 : vector<4x128xf32>
    %cst_34 = arith.constant 2.000000e-01 : f32
    %44 = vector.broadcast %cst_34 : f32 to vector<4x128xf32>
    %45 = arith.mulf %44, %41 : vector<4x128xf32>
    %46 = arith.select %43, %41, %45 : vector<4x128xi1>, vector<4x128xf32>
    %47 = arith.truncf %46 : vector<4x128xf32> to vector<4x128xbf16>
    %c2_35 = arith.constant 2 : index
    %c0_36 = arith.constant 0 : index
    %c0_37 = arith.constant 0 : index
    %48 = vector.load %arg4[%c2_35, %c0_36, %c0_37] : memref<4x128x128xbf16, #tpu.memory_space<vmem>>, vector<1x128x128xbf16>
    %49 = vector.shape_cast %48 : vector<1x128x128xbf16> to vector<128x128xbf16>
    %cst_38 = arith.constant dense<0.000000e+00> : vector<4x128xf32>
    %50 = tpu.matmul %47, %49, %cst_38 {dimension_numbers = #tpu.dot_dimension_numbers<[1], [0], [0], [1], [0, 0, 1, 1], [], []>} : vector<4x128xbf16>, vector<128x128xbf16>, vector<4x128xf32> -> vector<4x128xf32>
    %51 = arith.addf %34, %50 : vector<4x128xf32>
    %c3 = arith.constant 3 : index
    %c0_39 = arith.constant 0 : index
    %c0_40 = arith.constant 0 : index
    %52 = vector.load %arg1[%c3, %c0_39, %c0_40] : memref<4x4x1152xbf16, #tpu.memory_space<vmem>>, vector<1x4x1152xbf16>
    %53 = vector.shape_cast %52 : vector<1x4x1152xbf16> to vector<4x1152xbf16>
    %c0_41 = arith.constant 0 : index
    %c0_42 = arith.constant 0 : index
    %54 = vector.load %arg2[%c0_41, %c0_42] : memref<1152x128xbf16, #tpu.memory_space<vmem>>, vector<1152x128xbf16>
    %cst_43 = arith.constant dense<0.000000e+00> : vector<4x128xf32>
    %55 = tpu.matmul %53, %54, %cst_43 {dimension_numbers = #tpu.dot_dimension_numbers<[1], [0], [0], [1], [0, 0, 1, 1], [], []>} : vector<4x1152xbf16>, vector<1152x128xbf16>, vector<4x128xf32> -> vector<4x128xf32>
    %c0_44 = arith.constant 0 : index
    %c0_45 = arith.constant 0 : index
    %56 = vector.load %arg3[%c0_44, %c0_45] : memref<1x128xf32, #tpu.memory_space<vmem>>, vector<1x128xf32>
    %57 = vector.broadcast %56 : vector<1x128xf32> to vector<4x128xf32>
    %58 = arith.addf %55, %57 : vector<4x128xf32>
    %cst_46 = arith.constant 0.000000e+00 : f32
    %59 = vector.broadcast %cst_46 : f32 to vector<4x128xf32>
    %60 = arith.cmpf oge, %58, %59 : vector<4x128xf32>
    %cst_47 = arith.constant 2.000000e-01 : f32
    %61 = vector.broadcast %cst_47 : f32 to vector<4x128xf32>
    %62 = arith.mulf %61, %58 : vector<4x128xf32>
    %63 = arith.select %60, %58, %62 : vector<4x128xi1>, vector<4x128xf32>
    %64 = arith.truncf %63 : vector<4x128xf32> to vector<4x128xbf16>
    %c3_48 = arith.constant 3 : index
    %c0_49 = arith.constant 0 : index
    %c0_50 = arith.constant 0 : index
    %65 = vector.load %arg4[%c3_48, %c0_49, %c0_50] : memref<4x128x128xbf16, #tpu.memory_space<vmem>>, vector<1x128x128xbf16>
    %66 = vector.shape_cast %65 : vector<1x128x128xbf16> to vector<128x128xbf16>
    %cst_51 = arith.constant dense<0.000000e+00> : vector<4x128xf32>
    %67 = tpu.matmul %64, %66, %cst_51 {dimension_numbers = #tpu.dot_dimension_numbers<[1], [0], [0], [1], [0, 0, 1, 1], [], []>} : vector<4x128xbf16>, vector<128x128xbf16>, vector<4x128xf32> -> vector<4x128xf32>
    %68 = arith.addf %51, %67 : vector<4x128xf32>
    %c0_52 = arith.constant 0 : index
    %c0_53 = arith.constant 0 : index
    %69 = vector.load %arg5[%c0_52, %c0_53] : memref<1x128xf32, #tpu.memory_space<vmem>>, vector<1x128xf32>
    %70 = vector.broadcast %69 : vector<1x128xf32> to vector<4x128xf32>
    %71 = arith.addf %68, %70 : vector<4x128xf32>
    %c0_54 = arith.constant 0 : index
    %c0_55 = arith.constant 0 : index
    %72 = vector.load %arg6[%c0_54, %c0_55] : memref<4x128xf32, #tpu.memory_space<vmem>>, vector<4x128xf32>
    tpu.vector_store %arg6[%c0_54, %c0_55], %71 {strides = array<i32>} : memref<4x128xf32, #tpu.memory_space<vmem>>, vector<4x128xf32>,
    return
  }
  func.func @transform_0(%arg0: i32) -> (i32, i32, i32) {
    %c0_i32 = arith.constant 0 : i32
    %c0_i32_0 = arith.constant 0 : i32
    %c0_i32_1 = arith.constant 0 : i32
    %c0_i32_2 = arith.constant 0 : i32
    return %c0_i32, %c0_i32_0, %c0_i32_1 : i32, i32, i32
  }
  func.func @transform_1(%arg0: i32) -> (i32, i32) {
    %c0_i32 = arith.constant 0 : i32
    %c0_i32_0 = arith.constant 0 : i32
    %c0_i32_1 = arith.constant 0 : i32
    return %c0_i32, %c0_i32_0 : i32, i32
  }
  func.func @transform_2(%arg0: i32) -> (i32, i32) {
    %c0_i32 = arith.constant 0 : i32
    %c0_i32_0 = arith.constant 0 : i32
    %c0_i32_1 = arith.constant 0 : i32
    return %c0_i32, %c0_i32_0 : i32, i32
  }
  func.func @transform_3(%arg0: i32) -> (i32, i32, i32) {
    %c0_i32 = arith.constant 0 : i32
    %c0_i32_0 = arith.constant 0 : i32
    %c0_i32_1 = arith.constant 0 : i32
    %c0_i32_2 = arith.constant 0 : i32
    return %c0_i32, %c0_i32_0, %c0_i32_1 : i32, i32, i32
  }
  func.func @transform_4(%arg0: i32) -> (i32, i32) {
    %c0_i32 = arith.constant 0 : i32
    %c0_i32_0 = arith.constant 0 : i32
    %c0_i32_1 = arith.constant 0 : i32
    return %c0_i32, %c0_i32_0 : i32, i32
  }
  func.func @transform_5(%arg0: i32) -> (i32, i32) {
    %c0_i32 = arith.constant 0 : i32
    %c0_i32_0 = arith.constant 0 : i32
    %c0_i32_1 = arith.constant 0 : i32
    return %c0_i32, %c0_i32_0 : i32, i32
  }
}

</mosaic_0001>

<llo_original>
// kernel: forward.4
$region0: #{forward.4}
  #allocation0 [shape = 'u32[]', space=smem, size = 0x4, offset = 0x4, fixed_abs, tag = 'smem constant byte address 0x4 - core index']
  #allocation1 [shape = 'u32[144,128]{1,0:T(1,128)}', space=vmem, size = 0x12000, scoped, tag = 'internal scratch']
  %s0 = inlined_call_operand.vmem [shape: bf16[1024,27], index: 0, kind: input, shape index: {}]
  %s1 = inlined_call_operand.vmem [shape: bf16[27,128], index: 1, kind: input, shape index: {}]
  %s2 = inlined_call_operand.vmem [shape: f32[1,128], index: 2, kind: input, shape index: {}]
  %s3 = inlined_call_operand.vmem [shape: bf16[1024,128], index: 3, kind: output, shape index: {}]
  %s4 = sld [smem:[#allocation0]]
  $region45: #{forward.4} parent=0
    _
  %s6 = ssub.s32 1, %s4
  %s7 = scalar_select 0, %s6, %s4
  loop: start=0, step=1, limit=4
  $region2: #{forward.4} parent=0 // loop_pre_header
    _
  $region3: #{forward.4} parent=0 // loop_header
    %s9 = sphi 0, %s13
    %p10 = scmp.ge.s32.totalorder %s9, 4
    %s19 = sphi 0, %s21
    %s22 = sphi 0, %s19
    %s23 = sphi 0, %s22
    %s39 = sphi 0, %s23
    %s43 = sphi 0, %s43
    %s45 = sphi 0, %s43
    %s46 = sphi 0, %s45
    %s60 = sphi 0, %s46
    %s64 = sphi 0, %s64
    %s66 = sphi 0, %s64
    %s67 = sphi 0, %s66
    %s81 = sphi 0, %s67
    %s87 = sphi 0, %s89
    %s90 = sphi 0, %s87
    %s91 = sphi 0, %s90
    %s107 = sphi 0, %s91
  $region4: #{forward.4} parent=0 // loop_header_branch
    %12 = sbr.rel (%p10) target = $region8
  $region5: #{forward.4} parent=0 // loop_body
    %s14 = ssub.s32 %s9, 1
    %s15 = ssub.s32 %s9, 2
    %s16 = sadd.s32 %s9, 1
    %s17 = ssub.s32 %s9, %s16
    %p18 = scmp.eq.s32.totalorder %s17, 0
    %s20 = sadd.s32 %s19, 1
    %s21 = scalar_select %p18, %s19, %s20
    %p24 = pneg %p18
    %p25 = scmp.eq.s32.totalorder %s9, 1
    %p26 = por %p24, %p25
    %p27 = scmp.ne.s32.totalorder %s19, %s22
    %p28 = scmp.eq.s32.totalorder %s9, 0
    %p29 = por %p27, %p28
    %p30 = scmp.ne.s32.totalorder %s19, %s22
    %p31 = scmp.eq.s32.totalorder %s14, 1
    %p32 = por %p30, %p31
    %p33 = scmp.ne.s32.totalorder %s22, %s23
    %p34 = scmp.eq.s32.totalorder %s14, 0
    %p35 = por %p33, %p34
    %p36 = scmp.ne.s32.totalorder %s22, %s23
    %p37 = scmp.eq.s32.totalorder %s15, 1
    %p38 = por %p36, %p37
    %p40 = scmp.ne.s32.totalorder %s23, %s39
    %p41 = scmp.eq.s32.totalorder %s15, 0
    %p42 = por %p40, %p41
    %s44 = sadd.s32 %s43, 1
    %p47 = scmp.eq.s32.totalorder %s9, 1
    %p48 = scmp.ne.s32.totalorder %s43, %s45
    %p49 = scmp.eq.s32.totalorder %s9, 0
    %p50 = por %p48, %p49
    %p51 = scmp.ne.s32.totalorder %s43, %s45
    %p52 = scmp.eq.s32.totalorder %s14, 1
    %p53 = por %p51, %p52
    %p54 = scmp.ne.s32.totalorder %s45, %s46
    %p55 = scmp.eq.s32.totalorder %s14, 0
    %p56 = por %p54, %p55
    %p57 = scmp.ne.s32.totalorder %s45, %s46
    %p58 = scmp.eq.s32.totalorder %s15, 1
    %p59 = por %p57, %p58
    %p61 = scmp.ne.s32.totalorder %s46, %s60
    %p62 = scmp.eq.s32.totalorder %s15, 0
    %p63 = por %p61, %p62
    %s65 = sadd.s32 %s64, 1
    %p68 = scmp.eq.s32.totalorder %s9, 1
    %p69 = scmp.ne.s32.totalorder %s64, %s66
    %p70 = scmp.eq.s32.totalorder %s9, 0
    %p71 = por %p69, %p70
    %p72 = scmp.ne.s32.totalorder %s64, %s66
    %p73 = scmp.eq.s32.totalorder %s14, 1
    %p74 = por %p72, %p73
    %p75 = scmp.ne.s32.totalorder %s66, %s67
    %p76 = scmp.eq.s32.totalorder %s14, 0
    %p77 = por %p75, %p76
    %p78 = scmp.ne.s32.totalorder %s66, %s67
    %p79 = scmp.eq.s32.totalorder %s15, 1
    %p80 = por %p78, %p79
    %p82 = scmp.ne.s32.totalorder %s67, %s81
    %p83 = scmp.eq.s32.totalorder %s15, 0
    %p84 = por %p82, %p83
    %s85 = ssub.s32 %s9, %s16
    %p86 = scmp.eq.s32.totalorder %s85, 0
    %s88 = sadd.s32 %s87, 1
    %s89 = scalar_select %p86, %s87, %s88
    %p92 = pneg %p86
    %p93 = scmp.eq.s32.totalorder %s9, 1
    %p94 = por %p92, %p93
    %p95 = scmp.ne.s32.totalorder %s87, %s90
    %p96 = scmp.eq.s32.totalorder %s9, 0
    %p97 = por %p95, %p96
    %p98 = scmp.ne.s32.totalorder %s87, %s90
    %p99 = scmp.eq.s32.totalorder %s14, 1
    %p100 = por %p98, %p99
    %p101 = scmp.ne.s32.totalorder %s90, %s91
    %p102 = scmp.eq.s32.totalorder %s14, 0
    %p103 = por %p101, %p102
    %p104 = scmp.ne.s32.totalorder %s90, %s91
    %p105 = scmp.eq.s32.totalorder %s15, 1
    %p106 = por %p104, %p105
    %p108 = scmp.ne.s32.totalorder %s91, %s107
    %p109 = scmp.eq.s32.totalorder %s15, 0
    %p110 = por %p108, %p109
    %p111 = scmp.le.s32.totalorder 1, %s9
    %p112 = scmp.lt.s32.totalorder %s9, 3
    %p113 = pnand %p111, %p112
    %p114 = pneg %p113
    // Predicated region
    $region9: #{forward.4} parent=5 // pred_check
      _
    $region10: #{forward.4} parent=5 // pred_check_branch
      %116 = sbr.rel (%p113) target = $region12
    $region11: #{forward.4} parent=5 // pred_region
      %s117 = ssub.s32 %s9, 1
      // Predicated region
      $region13: #{forward.4} parent=11 // pred_check
        %p118 = pneg %p56
      $region14: #{forward.4} parent=11 // pred_check_branch
        %120 = sbr.rel (%p118) target = $region16
      $region15: #{forward.4} parent=11 // pred_region
        _
      $region16: #{forward.4} parent=11 // pred_fallthru
        _
      // Predicated region
      $region17: #{forward.4} parent=11 // pred_check
        %p121 = pneg %p77
      $region18: #{forward.4} parent=11 // pred_check_branch
        %123 = sbr.rel (%p121) target = $region20
      $region19: #{forward.4} parent=11 // pred_region
        _
      $region20: #{forward.4} parent=11 // pred_fallthru
        _
    $region12: #{forward.4} parent=5 // pred_fallthru
      _
    %p124 = scmp.lt.s32.totalorder %s9, 2
    // Predicated region
    $region21: #{forward.4} parent=5 // pred_check
      %p125 = pneg %p124
    $region22: #{forward.4} parent=5 // pred_check_branch
      %127 = sbr.rel (%p125) target = $region24
    $region23: #{forward.4} parent=5 // pred_region
      // Predicated region
      $region25: #{forward.4} parent=23 // pred_check
        %p128 = pneg %p29
      $region26: #{forward.4} parent=23 // pred_check_branch
        %130 = sbr.rel (%p128) target = $region28
      $region27: #{forward.4} parent=23 // pred_region
        %s131 = smul.u32 64, %s9
        %p132 = scmp.lt.s32.totalorder %s131, 127
        %s133 = scalar_select %p132, %s131, 127
        %s134 = smul.addr %s133, 4
        %s135 = scalar_lea.vmem %s0, %s134
        %s136 = smul.u32 64, %s9
      $region28: #{forward.4} parent=23 // pred_fallthru
        _
    $region24: #{forward.4} parent=5 // pred_fallthru
      _
    %p137 = scmp.le.s32.totalorder 1, %s9
    %p138 = scmp.lt.s32.totalorder %s9, 3
    %p139 = pnand %p137, %p138
    %p140 = pneg %p139
    // Predicated region
    $region29: #{forward.4} parent=5 // pred_check
      _
    $region30: #{forward.4} parent=5 // pred_check_branch
      %142 = sbr.rel (%p139) target = $region32
    $region31: #{forward.4} parent=5 // pred_region
      %s143 = ssub.s32 %s9, 1
      %s144 = smul.u32 64, %s14
      %p145 = scmp.lt.s32.totalorder %s144, 127
      %s146 = scalar_select %p145, %s144, 127
      %s147 = smul.addr %s146, 4
      %s148 = scalar_lea.vmem %s0, %s147
      %p149 = pneg %p35
      %p150 = pneg %p32
      %p151 = pneg %p56
      %p152 = pneg %p53
      %p153 = pneg %p77
      %p154 = pneg %p74
      %p155 = pneg %p103
      %p156 = pneg %p100
      %s157 = smul.u32 64, %s14
      %p158 = scmp.lt.s32.totalorder %s157, 127
      %s159 = scalar_select %p158, %s157, 127
      %s160 = smul.addr %s159, 4
      %s161 = scalar_lea.vmem %s3, %s160
      %s162 = smul.u32 64, %s14
      %p163 = scmp.lt.s32.totalorder %s162, 127
      %s164 = scalar_select %p163, %s162, 127
      %s165 = smul.addr %s164, 4
      %s166 = scalar_lea.vmem %s0, %s165
      %s167 = smul.u32 64, %s14
      %s168 = smul.u32 64, %s14
      %p169 = scmp.lt.s32.totalorder %s168, 127
      %s170 = scalar_select %p169, %s168, 127
      %s171 = smul.addr %s170, 4
      %s172 = scalar_lea.vmem %s3, %s171
      %s173 = smul.u32 64, %s14
      %v175 = vld [vmem:[%s166] sm:$0xf]
      %v176 = vld [vmem:[%s166 + $0x4] sm:$0xf]
      %v177 = vld [vmem:[%s166 + $0x8] sm:$0xf]
      %v178 = vld [vmem:[%s166 + $0xc] sm:$0xf]
      %v179 = vld [vmem:[%s166 + $0x10] sm:$0xf]
      %v180 = vld [vmem:[%s166 + $0x14] sm:$0xf]
      %v181 = vld [vmem:[%s166 + $0x18] sm:$0xf]
      %v182 = vld [vmem:[%s166 + $0x1c] sm:$0xf]
      %v183 = vld [vmem:[%s166 + $0x20] sm:$0xf]
      %v184 = vld [vmem:[%s166 + $0x24] sm:$0xf]
      %v185 = vld [vmem:[%s166 + $0x28] sm:$0xf]
      %v186 = vld [vmem:[%s166 + $0x2c] sm:$0xf]
      %v187 = vld [vmem:[%s166 + $0x30] sm:$0xf]
      %v188 = vld [vmem:[%s166 + $0x34] sm:$0xf]
      %v189 = vld [vmem:[%s166 + $0x38] sm:$0xf]
      %v190 = vld [vmem:[%s166 + $0x3c] sm:$0xf]
      %v191 = vld [vmem:[%s166 + $0x40] sm:$0xf]
      %v192 = vld [vmem:[%s166 + $0x44] sm:$0xf]
      %v193 = vld [vmem:[%s166 + $0x48] sm:$0xf]
      %v194 = vld [vmem:[%s166 + $0x4c] sm:$0xf]
      %v195 = vld [vmem:[%s166 + $0x50] sm:$0xf]
      %v196 = vld [vmem:[%s166 + $0x54] sm:$0xf]
      %v197 = vld [vmem:[%s166 + $0x58] sm:$0xf]
      %v198 = vld [vmem:[%s166 + $0x5c] sm:$0xf]
      %v199 = vld [vmem:[%s166 + $0x60] sm:$0xf]
      %v200 = vld [vmem:[%s166 + $0x64] sm:$0xf]
      %v201 = vld [vmem:[%s166 + $0x68] sm:$0xf]
      %v202 = vld [vmem:[%s166 + $0x6c] sm:$0xf]
      %v203 = vld [vmem:[%s166 + $0x70] sm:$0xf]
      %v204 = vld [vmem:[%s166 + $0x74] sm:$0xf]
      %v205 = vld [vmem:[%s166 + $0x78] sm:$0xf]
      %v206 = vld [vmem:[%s166 + $0x7c] sm:$0xf]
      %v207 = vld [vmem:[%s166 + $0x80] sm:$0xf]
      %v208 = vld [vmem:[%s166 + $0x84] sm:$0xf]
      %v209 = vld [vmem:[%s166 + $0x88] sm:$0xf]
      %v210 = vld [vmem:[%s166 + $0x8c] sm:$0xf]
      %v211 = vld [vmem:[%s166 + $0x90] sm:$0xf]
      %v212 = vld [vmem:[%s166 + $0x94] sm:$0xf]
      %v213 = vld [vmem:[%s166 + $0x98] sm:$0xf]
      %v214 = vld [vmem:[%s166 + $0x9c] sm:$0xf]
      %v215 = vld [vmem:[%s166 + $0xa0] sm:$0xf]
      %v216 = vld [vmem:[%s166 + $0xa4] sm:$0xf]
      %v217 = vld [vmem:[%s166 + $0xa8] sm:$0xf]
      %v218 = vld [vmem:[%s166 + $0xac] sm:$0xf]
      %v219 = vld [vmem:[%s166 + $0xb0] sm:$0xf]
      %v220 = vld [vmem:[%s166 + $0xb4] sm:$0xf]
      %v221 = vld [vmem:[%s166 + $0xb8] sm:$0xf]
      %v222 = vld [vmem:[%s166 + $0xbc] sm:$0xf]
      %v223 = vld [vmem:[%s166 + $0xc0] sm:$0xf]
      %v224 = vld [vmem:[%s166 + $0xc4] sm:$0xf]
      %v225 = vld [vmem:[%s166 + $0xc8] sm:$0xf]
      %v226 = vld [vmem:[%s166 + $0xcc] sm:$0xf]
      %v227 = vld [vmem:[%s166 + $0xd0] sm:$0xf]
      %v228 = vld [vmem:[%s166 + $0xd4] sm:$0xf]
      %v229 = vld [vmem:[%s166 + $0xd8] sm:$0xf]
      %v230 = vld [vmem:[%s166 + $0xdc] sm:$0xf]
      %v231 = vld [vmem:[%s166 + $0xe0] sm:$0xf]
      %v232 = vld [vmem:[%s166 + $0xe4] sm:$0xf]
      %v233 = vld [vmem:[%s166 + $0xe8] sm:$0xf]
      %v234 = vld [vmem:[%s166 + $0xec] sm:$0xf]
      %v235 = vld [vmem:[%s166 + $0xf0] sm:$0xf]
      %v236 = vld [vmem:[%s166 + $0xf4] sm:$0xf]
      %v237 = vld [vmem:[%s166 + $0xf8] sm:$0xf]
      %v238 = vld [vmem:[%s166 + $0xfc] sm:$0xf]
      %v239 = vld [vmem:[%s1] sm:$0xf]
      %v240 = vld [vmem:[%s1 + $0x4] sm:$0xf]
      %v241 = vld [vmem:[%s1 + $0x8] sm:$0xf]
      %v242 = vld [vmem:[%s1 + $0xc] sm:$0x3]
      %v243 = vld [vmem:[%s2] sm:$0x1]
      %v245 = vlaneseq
      %v246 = vshrl.u32 %v245, 7
      %v247 = vsub.s32 0, %v246
      %v248 = vrot.slane %v243, %v247
      %v314 = vunpack.c.l.b16 %v175
      %v315 = vunpack.c.l.b16 %v176
      %v316 = vunpack.c.l.b16 %v177
      %v317 = vunpack.c.l.b16 %v178
      %v318 = vunpack.c.l.b16 %v179
      %v319 = vunpack.c.l.b16 %v180
      %v320 = vunpack.c.l.b16 %v181
      %v321 = vunpack.c.l.b16 %v182
      %v322 = vunpack.c.l.b16 %v183
      %v323 = vunpack.c.l.b16 %v184
      %v324 = vunpack.c.l.b16 %v185
      %v325 = vunpack.c.l.b16 %v186
      %v326 = vunpack.c.l.b16 %v187
      %v327 = vunpack.c.l.b16 %v188
      %v328 = vunpack.c.l.b16 %v189
      %v329 = vunpack.c.l.b16 %v190
      %v330 = vunpack.c.l.b16 %v191
      %v331 = vunpack.c.l.b16 %v192
      %v332 = vunpack.c.l.b16 %v193
      %v333 = vunpack.c.l.b16 %v194
      %v334 = vunpack.c.l.b16 %v195
      %v335 = vunpack.c.l.b16 %v196
      %v336 = vunpack.c.l.b16 %v197
      %v337 = vunpack.c.l.b16 %v198
      %v338 = vunpack.c.l.b16 %v199
      %v339 = vunpack.c.l.b16 %v200
      %v340 = vunpack.c.l.b16 %v201
      %v341 = vunpack.c.l.b16 %v202
      %v342 = vunpack.c.l.b16 %v203
      %v343 = vunpack.c.l.b16 %v204
      %v344 = vunpack.c.l.b16 %v205
      %v345 = vunpack.c.l.b16 %v206
      %v346 = vunpack.c.l.b16 %v207
      %v347 = vunpack.c.l.b16 %v208
      %v348 = vunpack.c.l.b16 %v209
      %v349 = vunpack.c.l.b16 %v210
      %v350 = vunpack.c.l.b16 %v211
      %v351 = vunpack.c.l.b16 %v212
      %v352 = vunpack.c.l.b16 %v213
      %v353 = vunpack.c.l.b16 %v214
      %v354 = vunpack.c.l.b16 %v215
      %v355 = vunpack.c.l.b16 %v216
      %v356 = vunpack.c.l.b16 %v217
      %v357 = vunpack.c.l.b16 %v218
      %v358 = vunpack.c.l.b16 %v219
      %v359 = vunpack.c.l.b16 %v220
      %v360 = vunpack.c.l.b16 %v221
      %v361 = vunpack.c.l.b16 %v222
      %v362 = vunpack.c.l.b16 %v223
      %v363 = vunpack.c.l.b16 %v224
      %v364 = vunpack.c.l.b16 %v225
      %v365 = vunpack.c.l.b16 %v226
      %v366 = vunpack.c.l.b16 %v227
      %v367 = vunpack.c.l.b16 %v228
      %v368 = vunpack.c.l.b16 %v229
      %v369 = vunpack.c.l.b16 %v230
      %v370 = vunpack.c.l.b16 %v231
      %v371 = vunpack.c.l.b16 %v232
      %v372 = vunpack.c.l.b16 %v233
      %v373 = vunpack.c.l.b16 %v234
      %v374 = vunpack.c.l.b16 %v235
      %v375 = vunpack.c.l.b16 %v236
      %v376 = vunpack.c.l.b16 %v237
      %v377 = vunpack.c.l.b16 %v238
      %v378 = vpack.c.b16 %v315, %v314
      %v379 = vpack.c.b16 %v317, %v316
      %v380 = vpack.c.b16 %v319, %v318
      %v381 = vpack.c.b16 %v321, %v320
      %v382 = vpack.c.b16 %v323, %v322
      %v383 = vpack.c.b16 %v325, %v324
      %v384 = vpack.c.b16 %v327, %v326
      %v385 = vpack.c.b16 %v329, %v328
      %v386 = vpack.c.b16 %v331, %v330
      %v387 = vpack.c.b16 %v333, %v332
      %v388 = vpack.c.b16 %v335, %v334
      %v389 = vpack.c.b16 %v337, %v336
      %v390 = vpack.c.b16 %v339, %v338
      %v391 = vpack.c.b16 %v341, %v340
      %v392 = vpack.c.b16 %v343, %v342
      %v393 = vpack.c.b16 %v345, %v344
      %v394 = vpack.c.b16 %v347, %v346
      %v395 = vpack.c.b16 %v349, %v348
      %v396 = vpack.c.b16 %v351, %v350
      %v397 = vpack.c.b16 %v353, %v352
      %v398 = vpack.c.b16 %v355, %v354
      %v399 = vpack.c.b16 %v357, %v356
      %v400 = vpack.c.b16 %v359, %v358
      %v401 = vpack.c.b16 %v361, %v360
      %v402 = vpack.c.b16 %v363, %v362
      %v403 = vpack.c.b16 %v365, %v364
      %v404 = vpack.c.b16 %v367, %v366
      %v405 = vpack.c.b16 %v369, %v368
      %v406 = vpack.c.b16 %v371, %v370
      %v407 = vpack.c.b16 %v373, %v372
      %v408 = vpack.c.b16 %v375, %v374
      %v409 = vpack.c.b16 %v377, %v376
      %v414 = vunpack.c.l.b16 %v239
      %v415 = vunpack.c.l.b16 %v240
      %v416 = vunpack.c.l.b16 %v241
      %v417 = vunpack.c.l.b16 %v242
      %v418 = vpack.c.b16 %v415, %v414
      %v419 = vpack.c.b16 %v417, %v416
      %vm421 = vcmask 220160
      %v423 = vsel %vm421, %v378, 0
      %v426 = vsel %vm421, %v379, 0
      %v429 = vsel %vm421, %v380, 0
      %v432 = vsel %vm421, %v381, 0
      %v435 = vsel %vm421, %v382, 0
      %v438 = vsel %vm421, %v383, 0
      %v441 = vsel %vm421, %v384, 0
      %v444 = vsel %vm421, %v385, 0
      %v447 = vsel %vm421, %v386, 0
      %v450 = vsel %vm421, %v387, 0
      %v453 = vsel %vm421, %v388, 0
      %v456 = vsel %vm421, %v389, 0
      %v459 = vsel %vm421, %v390, 0
      %v462 = vsel %vm421, %v391, 0
      %v465 = vsel %vm421, %v392, 0
      %v468 = vsel %vm421, %v393, 0
      %v471 = vsel %vm421, %v394, 0
      %v474 = vsel %vm421, %v395, 0
      %v477 = vsel %vm421, %v396, 0
      %v480 = vsel %vm421, %v397, 0
      %v483 = vsel %vm421, %v398, 0
      %v486 = vsel %vm421, %v399, 0
      %v489 = vsel %vm421, %v400, 0
      %v492 = vsel %vm421, %v401, 0
      %v495 = vsel %vm421, %v402, 0
      %v498 = vsel %vm421, %v403, 0
      %v501 = vsel %vm421, %v404, 0
      %v504 = vsel %vm421, %v405, 0
      %v507 = vsel %vm421, %v406, 0
      %v510 = vsel %vm421, %v407, 0
      %v513 = vsel %vm421, %v408, 0
      %v516 = vsel %vm421, %v409, 0
      %vm518 = vcmask 1044480
      %vm519 = vcmask 1045504
      %v520 = vsel %vm518, 4294967295, 65535
      %v521 = vsel %vm519, %v520, 0
      %v523 = vand.u32 %v419, %v521
      %525 = vmatprep.subr.bf16.mxu0 0
      %526 = vmatpush1.bf16.msra.mxu0 %v418
      %527 = vmatprep.subr.bf16.mxu0 0
      %528 = vmatpush1.bf16.msra.mxu0 %v523
      %529 = vmatprep.subr.bf16.mxu0 0
      %530 = vmatpush1.bf16.msra.mxu0 0
      %531 = vmatprep.subr.bf16.mxu0 0
      %532 = vmatpush1.bf16.msra.mxu0 0
      %533 = vmatprep.subr.bf16.mxu0 0
      %534 = vmatpush1.bf16.msra.mxu0 0
      %535 = vmatprep.subr.bf16.mxu0 0
      %536 = vmatpush1.bf16.msra.mxu0 0
      %537 = vmatprep.subr.bf16.mxu0 0
      %538 = vmatpush1.bf16.msra.mxu0 0
      %539 = vmatprep.subr.bf16.mxu0 0
      %540 = vmatpush1.bf16.msra.mxu0 0
      %541 = vmatprep.subr.bf16.mxu0 0
      %542 = vmatpush1.bf16.msra.mxu0 0
      %543 = vmatprep.subr.bf16.mxu0 0
      %544 = vmatpush1.bf16.msra.mxu0 0
      %545 = vmatprep.subr.bf16.mxu0 0
      %546 = vmatpush1.bf16.msra.mxu0 0
      %547 = vmatprep.subr.bf16.mxu0 0
      %548 = vmatpush1.bf16.msra.mxu0 0
      %549 = vmatprep.subr.bf16.mxu0 0
      %550 = vmatpush1.bf16.msra.mxu0 0
      %551 = vmatprep.subr.bf16.mxu0 0
      %552 = vmatpush1.bf16.msra.mxu0 0
      %553 = vmatprep.subr.bf16.mxu0 0
      %554 = vmatpush1.bf16.msra.mxu0 0
      %555 = vmatprep.subr.bf16.mxu0 0
      %556 = vmatpush1.bf16.msra.mxu0 0
      %557 = vmatprep.mubr.bf16.mxu0 0
      %558 = vmatmul.mubr.bf16.gmra.mrb[0].mxu0 %v423
      %v559 = vpop.f32.mrb[0].mxu0
      %v560 = vadd.f32 %v248, %v559
      %v561 = vpop.f32.mrb[0].mxu0
      %v562 = vpop.f32.mrb[0].mxu0
      %v563 = vadd.f32 %v248, %v562
      %v564 = vpop.f32.mrb[0].mxu0
      %565 = vmatprep.mubr.bf16.mxu0 0
      %566 = vmatmul.mubr.bf16.gmra.mrb[0].mxu0 %v426
      %v567 = vpop.f32.mrb[0].mxu0
      %v568 = vadd.f32 %v248, %v567
      %v569 = vpop.f32.mrb[0].mxu0
      %v570 = vpop.f32.mrb[0].mxu0
      %v571 = vadd.f32 %v248, %v570
      %v572 = vpop.f32.mrb[0].mxu0
      %573 = vmatprep.mubr.bf16.mxu0 0
      %574 = vmatmul.mubr.bf16.gmra.mrb[0].mxu0 %v429
      %v575 = vpop.f32.mrb[0].mxu0
      %v576 = vadd.f32 %v248, %v575
      %v577 = vpop.f32.mrb[0].mxu0
      %v578 = vpop.f32.mrb[0].mxu0
      %v579 = vadd.f32 %v248, %v578
      %v580 = vpop.f32.mrb[0].mxu0
      %581 = vmatprep.mubr.bf16.mxu0 0
      %582 = vmatmul.mubr.bf16.gmra.mrb[0].mxu0 %v432
      %v583 = vpop.f32.mrb[0].mxu0
      %v584 = vadd.f32 %v248, %v583
      %v585 = vpop.f32.mrb[0].mxu0
      %v586 = vpop.f32.mrb[0].mxu0
      %v587 = vadd.f32 %v248, %v586
      %v588 = vpop.f32.mrb[0].mxu0
      %589 = vmatprep.mubr.bf16.mxu0 0
      %590 = vmatmul.mubr.bf16.gmra.mrb[0].mxu0 %v435
      %v591 = vpop.f32.mrb[0].mxu0
      %v592 = vadd.f32 %v248, %v591
      %v593 = vpop.f32.mrb[0].mxu0
      %v594 = vpop.f32.mrb[0].mxu0
      %v595 = vadd.f32 %v248, %v594
      %v596 = vpop.f32.mrb[0].mxu0
      %597 = vmatprep.mubr.bf16.mxu0 0
      %598 = vmatmul.mubr.bf16.gmra.mrb[0].mxu0 %v438
      %v599 = vpop.f32.mrb[0].mxu0
      %v600 = vadd.f32 %v248, %v599
      %v601 = vpop.f32.mrb[0].mxu0
      %v602 = vpop.f32.mrb[0].mxu0
      %v603 = vadd.f32 %v248, %v602
      %v604 = vpop.f32.mrb[0].mxu0
      %605 = vmatprep.mubr.bf16.mxu0 0
      %606 = vmatmul.mubr.bf16.gmra.mrb[0].mxu0 %v441
      %v607 = vpop.f32.mrb[0].mxu0
      %v608 = vadd.f32 %v248, %v607
      %v609 = vpop.f32.mrb[0].mxu0
      %v610 = vpop.f32.mrb[0].mxu0
      %v611 = vadd.f32 %v248, %v610
      %v612 = vpop.f32.mrb[0].mxu0
      %613 = vmatprep.mubr.bf16.mxu0 0
      %614 = vmatmul.mubr.bf16.gmra.mrb[0].mxu0 %v444
      %v615 = vpop.f32.mrb[0].mxu0
      %v616 = vadd.f32 %v248, %v615
      %v617 = vpop.f32.mrb[0].mxu0
      %v618 = vpop.f32.mrb[0].mxu0
      %v619 = vadd.f32 %v248, %v618
      %v620 = vpop.f32.mrb[0].mxu0
      %621 = vmatprep.mubr.bf16.mxu0 0
      %622 = vmatmul.mubr.bf16.gmra.mrb[0].mxu0 %v447
      %v623 = vpop.f32.mrb[0].mxu0
      %v624 = vadd.f32 %v248, %v623
      %v625 = vpop.f32.mrb[0].mxu0
      %v626 = vpop.f32.mrb[0].mxu0
      %v627 = vadd.f32 %v248, %v626
      %v628 = vpop.f32.mrb[0].mxu0
      %629 = vmatprep.mubr.bf16.mxu0 0
      %630 = vmatmul.mubr.bf16.gmra.mrb[0].mxu0 %v450
      %v631 = vpop.f32.mrb[0].mxu0
      %v632 = vadd.f32 %v248, %v631
      %v633 = vpop.f32.mrb[0].mxu0
      %v634 = vpop.f32.mrb[0].mxu0
      %v635 = vadd.f32 %v248, %v634
      %v636 = vpop.f32.mrb[0].mxu0
      %637 = vmatprep.mubr.bf16.mxu0 0
      %638 = vmatmul.mubr.bf16.gmra.mrb[0].mxu0 %v453
      %v639 = vpop.f32.mrb[0].mxu0
      %v640 = vadd.f32 %v248, %v639
      %v641 = vpop.f32.mrb[0].mxu0
      %v642 = vpop.f32.mrb[0].mxu0
      %v643 = vadd.f32 %v248, %v642
      %v644 = vpop.f32.mrb[0].mxu0
      %645 = vmatprep.mubr.bf16.mxu0 0
      %646 = vmatmul.mubr.bf16.gmra.mrb[0].mxu0 %v456
      %v647 = vpop.f32.mrb[0].mxu0
      %v648 = vadd.f32 %v248, %v647
      %v649 = vpop.f32.mrb[0].mxu0
      %v650 = vpop.f32.mrb[0].mxu0
      %v651 = vadd.f32 %v248, %v650
      %v652 = vpop.f32.mrb[0].mxu0
      %653 = vmatprep.mubr.bf16.mxu0 0
      %654 = vmatmul.mubr.bf16.gmra.mrb[0].mxu0 %v459
      %v655 = vpop.f32.mrb[0].mxu0
      %v656 = vadd.f32 %v248, %v655
      %v657 = vpop.f32.mrb[0].mxu0
      %v658 = vpop.f32.mrb[0].mxu0
      %v659 = vadd.f32 %v248, %v658
      %v660 = vpop.f32.mrb[0].mxu0
      %661 = vmatprep.mubr.bf16.mxu0 0
      %662 = vmatmul.mubr.bf16.gmra.mrb[0].mxu0 %v462
      %v663 = vpop.f32.mrb[0].mxu0
      %v664 = vadd.f32 %v248, %v663
      %v665 = vpop.f32.mrb[0].mxu0
      %v666 = vpop.f32.mrb[0].mxu0
      %v667 = vadd.f32 %v248, %v666
      %v668 = vpop.f32.mrb[0].mxu0
      %669 = vmatprep.mubr.bf16.mxu0 0
      %670 = vmatmul.mubr.bf16.gmra.mrb[0].mxu0 %v465
      %v671 = vpop.f32.mrb[0].mxu0
      %v672 = vadd.f32 %v248, %v671
      %v673 = vpop.f32.mrb[0].mxu0
      %v674 = vpop.f32.mrb[0].mxu0
      %v675 = vadd.f32 %v248, %v674
      %v676 = vpop.f32.mrb[0].mxu0
      %677 = vmatprep.mubr.bf16.mxu0 0
      %678 = vmatmul.mubr.bf16.gmra.mrb[0].mxu0 %v468
      %v679 = vpop.f32.mrb[0].mxu0
      %v680 = vadd.f32 %v248, %v679
      %v681 = vpop.f32.mrb[0].mxu0
      %v682 = vpop.f32.mrb[0].mxu0
      %v683 = vadd.f32 %v248, %v682
      %v684 = vpop.f32.mrb[0].mxu0
      %685 = vmatprep.mubr.bf16.mxu0 0
      %686 = vmatmul.mubr.bf16.gmra.mrb[0].mxu0 %v471
      %v687 = vpop.f32.mrb[0].mxu0
      %v688 = vadd.f32 %v248, %v687
      %v689 = vpop.f32.mrb[0].mxu0
      %v690 = vpop.f32.mrb[0].mxu0
      %v691 = vadd.f32 %v248, %v690
      %v692 = vpop.f32.mrb[0].mxu0
      %693 = vmatprep.mubr.bf16.mxu0 0
      %694 = vmatmul.mubr.bf16.gmra.mrb[0].mxu0 %v474
      %v695 = vpop.f32.mrb[0].mxu0
      %v696 = vadd.f32 %v248, %v695
      %v697 = vpop.f32.mrb[0].mxu0
      %v698 = vpop.f32.mrb[0].mxu0
      %v699 = vadd.f32 %v248, %v698
      %v700 = vpop.f32.mrb[0].mxu0
      %701 = vmatprep.mubr.bf16.mxu0 0
      %702 = vmatmul.mubr.bf16.gmra.mrb[0].mxu0 %v477
      %v703 = vpop.f32.mrb[0].mxu0
      %v704 = vadd.f32 %v248, %v703
      %v705 = vpop.f32.mrb[0].mxu0
      %v706 = vpop.f32.mrb[0].mxu0
      %v707 = vadd.f32 %v248, %v706
      %v708 = vpop.f32.mrb[0].mxu0
      %709 = vmatprep.mubr.bf16.mxu0 0
      %710 = vmatmul.mubr.bf16.gmra.mrb[0].mxu0 %v480
      %v711 = vpop.f32.mrb[0].mxu0
      %v712 = vadd.f32 %v248, %v711
      %v713 = vpop.f32.mrb[0].mxu0
      %v714 = vpop.f32.mrb[0].mxu0
      %v715 = vadd.f32 %v248, %v714
      %v716 = vpop.f32.mrb[0].mxu0
      %717 = vmatprep.mubr.bf16.mxu0 0
      %718 = vmatmul.mubr.bf16.gmra.mrb[0].mxu0 %v483
      %v719 = vpop.f32.mrb[0].mxu0
      %v720 = vadd.f32 %v248, %v719
      %v721 = vpop.f32.mrb[0].mxu0
      %v722 = vpop.f32.mrb[0].mxu0
      %v723 = vadd.f32 %v248, %v722
      %v724 = vpop.f32.mrb[0].mxu0
      %725 = vmatprep.mubr.bf16.mxu0 0
      %726 = vmatmul.mubr.bf16.gmra.mrb[0].mxu0 %v486
      %v727 = vpop.f32.mrb[0].mxu0
      %v728 = vadd.f32 %v248, %v727
      %v729 = vpop.f32.mrb[0].mxu0
      %v730 = vpop.f32.mrb[0].mxu0
      %v731 = vadd.f32 %v248, %v730
      %v732 = vpop.f32.mrb[0].mxu0
      %733 = vmatprep.mubr.bf16.mxu0 0
      %734 = vmatmul.mubr.bf16.gmra.mrb[0].mxu0 %v489
      %v735 = vpop.f32.mrb[0].mxu0
      %v736 = vadd.f32 %v248, %v735
      %v737 = vpop.f32.mrb[0].mxu0
      %v738 = vpop.f32.mrb[0].mxu0
      %v739 = vadd.f32 %v248, %v738
      %v740 = vpop.f32.mrb[0].mxu0
      %741 = vmatprep.mubr.bf16.mxu0 0
      %742 = vmatmul.mubr.bf16.gmra.mrb[0].mxu0 %v492
      %v743 = vpop.f32.mrb[0].mxu0
      %v744 = vadd.f32 %v248, %v743
      %v745 = vpop.f32.mrb[0].mxu0
      %v746 = vpop.f32.mrb[0].mxu0
      %v747 = vadd.f32 %v248, %v746
      %v748 = vpop.f32.mrb[0].mxu0
      %749 = vmatprep.mubr.bf16.mxu0 0
      %750 = vmatmul.mubr.bf16.gmra.mrb[0].mxu0 %v495
      %v751 = vpop.f32.mrb[0].mxu0
      %v752 = vadd.f32 %v248, %v751
      %v753 = vpop.f32.mrb[0].mxu0
      %v754 = vpop.f32.mrb[0].mxu0
      %v755 = vadd.f32 %v248, %v754
      %v756 = vpop.f32.mrb[0].mxu0
      %757 = vmatprep.mubr.bf16.mxu0 0
      %758 = vmatmul.mubr.bf16.gmra.mrb[0].mxu0 %v498
      %v759 = vpop.f32.mrb[0].mxu0
      %v760 = vadd.f32 %v248, %v759
      %v761 = vpop.f32.mrb[0].mxu0
      %v762 = vpop.f32.mrb[0].mxu0
      %v763 = vadd.f32 %v248, %v762
      %v764 = vpop.f32.mrb[0].mxu0
      %765 = vmatprep.mubr.bf16.mxu0 0
      %766 = vmatmul.mubr.bf16.gmra.mrb[0].mxu0 %v501
      %v767 = vpop.f32.mrb[0].mxu0
      %v768 = vadd.f32 %v248, %v767
      %v769 = vpop.f32.mrb[0].mxu0
      %v770 = vpop.f32.mrb[0].mxu0
      %v771 = vadd.f32 %v248, %v770
      %v772 = vpop.f32.mrb[0].mxu0
      %773 = vmatprep.mubr.bf16.mxu0 0
      %774 = vmatmul.mubr.bf16.gmra.mrb[0].mxu0 %v504
      %v775 = vpop.f32.mrb[0].mxu0
      %v776 = vadd.f32 %v248, %v775
      %v777 = vpop.f32.mrb[0].mxu0
      %v778 = vpop.f32.mrb[0].mxu0
      %v779 = vadd.f32 %v248, %v778
      %v780 = vpop.f32.mrb[0].mxu0
      %781 = vmatprep.mubr.bf16.mxu0 0
      %782 = vmatmul.mubr.bf16.gmra.mrb[0].mxu0 %v507
      %v783 = vpop.f32.mrb[0].mxu0
      %v784 = vadd.f32 %v248, %v783
      %v785 = vpop.f32.mrb[0].mxu0
      %v786 = vpop.f32.mrb[0].mxu0
      %v787 = vadd.f32 %v248, %v786
      %v788 = vpop.f32.mrb[0].mxu0
      %789 = vmatprep.mubr.bf16.mxu0 0
      %790 = vmatmul.mubr.bf16.gmra.mrb[0].mxu0 %v510
      %v791 = vpop.f32.mrb[0].mxu0
      %v792 = vadd.f32 %v248, %v791
      %v793 = vpop.f32.mrb[0].mxu0
      %v794 = vpop.f32.mrb[0].mxu0
      %v795 = vadd.f32 %v248, %v794
      %v796 = vpop.f32.mrb[0].mxu0
      %797 = vmatprep.mubr.bf16.mxu0 0
      %798 = vmatmul.mubr.bf16.gmra.mrb[0].mxu0 %v513
      %v799 = vpop.f32.mrb[0].mxu0
      %v800 = vadd.f32 %v248, %v799
      %v801 = vpop.f32.mrb[0].mxu0
      %v802 = vpop.f32.mrb[0].mxu0
      %v803 = vadd.f32 %v248, %v802
      %v804 = vpop.f32.mrb[0].mxu0
      %805 = vmatprep.mubr.bf16.mxu0 0
      %806 = vmatmul.mubr.bf16.gmra.mrb[0].mxu0 %v516
      %v807 = vpop.f32.mrb[0].mxu0
      %v808 = vadd.f32 %v248, %v807
      %v809 = vpop.f32.mrb[0].mxu0
      %v810 = vpop.f32.mrb[0].mxu0
      %v811 = vadd.f32 %v248, %v810
      %v812 = vpop.f32.mrb[0].mxu0
      %813 = vdwg.mxu0
      %vm814 = vcmp.ge.f32.partialorder %v560, 0.0
      %vm815 = vcmp.ge.f32.partialorder %v563, 0.0
      %vm816 = vcmp.ge.f32.partialorder %v568, 0.0
      %vm817 = vcmp.ge.f32.partialorder %v571, 0.0
      %vm818 = vcmp.ge.f32.partialorder %v576, 0.0
      %vm819 = vcmp.ge.f32.partialorder %v579, 0.0
      %vm820 = vcmp.ge.f32.partialorder %v584, 0.0
      %vm821 = vcmp.ge.f32.partialorder %v587, 0.0
      %vm822 = vcmp.ge.f32.partialorder %v592, 0.0
      %vm823 = vcmp.ge.f32.partialorder %v595, 0.0
      %vm824 = vcmp.ge.f32.partialorder %v600, 0.0
      %vm825 = vcmp.ge.f32.partialorder %v603, 0.0
      %vm826 = vcmp.ge.f32.partialorder %v608, 0.0
      %vm827 = vcmp.ge.f32.partialorder %v611, 0.0
      %vm828 = vcmp.ge.f32.partialorder %v616, 0.0
      %vm829 = vcmp.ge.f32.partialorder %v619, 0.0
      %vm830 = vcmp.ge.f32.partialorder %v624, 0.0
      %vm831 = vcmp.ge.f32.partialorder %v627, 0.0
      %vm832 = vcmp.ge.f32.partialorder %v632, 0.0
      %vm833 = vcmp.ge.f32.partialorder %v635, 0.0
      %vm834 = vcmp.ge.f32.partialorder %v640, 0.0
      %vm835 = vcmp.ge.f32.partialorder %v643, 0.0
      %vm836 = vcmp.ge.f32.partialorder %v648, 0.0
      %vm837 = vcmp.ge.f32.partialorder %v651, 0.0
      %vm838 = vcmp.ge.f32.partialorder %v656, 0.0
      %vm839 = vcmp.ge.f32.partialorder %v659, 0.0
      %vm840 = vcmp.ge.f32.partialorder %v664, 0.0
      %vm841 = vcmp.ge.f32.partialorder %v667, 0.0
      %vm842 = vcmp.ge.f32.partialorder %v672, 0.0
      %vm843 = vcmp.ge.f32.partialorder %v675, 0.0
      %vm844 = vcmp.ge.f32.partialorder %v680, 0.0
      %vm845 = vcmp.ge.f32.partialorder %v683, 0.0
      %vm846 = vcmp.ge.f32.partialorder %v688, 0.0
      %vm847 = vcmp.ge.f32.partialorder %v691, 0.0
      %vm848 = vcmp.ge.f32.partialorder %v696, 0.0
      %vm849 = vcmp.ge.f32.partialorder %v699, 0.0
      %vm850 = vcmp.ge.f32.partialorder %v704, 0.0
      %vm851 = vcmp.ge.f32.partialorder %v707, 0.0
      %vm852 = vcmp.ge.f32.partialorder %v712, 0.0
      %vm853 = vcmp.ge.f32.partialorder %v715, 0.0
      %vm854 = vcmp.ge.f32.partialorder %v720, 0.0
      %vm855 = vcmp.ge.f32.partialorder %v723, 0.0
      %vm856 = vcmp.ge.f32.partialorder %v728, 0.0
      %vm857 = vcmp.ge.f32.partialorder %v731, 0.0
      %vm858 = vcmp.ge.f32.partialorder %v736, 0.0
      %vm859 = vcmp.ge.f32.partialorder %v739, 0.0
      %vm860 = vcmp.ge.f32.partialorder %v744, 0.0
      %vm861 = vcmp.ge.f32.partialorder %v747, 0.0
      %vm862 = vcmp.ge.f32.partialorder %v752, 0.0
      %vm863 = vcmp.ge.f32.partialorder %v755, 0.0
      %vm864 = vcmp.ge.f32.partialorder %v760, 0.0
      %vm865 = vcmp.ge.f32.partialorder %v763, 0.0
      %vm866 = vcmp.ge.f32.partialorder %v768, 0.0
      %vm867 = vcmp.ge.f32.partialorder %v771, 0.0
      %vm868 = vcmp.ge.f32.partialorder %v776, 0.0
      %vm869 = vcmp.ge.f32.partialorder %v779, 0.0
      %vm870 = vcmp.ge.f32.partialorder %v784, 0.0
      %vm871 = vcmp.ge.f32.partialorder %v787, 0.0
      %vm872 = vcmp.ge.f32.partialorder %v792, 0.0
      %vm873 = vcmp.ge.f32.partialorder %v795, 0.0
      %vm874 = vcmp.ge.f32.partialorder %v800, 0.0
      %vm875 = vcmp.ge.f32.partialorder %v803, 0.0
      %vm876 = vcmp.ge.f32.partialorder %v808, 0.0
      %vm877 = vcmp.ge.f32.partialorder %v811, 0.0
      %v878 = vmul.f32 %v560, 0.2
      %v879 = vmul.f32 %v563, 0.2
      %v880 = vmul.f32 %v568, 0.2
      %v881 = vmul.f32 %v571, 0.2
      %v882 = vmul.f32 %v576, 0.2
      %v883 = vmul.f32 %v579, 0.2
      %v884 = vmul.f32 %v584, 0.2
      %v885 = vmul.f32 %v587, 0.2
      %v886 = vmul.f32 %v592, 0.2
      %v887 = vmul.f32 %v595, 0.2
      %v888 = vmul.f32 %v600, 0.2
      %v889 = vmul.f32 %v603, 0.2
      %v890 = vmul.f32 %v608, 0.2
      %v891 = vmul.f32 %v611, 0.2
      %v892 = vmul.f32 %v616, 0.2
      %v893 = vmul.f32 %v619, 0.2
      %v894 = vmul.f32 %v624, 0.2
      %v895 = vmul.f32 %v627, 0.2
      %v896 = vmul.f32 %v632, 0.2
      %v897 = vmul.f32 %v635, 0.2
      %v898 = vmul.f32 %v640, 0.2
      %v899 = vmul.f32 %v643, 0.2
      %v900 = vmul.f32 %v648, 0.2
      %v901 = vmul.f32 %v651, 0.2
      %v902 = vmul.f32 %v656, 0.2
      %v903 = vmul.f32 %v659, 0.2
      %v904 = vmul.f32 %v664, 0.2
      %v905 = vmul.f32 %v667, 0.2
      %v906 = vmul.f32 %v672, 0.2
      %v907 = vmul.f32 %v675, 0.2
      %v908 = vmul.f32 %v680, 0.2
      %v909 = vmul.f32 %v683, 0.2
      %v910 = vmul.f32 %v688, 0.2
      %v911 = vmul.f32 %v691, 0.2
      %v912 = vmul.f32 %v696, 0.2
      %v913 = vmul.f32 %v699, 0.2
      %v914 = vmul.f32 %v704, 0.2
      %v915 = vmul.f32 %v707, 0.2
      %v916 = vmul.f32 %v712, 0.2
      %v917 = vmul.f32 %v715, 0.2
      %v918 = vmul.f32 %v720, 0.2
      %v919 = vmul.f32 %v723, 0.2
      %v920 = vmul.f32 %v728, 0.2
      %v921 = vmul.f32 %v731, 0.2
      %v922 = vmul.f32 %v736, 0.2
      %v923 = vmul.f32 %v739, 0.2
      %v924 = vmul.f32 %v744, 0.2
      %v925 = vmul.f32 %v747, 0.2
      %v926 = vmul.f32 %v752, 0.2
      %v927 = vmul.f32 %v755, 0.2
      %v928 = vmul.f32 %v760, 0.2
      %v929 = vmul.f32 %v763, 0.2
      %v930 = vmul.f32 %v768, 0.2
      %v931 = vmul.f32 %v771, 0.2
      %v932 = vmul.f32 %v776, 0.2
      %v933 = vmul.f32 %v779, 0.2
      %v934 = vmul.f32 %v784, 0.2
      %v935 = vmul.f32 %v787, 0.2
      %v936 = vmul.f32 %v792, 0.2
      %v937 = vmul.f32 %v795, 0.2
      %v938 = vmul.f32 %v800, 0.2
      %v939 = vmul.f32 %v803, 0.2
      %v940 = vmul.f32 %v808, 0.2
      %v941 = vmul.f32 %v811, 0.2
      %v942 = vsel %vm814, %v560, %v878
      %v943 = vsel %vm815, %v563, %v879
      %v944 = vsel %vm816, %v568, %v880
      %v945 = vsel %vm817, %v571, %v881
      %v946 = vsel %vm818, %v576, %v882
      %v947 = vsel %vm819, %v579, %v883
      %v948 = vsel %vm820, %v584, %v884
      %v949 = vsel %vm821, %v587, %v885
      %v950 = vsel %vm822, %v592, %v886
      %v951 = vsel %vm823, %v595, %v887
      %v952 = vsel %vm824, %v600, %v888
      %v953 = vsel %vm825, %v603, %v889
      %v954 = vsel %vm826, %v608, %v890
      %v955 = vsel %vm827, %v611, %v891
      %v956 = vsel %vm828, %v616, %v892
      %v957 = vsel %vm829, %v619, %v893
      %v958 = vsel %vm830, %v624, %v894
      %v959 = vsel %vm831, %v627, %v895
      %v960 = vsel %vm832, %v632, %v896
      %v961 = vsel %vm833, %v635, %v897
      %v962 = vsel %vm834, %v640, %v898
      %v963 = vsel %vm835, %v643, %v899
      %v964 = vsel %vm836, %v648, %v900
      %v965 = vsel %vm837, %v651, %v901
      %v966 = vsel %vm838, %v656, %v902
      %v967 = vsel %vm839, %v659, %v903
      %v968 = vsel %vm840, %v664, %v904
      %v969 = vsel %vm841, %v667, %v905
      %v970 = vsel %vm842, %v672, %v906
      %v971 = vsel %vm843, %v675, %v907
      %v972 = vsel %vm844, %v680, %v908
      %v973 = vsel %vm845, %v683, %v909
      %v974 = vsel %vm846, %v688, %v910
      %v975 = vsel %vm847, %v691, %v911
      %v976 = vsel %vm848, %v696, %v912
      %v977 = vsel %vm849, %v699, %v913
      %v978 = vsel %vm850, %v704, %v914
      %v979 = vsel %vm851, %v707, %v915
      %v980 = vsel %vm852, %v712, %v916
      %v981 = vsel %vm853, %v715, %v917
      %v982 = vsel %vm854, %v720, %v918
      %v983 = vsel %vm855, %v723, %v919
      %v984 = vsel %vm856, %v728, %v920
      %v985 = vsel %vm857, %v731, %v921
      %v986 = vsel %vm858, %v736, %v922
      %v987 = vsel %vm859, %v739, %v923
      %v988 = vsel %vm860, %v744, %v924
      %v989 = vsel %vm861, %v747, %v925
      %v990 = vsel %vm862, %v752, %v926
      %v991 = vsel %vm863, %v755, %v927
      %v992 = vsel %vm864, %v760, %v928
      %v993 = vsel %vm865, %v763, %v929
      %v994 = vsel %vm866, %v768, %v930
      %v995 = vsel %vm867, %v771, %v931
      %v996 = vsel %vm868, %v776, %v932
      %v997 = vsel %vm869, %v779, %v933
      %v998 = vsel %vm870, %v784, %v934
      %v999 = vsel %vm871, %v787, %v935
      %v1000 = vsel %vm872, %v792, %v936
      %v1001 = vsel %vm873, %v795, %v937
      %v1002 = vsel %vm874, %v800, %v938
      %v1003 = vsel %vm875, %v803, %v939
      %v1004 = vsel %vm876, %v808, %v940
      %v1005 = vsel %vm877, %v811, %v941
      %v1006 = vpack.c.bf16 %v943, %v942
      %v1007 = vpack.c.bf16 %v945, %v944
      %v1008 = vpack.c.bf16 %v947, %v946
      %v1009 = vpack.c.bf16 %v949, %v948
      %v1010 = vpack.c.bf16 %v951, %v950
      %v1011 = vpack.c.bf16 %v953, %v952
      %v1012 = vpack.c.bf16 %v955, %v954
      %v1013 = vpack.c.bf16 %v957, %v956
      %v1014 = vpack.c.bf16 %v959, %v958
      %v1015 = vpack.c.bf16 %v961, %v960
      %v1016 = vpack.c.bf16 %v963, %v962
      %v1017 = vpack.c.bf16 %v965, %v964
      %v1018 = vpack.c.bf16 %v967, %v966
      %v1019 = vpack.c.bf16 %v969, %v968
      %v1020 = vpack.c.bf16 %v971, %v970
      %v1021 = vpack.c.bf16 %v973, %v972
      %v1022 = vpack.c.bf16 %v975, %v974
      %v1023 = vpack.c.bf16 %v977, %v976
      %v1024 = vpack.c.bf16 %v979, %v978
      %v1025 = vpack.c.bf16 %v981, %v980
      %v1026 = vpack.c.bf16 %v983, %v982
      %v1027 = vpack.c.bf16 %v985, %v984
      %v1028 = vpack.c.bf16 %v987, %v986
      %v1029 = vpack.c.bf16 %v989, %v988
      %v1030 = vpack.c.bf16 %v991, %v990
      %v1031 = vpack.c.bf16 %v993, %v992
      %v1032 = vpack.c.bf16 %v995, %v994
      %v1033 = vpack.c.bf16 %v997, %v996
      %v1034 = vpack.c.bf16 %v999, %v998
      %v1035 = vpack.c.bf16 %v1001, %v1000
      %v1036 = vpack.c.bf16 %v1003, %v1002
      %v1037 = vpack.c.bf16 %v1005, %v1004
      %v1070 = vunpack.c.l.b16 %v1006
      %v1071 = vunpack.c.h.b16 %v1006
      %v1072 = vunpack.c.l.b16 %v1007
      %v1073 = vunpack.c.h.b16 %v1007
      %v1074 = vunpack.c.l.b16 %v1008
      %v1075 = vunpack.c.h.b16 %v1008
      %v1076 = vunpack.c.l.b16 %v1009
      %v1077 = vunpack.c.h.b16 %v1009
      %v1078 = vunpack.c.l.b16 %v1010
      %v1079 = vunpack.c.h.b16 %v1010
      %v1080 = vunpack.c.l.b16 %v1011
      %v1081 = vunpack.c.h.b16 %v1011
      %v1082 = vunpack.c.l.b16 %v1012
      %v1083 = vunpack.c.h.b16 %v1012
      %v1084 = vunpack.c.l.b16 %v1013
      %v1085 = vunpack.c.h.b16 %v1013
      %v1086 = vunpack.c.l.b16 %v1014
      %v1087 = vunpack.c.h.b16 %v1014
      %v1088 = vunpack.c.l.b16 %v1015
      %v1089 = vunpack.c.h.b16 %v1015
      %v1090 = vunpack.c.l.b16 %v1016
      %v1091 = vunpack.c.h.b16 %v1016
      %v1092 = vunpack.c.l.b16 %v1017
      %v1093 = vunpack.c.h.b16 %v1017
      %v1094 = vunpack.c.l.b16 %v1018
      %v1095 = vunpack.c.h.b16 %v1018
      %v1096 = vunpack.c.l.b16 %v1019
      %v1097 = vunpack.c.h.b16 %v1019
      %v1098 = vunpack.c.l.b16 %v1020
      %v1099 = vunpack.c.h.b16 %v1020
      %v1100 = vunpack.c.l.b16 %v1021
      %v1101 = vunpack.c.h.b16 %v1021
      %v1102 = vunpack.c.l.b16 %v1022
      %v1103 = vunpack.c.h.b16 %v1022
      %v1104 = vunpack.c.l.b16 %v1023
      %v1105 = vunpack.c.h.b16 %v1023
      %v1106 = vunpack.c.l.b16 %v1024
      %v1107 = vunpack.c.h.b16 %v1024
      %v1108 = vunpack.c.l.b16 %v1025
      %v1109 = vunpack.c.h.b16 %v1025
      %v1110 = vunpack.c.l.b16 %v1026
      %v1111 = vunpack.c.h.b16 %v1026
      %v1112 = vunpack.c.l.b16 %v1027
      %v1113 = vunpack.c.h.b16 %v1027
      %v1114 = vunpack.c.l.b16 %v1028
      %v1115 = vunpack.c.h.b16 %v1028
      %v1116 = vunpack.c.l.b16 %v1029
      %v1117 = vunpack.c.h.b16 %v1029
      %v1118 = vunpack.c.l.b16 %v1030
      %v1119 = vunpack.c.h.b16 %v1030
      %v1120 = vunpack.c.l.b16 %v1031
      %v1121 = vunpack.c.h.b16 %v1031
      %v1122 = vunpack.c.l.b16 %v1032
      %v1123 = vunpack.c.h.b16 %v1032
      %v1124 = vunpack.c.l.b16 %v1033
      %v1125 = vunpack.c.h.b16 %v1033
      %v1126 = vunpack.c.l.b16 %v1034
      %v1127 = vunpack.c.h.b16 %v1034
      %v1128 = vunpack.c.l.b16 %v1035
      %v1129 = vunpack.c.h.b16 %v1035
      %v1130 = vunpack.c.l.b16 %v1036
      %v1131 = vunpack.c.h.b16 %v1036
      %v1132 = vunpack.c.l.b16 %v1037
      %v1133 = vunpack.c.h.b16 %v1037
      %v1134 = vpack.c.b16 %v1070, %v1070
      %v1135 = vpack.c.b16 %v1071, %v1071
      %v1136 = vpack.c.b16 %v1072, %v1072
      %v1137 = vpack.c.b16 %v1073, %v1073
      %v1138 = vpack.c.b16 %v1074, %v1074
      %v1139 = vpack.c.b16 %v1075, %v1075
      %v1140 = vpack.c.b16 %v1076, %v1076
      %v1141 = vpack.c.b16 %v1077, %v1077
      %v1142 = vpack.c.b16 %v1078, %v1078
      %v1143 = vpack.c.b16 %v1079, %v1079
      %v1144 = vpack.c.b16 %v1080, %v1080
      %v1145 = vpack.c.b16 %v1081, %v1081
      %v1146 = vpack.c.b16 %v1082, %v1082
      %v1147 = vpack.c.b16 %v1083, %v1083
      %v1148 = vpack.c.b16 %v1084, %v1084
      %v1149 = vpack.c.b16 %v1085, %v1085
      %v1150 = vpack.c.b16 %v1086, %v1086
      %v1151 = vpack.c.b16 %v1087, %v1087
      %v1152 = vpack.c.b16 %v1088, %v1088
      %v1153 = vpack.c.b16 %v1089, %v1089
      %v1154 = vpack.c.b16 %v1090, %v1090
      %v1155 = vpack.c.b16 %v1091, %v1091
      %v1156 = vpack.c.b16 %v1092, %v1092
      %v1157 = vpack.c.b16 %v1093, %v1093
      %v1158 = vpack.c.b16 %v1094, %v1094
      %v1159 = vpack.c.b16 %v1095, %v1095
      %v1160 = vpack.c.b16 %v1096, %v1096
      %v1161 = vpack.c.b16 %v1097, %v1097
      %v1162 = vpack.c.b16 %v1098, %v1098
      %v1163 = vpack.c.b16 %v1099, %v1099
      %v1164 = vpack.c.b16 %v1100, %v1100
      %v1165 = vpack.c.b16 %v1101, %v1101
      %v1166 = vpack.c.b16 %v1102, %v1102
      %v1167 = vpack.c.b16 %v1103, %v1103
      %v1168 = vpack.c.b16 %v1104, %v1104
      %v1169 = vpack.c.b16 %v1105, %v1105
      %v1170 = vpack.c.b16 %v1106, %v1106
      %v1171 = vpack.c.b16 %v1107, %v1107
      %v1172 = vpack.c.b16 %v1108, %v1108
      %v1173 = vpack.c.b16 %v1109, %v1109
      %v1174 = vpack.c.b16 %v1110, %v1110
      %v1175 = vpack.c.b16 %v1111, %v1111
      %v1176 = vpack.c.b16 %v1112, %v1112
      %v1177 = vpack.c.b16 %v1113, %v1113
      %v1178 = vpack.c.b16 %v1114, %v1114
      %v1179 = vpack.c.b16 %v1115, %v1115
      %v1180 = vpack.c.b16 %v1116, %v1116
      %v1181 = vpack.c.b16 %v1117, %v1117
      %v1182 = vpack.c.b16 %v1118, %v1118
      %v1183 = vpack.c.b16 %v1119, %v1119
      %v1184 = vpack.c.b16 %v1120, %v1120
      %v1185 = vpack.c.b16 %v1121, %v1121
      %v1186 = vpack.c.b16 %v1122, %v1122
      %v1187 = vpack.c.b16 %v1123, %v1123
      %v1188 = vpack.c.b16 %v1124, %v1124
      %v1189 = vpack.c.b16 %v1125, %v1125
      %v1190 = vpack.c.b16 %v1126, %v1126
      %v1191 = vpack.c.b16 %v1127, %v1127
      %v1192 = vpack.c.b16 %v1128, %v1128
      %v1193 = vpack.c.b16 %v1129, %v1129
      %v1194 = vpack.c.b16 %v1130, %v1130
      %v1195 = vpack.c.b16 %v1131, %v1131
      %v1196 = vpack.c.b16 %v1132, %v1132
      %v1197 = vpack.c.b16 %v1133, %v1133
      %1262 = vst [vmem:[%s172] sm:$0xf] %v1134
      %1263 = vst [vmem:[%s172 + $0x4] sm:$0xf] %v1135
      %1264 = vst [vmem:[%s172 + $0x8] sm:$0xf] %v1136
      %1265 = vst [vmem:[%s172 + $0xc] sm:$0xf] %v1137
      %1266 = vst [vmem:[%s172 + $0x10] sm:$0xf] %v1138
      %1267 = vst [vmem:[%s172 + $0x14] sm:$0xf] %v1139
      %1268 = vst [vmem:[%s172 + $0x18] sm:$0xf] %v1140
      %1269 = vst [vmem:[%s172 + $0x1c] sm:$0xf] %v1141
      %1270 = vst [vmem:[%s172 + $0x20] sm:$0xf] %v1142
      %1271 = vst [vmem:[%s172 + $0x24] sm:$0xf] %v1143
      %1272 = vst [vmem:[%s172 + $0x28] sm:$0xf] %v1144
      %1273 = vst [vmem:[%s172 + $0x2c] sm:$0xf] %v1145
      %1274 = vst [vmem:[%s172 + $0x30] sm:$0xf] %v1146
      %1275 = vst [vmem:[%s172 + $0x34] sm:$0xf] %v1147
      %1276 = vst [vmem:[%s172 + $0x38] sm:$0xf] %v1148
      %1277 = vst [vmem:[%s172 + $0x3c] sm:$0xf] %v1149
      %1278 = vst [vmem:[%s172 + $0x40] sm:$0xf] %v1150
      %1279 = vst [vmem:[%s172 + $0x44] sm:$0xf] %v1151
      %1280 = vst [vmem:[%s172 + $0x48] sm:$0xf] %v1152
      %1281 = vst [vmem:[%s172 + $0x4c] sm:$0xf] %v1153
      %1282 = vst [vmem:[%s172 + $0x50] sm:$0xf] %v1154
      %1283 = vst [vmem:[%s172 + $0x54] sm:$0xf] %v1155
      %1284 = vst [vmem:[%s172 + $0x58] sm:$0xf] %v1156
      %1285 = vst [vmem:[%s172 + $0x5c] sm:$0xf] %v1157
      %1286 = vst [vmem:[%s172 + $0x60] sm:$0xf] %v1158
      %1287 = vst [vmem:[%s172 + $0x64] sm:$0xf] %v1159
      %1288 = vst [vmem:[%s172 + $0x68] sm:$0xf] %v1160
      %1289 = vst [vmem:[%s172 + $0x6c] sm:$0xf] %v1161
      %1290 = vst [vmem:[%s172 + $0x70] sm:$0xf] %v1162
      %1291 = vst [vmem:[%s172 + $0x74] sm:$0xf] %v1163
      %1292 = vst [vmem:[%s172 + $0x78] sm:$0xf] %v1164
      %1293 = vst [vmem:[%s172 + $0x7c] sm:$0xf] %v1165
      %1294 = vst [vmem:[%s172 + $0x80] sm:$0xf] %v1166
      %1295 = vst [vmem:[%s172 + $0x84] sm:$0xf] %v1167
      %1296 = vst [vmem:[%s172 + $0x88] sm:$0xf] %v1168
      %1297 = vst [vmem:[%s172 + $0x8c] sm:$0xf] %v1169
      %1298 = vst [vmem:[%s172 + $0x90] sm:$0xf] %v1170
      %1299 = vst [vmem:[%s172 + $0x94] sm:$0xf] %v1171
      %1300 = vst [vmem:[%s172 + $0x98] sm:$0xf] %v1172
      %1301 = vst [vmem:[%s172 + $0x9c] sm:$0xf] %v1173
      %1302 = vst [vmem:[%s172 + $0xa0] sm:$0xf] %v1174
      %1303 = vst [vmem:[%s172 + $0xa4] sm:$0xf] %v1175
      %1304 = vst [vmem:[%s172 + $0xa8] sm:$0xf] %v1176
      %1305 = vst [vmem:[%s172 + $0xac] sm:$0xf] %v1177
      %1306 = vst [vmem:[%s172 + $0xb0] sm:$0xf] %v1178
      %1307 = vst [vmem:[%s172 + $0xb4] sm:$0xf] %v1179
      %1308 = vst [vmem:[%s172 + $0xb8] sm:$0xf] %v1180
      %1309 = vst [vmem:[%s172 + $0xbc] sm:$0xf] %v1181
      %1310 = vst [vmem:[%s172 + $0xc0] sm:$0xf] %v1182
      %1311 = vst [vmem:[%s172 + $0xc4] sm:$0xf] %v1183
      %1312 = vst [vmem:[%s172 + $0xc8] sm:$0xf] %v1184
      %1313 = vst [vmem:[%s172 + $0xcc] sm:$0xf] %v1185
      %1314 = vst [vmem:[%s172 + $0xd0] sm:$0xf] %v1186
      %1315 = vst [vmem:[%s172 + $0xd4] sm:$0xf] %v1187
      %1316 = vst [vmem:[%s172 + $0xd8] sm:$0xf] %v1188
      %1317 = vst [vmem:[%s172 + $0xdc] sm:$0xf] %v1189
      %1318 = vst [vmem:[%s172 + $0xe0] sm:$0xf] %v1190
      %1319 = vst [vmem:[%s172 + $0xe4] sm:$0xf] %v1191
      %1320 = vst [vmem:[%s172 + $0xe8] sm:$0xf] %v1192
      %1321 = vst [vmem:[%s172 + $0xec] sm:$0xf] %v1193
      %1322 = vst [vmem:[%s172 + $0xf0] sm:$0xf] %v1194
      %1323 = vst [vmem:[%s172 + $0xf4] sm:$0xf] %v1195
      %1324 = vst [vmem:[%s172 + $0xf8] sm:$0xf] %v1196
      %1325 = vst [vmem:[%s172 + $0xfc] sm:$0xf] %v1197
      %s1326 = smul.u32 64, %s14
      %p1327 = scmp.lt.s32.totalorder %s1326, 127
      %s1328 = scalar_select %p1327, %s1326, 127
      %s1329 = smul.addr %s1328, 4
      %s1330 = scalar_lea.vmem %s3, %s1329
      // Predicated region
      $region33: #{forward.4} parent=31 // pred_check
        %p1331 = pneg %p100
      $region34: #{forward.4} parent=31 // pred_check_branch
        %1333 = sbr.rel (%p1331) target = $region36
      $region35: #{forward.4} parent=31 // pred_region
        %s1334 = smul.u32 64, %s14
      $region36: #{forward.4} parent=31 // pred_fallthru
        _
    $region32: #{forward.4} parent=5 // pred_fallthru
      _
    %p1335 = scmp.le.s32.totalorder 2, %s9
    // Predicated region
    $region37: #{forward.4} parent=5 // pred_check
      %p1336 = pneg %p1335
    $region38: #{forward.4} parent=5 // pred_check_branch
      %1338 = sbr.rel (%p1336) target = $region40
    $region39: #{forward.4} parent=5 // pred_region
      %s1339 = ssub.s32 %s9, 2
      // Predicated region
      $region41: #{forward.4} parent=39 // pred_check
        %p1340 = pneg %p106
      $region42: #{forward.4} parent=39 // pred_check_branch
        %1342 = sbr.rel (%p1340) target = $region44
      $region43: #{forward.4} parent=39 // pred_region
        %s1343 = smul.u32 64, %s15
        %p1344 = scmp.lt.s32.totalorder %s1343, 127
        %s1345 = scalar_select %p1344, %s1343, 127
        %s1346 = smul.addr %s1345, 4
        %s1347 = scalar_lea.vmem %s3, %s1346
      $region44: #{forward.4} parent=39 // pred_fallthru
        _
    $region40: #{forward.4} parent=5 // pred_fallthru
      _
  $region6: #{forward.4} parent=0 // loop_footer
    %s13 = sadd.s32 1, %s9
  $region7: #{forward.4} parent=0 // loop_footer_branch
    %8 = sbr.rel target = $region3
  $region8: #{forward.4} parent=0 // loop_exit
    _

// kernel: forward.6
$region0: #{forward.6}
  #allocation0 [shape = 'u32[]', space=smem, size = 0x4, offset = 0x4, fixed_abs, tag = 'smem constant byte address 0x4 - core index']
  #allocation1 [shape = 'u32[144,128]{1,0:T(1,128)}', space=vmem, size = 0x12000, scoped, tag = 'internal scratch']
  %s0 = inlined_call_operand.vmem [shape: bf16[64,1152], index: 0, kind: input, shape index: {}]
  %s1 = inlined_call_operand.vmem [shape: bf16[1152,128], index: 1, kind: input, shape index: {}]
  %s2 = inlined_call_operand.vmem [shape: f32[1,128], index: 2, kind: input, shape index: {}]
  %s3 = inlined_call_operand.vmem [shape: bf16[64,128], index: 3, kind: output, shape index: {}]
  %s4 = sld [smem:[#allocation0]]
  $region22: #{forward.6} parent=0
    _
  %s6 = ssub.s32 1, %s4
  %s7 = scalar_select 0, %s6, %s4
  // Predicated region
  $region2: #{forward.6} parent=0 // pred_check
    _
  $region3: #{forward.6} parent=0 // pred_check_branch
    %9 = sbr.rel (0) target = $region5
  $region4: #{forward.6} parent=0 // pred_region
    _
  $region5: #{forward.6} parent=0 // pred_fallthru
    _
  // Predicated region
  $region6: #{forward.6} parent=0 // pred_check
    _
  $region7: #{forward.6} parent=0 // pred_check_branch
    %11 = sbr.rel (0) target = $region9
  $region8: #{forward.6} parent=0 // pred_region
    _
  $region9: #{forward.6} parent=0 // pred_fallthru
    _
  // Predicated region
  $region10: #{forward.6} parent=0 // pred_check
    _
  $region11: #{forward.6} parent=0 // pred_check_branch
    %13 = sbr.rel (0) target = $region13
  $region12: #{forward.6} parent=0 // pred_region
    _
  $region13: #{forward.6} parent=0 // pred_fallthru
    _
  %v15 = vld [vmem:[%s0] sm:$0xff]
  %v16 = vld [vmem:[%s0 + $0x8] sm:$0xff]
  %v17 = vld [vmem:[%s0 + $0x10] sm:$0xff]
  %v18 = vld [vmem:[%s0 + $0x18] sm:$0xff]
  %v19 = vld [vmem:[%s0 + $0x20] sm:$0xf]
  %v20 = vld [vmem:[%s0 + $0x24] sm:$0xff]
  %v21 = vld [vmem:[%s0 + $0x2c] sm:$0xff]
  %v22 = vld [vmem:[%s0 + $0x34] sm:$0xff]
  %v23 = vld [vmem:[%s0 + $0x3c] sm:$0xff]
  %v24 = vld [vmem:[%s0 + $0x44] sm:$0xf]
  %v25 = vld [vmem:[%s0 + $0x48] sm:$0xff]
  %v26 = vld [vmem:[%s0 + $0x50] sm:$0xff]
  %v27 = vld [vmem:[%s0 + $0x58] sm:$0xff]
  %v28 = vld [vmem:[%s0 + $0x60] sm:$0xff]
  %v29 = vld [vmem:[%s0 + $0x68] sm:$0xf]
  %v30 = vld [vmem:[%s0 + $0x6c] sm:$0xff]
  %v31 = vld [vmem:[%s0 + $0x74] sm:$0xff]
  %v32 = vld [vmem:[%s0 + $0x7c] sm:$0xff]
  %v33 = vld [vmem:[%s0 + $0x84] sm:$0xff]
  %v34 = vld [vmem:[%s0 + $0x8c] sm:$0xf]
  %v35 = vld [vmem:[%s0 + $0x90] sm:$0xff]
  %v36 = vld [vmem:[%s0 + $0x98] sm:$0xff]
  %v37 = vld [vmem:[%s0 + $0xa0] sm:$0xff]
  %v38 = vld [vmem:[%s0 + $0xa8] sm:$0xff]
  %v39 = vld [vmem:[%s0 + $0xb0] sm:$0xf]
  %v40 = vld [vmem:[%s0 + $0xb4] sm:$0xff]
  %v41 = vld [vmem:[%s0 + $0xbc] sm:$0xff]
  %v42 = vld [vmem:[%s0 + $0xc4] sm:$0xff]
  %v43 = vld [vmem:[%s0 + $0xcc] sm:$0xff]
  %v44 = vld [vmem:[%s0 + $0xd4] sm:$0xf]
  %v45 = vld [vmem:[%s0 + $0xd8] sm:$0xff]
  %v46 = vld [vmem:[%s0 + $0xe0] sm:$0xff]
  %v47 = vld [vmem:[%s0 + $0xe8] sm:$0xff]
  %v48 = vld [vmem:[%s0 + $0xf0] sm:$0xff]
  %v49 = vld [vmem:[%s0 + $0xf8] sm:$0xf]
  %v50 = vld [vmem:[%s0 + $0xfc] sm:$0xff]
  %v51 = vld [vmem:[%s0 + $0x104] sm:$0xff]
  %v52 = vld [vmem:[%s0 + $0x10c] sm:$0xff]
  %v53 = vld [vmem:[%s0 + $0x114] sm:$0xff]
  %v54 = vld [vmem:[%s0 + $0x11c] sm:$0xf]
  %v55 = vld [vmem:[%s1] sm:$0xf]
  %v56 = vld [vmem:[%s1 + $0x4] sm:$0xf]
  %v57 = vld [vmem:[%s1 + $0x8] sm:$0xf]
  %v58 = vld [vmem:[%s1 + $0xc] sm:$0xf]
  %v59 = vld [vmem:[%s1 + $0x10] sm:$0xf]
  %v60 = vld [vmem:[%s1 + $0x14] sm:$0xf]
  %v61 = vld [vmem:[%s1 + $0x18] sm:$0xf]
  %v62 = vld [vmem:[%s1 + $0x1c] sm:$0xf]
  %v63 = vld [vmem:[%s1 + $0x20] sm:$0xf]
  %v64 = vld [vmem:[%s1 + $0x24] sm:$0xf]
  %v65 = vld [vmem:[%s1 + $0x28] sm:$0xf]
  %v66 = vld [vmem:[%s1 + $0x2c] sm:$0xf]
  %v67 = vld [vmem:[%s1 + $0x30] sm:$0xf]
  %v68 = vld [vmem:[%s1 + $0x34] sm:$0xf]
  %v69 = vld [vmem:[%s1 + $0x38] sm:$0xf]
  %v70 = vld [vmem:[%s1 + $0x3c] sm:$0xf]
  %v71 = vld [vmem:[%s1 + $0x40] sm:$0xf]
  %v72 = vld [vmem:[%s1 + $0x44] sm:$0xf]
  %v73 = vld [vmem:[%s1 + $0x48] sm:$0xf]
  %v74 = vld [vmem:[%s1 + $0x4c] sm:$0xf]
  %v75 = vld [vmem:[%s1 + $0x50] sm:$0xf]
  %v76 = vld [vmem:[%s1 + $0x54] sm:$0xf]
  %v77 = vld [vmem:[%s1 + $0x58] sm:$0xf]
  %v78 = vld [vmem:[%s1 + $0x5c] sm:$0xf]
  %v79 = vld [vmem:[%s1 + $0x60] sm:$0xf]
  %v80 = vld [vmem:[%s1 + $0x64] sm:$0xf]
  %v81 = vld [vmem:[%s1 + $0x68] sm:$0xf]
  %v82 = vld [vmem:[%s1 + $0x6c] sm:$0xf]
  %v83 = vld [vmem:[%s1 + $0x70] sm:$0xf]
  %v84 = vld [vmem:[%s1 + $0x74] sm:$0xf]
  %v85 = vld [vmem:[%s1 + $0x78] sm:$0xf]
  %v86 = vld [vmem:[%s1 + $0x7c] sm:$0xf]
  %v87 = vld [vmem:[%s1 + $0x80] sm:$0xf]
  %v88 = vld [vmem:[%s1 + $0x84] sm:$0xf]
  %v89 = vld [vmem:[%s1 + $0x88] sm:$0xf]
  %v90 = vld [vmem:[%s1 + $0x8c] sm:$0xf]
  %v91 = vld [vmem:[%s1 + $0x90] sm:$0xf]
  %v92 = vld [vmem:[%s1 + $0x94] sm:$0xf]
  %v93 = vld [vmem:[%s1 + $0x98] sm:$0xf]
  %v94 = vld [vmem:[%s1 + $0x9c] sm:$0xf]
  %v95 = vld [vmem:[%s1 + $0xa0] sm:$0xf]
  %v96 = vld [vmem:[%s1 + $0xa4] sm:$0xf]
  %v97 = vld [vmem:[%s1 + $0xa8] sm:$0xf]
  %v98 = vld [vmem:[%s1 + $0xac] sm:$0xf]
  %v99 = vld [vmem:[%s1 + $0xb0] sm:$0xf]
  %v100 = vld [vmem:[%s1 + $0xb4] sm:$0xf]
  %v101 = vld [vmem:[%s1 + $0xb8] sm:$0xf]
  %v102 = vld [vmem:[%s1 + $0xbc] sm:$0xf]
  %v103 = vld [vmem:[%s1 + $0xc0] sm:$0xf]
  %v104 = vld [vmem:[%s1 + $0xc4] sm:$0xf]
  %v105 = vld [vmem:[%s1 + $0xc8] sm:$0xf]
  %v106 = vld [vmem:[%s1 + $0xcc] sm:$0xf]
  %v107 = vld [vmem:[%s1 + $0xd0] sm:$0xf]
  %v108 = vld [vmem:[%s1 + $0xd4] sm:$0xf]
  %v109 = vld [vmem:[%s1 + $0xd8] sm:$0xf]
  %v110 = vld [vmem:[%s1 + $0xdc] sm:$0xf]
  %v111 = vld [vmem:[%s1 + $0xe0] sm:$0xf]
  %v112 = vld [vmem:[%s1 + $0xe4] sm:$0xf]
  %v113 = vld [vmem:[%s1 + $0xe8] sm:$0xf]
  %v114 = vld [vmem:[%s1 + $0xec] sm:$0xf]
  %v115 = vld [vmem:[%s1 + $0xf0] sm:$0xf]
  %v116 = vld [vmem:[%s1 + $0xf4] sm:$0xf]
  %v117 = vld [vmem:[%s1 + $0xf8] sm:$0xf]
  %v118 = vld [vmem:[%s1 + $0xfc] sm:$0xf]
  %v119 = vld [vmem:[%s1 + $0x100] sm:$0xf]
  %v120 = vld [vmem:[%s1 + $0x104] sm:$0xf]
  %v121 = vld [vmem:[%s1 + $0x108] sm:$0xf]
  %v122 = vld [vmem:[%s1 + $0x10c] sm:$0xf]
  %v123 = vld [vmem:[%s1 + $0x110] sm:$0xf]
  %v124 = vld [vmem:[%s1 + $0x114] sm:$0xf]
  %v125 = vld [vmem:[%s1 + $0x118] sm:$0xf]
  %v126 = vld [vmem:[%s1 + $0x11c] sm:$0xf]
  %v127 = vld [vmem:[%s1 + $0x120] sm:$0xf]
  %v128 = vld [vmem:[%s1 + $0x124] sm:$0xf]
  %v129 = vld [vmem:[%s1 + $0x128] sm:$0xf]
  %v130 = vld [vmem:[%s1 + $0x12c] sm:$0xf]
  %v131 = vld [vmem:[%s1 + $0x130] sm:$0xf]
  %v132 = vld [vmem:[%s1 + $0x134] sm:$0xf]
  %v133 = vld [vmem:[%s1 + $0x138] sm:$0xf]
  %v134 = vld [vmem:[%s1 + $0x13c] sm:$0xf]
  %v135 = vld [vmem:[%s1 + $0x140] sm:$0xf]
  %v136 = vld [vmem:[%s1 + $0x144] sm:$0xf]
  %v137 = vld [vmem:[%s1 + $0x148] sm:$0xf]
  %v138 = vld [vmem:[%s1 + $0x14c] sm:$0xf]
  %v139 = vld [vmem:[%s1 + $0x150] sm:$0xf]
  %v140 = vld [vmem:[%s1 + $0x154] sm:$0xf]
  %v141 = vld [vmem:[%s1 + $0x158] sm:$0xf]
  %v142 = vld [vmem:[%s1 + $0x15c] sm:$0xf]
  %v143 = vld [vmem:[%s1 + $0x160] sm:$0xf]
  %v144 = vld [vmem:[%s1 + $0x164] sm:$0xf]
  %v145 = vld [vmem:[%s1 + $0x168] sm:$0xf]
  %v146 = vld [vmem:[%s1 + $0x16c] sm:$0xf]
  %v147 = vld [vmem:[%s1 + $0x170] sm:$0xf]
  %v148 = vld [vmem:[%s1 + $0x174] sm:$0xf]
  %v149 = vld [vmem:[%s1 + $0x178] sm:$0xf]
  %v150 = vld [vmem:[%s1 + $0x17c] sm:$0xf]
  %v151 = vld [vmem:[%s1 + $0x180] sm:$0xf]
  %v152 = vld [vmem:[%s1 + $0x184] sm:$0xf]
  %v153 = vld [vmem:[%s1 + $0x188] sm:$0xf]
  %v154 = vld [vmem:[%s1 + $0x18c] sm:$0xf]
  %v155 = vld [vmem:[%s1 + $0x190] sm:$0xf]
  %v156 = vld [vmem:[%s1 + $0x194] sm:$0xf]
  %v157 = vld [vmem:[%s1 + $0x198] sm:$0xf]
  %v158 = vld [vmem:[%s1 + $0x19c] sm:$0xf]
  %v159 = vld [vmem:[%s1 + $0x1a0] sm:$0xf]
  %v160 = vld [vmem:[%s1 + $0x1a4] sm:$0xf]
  %v161 = vld [vmem:[%s1 + $0x1a8] sm:$0xf]
  %v162 = vld [vmem:[%s1 + $0x1ac] sm:$0xf]
  %v163 = vld [vmem:[%s1 + $0x1b0] sm:$0xf]
  %v164 = vld [vmem:[%s1 + $0x1b4] sm:$0xf]
  %v165 = vld [vmem:[%s1 + $0x1b8] sm:$0xf]
  %v166 = vld [vmem:[%s1 + $0x1bc] sm:$0xf]
  %v167 = vld [vmem:[%s1 + $0x1c0] sm:$0xf]
  %v168 = vld [vmem:[%s1 + $0x1c4] sm:$0xf]
  %v169 = vld [vmem:[%s1 + $0x1c8] sm:$0xf]
  %v170 = vld [vmem:[%s1 + $0x1cc] sm:$0xf]
  %v171 = vld [vmem:[%s1 + $0x1d0] sm:$0xf]
  %v172 = vld [vmem:[%s1 + $0x1d4] sm:$0xf]
  %v173 = vld [vmem:[%s1 + $0x1d8] sm:$0xf]
  %v174 = vld [vmem:[%s1 + $0x1dc] sm:$0xf]
  %v175 = vld [vmem:[%s1 + $0x1e0] sm:$0xf]
  %v176 = vld [vmem:[%s1 + $0x1e4] sm:$0xf]
  %v177 = vld [vmem:[%s1 + $0x1e8] sm:$0xf]
  %v178 = vld [vmem:[%s1 + $0x1ec] sm:$0xf]
  %v179 = vld [vmem:[%s1 + $0x1f0] sm:$0xf]
  %v180 = vld [vmem:[%s1 + $0x1f4] sm:$0xf]
  %v181 = vld [vmem:[%s1 + $0x1f8] sm:$0xf]
  %v182 = vld [vmem:[%s1 + $0x1fc] sm:$0xf]
  %v183 = vld [vmem:[%s1 + $0x200] sm:$0xf]
  %v184 = vld [vmem:[%s1 + $0x204] sm:$0xf]
  %v185 = vld [vmem:[%s1 + $0x208] sm:$0xf]
  %v186 = vld [vmem:[%s1 + $0x20c] sm:$0xf]
  %v187 = vld [vmem:[%s1 + $0x210] sm:$0xf]
  %v188 = vld [vmem:[%s1 + $0x214] sm:$0xf]
  %v189 = vld [vmem:[%s1 + $0x218] sm:$0xf]
  %v190 = vld [vmem:[%s1 + $0x21c] sm:$0xf]
  %v191 = vld [vmem:[%s1 + $0x220] sm:$0xf]
  %v192 = vld [vmem:[%s1 + $0x224] sm:$0xf]
  %v193 = vld [vmem:[%s1 + $0x228] sm:$0xf]
  %v194 = vld [vmem:[%s1 + $0x22c] sm:$0xf]
  %v195 = vld [vmem:[%s1 + $0x230] sm:$0xf]
  %v196 = vld [vmem:[%s1 + $0x234] sm:$0xf]
  %v197 = vld [vmem:[%s1 + $0x238] sm:$0xf]
  %v198 = vld [vmem:[%s1 + $0x23c] sm:$0xf]
  %v199 = vld [vmem:[%s2] sm:$0x1]
  %v201 = vlaneseq
  %v202 = vshrl.u32 %v201, 7
  %v203 = vsub.s32 0, %v202
  %v204 = vrot.slane %v199, %v203
  %v246 = vunpack.c.l.b16 %v15
  %v247 = vunpack.c.h.b16 %v15
  %v248 = vunpack.c.l.b16 %v16
  %v249 = vunpack.c.h.b16 %v16
  %v250 = vunpack.c.l.b16 %v17
  %v251 = vunpack.c.h.b16 %v17
  %v252 = vunpack.c.l.b16 %v18
  %v253 = vunpack.c.h.b16 %v18
  %v254 = vunpack.c.l.b16 %v19
  %v255 = vunpack.c.l.b16 %v20
  %v256 = vunpack.c.h.b16 %v20
  %v257 = vunpack.c.l.b16 %v21
  %v258 = vunpack.c.h.b16 %v21
  %v259 = vunpack.c.l.b16 %v22
  %v260 = vunpack.c.h.b16 %v22
  %v261 = vunpack.c.l.b16 %v23
  %v262 = vunpack.c.h.b16 %v23
  %v263 = vunpack.c.l.b16 %v24
  %v264 = vunpack.c.l.b16 %v25
  %v265 = vunpack.c.h.b16 %v25
  %v266 = vunpack.c.l.b16 %v26
  %v267 = vunpack.c.h.b16 %v26
  %v268 = vunpack.c.l.b16 %v27
  %v269 = vunpack.c.h.b16 %v27
  %v270 = vunpack.c.l.b16 %v28
  %v271 = vunpack.c.h.b16 %v28
  %v272 = vunpack.c.l.b16 %v29
  %v273 = vunpack.c.l.b16 %v30
  %v274 = vunpack.c.h.b16 %v30
  %v275 = vunpack.c.l.b16 %v31
  %v276 = vunpack.c.h.b16 %v31
  %v277 = vunpack.c.l.b16 %v32
  %v278 = vunpack.c.h.b16 %v32
  %v279 = vunpack.c.l.b16 %v33
  %v280 = vunpack.c.h.b16 %v33
  %v281 = vunpack.c.l.b16 %v34
  %v282 = vunpack.c.l.b16 %v35
  %v283 = vunpack.c.h.b16 %v35
  %v284 = vunpack.c.l.b16 %v36
  %v285 = vunpack.c.h.b16 %v36
  %v286 = vunpack.c.l.b16 %v37
  %v287 = vunpack.c.h.b16 %v37
  %v288 = vunpack.c.l.b16 %v38
  %v289 = vunpack.c.h.b16 %v38
  %v290 = vunpack.c.l.b16 %v39
  %v291 = vunpack.c.l.b16 %v40
  %v292 = vunpack.c.h.b16 %v40
  %v293 = vunpack.c.l.b16 %v41
  %v294 = vunpack.c.h.b16 %v41
  %v295 = vunpack.c.l.b16 %v42
  %v296 = vunpack.c.h.b16 %v42
  %v297 = vunpack.c.l.b16 %v43
  %v298 = vunpack.c.h.b16 %v43
  %v299 = vunpack.c.l.b16 %v44
  %v300 = vunpack.c.l.b16 %v45
  %v301 = vunpack.c.h.b16 %v45
  %v302 = vunpack.c.l.b16 %v46
  %v303 = vunpack.c.h.b16 %v46
  %v304 = vunpack.c.l.b16 %v47
  %v305 = vunpack.c.h.b16 %v47
  %v306 = vunpack.c.l.b16 %v48
  %v307 = vunpack.c.h.b16 %v48
  %v308 = vunpack.c.l.b16 %v49
  %v309 = vunpack.c.l.b16 %v50
  %v310 = vunpack.c.h.b16 %v50
  %v311 = vunpack.c.l.b16 %v51
  %v312 = vunpack.c.h.b16 %v51
  %v313 = vunpack.c.l.b16 %v52
  %v314 = vunpack.c.h.b16 %v52
  %v315 = vunpack.c.l.b16 %v53
  %v316 = vunpack.c.h.b16 %v53
  %v317 = vunpack.c.l.b16 %v54
  %v318 = vpack.c.b16 %v255, %v246
  %v319 = vpack.c.b16 %v256, %v247
  %v320 = vpack.c.b16 %v257, %v248
  %v321 = vpack.c.b16 %v258, %v249
  %v322 = vpack.c.b16 %v259, %v250
  %v323 = vpack.c.b16 %v260, %v251
  %v324 = vpack.c.b16 %v261, %v252
  %v325 = vpack.c.b16 %v262, %v253
  %v326 = vpack.c.b16 %v263, %v254
  %v327 = vpack.c.b16 %v273, %v264
  %v328 = vpack.c.b16 %v274, %v265
  %v329 = vpack.c.b16 %v275, %v266
  %v330 = vpack.c.b16 %v276, %v267
  %v331 = vpack.c.b16 %v277, %v268
  %v332 = vpack.c.b16 %v278, %v269
  %v333 = vpack.c.b16 %v279, %v270
  %v334 = vpack.c.b16 %v280, %v271
  %v335 = vpack.c.b16 %v281, %v272
  %v336 = vpack.c.b16 %v291, %v282
  %v337 = vpack.c.b16 %v292, %v283
  %v338 = vpack.c.b16 %v293, %v284
  %v339 = vpack.c.b16 %v294, %v285
  %v340 = vpack.c.b16 %v295, %v286
  %v341 = vpack.c.b16 %v296, %v287
  %v342 = vpack.c.b16 %v297, %v288
  %v343 = vpack.c.b16 %v298, %v289
  %v344 = vpack.c.b16 %v299, %v290
  %v345 = vpack.c.b16 %v309, %v300
  %v346 = vpack.c.b16 %v310, %v301
  %v347 = vpack.c.b16 %v311, %v302
  %v348 = vpack.c.b16 %v312, %v303
  %v349 = vpack.c.b16 %v313, %v304
  %v350 = vpack.c.b16 %v314, %v305
  %v351 = vpack.c.b16 %v315, %v306
  %v352 = vpack.c.b16 %v316, %v307
  %v353 = vpack.c.b16 %v317, %v308
  %v534 = vunpack.c.l.b16 %v55
  %v535 = vunpack.c.l.b16 %v56
  %v536 = vunpack.c.l.b16 %v57
  %v537 = vunpack.c.l.b16 %v58
  %v538 = vunpack.c.l.b16 %v59
  %v539 = vunpack.c.l.b16 %v60
  %v540 = vunpack.c.l.b16 %v61
  %v541 = vunpack.c.l.b16 %v62
  %v542 = vunpack.c.l.b16 %v63
  %v543 = vunpack.c.l.b16 %v64
  %v544 = vunpack.c.l.b16 %v65
  %v545 = vunpack.c.l.b16 %v66
  %v546 = vunpack.c.l.b16 %v67
  %v547 = vunpack.c.l.b16 %v68
  %v548 = vunpack.c.l.b16 %v69
  %v549 = vunpack.c.l.b16 %v70
  %v550 = vunpack.c.l.b16 %v71
  %v551 = vunpack.c.l.b16 %v72
  %v552 = vunpack.c.l.b16 %v73
  %v553 = vunpack.c.l.b16 %v74
  %v554 = vunpack.c.l.b16 %v75
  %v555 = vunpack.c.l.b16 %v76
  %v556 = vunpack.c.l.b16 %v77
  %v557 = vunpack.c.l.b16 %v78
  %v558 = vunpack.c.l.b16 %v79
  %v559 = vunpack.c.l.b16 %v80
  %v560 = vunpack.c.l.b16 %v81
  %v561 = vunpack.c.l.b16 %v82
  %v562 = vunpack.c.l.b16 %v83
  %v563 = vunpack.c.l.b16 %v84
  %v564 = vunpack.c.l.b16 %v85
  %v565 = vunpack.c.l.b16 %v86
  %v566 = vunpack.c.l.b16 %v87
  %v567 = vunpack.c.l.b16 %v88
  %v568 = vunpack.c.l.b16 %v89
  %v569 = vunpack.c.l.b16 %v90
  %v570 = vunpack.c.l.b16 %v91
  %v571 = vunpack.c.l.b16 %v92
  %v572 = vunpack.c.l.b16 %v93
  %v573 = vunpack.c.l.b16 %v94
  %v574 = vunpack.c.l.b16 %v95
  %v575 = vunpack.c.l.b16 %v96
  %v576 = vunpack.c.l.b16 %v97
  %v577 = vunpack.c.l.b16 %v98
  %v578 = vunpack.c.l.b16 %v99
  %v579 = vunpack.c.l.b16 %v100
  %v580 = vunpack.c.l.b16 %v101
  %v581 = vunpack.c.l.b16 %v102
  %v582 = vunpack.c.l.b16 %v103
  %v583 = vunpack.c.l.b16 %v104
  %v584 = vunpack.c.l.b16 %v105
  %v585 = vunpack.c.l.b16 %v106
  %v586 = vunpack.c.l.b16 %v107
  %v587 = vunpack.c.l.b16 %v108
  %v588 = vunpack.c.l.b16 %v109
  %v589 = vunpack.c.l.b16 %v110
  %v590 = vunpack.c.l.b16 %v111
  %v591 = vunpack.c.l.b16 %v112
  %v592 = vunpack.c.l.b16 %v113
  %v593 = vunpack.c.l.b16 %v114
  %v594 = vunpack.c.l.b16 %v115
  %v595 = vunpack.c.l.b16 %v116
  %v596 = vunpack.c.l.b16 %v117
  %v597 = vunpack.c.l.b16 %v118
  %v598 = vunpack.c.l.b16 %v119
  %v599 = vunpack.c.l.b16 %v120
  %v600 = vunpack.c.l.b16 %v121
  %v601 = vunpack.c.l.b16 %v122
  %v602 = vunpack.c.l.b16 %v123
  %v603 = vunpack.c.l.b16 %v124
  %v604 = vunpack.c.l.b16 %v125
  %v605 = vunpack.c.l.b16 %v126
  %v606 = vunpack.c.l.b16 %v127
  %v607 = vunpack.c.l.b16 %v128
  %v608 = vunpack.c.l.b16 %v129
  %v609 = vunpack.c.l.b16 %v130
  %v610 = vunpack.c.l.b16 %v131
  %v611 = vunpack.c.l.b16 %v132
  %v612 = vunpack.c.l.b16 %v133
  %v613 = vunpack.c.l.b16 %v134
  %v614 = vunpack.c.l.b16 %v135
  %v615 = vunpack.c.l.b16 %v136
  %v616 = vunpack.c.l.b16 %v137
  %v617 = vunpack.c.l.b16 %v138
  %v618 = vunpack.c.l.b16 %v139
  %v619 = vunpack.c.l.b16 %v140
  %v620 = vunpack.c.l.b16 %v141
  %v621 = vunpack.c.l.b16 %v142
  %v622 = vunpack.c.l.b16 %v143
  %v623 = vunpack.c.l.b16 %v144
  %v624 = vunpack.c.l.b16 %v145
  %v625 = vunpack.c.l.b16 %v146
  %v626 = vunpack.c.l.b16 %v147
  %v627 = vunpack.c.l.b16 %v148
  %v628 = vunpack.c.l.b16 %v149
  %v629 = vunpack.c.l.b16 %v150
  %v630 = vunpack.c.l.b16 %v151
  %v631 = vunpack.c.l.b16 %v152
  %v632 = vunpack.c.l.b16 %v153
  %v633 = vunpack.c.l.b16 %v154
  %v634 = vunpack.c.l.b16 %v155
  %v635 = vunpack.c.l.b16 %v156
  %v636 = vunpack.c.l.b16 %v157
  %v637 = vunpack.c.l.b16 %v158
  %v638 = vunpack.c.l.b16 %v159
  %v639 = vunpack.c.l.b16 %v160
  %v640 = vunpack.c.l.b16 %v161
  %v641 = vunpack.c.l.b16 %v162
  %v642 = vunpack.c.l.b16 %v163
  %v643 = vunpack.c.l.b16 %v164
  %v644 = vunpack.c.l.b16 %v165
  %v645 = vunpack.c.l.b16 %v166
  %v646 = vunpack.c.l.b16 %v167
  %v647 = vunpack.c.l.b16 %v168
  %v648 = vunpack.c.l.b16 %v169
  %v649 = vunpack.c.l.b16 %v170
  %v650 = vunpack.c.l.b16 %v171
  %v651 = vunpack.c.l.b16 %v172
  %v652 = vunpack.c.l.b16 %v173
  %v653 = vunpack.c.l.b16 %v174
  %v654 = vunpack.c.l.b16 %v175
  %v655 = vunpack.c.l.b16 %v176
  %v656 = vunpack.c.l.b16 %v177
  %v657 = vunpack.c.l.b16 %v178
  %v658 = vunpack.c.l.b16 %v179
  %v659 = vunpack.c.l.b16 %v180
  %v660 = vunpack.c.l.b16 %v181
  %v661 = vunpack.c.l.b16 %v182
  %v662 = vunpack.c.l.b16 %v183
  %v663 = vunpack.c.l.b16 %v184
  %v664 = vunpack.c.l.b16 %v185
  %v665 = vunpack.c.l.b16 %v186
  %v666 = vunpack.c.l.b16 %v187
  %v667 = vunpack.c.l.b16 %v188
  %v668 = vunpack.c.l.b16 %v189
  %v669 = vunpack.c.l.b16 %v190
  %v670 = vunpack.c.l.b16 %v191
  %v671 = vunpack.c.l.b16 %v192
  %v672 = vunpack.c.l.b16 %v193
  %v673 = vunpack.c.l.b16 %v194
  %v674 = vunpack.c.l.b16 %v195
  %v675 = vunpack.c.l.b16 %v196
  %v676 = vunpack.c.l.b16 %v197
  %v677 = vunpack.c.l.b16 %v198
  %v678 = vpack.c.b16 %v535, %v534
  %v679 = vpack.c.b16 %v537, %v536
  %v680 = vpack.c.b16 %v539, %v538
  %v681 = vpack.c.b16 %v541, %v540
  %v682 = vpack.c.b16 %v543, %v542
  %v683 = vpack.c.b16 %v545, %v544
  %v684 = vpack.c.b16 %v547, %v546
  %v685 = vpack.c.b16 %v549, %v548
  %v686 = vpack.c.b16 %v551, %v550
  %v687 = vpack.c.b16 %v553, %v552
  %v688 = vpack.c.b16 %v555, %v554
  %v689 = vpack.c.b16 %v557, %v556
  %v690 = vpack.c.b16 %v559, %v558
  %v691 = vpack.c.b16 %v561, %v560
  %v692 = vpack.c.b16 %v563, %v562
  %v693 = vpack.c.b16 %v565, %v564
  %v694 = vpack.c.b16 %v567, %v566
  %v695 = vpack.c.b16 %v569, %v568
  %v696 = vpack.c.b16 %v571, %v570
  %v697 = vpack.c.b16 %v573, %v572
  %v698 = vpack.c.b16 %v575, %v574
  %v699 = vpack.c.b16 %v577, %v576
  %v700 = vpack.c.b16 %v579, %v578
  %v701 = vpack.c.b16 %v581, %v580
  %v702 = vpack.c.b16 %v583, %v582
  %v703 = vpack.c.b16 %v585, %v584
  %v704 = vpack.c.b16 %v587, %v586
  %v705 = vpack.c.b16 %v589, %v588
  %v706 = vpack.c.b16 %v591, %v590
  %v707 = vpack.c.b16 %v593, %v592
  %v708 = vpack.c.b16 %v595, %v594
  %v709 = vpack.c.b16 %v597, %v596
  %v710 = vpack.c.b16 %v599, %v598
  %v711 = vpack.c.b16 %v601, %v600
  %v712 = vpack.c.b16 %v603, %v602
  %v713 = vpack.c.b16 %v605, %v604
  %v714 = vpack.c.b16 %v607, %v606
  %v715 = vpack.c.b16 %v609, %v608
  %v716 = vpack.c.b16 %v611, %v610
  %v717 = vpack.c.b16 %v613, %v612
  %v718 = vpack.c.b16 %v615, %v614
  %v719 = vpack.c.b16 %v617, %v616
  %v720 = vpack.c.b16 %v619, %v618
  %v721 = vpack.c.b16 %v621, %v620
  %v722 = vpack.c.b16 %v623, %v622
  %v723 = vpack.c.b16 %v625, %v624
  %v724 = vpack.c.b16 %v627, %v626
  %v725 = vpack.c.b16 %v629, %v628
  %v726 = vpack.c.b16 %v631, %v630
  %v727 = vpack.c.b16 %v633, %v632
  %v728 = vpack.c.b16 %v635, %v634
  %v729 = vpack.c.b16 %v637, %v636
  %v730 = vpack.c.b16 %v639, %v638
  %v731 = vpack.c.b16 %v641, %v640
  %v732 = vpack.c.b16 %v643, %v642
  %v733 = vpack.c.b16 %v645, %v644
  %v734 = vpack.c.b16 %v647, %v646
  %v735 = vpack.c.b16 %v649, %v648
  %v736 = vpack.c.b16 %v651, %v650
  %v737 = vpack.c.b16 %v653, %v652
  %v738 = vpack.c.b16 %v655, %v654
  %v739 = vpack.c.b16 %v657, %v656
  %v740 = vpack.c.b16 %v659, %v658
  %v741 = vpack.c.b16 %v661, %v660
  %v742 = vpack.c.b16 %v663, %v662
  %v743 = vpack.c.b16 %v665, %v664
  %v744 = vpack.c.b16 %v667, %v666
  %v745 = vpack.c.b16 %v669, %v668
  %v746 = vpack.c.b16 %v671, %v670
  %v747 = vpack.c.b16 %v673, %v672
  %v748 = vpack.c.b16 %v675, %v674
  %v749 = vpack.c.b16 %v677, %v676
  %822 = vmatprep.subr.bf16.mxu0 0
  %823 = vmatpush1.bf16.msra.mxu0 %v678
  %824 = vmatprep.subr.bf16.mxu0 0
  %825 = vmatpush1.bf16.msra.mxu0 %v679
  %826 = vmatprep.subr.bf16.mxu0 0
  %827 = vmatpush1.bf16.msra.mxu0 %v680
  %828 = vmatprep.subr.bf16.mxu0 0
  %829 = vmatpush1.bf16.msra.mxu0 %v681
  %830 = vmatprep.subr.bf16.mxu0 0
  %831 = vmatpush1.bf16.msra.mxu0 %v682
  %832 = vmatprep.subr.bf16.mxu0 0
  %833 = vmatpush1.bf16.msra.mxu0 %v683
  %834 = vmatprep.subr.bf16.mxu0 0
  %835 = vmatpush1.bf16.msra.mxu0 %v684
  %836 = vmatprep.subr.bf16.mxu0 0
  %837 = vmatpush1.bf16.msra.mxu0 %v685
  %838 = vmatprep.subr.bf16.mxu0 0
  %839 = vmatpush1.bf16.msra.mxu0 %v686
  %840 = vmatprep.subr.bf16.mxu0 0
  %841 = vmatpush1.bf16.msra.mxu0 %v687
  %842 = vmatprep.subr.bf16.mxu0 0
  %843 = vmatpush1.bf16.msra.mxu0 %v688
  %844 = vmatprep.subr.bf16.mxu0 0
  %845 = vmatpush1.bf16.msra.mxu0 %v689
  %846 = vmatprep.subr.bf16.mxu0 0
  %847 = vmatpush1.bf16.msra.mxu0 %v690
  %848 = vmatprep.subr.bf16.mxu0 0
  %849 = vmatpush1.bf16.msra.mxu0 %v691
  %850 = vmatprep.subr.bf16.mxu0 0
  %851 = vmatpush1.bf16.msra.mxu0 %v692
  %852 = vmatprep.subr.bf16.mxu0 0
  %853 = vmatpush1.bf16.msra.mxu0 %v693
  %854 = vmatprep.mubr.bf16.mxu0 %v319
  %855 = vmatmul.mubr.bf16.gmra.mrb[0].mxu0 %v318
  %v856 = vpop.f32.mrb[0].mxu0
  %v857 = vadd.f32 %v204, %v856
  %v858 = vpop.f32.mrb[0].mxu0
  %v859 = vpop.f32.mrb[0].mxu0
  %v860 = vadd.f32 %v204, %v859
  %v861 = vpop.f32.mrb[0].mxu0
  %862 = vmatprep.mubr.bf16.mxu0 %v328
  %863 = vmatmul.mubr.bf16.gmra.mrb[0].mxu0 %v327
  %v864 = vpop.f32.mrb[0].mxu0
  %v865 = vadd.f32 %v204, %v864
  %v866 = vpop.f32.mrb[0].mxu0
  %v867 = vpop.f32.mrb[0].mxu0
  %v868 = vadd.f32 %v204, %v867
  %v869 = vpop.f32.mrb[0].mxu0
  %870 = vmatprep.mubr.bf16.mxu0 %v337
  %871 = vmatmul.mubr.bf16.gmra.mrb[0].mxu0 %v336
  %v872 = vpop.f32.mrb[0].mxu0
  %v873 = vadd.f32 %v204, %v872
  %v874 = vpop.f32.mrb[0].mxu0
  %v875 = vpop.f32.mrb[0].mxu0
  %v876 = vadd.f32 %v204, %v875
  %v877 = vpop.f32.mrb[0].mxu0
  %878 = vmatprep.mubr.bf16.mxu0 %v346
  %879 = vmatmul.mubr.bf16.gmra.mrb[0].mxu0 %v345
  %v880 = vpop.f32.mrb[0].mxu0
  %v881 = vadd.f32 %v204, %v880
  %v882 = vpop.f32.mrb[0].mxu0
  %v883 = vpop.f32.mrb[0].mxu0
  %v884 = vadd.f32 %v204, %v883
  %v885 = vpop.f32.mrb[0].mxu0
  %886 = vdwg.mxu0
  %887 = vmatprep.subr.bf16.mxu0 0
  %888 = vmatpush1.bf16.msra.mxu0 %v694
  %889 = vmatprep.subr.bf16.mxu0 0
  %890 = vmatpush1.bf16.msra.mxu0 %v695
  %891 = vmatprep.subr.bf16.mxu0 0
  %892 = vmatpush1.bf16.msra.mxu0 %v696
  %893 = vmatprep.subr.bf16.mxu0 0
  %894 = vmatpush1.bf16.msra.mxu0 %v697
  %895 = vmatprep.subr.bf16.mxu0 0
  %896 = vmatpush1.bf16.msra.mxu0 %v698
  %897 = vmatprep.subr.bf16.mxu0 0
  %898 = vmatpush1.bf16.msra.mxu0 %v699
  %899 = vmatprep.subr.bf16.mxu0 0
  %900 = vmatpush1.bf16.msra.mxu0 %v700
  %901 = vmatprep.subr.bf16.mxu0 0
  %902 = vmatpush1.bf16.msra.mxu0 %v701
  %903 = vmatprep.subr.bf16.mxu0 0
  %904 = vmatpush1.bf16.msra.mxu0 %v702
  %905 = vmatprep.subr.bf16.mxu0 0
  %906 = vmatpush1.bf16.msra.mxu0 %v703
  %907 = vmatprep.subr.bf16.mxu0 0
  %908 = vmatpush1.bf16.msra.mxu0 %v704
  %909 = vmatprep.subr.bf16.mxu0 0
  %910 = vmatpush1.bf16.msra.mxu0 %v705
  %911 = vmatprep.subr.bf16.mxu0 0
  %912 = vmatpush1.bf16.msra.mxu0 %v706
  %913 = vmatprep.subr.bf16.mxu0 0
  %914 = vmatpush1.bf16.msra.mxu0 %v707
  %915 = vmatprep.subr.bf16.mxu0 0
  %916 = vmatpush1.bf16.msra.mxu0 %v708
  %917 = vmatprep.subr.bf16.mxu0 0
  %918 = vmatpush1.bf16.msra.mxu0 %v709
  %919 = vmatprep.mubr.bf16.mxu0 %v321
  %920 = vmatmul.mubr.bf16.gmra.mrb[0].mxu0 %v320
  %v921 = vpop.f32.mrb[0].mxu0
  %v922 = vadd.f32 %v857, %v921
  %v923 = vpop.f32.mrb[0].mxu0
  %v924 = vpop.f32.mrb[0].mxu0
  %v925 = vadd.f32 %v860, %v924
  %v926 = vpop.f32.mrb[0].mxu0
  %927 = vmatprep.mubr.bf16.mxu0 %v330
  %928 = vmatmul.mubr.bf16.gmra.mrb[0].mxu0 %v329
  %v929 = vpop.f32.mrb[0].mxu0
  %v930 = vadd.f32 %v865, %v929
  %v931 = vpop.f32.mrb[0].mxu0
  %v932 = vpop.f32.mrb[0].mxu0
  %v933 = vadd.f32 %v868, %v932
  %v934 = vpop.f32.mrb[0].mxu0
  %935 = vmatprep.mubr.bf16.mxu0 %v339
  %936 = vmatmul.mubr.bf16.gmra.mrb[0].mxu0 %v338
  %v937 = vpop.f32.mrb[0].mxu0
  %v938 = vadd.f32 %v873, %v937
  %v939 = vpop.f32.mrb[0].mxu0
  %v940 = vpop.f32.mrb[0].mxu0
  %v941 = vadd.f32 %v876, %v940
  %v942 = vpop.f32.mrb[0].mxu0
  %943 = vmatprep.mubr.bf16.mxu0 %v348
  %944 = vmatmul.mubr.bf16.gmra.mrb[0].mxu0 %v347
  %v945 = vpop.f32.mrb[0].mxu0
  %v946 = vadd.f32 %v881, %v945
  %v947 = vpop.f32.mrb[0].mxu0
  %v948 = vpop.f32.mrb[0].mxu0
  %v949 = vadd.f32 %v884, %v948
  %v950 = vpop.f32.mrb[0].mxu0
  %951 = vdwg.mxu0
  %952 = vmatprep.subr.bf16.mxu0 0
  %953 = vmatpush1.bf16.msra.mxu0 %v710
  %954 = vmatprep.subr.bf16.mxu0 0
  %955 = vmatpush1.bf16.msra.mxu0 %v711
  %956 = vmatprep.subr.bf16.mxu0 0
  %957 = vmatpush1.bf16.msra.mxu0 %v712
  %958 = vmatprep.subr.bf16.mxu0 0
  %959 = vmatpush1.bf16.msra.mxu0 %v713
  %960 = vmatprep.subr.bf16.mxu0 0
  %961 = vmatpush1.bf16.msra.mxu0 %v714
  %962 = vmatprep.subr.bf16.mxu0 0
  %963 = vmatpush1.bf16.msra.mxu0 %v715
  %964 = vmatprep.subr.bf16.mxu0 0
  %965 = vmatpush1.bf16.msra.mxu0 %v716
  %966 = vmatprep.subr.bf16.mxu0 0
  %967 = vmatpush1.bf16.msra.mxu0 %v717
  %968 = vmatprep.subr.bf16.mxu0 0
  %969 = vmatpush1.bf16.msra.mxu0 %v718
  %970 = vmatprep.subr.bf16.mxu0 0
  %971 = vmatpush1.bf16.msra.mxu0 %v719
  %972 = vmatprep.subr.bf16.mxu0 0
  %973 = vmatpush1.bf16.msra.mxu0 %v720
  %974 = vmatprep.subr.bf16.mxu0 0
  %975 = vmatpush1.bf16.msra.mxu0 %v721
  %976 = vmatprep.subr.bf16.mxu0 0
  %977 = vmatpush1.bf16.msra.mxu0 %v722
  %978 = vmatprep.subr.bf16.mxu0 0
  %979 = vmatpush1.bf16.msra.mxu0 %v723
  %980 = vmatprep.subr.bf16.mxu0 0
  %981 = vmatpush1.bf16.msra.mxu0 %v724
  %982 = vmatprep.subr.bf16.mxu0 0
  %983 = vmatpush1.bf16.msra.mxu0 %v725
  %984 = vmatprep.mubr.bf16.mxu0 %v323
  %985 = vmatmul.mubr.bf16.gmra.mrb[0].mxu0 %v322
  %v986 = vpop.f32.mrb[0].mxu0
  %v987 = vadd.f32 %v922, %v986
  %v988 = vpop.f32.mrb[0].mxu0
  %v989 = vpop.f32.mrb[0].mxu0
  %v990 = vadd.f32 %v925, %v989
  %v991 = vpop.f32.mrb[0].mxu0
  %992 = vmatprep.mubr.bf16.mxu0 %v332
  %993 = vmatmul.mubr.bf16.gmra.mrb[0].mxu0 %v331
  %v994 = vpop.f32.mrb[0].mxu0
  %v995 = vadd.f32 %v930, %v994
  %v996 = vpop.f32.mrb[0].mxu0
  %v997 = vpop.f32.mrb[0].mxu0
  %v998 = vadd.f32 %v933, %v997
  %v999 = vpop.f32.mrb[0].mxu0
  %1000 = vmatprep.mubr.bf16.mxu0 %v341
  %1001 = vmatmul.mubr.bf16.gmra.mrb[0].mxu0 %v340
  %v1002 = vpop.f32.mrb[0].mxu0
  %v1003 = vadd.f32 %v938, %v1002
  %v1004 = vpop.f32.mrb[0].mxu0
  %v1005 = vpop.f32.mrb[0].mxu0
  %v1006 = vadd.f32 %v941, %v1005
  %v1007 = vpop.f32.mrb[0].mxu0
  %1008 = vmatprep.mubr.bf16.mxu0 %v350
  %1009 = vmatmul.mubr.bf16.gmra.mrb[0].mxu0 %v349
  %v1010 = vpop.f32.mrb[0].mxu0
  %v1011 = vadd.f32 %v946, %v1010
  %v1012 = vpop.f32.mrb[0].mxu0
  %v1013 = vpop.f32.mrb[0].mxu0
  %v1014 = vadd.f32 %v949, %v1013
  %v1015 = vpop.f32.mrb[0].mxu0
  %1016 = vdwg.mxu0
  %1017 = vmatprep.subr.bf16.mxu0 0
  %1018 = vmatpush1.bf16.msra.mxu0 %v726
  %1019 = vmatprep.subr.bf16.mxu0 0
  %1020 = vmatpush1.bf16.msra.mxu0 %v727
  %1021 = vmatprep.subr.bf16.mxu0 0
  %1022 = vmatpush1.bf16.msra.mxu0 %v728
  %1023 = vmatprep.subr.bf16.mxu0 0
  %1024 = vmatpush1.bf16.msra.mxu0 %v729
  %1025 = vmatprep.subr.bf16.mxu0 0
  %1026 = vmatpush1.bf16.msra.mxu0 %v730
  %1027 = vmatprep.subr.bf16.mxu0 0
  %1028 = vmatpush1.bf16.msra.mxu0 %v731
  %1029 = vmatprep.subr.bf16.mxu0 0
  %1030 = vmatpush1.bf16.msra.mxu0 %v732
  %1031 = vmatprep.subr.bf16.mxu0 0
  %1032 = vmatpush1.bf16.msra.mxu0 %v733
  %1033 = vmatprep.subr.bf16.mxu0 0
  %1034 = vmatpush1.bf16.msra.mxu0 %v734
  %1035 = vmatprep.subr.bf16.mxu0 0
  %1036 = vmatpush1.bf16.msra.mxu0 %v735
  %1037 = vmatprep.subr.bf16.mxu0 0
  %1038 = vmatpush1.bf16.msra.mxu0 %v736
  %1039 = vmatprep.subr.bf16.mxu0 0
  %1040 = vmatpush1.bf16.msra.mxu0 %v737
  %1041 = vmatprep.subr.bf16.mxu0 0
  %1042 = vmatpush1.bf16.msra.mxu0 %v738
  %1043 = vmatprep.subr.bf16.mxu0 0
  %1044 = vmatpush1.bf16.msra.mxu0 %v739
  %1045 = vmatprep.subr.bf16.mxu0 0
  %1046 = vmatpush1.bf16.msra.mxu0 %v740
  %1047 = vmatprep.subr.bf16.mxu0 0
  %1048 = vmatpush1.bf16.msra.mxu0 %v741
  %1049 = vmatprep.mubr.bf16.mxu0 %v325
  %1050 = vmatmul.mubr.bf16.gmra.mrb[0].mxu0 %v324
  %v1051 = vpop.f32.mrb[0].mxu0
  %v1052 = vadd.f32 %v987, %v1051
  %v1053 = vpop.f32.mrb[0].mxu0
  %v1054 = vpop.f32.mrb[0].mxu0
  %v1055 = vadd.f32 %v990, %v1054
  %v1056 = vpop.f32.mrb[0].mxu0
  %1057 = vmatprep.mubr.bf16.mxu0 %v334
  %1058 = vmatmul.mubr.bf16.gmra.mrb[0].mxu0 %v333
  %v1059 = vpop.f32.mrb[0].mxu0
  %v1060 = vadd.f32 %v995, %v1059
  %v1061 = vpop.f32.mrb[0].mxu0
  %v1062 = vpop.f32.mrb[0].mxu0
  %v1063 = vadd.f32 %v998, %v1062
  %v1064 = vpop.f32.mrb[0].mxu0
  %1065 = vmatprep.mubr.bf16.mxu0 %v343
  %1066 = vmatmul.mubr.bf16.gmra.mrb[0].mxu0 %v342
  %v1067 = vpop.f32.mrb[0].mxu0
  %v1068 = vadd.f32 %v1003, %v1067
  %v1069 = vpop.f32.mrb[0].mxu0
  %v1070 = vpop.f32.mrb[0].mxu0
  %v1071 = vadd.f32 %v1006, %v1070
  %v1072 = vpop.f32.mrb[0].mxu0
  %1073 = vmatprep.mubr.bf16.mxu0 %v352
  %1074 = vmatmul.mubr.bf16.gmra.mrb[0].mxu0 %v351
  %v1075 = vpop.f32.mrb[0].mxu0
  %v1076 = vadd.f32 %v1011, %v1075
  %v1077 = vpop.f32.mrb[0].mxu0
  %v1078 = vpop.f32.mrb[0].mxu0
  %v1079 = vadd.f32 %v1014, %v1078
  %v1080 = vpop.f32.mrb[0].mxu0
  %1081 = vdwg.mxu0
  %1082 = vmatprep.subr.bf16.mxu0 0
  %1083 = vmatpush1.bf16.msra.mxu0 %v742
  %1084 = vmatprep.subr.bf16.mxu0 0
  %1085 = vmatpush1.bf16.msra.mxu0 %v743
  %1086 = vmatprep.subr.bf16.mxu0 0
  %1087 = vmatpush1.bf16.msra.mxu0 %v744
  %1088 = vmatprep.subr.bf16.mxu0 0
  %1089 = vmatpush1.bf16.msra.mxu0 %v745
  %1090 = vmatprep.subr.bf16.mxu0 0
  %1091 = vmatpush1.bf16.msra.mxu0 %v746
  %1092 = vmatprep.subr.bf16.mxu0 0
  %1093 = vmatpush1.bf16.msra.mxu0 %v747
  %1094 = vmatprep.subr.bf16.mxu0 0
  %1095 = vmatpush1.bf16.msra.mxu0 %v748
  %1096 = vmatprep.subr.bf16.mxu0 0
  %1097 = vmatpush1.bf16.msra.mxu0 %v749
  %1098 = vmatprep.subr.bf16.mxu0 0
  %1099 = vmatpush1.bf16.msra.mxu0 0
  %1100 = vmatprep.subr.bf16.mxu0 0
  %1101 = vmatpush1.bf16.msra.mxu0 0
  %1102 = vmatprep.subr.bf16.mxu0 0
  %1103 = vmatpush1.bf16.msra.mxu0 0
  %1104 = vmatprep.subr.bf16.mxu0 0
  %1105 = vmatpush1.bf16.msra.mxu0 0
  %1106 = vmatprep.subr.bf16.mxu0 0
  %1107 = vmatpush1.bf16.msra.mxu0 0
  %1108 = vmatprep.subr.bf16.mxu0 0
  %1109 = vmatpush1.bf16.msra.mxu0 0
  %1110 = vmatprep.subr.bf16.mxu0 0
  %1111 = vmatpush1.bf16.msra.mxu0 0
  %1112 = vmatprep.subr.bf16.mxu0 0
  %1113 = vmatpush1.bf16.msra.mxu0 0
  %1114 = vmatprep.mubr.bf16.mxu0 0
  %1115 = vmatmul.mubr.bf16.gmra.mrb[0].mxu0 %v326
  %v1116 = vpop.f32.mrb[0].mxu0
  %v1117 = vadd.f32 %v1052, %v1116
  %v1118 = vpop.f32.mrb[0].mxu0
  %v1119 = vpop.f32.mrb[0].mxu0
  %v1120 = vadd.f32 %v1055, %v1119
  %v1121 = vpop.f32.mrb[0].mxu0
  %1122 = vmatprep.mubr.bf16.mxu0 0
  %1123 = vmatmul.mubr.bf16.gmra.mrb[0].mxu0 %v335
  %v1124 = vpop.f32.mrb[0].mxu0
  %v1125 = vadd.f32 %v1060, %v1124
  %v1126 = vpop.f32.mrb[0].mxu0
  %v1127 = vpop.f32.mrb[0].mxu0
  %v1128 = vadd.f32 %v1063, %v1127
  %v1129 = vpop.f32.mrb[0].mxu0
  %1130 = vmatprep.mubr.bf16.mxu0 0
  %1131 = vmatmul.mubr.bf16.gmra.mrb[0].mxu0 %v344
  %v1132 = vpop.f32.mrb[0].mxu0
  %v1133 = vadd.f32 %v1068, %v1132
  %v1134 = vpop.f32.mrb[0].mxu0
  %v1135 = vpop.f32.mrb[0].mxu0
  %v1136 = vadd.f32 %v1071, %v1135
  %v1137 = vpop.f32.mrb[0].mxu0
  %1138 = vmatprep.mubr.bf16.mxu0 0
  %1139 = vmatmul.mubr.bf16.gmra.mrb[0].mxu0 %v353
  %v1140 = vpop.f32.mrb[0].mxu0
  %v1141 = vadd.f32 %v1076, %v1140
  %v1142 = vpop.f32.mrb[0].mxu0
  %v1143 = vpop.f32.mrb[0].mxu0
  %v1144 = vadd.f32 %v1079, %v1143
  %v1145 = vpop.f32.mrb[0].mxu0
  %1146 = vdwg.mxu0
  %vm1147 = vcmp.ge.f32.partialorder %v1117, 0.0
  %vm1148 = vcmp.ge.f32.partialorder %v1120, 0.0
  %vm1149 = vcmp.ge.f32.partialorder %v1125, 0.0
  %vm1150 = vcmp.ge.f32.partialorder %v1128, 0.0
  %vm1151 = vcmp.ge.f32.partialorder %v1133, 0.0
  %vm1152 = vcmp.ge.f32.partialorder %v1136, 0.0
  %vm1153 = vcmp.ge.f32.partialorder %v1141, 0.0
  %vm1154 = vcmp.ge.f32.partialorder %v1144, 0.0
  %v1155 = vmul.f32 %v1117, 0.2
  %v1156 = vmul.f32 %v1120, 0.2
  %v1157 = vmul.f32 %v1125, 0.2
  %v1158 = vmul.f32 %v1128, 0.2
  %v1159 = vmul.f32 %v1133, 0.2
  %v1160 = vmul.f32 %v1136, 0.2
  %v1161 = vmul.f32 %v1141, 0.2
  %v1162 = vmul.f32 %v1144, 0.2
  %v1163 = vsel %vm1147, %v1117, %v1155
  %v1164 = vsel %vm1148, %v1120, %v1156
  %v1165 = vsel %vm1149, %v1125, %v1157
  %v1166 = vsel %vm1150, %v1128, %v1158
  %v1167 = vsel %vm1151, %v1133, %v1159
  %v1168 = vsel %vm1152, %v1136, %v1160
  %v1169 = vsel %vm1153, %v1141, %v1161
  %v1170 = vsel %vm1154, %v1144, %v1162
  %v1171 = vpack.c.bf16 %v1164, %v1163
  %v1172 = vpack.c.bf16 %v1166, %v1165
  %v1173 = vpack.c.bf16 %v1168, %v1167
  %v1174 = vpack.c.bf16 %v1170, %v1169
  %v1179 = vunpack.c.l.b16 %v1171
  %v1180 = vunpack.c.h.b16 %v1171
  %v1181 = vunpack.c.l.b16 %v1172
  %v1182 = vunpack.c.h.b16 %v1172
  %v1183 = vunpack.c.l.b16 %v1173
  %v1184 = vunpack.c.h.b16 %v1173
  %v1185 = vunpack.c.l.b16 %v1174
  %v1186 = vunpack.c.h.b16 %v1174
  %v1187 = vpack.c.b16 %v1179, %v1179
  %v1188 = vpack.c.b16 %v1180, %v1180
  %v1189 = vpack.c.b16 %v1181, %v1181
  %v1190 = vpack.c.b16 %v1182, %v1182
  %v1191 = vpack.c.b16 %v1183, %v1183
  %v1192 = vpack.c.b16 %v1184, %v1184
  %v1193 = vpack.c.b16 %v1185, %v1185
  %v1194 = vpack.c.b16 %v1186, %v1186
  %1203 = vst [vmem:[%s3] sm:$0xf] %v1187
  %1204 = vst [vmem:[%s3 + $0x4] sm:$0xf] %v1188
  %1205 = vst [vmem:[%s3 + $0x8] sm:$0xf] %v1189
  %1206 = vst [vmem:[%s3 + $0xc] sm:$0xf] %v1190
  %1207 = vst [vmem:[%s3 + $0x10] sm:$0xf] %v1191
  %1208 = vst [vmem:[%s3 + $0x14] sm:$0xf] %v1192
  %1209 = vst [vmem:[%s3 + $0x18] sm:$0xf] %v1193
  %1210 = vst [vmem:[%s3 + $0x1c] sm:$0xf] %v1194
  // Predicated region
  $region14: #{forward.6} parent=0 // pred_check
    _
  $region15: #{forward.6} parent=0 // pred_check_branch
    %1212 = sbr.rel (0) target = $region17
  $region16: #{forward.6} parent=0 // pred_region
    _
  $region17: #{forward.6} parent=0 // pred_fallthru
    _
  // Predicated region
  $region18: #{forward.6} parent=0 // pred_check
    _
  $region19: #{forward.6} parent=0 // pred_check_branch
    %1214 = sbr.rel (0) target = $region21
  $region20: #{forward.6} parent=0 // pred_region
    _
  $region21: #{forward.6} parent=0 // pred_fallthru
    _

// kernel: forward.5
$region0: #{forward.5}
  #allocation0 [shape = 'u32[]', space=smem, size = 0x4, offset = 0x4, fixed_abs, tag = 'smem constant byte address 0x4 - core index']
  #allocation1 [shape = 'u32[144,128]{1,0:T(1,128)}', space=vmem, size = 0x12000, scoped, tag = 'internal scratch']
  %s0 = inlined_call_operand.vmem [shape: bf16[256,1152], index: 0, kind: input, shape index: {}]
  %s1 = inlined_call_operand.vmem [shape: bf16[1152,128], index: 1, kind: input, shape index: {}]
  %s2 = inlined_call_operand.vmem [shape: f32[1,128], index: 2, kind: input, shape index: {}]
  %s3 = inlined_call_operand.vmem [shape: bf16[256,128], index: 3, kind: output, shape index: {}]
  %s4 = sld [smem:[#allocation0]]
  $region22: #{forward.5} parent=0
    _
  %s6 = ssub.s32 1, %s4
  %s7 = scalar_select 0, %s6, %s4
  // Predicated region
  $region2: #{forward.5} parent=0 // pred_check
    _
  $region3: #{forward.5} parent=0 // pred_check_branch
    %9 = sbr.rel (0) target = $region5
  $region4: #{forward.5} parent=0 // pred_region
    _
  $region5: #{forward.5} parent=0 // pred_fallthru
    _
  // Predicated region
  $region6: #{forward.5} parent=0 // pred_check
    _
  $region7: #{forward.5} parent=0 // pred_check_branch
    %11 = sbr.rel (0) target = $region9
  $region8: #{forward.5} parent=0 // pred_region
    _
  $region9: #{forward.5} parent=0 // pred_fallthru
    _
  // Predicated region
  $region10: #{forward.5} parent=0 // pred_check
    _
  $region11: #{forward.5} parent=0 // pred_check_branch
    %13 = sbr.rel (0) target = $region13
  $region12: #{forward.5} parent=0 // pred_region
    _
  $region13: #{forward.5} parent=0 // pred_fallthru
    _
  %v15 = vld [vmem:[%s0] sm:$0xff]
  %v16 = vld [vmem:[%s0 + $0x8] sm:$0xff]
  %v17 = vld [vmem:[%s0 + $0x10] sm:$0xff]
  %v18 = vld [vmem:[%s0 + $0x18] sm:$0xff]
  %v19 = vld [vmem:[%s0 + $0x20] sm:$0xf]
  %v20 = vld [vmem:[%s0 + $0x24] sm:$0xff]
  %v21 = vld [vmem:[%s0 + $0x2c] sm:$0xff]
  %v22 = vld [vmem:[%s0 + $0x34] sm:$0xff]
  %v23 = vld [vmem:[%s0 + $0x3c] sm:$0xff]
  %v24 = vld [vmem:[%s0 + $0x44] sm:$0xf]
  %v25 = vld [vmem:[%s0 + $0x48] sm:$0xff]
  %v26 = vld [vmem:[%s0 + $0x50] sm:$0xff]
  %v27 = vld [vmem:[%s0 + $0x58] sm:$0xff]
  %v28 = vld [vmem:[%s0 + $0x60] sm:$0xff]
  %v29 = vld [vmem:[%s0 + $0x68] sm:$0xf]
  %v30 = vld [vmem:[%s0 + $0x6c] sm:$0xff]
  %v31 = vld [vmem:[%s0 + $0x74] sm:$0xff]
  %v32 = vld [vmem:[%s0 + $0x7c] sm:$0xff]
  %v33 = vld [vmem:[%s0 + $0x84] sm:$0xff]
  %v34 = vld [vmem:[%s0 + $0x8c] sm:$0xf]
  %v35 = vld [vmem:[%s0 + $0x90] sm:$0xff]
  %v36 = vld [vmem:[%s0 + $0x98] sm:$0xff]
  %v37 = vld [vmem:[%s0 + $0xa0] sm:$0xff]
  %v38 = vld [vmem:[%s0 + $0xa8] sm:$0xff]
  %v39 = vld [vmem:[%s0 + $0xb0] sm:$0xf]
  %v40 = vld [vmem:[%s0 + $0xb4] sm:$0xff]
  %v41 = vld [vmem:[%s0 + $0xbc] sm:$0xff]
  %v42 = vld [vmem:[%s0 + $0xc4] sm:$0xff]
  %v43 = vld [vmem:[%s0 + $0xcc] sm:$0xff]
  %v44 = vld [vmem:[%s0 + $0xd4] sm:$0xf]
  %v45 = vld [vmem:[%s0 + $0xd8] sm:$0xff]
  %v46 = vld [vmem:[%s0 + $0xe0] sm:$0xff]
  %v47 = vld [vmem:[%s0 + $0xe8] sm:$0xff]
  %v48 = vld [vmem:[%s0 + $0xf0] sm:$0xff]
  %v49 = vld [vmem:[%s0 + $0xf8] sm:$0xf]
  %v50 = vld [vmem:[%s0 + $0xfc] sm:$0xff]
  %v51 = vld [vmem:[%s0 + $0x104] sm:$0xff]
  %v52 = vld [vmem:[%s0 + $0x10c] sm:$0xff]
  %v53 = vld [vmem:[%s0 + $0x114] sm:$0xff]
  %v54 = vld [vmem:[%s0 + $0x11c] sm:$0xf]
  %v55 = vld [vmem:[%s0 + $0x120] sm:$0xff]
  %v56 = vld [vmem:[%s0 + $0x128] sm:$0xff]
  %v57 = vld [vmem:[%s0 + $0x130] sm:$0xff]
  %v58 = vld [vmem:[%s0 + $0x138] sm:$0xff]
  %v59 = vld [vmem:[%s0 + $0x140] sm:$0xf]
  %v60 = vld [vmem:[%s0 + $0x144] sm:$0xff]
  %v61 = vld [vmem:[%s0 + $0x14c] sm:$0xff]
  %v62 = vld [vmem:[%s0 + $0x154] sm:$0xff]
  %v63 = vld [vmem:[%s0 + $0x15c] sm:$0xff]
  %v64 = vld [vmem:[%s0 + $0x164] sm:$0xf]
  %v65 = vld [vmem:[%s0 + $0x168] sm:$0xff]
  %v66 = vld [vmem:[%s0 + $0x170] sm:$0xff]
  %v67 = vld [vmem:[%s0 + $0x178] sm:$0xff]
  %v68 = vld [vmem:[%s0 + $0x180] sm:$0xff]
  %v69 = vld [vmem:[%s0 + $0x188] sm:$0xf]
  %v70 = vld [vmem:[%s0 + $0x18c] sm:$0xff]
  %v71 = vld [vmem:[%s0 + $0x194] sm:$0xff]
  %v72 = vld [vmem:[%s0 + $0x19c] sm:$0xff]
  %v73 = vld [vmem:[%s0 + $0x1a4] sm:$0xff]
  %v74 = vld [vmem:[%s0 + $0x1ac] sm:$0xf]
  %v75 = vld [vmem:[%s0 + $0x1b0] sm:$0xff]
  %v76 = vld [vmem:[%s0 + $0x1b8] sm:$0xff]
  %v77 = vld [vmem:[%s0 + $0x1c0] sm:$0xff]
  %v78 = vld [vmem:[%s0 + $0x1c8] sm:$0xff]
  %v79 = vld [vmem:[%s0 + $0x1d0] sm:$0xf]
  %v80 = vld [vmem:[%s0 + $0x1d4] sm:$0xff]
  %v81 = vld [vmem:[%s0 + $0x1dc] sm:$0xff]
  %v82 = vld [vmem:[%s0 + $0x1e4] sm:$0xff]
  %v83 = vld [vmem:[%s0 + $0x1ec] sm:$0xff]
  %v84 = vld [vmem:[%s0 + $0x1f4] sm:$0xf]
  %v85 = vld [vmem:[%s0 + $0x1f8] sm:$0xff]
  %v86 = vld [vmem:[%s0 + $0x200] sm:$0xff]
  %v87 = vld [vmem:[%s0 + $0x208] sm:$0xff]
  %v88 = vld [vmem:[%s0 + $0x210] sm:$0xff]
  %v89 = vld [vmem:[%s0 + $0x218] sm:$0xf]
  %v90 = vld [vmem:[%s0 + $0x21c] sm:$0xff]
  %v91 = vld [vmem:[%s0 + $0x224] sm:$0xff]
  %v92 = vld [vmem:[%s0 + $0x22c] sm:$0xff]
  %v93 = vld [vmem:[%s0 + $0x234] sm:$0xff]
  %v94 = vld [vmem:[%s0 + $0x23c] sm:$0xf]
  %v95 = vld [vmem:[%s0 + $0x240] sm:$0xff]
  %v96 = vld [vmem:[%s0 + $0x248] sm:$0xff]
  %v97 = vld [vmem:[%s0 + $0x250] sm:$0xff]
  %v98 = vld [vmem:[%s0 + $0x258] sm:$0xff]
  %v99 = vld [vmem:[%s0 + $0x260] sm:$0xf]
  %v100 = vld [vmem:[%s0 + $0x264] sm:$0xff]
  %v101 = vld [vmem:[%s0 + $0x26c] sm:$0xff]
  %v102 = vld [vmem:[%s0 + $0x274] sm:$0xff]
  %v103 = vld [vmem:[%s0 + $0x27c] sm:$0xff]
  %v104 = vld [vmem:[%s0 + $0x284] sm:$0xf]
  %v105 = vld [vmem:[%s0 + $0x288] sm:$0xff]
  %v106 = vld [vmem:[%s0 + $0x290] sm:$0xff]
  %v107 = vld [vmem:[%s0 + $0x298] sm:$0xff]
  %v108 = vld [vmem:[%s0 + $0x2a0] sm:$0xff]
  %v109 = vld [vmem:[%s0 + $0x2a8] sm:$0xf]
  %v110 = vld [vmem:[%s0 + $0x2ac] sm:$0xff]
  %v111 = vld [vmem:[%s0 + $0x2b4] sm:$0xff]
  %v112 = vld [vmem:[%s0 + $0x2bc] sm:$0xff]
  %v113 = vld [vmem:[%s0 + $0x2c4] sm:$0xff]
  %v114 = vld [vmem:[%s0 + $0x2cc] sm:$0xf]
  %v115 = vld [vmem:[%s0 + $0x2d0] sm:$0xff]
  %v116 = vld [vmem:[%s0 + $0x2d8] sm:$0xff]
  %v117 = vld [vmem:[%s0 + $0x2e0] sm:$0xff]
  %v118 = vld [vmem:[%s0 + $0x2e8] sm:$0xff]
  %v119 = vld [vmem:[%s0 + $0x2f0] sm:$0xf]
  %v120 = vld [vmem:[%s0 + $0x2f4] sm:$0xff]
  %v121 = vld [vmem:[%s0 + $0x2fc] sm:$0xff]
  %v122 = vld [vmem:[%s0 + $0x304] sm:$0xff]
  %v123 = vld [vmem:[%s0 + $0x30c] sm:$0xff]
  %v124 = vld [vmem:[%s0 + $0x314] sm:$0xf]
  %v125 = vld [vmem:[%s0 + $0x318] sm:$0xff]
  %v126 = vld [vmem:[%s0 + $0x320] sm:$0xff]
  %v127 = vld [vmem:[%s0 + $0x328] sm:$0xff]
  %v128 = vld [vmem:[%s0 + $0x330] sm:$0xff]
  %v129 = vld [vmem:[%s0 + $0x338] sm:$0xf]
  %v130 = vld [vmem:[%s0 + $0x33c] sm:$0xff]
  %v131 = vld [vmem:[%s0 + $0x344] sm:$0xff]
  %v132 = vld [vmem:[%s0 + $0x34c] sm:$0xff]
  %v133 = vld [vmem:[%s0 + $0x354] sm:$0xff]
  %v134 = vld [vmem:[%s0 + $0x35c] sm:$0xf]
  %v135 = vld [vmem:[%s0 + $0x360] sm:$0xff]
  %v136 = vld [vmem:[%s0 + $0x368] sm:$0xff]
  %v137 = vld [vmem:[%s0 + $0x370] sm:$0xff]
  %v138 = vld [vmem:[%s0 + $0x378] sm:$0xff]
  %v139 = vld [vmem:[%s0 + $0x380] sm:$0xf]
  %v140 = vld [vmem:[%s0 + $0x384] sm:$0xff]
  %v141 = vld [vmem:[%s0 + $0x38c] sm:$0xff]
  %v142 = vld [vmem:[%s0 + $0x394] sm:$0xff]
  %v143 = vld [vmem:[%s0 + $0x39c] sm:$0xff]
  %v144 = vld [vmem:[%s0 + $0x3a4] sm:$0xf]
  %v145 = vld [vmem:[%s0 + $0x3a8] sm:$0xff]
  %v146 = vld [vmem:[%s0 + $0x3b0] sm:$0xff]
  %v147 = vld [vmem:[%s0 + $0x3b8] sm:$0xff]
  %v148 = vld [vmem:[%s0 + $0x3c0] sm:$0xff]
  %v149 = vld [vmem:[%s0 + $0x3c8] sm:$0xf]
  %v150 = vld [vmem:[%s0 + $0x3cc] sm:$0xff]
  %v151 = vld [vmem:[%s0 + $0x3d4] sm:$0xff]
  %v152 = vld [vmem:[%s0 + $0x3dc] sm:$0xff]
  %v153 = vld [vmem:[%s0 + $0x3e4] sm:$0xff]
  %v154 = vld [vmem:[%s0 + $0x3ec] sm:$0xf]
  %v155 = vld [vmem:[%s0 + $0x3f0] sm:$0xff]
  %v156 = vld [vmem:[%s0 + $0x3f8] sm:$0xff]
  %v157 = vld [vmem:[%s0 + $0x400] sm:$0xff]
  %v158 = vld [vmem:[%s0 + $0x408] sm:$0xff]
  %v159 = vld [vmem:[%s0 + $0x410] sm:$0xf]
  %v160 = vld [vmem:[%s0 + $0x414] sm:$0xff]
  %v161 = vld [vmem:[%s0 + $0x41c] sm:$0xff]
  %v162 = vld [vmem:[%s0 + $0x424] sm:$0xff]
  %v163 = vld [vmem:[%s0 + $0x42c] sm:$0xff]
  %v164 = vld [vmem:[%s0 + $0x434] sm:$0xf]
  %v165 = vld [vmem:[%s0 + $0x438] sm:$0xff]
  %v166 = vld [vmem:[%s0 + $0x440] sm:$0xff]
  %v167 = vld [vmem:[%s0 + $0x448] sm:$0xff]
  %v168 = vld [vmem:[%s0 + $0x450] sm:$0xff]
  %v169 = vld [vmem:[%s0 + $0x458] sm:$0xf]
  %v170 = vld [vmem:[%s0 + $0x45c] sm:$0xff]
  %v171 = vld [vmem:[%s0 + $0x464] sm:$0xff]
  %v172 = vld [vmem:[%s0 + $0x46c] sm:$0xff]
  %v173 = vld [vmem:[%s0 + $0x474] sm:$0xff]
  %v174 = vld [vmem:[%s0 + $0x47c] sm:$0xf]
  %v175 = vld [vmem:[%s1] sm:$0xf]
  %v176 = vld [vmem:[%s1 + $0x4] sm:$0xf]
  %v177 = vld [vmem:[%s1 + $0x8] sm:$0xf]
  %v178 = vld [vmem:[%s1 + $0xc] sm:$0xf]
  %v179 = vld [vmem:[%s1 + $0x10] sm:$0xf]
  %v180 = vld [vmem:[%s1 + $0x14] sm:$0xf]
  %v181 = vld [vmem:[%s1 + $0x18] sm:$0xf]
  %v182 = vld [vmem:[%s1 + $0x1c] sm:$0xf]
  %v183 = vld [vmem:[%s1 + $0x20] sm:$0xf]
  %v184 = vld [vmem:[%s1 + $0x24] sm:$0xf]
  %v185 = vld [vmem:[%s1 + $0x28] sm:$0xf]
  %v186 = vld [vmem:[%s1 + $0x2c] sm:$0xf]
  %v187 = vld [vmem:[%s1 + $0x30] sm:$0xf]
  %v188 = vld [vmem:[%s1 + $0x34] sm:$0xf]
  %v189 = vld [vmem:[%s1 + $0x38] sm:$0xf]
  %v190 = vld [vmem:[%s1 + $0x3c] sm:$0xf]
  %v191 = vld [vmem:[%s1 + $0x40] sm:$0xf]
  %v192 = vld [vmem:[%s1 + $0x44] sm:$0xf]
  %v193 = vld [vmem:[%s1 + $0x48] sm:$0xf]
  %v194 = vld [vmem:[%s1 + $0x4c] sm:$0xf]
  %v195 = vld [vmem:[%s1 + $0x50] sm:$0xf]
  %v196 = vld [vmem:[%s1 + $0x54] sm:$0xf]
  %v197 = vld [vmem:[%s1 + $0x58] sm:$0xf]
  %v198 = vld [vmem:[%s1 + $0x5c] sm:$0xf]
  %v199 = vld [vmem:[%s1 + $0x60] sm:$0xf]
  %v200 = vld [vmem:[%s1 + $0x64] sm:$0xf]
  %v201 = vld [vmem:[%s1 + $0x68] sm:$0xf]
  %v202 = vld [vmem:[%s1 + $0x6c] sm:$0xf]
  %v203 = vld [vmem:[%s1 + $0x70] sm:$0xf]
  %v204 = vld [vmem:[%s1 + $0x74] sm:$0xf]
  %v205 = vld [vmem:[%s1 + $0x78] sm:$0xf]
  %v206 = vld [vmem:[%s1 + $0x7c] sm:$0xf]
  %v207 = vld [vmem:[%s1 + $0x80] sm:$0xf]
  %v208 = vld [vmem:[%s1 + $0x84] sm:$0xf]
  %v209 = vld [vmem:[%s1 + $0x88] sm:$0xf]
  %v210 = vld [vmem:[%s1 + $0x8c] sm:$0xf]
  %v211 = vld [vmem:[%s1 + $0x90] sm:$0xf]
  %v212 = vld [vmem:[%s1 + $0x94] sm:$0xf]
  %v213 = vld [vmem:[%s1 + $0x98] sm:$0xf]
  %v214 = vld [vmem:[%s1 + $0x9c] sm:$0xf]
  %v215 = vld [vmem:[%s1 + $0xa0] sm:$0xf]
  %v216 = vld [vmem:[%s1 + $0xa4] sm:$0xf]
  %v217 = vld [vmem:[%s1 + $0xa8] sm:$0xf]
  %v218 = vld [vmem:[%s1 + $0xac] sm:$0xf]
  %v219 = vld [vmem:[%s1 + $0xb0] sm:$0xf]
  %v220 = vld [vmem:[%s1 + $0xb4] sm:$0xf]
  %v221 = vld [vmem:[%s1 + $0xb8] sm:$0xf]
  %v222 = vld [vmem:[%s1 + $0xbc] sm:$0xf]
  %v223 = vld [vmem:[%s1 + $0xc0] sm:$0xf]
  %v224 = vld [vmem:[%s1 + $0xc4] sm:$0xf]
  %v225 = vld [vmem:[%s1 + $0xc8] sm:$0xf]
  %v226 = vld [vmem:[%s1 + $0xcc] sm:$0xf]
  %v227 = vld [vmem:[%s1 + $0xd0] sm:$0xf]
  %v228 = vld [vmem:[%s1 + $0xd4] sm:$0xf]
  %v229 = vld [vmem:[%s1 + $0xd8] sm:$0xf]
  %v230 = vld [vmem:[%s1 + $0xdc] sm:$0xf]
  %v231 = vld [vmem:[%s1 + $0xe0] sm:$0xf]
  %v232 = vld [vmem:[%s1 + $0xe4] sm:$0xf]
  %v233 = vld [vmem:[%s1 + $0xe8] sm:$0xf]
  %v234 = vld [vmem:[%s1 + $0xec] sm:$0xf]
  %v235 = vld [vmem:[%s1 + $0xf0] sm:$0xf]
  %v236 = vld [vmem:[%s1 + $0xf4] sm:$0xf]
  %v237 = vld [vmem:[%s1 + $0xf8] sm:$0xf]
  %v238 = vld [vmem:[%s1 + $0xfc] sm:$0xf]
  %v239 = vld [vmem:[%s1 + $0x100] sm:$0xf]
  %v240 = vld [vmem:[%s1 + $0x104] sm:$0xf]
  %v241 = vld [vmem:[%s1 + $0x108] sm:$0xf]
  %v242 = vld [vmem:[%s1 + $0x10c] sm:$0xf]
  %v243 = vld [vmem:[%s1 + $0x110] sm:$0xf]
  %v244 = vld [vmem:[%s1 + $0x114] sm:$0xf]
  %v245 = vld [vmem:[%s1 + $0x118] sm:$0xf]
  %v246 = vld [vmem:[%s1 + $0x11c] sm:$0xf]
  %v247 = vld [vmem:[%s1 + $0x120] sm:$0xf]
  %v248 = vld [vmem:[%s1 + $0x124] sm:$0xf]
  %v249 = vld [vmem:[%s1 + $0x128] sm:$0xf]
  %v250 = vld [vmem:[%s1 + $0x12c] sm:$0xf]
  %v251 = vld [vmem:[%s1 + $0x130] sm:$0xf]
  %v252 = vld [vmem:[%s1 + $0x134] sm:$0xf]
  %v253 = vld [vmem:[%s1 + $0x138] sm:$0xf]
  %v254 = vld [vmem:[%s1 + $0x13c] sm:$0xf]
  %v255 = vld [vmem:[%s1 + $0x140] sm:$0xf]
  %v256 = vld [vmem:[%s1 + $0x144] sm:$0xf]
  %v257 = vld [vmem:[%s1 + $0x148] sm:$0xf]
  %v258 = vld [vmem:[%s1 + $0x14c] sm:$0xf]
  %v259 = vld [vmem:[%s1 + $0x150] sm:$0xf]
  %v260 = vld [vmem:[%s1 + $0x154] sm:$0xf]
  %v261 = vld [vmem:[%s1 + $0x158] sm:$0xf]
  %v262 = vld [vmem:[%s1 + $0x15c] sm:$0xf]
  %v263 = vld [vmem:[%s1 + $0x160] sm:$0xf]
  %v264 = vld [vmem:[%s1 + $0x164] sm:$0xf]
  %v265 = vld [vmem:[%s1 + $0x168] sm:$0xf]
  %v266 = vld [vmem:[%s1 + $0x16c] sm:$0xf]
  %v267 = vld [vmem:[%s1 + $0x170] sm:$0xf]
  %v268 = vld [vmem:[%s1 + $0x174] sm:$0xf]
  %v269 = vld [vmem:[%s1 + $0x178] sm:$0xf]
  %v270 = vld [vmem:[%s1 + $0x17c] sm:$0xf]
  %v271 = vld [vmem:[%s1 + $0x180] sm:$0xf]
  %v272 = vld [vmem:[%s1 + $0x184] sm:$0xf]
  %v273 = vld [vmem:[%s1 + $0x188] sm:$0xf]
  %v274 = vld [vmem:[%s1 + $0x18c] sm:$0xf]
  %v275 = vld [vmem:[%s1 + $0x190] sm:$0xf]
  %v276 = vld [vmem:[%s1 + $0x194] sm:$0xf]
  %v277 = vld [vmem:[%s1 + $0x198] sm:$0xf]
  %v278 = vld [vmem:[%s1 + $0x19c] sm:$0xf]
  %v279 = vld [vmem:[%s1 + $0x1a0] sm:$0xf]
  %v280 = vld [vmem:[%s1 + $0x1a4] sm:$0xf]
  %v281 = vld [vmem:[%s1 + $0x1a8] sm:$0xf]
  %v282 = vld [vmem:[%s1 + $0x1ac] sm:$0xf]
  %v283 = vld [vmem:[%s1 + $0x1b0] sm:$0xf]
  %v284 = vld [vmem:[%s1 + $0x1b4] sm:$0xf]
  %v285 = vld [vmem:[%s1 + $0x1b8] sm:$0xf]
  %v286 = vld [vmem:[%s1 + $0x1bc] sm:$0xf]
  %v287 = vld [vmem:[%s1 + $0x1c0] sm:$0xf]
  %v288 = vld [vmem:[%s1 + $0x1c4] sm:$0xf]
  %v289 = vld [vmem:[%s1 + $0x1c8] sm:$0xf]
  %v290 = vld [vmem:[%s1 + $0x1cc] sm:$0xf]
  %v291 = vld [vmem:[%s1 + $0x1d0] sm:$0xf]
  %v292 = vld [vmem:[%s1 + $0x1d4] sm:$0xf]
  %v293 = vld [vmem:[%s1 + $0x1d8] sm:$0xf]
  %v294 = vld [vmem:[%s1 + $0x1dc] sm:$0xf]
  %v295 = vld [vmem:[%s1 + $0x1e0] sm:$0xf]
  %v296 = vld [vmem:[%s1 + $0x1e4] sm:$0xf]
  %v297 = vld [vmem:[%s1 + $0x1e8] sm:$0xf]
  %v298 = vld [vmem:[%s1 + $0x1ec] sm:$0xf]
  %v299 = vld [vmem:[%s1 + $0x1f0] sm:$0xf]
  %v300 = vld [vmem:[%s1 + $0x1f4] sm:$0xf]
  %v301 = vld [vmem:[%s1 + $0x1f8] sm:$0xf]
  %v302 = vld [vmem:[%s1 + $0x1fc] sm:$0xf]
  %v303 = vld [vmem:[%s1 + $0x200] sm:$0xf]
  %v304 = vld [vmem:[%s1 + $0x204] sm:$0xf]
  %v305 = vld [vmem:[%s1 + $0x208] sm:$0xf]
  %v306 = vld [vmem:[%s1 + $0x20c] sm:$0xf]
  %v307 = vld [vmem:[%s1 + $0x210] sm:$0xf]
  %v308 = vld [vmem:[%s1 + $0x214] sm:$0xf]
  %v309 = vld [vmem:[%s1 + $0x218] sm:$0xf]
  %v310 = vld [vmem:[%s1 + $0x21c] sm:$0xf]
  %v311 = vld [vmem:[%s1 + $0x220] sm:$0xf]
  %v312 = vld [vmem:[%s1 + $0x224] sm:$0xf]
  %v313 = vld [vmem:[%s1 + $0x228] sm:$0xf]
  %v314 = vld [vmem:[%s1 + $0x22c] sm:$0xf]
  %v315 = vld [vmem:[%s1 + $0x230] sm:$0xf]
  %v316 = vld [vmem:[%s1 + $0x234] sm:$0xf]
  %v317 = vld [vmem:[%s1 + $0x238] sm:$0xf]
  %v318 = vld [vmem:[%s1 + $0x23c] sm:$0xf]
  %v319 = vld [vmem:[%s2] sm:$0x1]
  %v321 = vlaneseq
  %v322 = vshrl.u32 %v321, 7
  %v323 = vsub.s32 0, %v322
  %v324 = vrot.slane %v319, %v323
  %v486 = vunpack.c.l.b16 %v15
  %v487 = vunpack.c.h.b16 %v15
  %v488 = vunpack.c.l.b16 %v16
  %v489 = vunpack.c.h.b16 %v16
  %v490 = vunpack.c.l.b16 %v17
  %v491 = vunpack.c.h.b16 %v17
  %v492 = vunpack.c.l.b16 %v18
  %v493 = vunpack.c.h.b16 %v18
  %v494 = vunpack.c.l.b16 %v19
  %v495 = vunpack.c.l.b16 %v20
  %v496 = vunpack.c.h.b16 %v20
  %v497 = vunpack.c.l.b16 %v21
  %v498 = vunpack.c.h.b16 %v21
  %v499 = vunpack.c.l.b16 %v22
  %v500 = vunpack.c.h.b16 %v22
  %v501 = vunpack.c.l.b16 %v23
  %v502 = vunpack.c.h.b16 %v23
  %v503 = vunpack.c.l.b16 %v24
  %v504 = vunpack.c.l.b16 %v25
  %v505 = vunpack.c.h.b16 %v25
  %v506 = vunpack.c.l.b16 %v26
  %v507 = vunpack.c.h.b16 %v26
  %v508 = vunpack.c.l.b16 %v27
  %v509 = vunpack.c.h.b16 %v27
  %v510 = vunpack.c.l.b16 %v28
  %v511 = vunpack.c.h.b16 %v28
  %v512 = vunpack.c.l.b16 %v29
  %v513 = vunpack.c.l.b16 %v30
  %v514 = vunpack.c.h.b16 %v30
  %v515 = vunpack.c.l.b16 %v31
  %v516 = vunpack.c.h.b16 %v31
  %v517 = vunpack.c.l.b16 %v32
  %v518 = vunpack.c.h.b16 %v32
  %v519 = vunpack.c.l.b16 %v33
  %v520 = vunpack.c.h.b16 %v33
  %v521 = vunpack.c.l.b16 %v34
  %v522 = vunpack.c.l.b16 %v35
  %v523 = vunpack.c.h.b16 %v35
  %v524 = vunpack.c.l.b16 %v36
  %v525 = vunpack.c.h.b16 %v36
  %v526 = vunpack.c.l.b16 %v37
  %v527 = vunpack.c.h.b16 %v37
  %v528 = vunpack.c.l.b16 %v38
  %v529 = vunpack.c.h.b16 %v38
  %v530 = vunpack.c.l.b16 %v39
  %v531 = vunpack.c.l.b16 %v40
  %v532 = vunpack.c.h.b16 %v40
  %v533 = vunpack.c.l.b16 %v41
  %v534 = vunpack.c.h.b16 %v41
  %v535 = vunpack.c.l.b16 %v42
  %v536 = vunpack.c.h.b16 %v42
  %v537 = vunpack.c.l.b16 %v43
  %v538 = vunpack.c.h.b16 %v43
  %v539 = vunpack.c.l.b16 %v44
  %v540 = vunpack.c.l.b16 %v45
  %v541 = vunpack.c.h.b16 %v45
  %v542 = vunpack.c.l.b16 %v46
  %v543 = vunpack.c.h.b16 %v46
  %v544 = vunpack.c.l.b16 %v47
  %v545 = vunpack.c.h.b16 %v47
  %v546 = vunpack.c.l.b16 %v48
  %v547 = vunpack.c.h.b16 %v48
  %v548 = vunpack.c.l.b16 %v49
  %v549 = vunpack.c.l.b16 %v50
  %v550 = vunpack.c.h.b16 %v50
  %v551 = vunpack.c.l.b16 %v51
  %v552 = vunpack.c.h.b16 %v51
  %v553 = vunpack.c.l.b16 %v52
  %v554 = vunpack.c.h.b16 %v52
  %v555 = vunpack.c.l.b16 %v53
  %v556 = vunpack.c.h.b16 %v53
  %v557 = vunpack.c.l.b16 %v54
  %v558 = vunpack.c.l.b16 %v55
  %v559 = vunpack.c.h.b16 %v55
  %v560 = vunpack.c.l.b16 %v56
  %v561 = vunpack.c.h.b16 %v56
  %v562 = vunpack.c.l.b16 %v57
  %v563 = vunpack.c.h.b16 %v57
  %v564 = vunpack.c.l.b16 %v58
  %v565 = vunpack.c.h.b16 %v58
  %v566 = vunpack.c.l.b16 %v59
  %v567 = vunpack.c.l.b16 %v60
  %v568 = vunpack.c.h.b16 %v60
  %v569 = vunpack.c.l.b16 %v61
  %v570 = vunpack.c.h.b16 %v61
  %v571 = vunpack.c.l.b16 %v62
  %v572 = vunpack.c.h.b16 %v62
  %v573 = vunpack.c.l.b16 %v63
  %v574 = vunpack.c.h.b16 %v63
  %v575 = vunpack.c.l.b16 %v64
  %v576 = vunpack.c.l.b16 %v65
  %v577 = vunpack.c.h.b16 %v65
  %v578 = vunpack.c.l.b16 %v66
  %v579 = vunpack.c.h.b16 %v66
  %v580 = vunpack.c.l.b16 %v67
  %v581 = vunpack.c.h.b16 %v67
  %v582 = vunpack.c.l.b16 %v68
  %v583 = vunpack.c.h.b16 %v68
  %v584 = vunpack.c.l.b16 %v69
  %v585 = vunpack.c.l.b16 %v70
  %v586 = vunpack.c.h.b16 %v70
  %v587 = vunpack.c.l.b16 %v71
  %v588 = vunpack.c.h.b16 %v71
  %v589 = vunpack.c.l.b16 %v72
  %v590 = vunpack.c.h.b16 %v72
  %v591 = vunpack.c.l.b16 %v73
  %v592 = vunpack.c.h.b16 %v73
  %v593 = vunpack.c.l.b16 %v74
  %v594 = vunpack.c.l.b16 %v75
  %v595 = vunpack.c.h.b16 %v75
  %v596 = vunpack.c.l.b16 %v76
  %v597 = vunpack.c.h.b16 %v76
  %v598 = vunpack.c.l.b16 %v77
  %v599 = vunpack.c.h.b16 %v77
  %v600 = vunpack.c.l.b16 %v78
  %v601 = vunpack.c.h.b16 %v78
  %v602 = vunpack.c.l.b16 %v79
  %v603 = vunpack.c.l.b16 %v80
  %v604 = vunpack.c.h.b16 %v80
  %v605 = vunpack.c.l.b16 %v81
  %v606 = vunpack.c.h.b16 %v81
  %v607 = vunpack.c.l.b16 %v82
  %v608 = vunpack.c.h.b16 %v82
  %v609 = vunpack.c.l.b16 %v83
  %v610 = vunpack.c.h.b16 %v83
  %v611 = vunpack.c.l.b16 %v84
  %v612 = vunpack.c.l.b16 %v85
  %v613 = vunpack.c.h.b16 %v85
  %v614 = vunpack.c.l.b16 %v86
  %v615 = vunpack.c.h.b16 %v86
  %v616 = vunpack.c.l.b16 %v87
  %v617 = vunpack.c.h.b16 %v87
  %v618 = vunpack.c.l.b16 %v88
  %v619 = vunpack.c.h.b16 %v88
  %v620 = vunpack.c.l.b16 %v89
  %v621 = vunpack.c.l.b16 %v90
  %v622 = vunpack.c.h.b16 %v90
  %v623 = vunpack.c.l.b16 %v91
  %v624 = vunpack.c.h.b16 %v91
  %v625 = vunpack.c.l.b16 %v92
  %v626 = vunpack.c.h.b16 %v92
  %v627 = vunpack.c.l.b16 %v93
  %v628 = vunpack.c.h.b16 %v93
  %v629 = vunpack.c.l.b16 %v94
  %v630 = vunpack.c.l.b16 %v95
  %v631 = vunpack.c.h.b16 %v95
  %v632 = vunpack.c.l.b16 %v96
  %v633 = vunpack.c.h.b16 %v96
  %v634 = vunpack.c.l.b16 %v97
  %v635 = vunpack.c.h.b16 %v97
  %v636 = vunpack.c.l.b16 %v98
  %v637 = vunpack.c.h.b16 %v98
  %v638 = vunpack.c.l.b16 %v99
  %v639 = vunpack.c.l.b16 %v100
  %v640 = vunpack.c.h.b16 %v100
  %v641 = vunpack.c.l.b16 %v101
  %v642 = vunpack.c.h.b16 %v101
  %v643 = vunpack.c.l.b16 %v102
  %v644 = vunpack.c.h.b16 %v102
  %v645 = vunpack.c.l.b16 %v103
  %v646 = vunpack.c.h.b16 %v103
  %v647 = vunpack.c.l.b16 %v104
  %v648 = vunpack.c.l.b16 %v105
  %v649 = vunpack.c.h.b16 %v105
  %v650 = vunpack.c.l.b16 %v106
  %v651 = vunpack.c.h.b16 %v106
  %v652 = vunpack.c.l.b16 %v107
  %v653 = vunpack.c.h.b16 %v107
  %v654 = vunpack.c.l.b16 %v108
  %v655 = vunpack.c.h.b16 %v108
  %v656 = vunpack.c.l.b16 %v109
  %v657 = vunpack.c.l.b16 %v110
  %v658 = vunpack.c.h.b16 %v110
  %v659 = vunpack.c.l.b16 %v111
  %v660 = vunpack.c.h.b16 %v111
  %v661 = vunpack.c.l.b16 %v112
  %v662 = vunpack.c.h.b16 %v112
  %v663 = vunpack.c.l.b16 %v113
  %v664 = vunpack.c.h.b16 %v113
  %v665 = vunpack.c.l.b16 %v114
  %v666 = vunpack.c.l.b16 %v115
  %v667 = vunpack.c.h.b16 %v115
  %v668 = vunpack.c.l.b16 %v116
  %v669 = vunpack.c.h.b16 %v116
  %v670 = vunpack.c.l.b16 %v117
  %v671 = vunpack.c.h.b16 %v117
  %v672 = vunpack.c.l.b16 %v118
  %v673 = vunpack.c.h.b16 %v118
  %v674 = vunpack.c.l.b16 %v119
  %v675 = vunpack.c.l.b16 %v120
  %v676 = vunpack.c.h.b16 %v120
  %v677 = vunpack.c.l.b16 %v121
  %v678 = vunpack.c.h.b16 %v121
  %v679 = vunpack.c.l.b16 %v122
  %v680 = vunpack.c.h.b16 %v122
  %v681 = vunpack.c.l.b16 %v123
  %v682 = vunpack.c.h.b16 %v123
  %v683 = vunpack.c.l.b16 %v124
  %v684 = vunpack.c.l.b16 %v125
  %v685 = vunpack.c.h.b16 %v125
  %v686 = vunpack.c.l.b16 %v126
  %v687 = vunpack.c.h.b16 %v126
  %v688 = vunpack.c.l.b16 %v127
  %v689 = vunpack.c.h.b16 %v127
  %v690 = vunpack.c.l.b16 %v128
  %v691 = vunpack.c.h.b16 %v128
  %v692 = vunpack.c.l.b16 %v129
  %v693 = vunpack.c.l.b16 %v130
  %v694 = vunpack.c.h.b16 %v130
  %v695 = vunpack.c.l.b16 %v131
  %v696 = vunpack.c.h.b16 %v131
  %v697 = vunpack.c.l.b16 %v132
  %v698 = vunpack.c.h.b16 %v132
  %v699 = vunpack.c.l.b16 %v133
  %v700 = vunpack.c.h.b16 %v133
  %v701 = vunpack.c.l.b16 %v134
  %v702 = vunpack.c.l.b16 %v135
  %v703 = vunpack.c.h.b16 %v135
  %v704 = vunpack.c.l.b16 %v136
  %v705 = vunpack.c.h.b16 %v136
  %v706 = vunpack.c.l.b16 %v137
  %v707 = vunpack.c.h.b16 %v137
  %v708 = vunpack.c.l.b16 %v138
  %v709 = vunpack.c.h.b16 %v138
  %v710 = vunpack.c.l.b16 %v139
  %v711 = vunpack.c.l.b16 %v140
  %v712 = vunpack.c.h.b16 %v140
  %v713 = vunpack.c.l.b16 %v141
  %v714 = vunpack.c.h.b16 %v141
  %v715 = vunpack.c.l.b16 %v142
  %v716 = vunpack.c.h.b16 %v142
  %v717 = vunpack.c.l.b16 %v143
  %v718 = vunpack.c.h.b16 %v143
  %v719 = vunpack.c.l.b16 %v144
  %v720 = vunpack.c.l.b16 %v145
  %v721 = vunpack.c.h.b16 %v145
  %v722 = vunpack.c.l.b16 %v146
  %v723 = vunpack.c.h.b16 %v146
  %v724 = vunpack.c.l.b16 %v147
  %v725 = vunpack.c.h.b16 %v147
  %v726 = vunpack.c.l.b16 %v148
  %v727 = vunpack.c.h.b16 %v148
  %v728 = vunpack.c.l.b16 %v149
  %v729 = vunpack.c.l.b16 %v150
  %v730 = vunpack.c.h.b16 %v150
  %v731 = vunpack.c.l.b16 %v151
  %v732 = vunpack.c.h.b16 %v151
  %v733 = vunpack.c.l.b16 %v152
  %v734 = vunpack.c.h.b16 %v152
  %v735 = vunpack.c.l.b16 %v153
  %v736 = vunpack.c.h.b16 %v153
  %v737 = vunpack.c.l.b16 %v154
  %v738 = vunpack.c.l.b16 %v155
  %v739 = vunpack.c.h.b16 %v155
  %v740 = vunpack.c.l.b16 %v156
  %v741 = vunpack.c.h.b16 %v156
  %v742 = vunpack.c.l.b16 %v157
  %v743 = vunpack.c.h.b16 %v157
  %v744 = vunpack.c.l.b16 %v158
  %v745 = vunpack.c.h.b16 %v158
  %v746 = vunpack.c.l.b16 %v159
  %v747 = vunpack.c.l.b16 %v160
  %v748 = vunpack.c.h.b16 %v160
  %v749 = vunpack.c.l.b16 %v161
  %v750 = vunpack.c.h.b16 %v161
  %v751 = vunpack.c.l.b16 %v162
  %v752 = vunpack.c.h.b16 %v162
  %v753 = vunpack.c.l.b16 %v163
  %v754 = vunpack.c.h.b16 %v163
  %v755 = vunpack.c.l.b16 %v164
  %v756 = vunpack.c.l.b16 %v165
  %v757 = vunpack.c.h.b16 %v165
  %v758 = vunpack.c.l.b16 %v166
  %v759 = vunpack.c.h.b16 %v166
  %v760 = vunpack.c.l.b16 %v167
  %v761 = vunpack.c.h.b16 %v167
  %v762 = vunpack.c.l.b16 %v168
  %v763 = vunpack.c.h.b16 %v168
  %v764 = vunpack.c.l.b16 %v169
  %v765 = vunpack.c.l.b16 %v170
  %v766 = vunpack.c.h.b16 %v170
  %v767 = vunpack.c.l.b16 %v171
  %v768 = vunpack.c.h.b16 %v171
  %v769 = vunpack.c.l.b16 %v172
  %v770 = vunpack.c.h.b16 %v172
  %v771 = vunpack.c.l.b16 %v173
  %v772 = vunpack.c.h.b16 %v173
  %v773 = vunpack.c.l.b16 %v174
  %v774 = vpack.c.b16 %v495, %v486
  %v775 = vpack.c.b16 %v496, %v487
  %v776 = vpack.c.b16 %v497, %v488
  %v777 = vpack.c.b16 %v498, %v489
  %v778 = vpack.c.b16 %v499, %v490
  %v779 = vpack.c.b16 %v500, %v491
  %v780 = vpack.c.b16 %v501, %v492
  %v781 = vpack.c.b16 %v502, %v493
  %v782 = vpack.c.b16 %v503, %v494
  %v783 = vpack.c.b16 %v513, %v504
  %v784 = vpack.c.b16 %v514, %v505
  %v785 = vpack.c.b16 %v515, %v506
  %v786 = vpack.c.b16 %v516, %v507
  %v787 = vpack.c.b16 %v517, %v508
  %v788 = vpack.c.b16 %v518, %v509
  %v789 = vpack.c.b16 %v519, %v510
  %v790 = vpack.c.b16 %v520, %v511
  %v791 = vpack.c.b16 %v521, %v512
  %v792 = vpack.c.b16 %v531, %v522
  %v793 = vpack.c.b16 %v532, %v523
  %v794 = vpack.c.b16 %v533, %v524
  %v795 = vpack.c.b16 %v534, %v525
  %v796 = vpack.c.b16 %v535, %v526
  %v797 = vpack.c.b16 %v536, %v527
  %v798 = vpack.c.b16 %v537, %v528
  %v799 = vpack.c.b16 %v538, %v529
  %v800 = vpack.c.b16 %v539, %v530
  %v801 = vpack.c.b16 %v549, %v540
  %v802 = vpack.c.b16 %v550, %v541
  %v803 = vpack.c.b16 %v551, %v542
  %v804 = vpack.c.b16 %v552, %v543
  %v805 = vpack.c.b16 %v553, %v544
  %v806 = vpack.c.b16 %v554, %v545
  %v807 = vpack.c.b16 %v555, %v546
  %v808 = vpack.c.b16 %v556, %v547
  %v809 = vpack.c.b16 %v557, %v548
  %v810 = vpack.c.b16 %v567, %v558
  %v811 = vpack.c.b16 %v568, %v559
  %v812 = vpack.c.b16 %v569, %v560
  %v813 = vpack.c.b16 %v570, %v561
  %v814 = vpack.c.b16 %v571, %v562
  %v815 = vpack.c.b16 %v572, %v563
  %v816 = vpack.c.b16 %v573, %v564
  %v817 = vpack.c.b16 %v574, %v565
  %v818 = vpack.c.b16 %v575, %v566
  %v819 = vpack.c.b16 %v585, %v576
  %v820 = vpack.c.b16 %v586, %v577
  %v821 = vpack.c.b16 %v587, %v578
  %v822 = vpack.c.b16 %v588, %v579
  %v823 = vpack.c.b16 %v589, %v580
  %v824 = vpack.c.b16 %v590, %v581
  %v825 = vpack.c.b16 %v591, %v582
  %v826 = vpack.c.b16 %v592, %v583
  %v827 = vpack.c.b16 %v593, %v584
  %v828 = vpack.c.b16 %v603, %v594
  %v829 = vpack.c.b16 %v604, %v595
  %v830 = vpack.c.b16 %v605, %v596
  %v831 = vpack.c.b16 %v606, %v597
  %v832 = vpack.c.b16 %v607, %v598
  %v833 = vpack.c.b16 %v608, %v599
  %v834 = vpack.c.b16 %v609, %v600
  %v835 = vpack.c.b16 %v610, %v601
  %v836 = vpack.c.b16 %v611, %v602
  %v837 = vpack.c.b16 %v621, %v612
  %v838 = vpack.c.b16 %v622, %v613
  %v839 = vpack.c.b16 %v623, %v614
  %v840 = vpack.c.b16 %v624, %v615
  %v841 = vpack.c.b16 %v625, %v616
  %v842 = vpack.c.b16 %v626, %v617
  %v843 = vpack.c.b16 %v627, %v618
  %v844 = vpack.c.b16 %v628, %v619
  %v845 = vpack.c.b16 %v629, %v620
  %v846 = vpack.c.b16 %v639, %v630
  %v847 = vpack.c.b16 %v640, %v631
  %v848 = vpack.c.b16 %v641, %v632
  %v849 = vpack.c.b16 %v642, %v633
  %v850 = vpack.c.b16 %v643, %v634
  %v851 = vpack.c.b16 %v644, %v635
  %v852 = vpack.c.b16 %v645, %v636
  %v853 = vpack.c.b16 %v646, %v637
  %v854 = vpack.c.b16 %v647, %v638
  %v855 = vpack.c.b16 %v657, %v648
  %v856 = vpack.c.b16 %v658, %v649
  %v857 = vpack.c.b16 %v659, %v650
  %v858 = vpack.c.b16 %v660, %v651
  %v859 = vpack.c.b16 %v661, %v652
  %v860 = vpack.c.b16 %v662, %v653
  %v861 = vpack.c.b16 %v663, %v654
  %v862 = vpack.c.b16 %v664, %v655
  %v863 = vpack.c.b16 %v665, %v656
  %v864 = vpack.c.b16 %v675, %v666
  %v865 = vpack.c.b16 %v676, %v667
  %v866 = vpack.c.b16 %v677, %v668
  %v867 = vpack.c.b16 %v678, %v669
  %v868 = vpack.c.b16 %v679, %v670
  %v869 = vpack.c.b16 %v680, %v671
  %v870 = vpack.c.b16 %v681, %v672
  %v871 = vpack.c.b16 %v682, %v673
  %v872 = vpack.c.b16 %v683, %v674
  %v873 = vpack.c.b16 %v693, %v684
  %v874 = vpack.c.b16 %v694, %v685
  %v875 = vpack.c.b16 %v695, %v686
  %v876 = vpack.c.b16 %v696, %v687
  %v877 = vpack.c.b16 %v697, %v688
  %v878 = vpack.c.b16 %v698, %v689
  %v879 = vpack.c.b16 %v699, %v690
  %v880 = vpack.c.b16 %v700, %v691
  %v881 = vpack.c.b16 %v701, %v692
  %v882 = vpack.c.b16 %v711, %v702
  %v883 = vpack.c.b16 %v712, %v703
  %v884 = vpack.c.b16 %v713, %v704
  %v885 = vpack.c.b16 %v714, %v705
  %v886 = vpack.c.b16 %v715, %v706
  %v887 = vpack.c.b16 %v716, %v707
  %v888 = vpack.c.b16 %v717, %v708
  %v889 = vpack.c.b16 %v718, %v709
  %v890 = vpack.c.b16 %v719, %v710
  %v891 = vpack.c.b16 %v729, %v720
  %v892 = vpack.c.b16 %v730, %v721
  %v893 = vpack.c.b16 %v731, %v722
  %v894 = vpack.c.b16 %v732, %v723
  %v895 = vpack.c.b16 %v733, %v724
  %v896 = vpack.c.b16 %v734, %v725
  %v897 = vpack.c.b16 %v735, %v726
  %v898 = vpack.c.b16 %v736, %v727
  %v899 = vpack.c.b16 %v737, %v728
  %v900 = vpack.c.b16 %v747, %v738
  %v901 = vpack.c.b16 %v748, %v739
  %v902 = vpack.c.b16 %v749, %v740
  %v903 = vpack.c.b16 %v750, %v741
  %v904 = vpack.c.b16 %v751, %v742
  %v905 = vpack.c.b16 %v752, %v743
  %v906 = vpack.c.b16 %v753, %v744
  %v907 = vpack.c.b16 %v754, %v745
  %v908 = vpack.c.b16 %v755, %v746
  %v909 = vpack.c.b16 %v765, %v756
  %v910 = vpack.c.b16 %v766, %v757
  %v911 = vpack.c.b16 %v767, %v758
  %v912 = vpack.c.b16 %v768, %v759
  %v913 = vpack.c.b16 %v769, %v760
  %v914 = vpack.c.b16 %v770, %v761
  %v915 = vpack.c.b16 %v771, %v762
  %v916 = vpack.c.b16 %v772, %v763
  %v917 = vpack.c.b16 %v773, %v764
  %v1206 = vunpack.c.l.b16 %v175
  %v1207 = vunpack.c.l.b16 %v176
  %v1208 = vunpack.c.l.b16 %v177
  %v1209 = vunpack.c.l.b16 %v178
  %v1210 = vunpack.c.l.b16 %v179
  %v1211 = vunpack.c.l.b16 %v180
  %v1212 = vunpack.c.l.b16 %v181
  %v1213 = vunpack.c.l.b16 %v182
  %v1214 = vunpack.c.l.b16 %v183
  %v1215 = vunpack.c.l.b16 %v184
  %v1216 = vunpack.c.l.b16 %v185
  %v1217 = vunpack.c.l.b16 %v186
  %v1218 = vunpack.c.l.b16 %v187
  %v1219 = vunpack.c.l.b16 %v188
  %v1220 = vunpack.c.l.b16 %v189
  %v1221 = vunpack.c.l.b16 %v190
  %v1222 = vunpack.c.l.b16 %v191
  %v1223 = vunpack.c.l.b16 %v192
  %v1224 = vunpack.c.l.b16 %v193
  %v1225 = vunpack.c.l.b16 %v194
  %v1226 = vunpack.c.l.b16 %v195
  %v1227 = vunpack.c.l.b16 %v196
  %v1228 = vunpack.c.l.b16 %v197
  %v1229 = vunpack.c.l.b16 %v198
  %v1230 = vunpack.c.l.b16 %v199
  %v1231 = vunpack.c.l.b16 %v200
  %v1232 = vunpack.c.l.b16 %v201
  %v1233 = vunpack.c.l.b16 %v202
  %v1234 = vunpack.c.l.b16 %v203
  %v1235 = vunpack.c.l.b16 %v204
  %v1236 = vunpack.c.l.b16 %v205
  %v1237 = vunpack.c.l.b16 %v206
  %v1238 = vunpack.c.l.b16 %v207
  %v1239 = vunpack.c.l.b16 %v208
  %v1240 = vunpack.c.l.b16 %v209
  %v1241 = vunpack.c.l.b16 %v210
  %v1242 = vunpack.c.l.b16 %v211
  %v1243 = vunpack.c.l.b16 %v212
  %v1244 = vunpack.c.l.b16 %v213
  %v1245 = vunpack.c.l.b16 %v214
  %v1246 = vunpack.c.l.b16 %v215
  %v1247 = vunpack.c.l.b16 %v216
  %v1248 = vunpack.c.l.b16 %v217
  %v1249 = vunpack.c.l.b16 %v218
  %v1250 = vunpack.c.l.b16 %v219
  %v1251 = vunpack.c.l.b16 %v220
  %v1252 = vunpack.c.l.b16 %v221
  %v1253 = vunpack.c.l.b16 %v222
  %v1254 = vunpack.c.l.b16 %v223
  %v1255 = vunpack.c.l.b16 %v224
  %v1256 = vunpack.c.l.b16 %v225
  %v1257 = vunpack.c.l.b16 %v226
  %v1258 = vunpack.c.l.b16 %v227
  %v1259 = vunpack.c.l.b16 %v228
  %v1260 = vunpack.c.l.b16 %v229
  %v1261 = vunpack.c.l.b16 %v230
  %v1262 = vunpack.c.l.b16 %v231
  %v1263 = vunpack.c.l.b16 %v232
  %v1264 = vunpack.c.l.b16 %v233
  %v1265 = vunpack.c.l.b16 %v234
  %v1266 = vunpack.c.l.b16 %v235
  %v1267 = vunpack.c.l.b16 %v236
  %v1268 = vunpack.c.l.b16 %v237
  %v1269 = vunpack.c.l.b16 %v238
  %v1270 = vunpack.c.l.b16 %v239
  %v1271 = vunpack.c.l.b16 %v240
  %v1272 = vunpack.c.l.b16 %v241
  %v1273 = vunpack.c.l.b16 %v242
  %v1274 = vunpack.c.l.b16 %v243
  %v1275 = vunpack.c.l.b16 %v244
  %v1276 = vunpack.c.l.b16 %v245
  %v1277 = vunpack.c.l.b16 %v246
  %v1278 = vunpack.c.l.b16 %v247
  %v1279 = vunpack.c.l.b16 %v248
  %v1280 = vunpack.c.l.b16 %v249
  %v1281 = vunpack.c.l.b16 %v250
  %v1282 = vunpack.c.l.b16 %v251
  %v1283 = vunpack.c.l.b16 %v252
  %v1284 = vunpack.c.l.b16 %v253
  %v1285 = vunpack.c.l.b16 %v254
  %v1286 = vunpack.c.l.b16 %v255
  %v1287 = vunpack.c.l.b16 %v256
  %v1288 = vunpack.c.l.b16 %v257
  %v1289 = vunpack.c.l.b16 %v258
  %v1290 = vunpack.c.l.b16 %v259
  %v1291 = vunpack.c.l.b16 %v260
  %v1292 = vunpack.c.l.b16 %v261
  %v1293 = vunpack.c.l.b16 %v262
  %v1294 = vunpack.c.l.b16 %v263
  %v1295 = vunpack.c.l.b16 %v264
  %v1296 = vunpack.c.l.b16 %v265
  %v1297 = vunpack.c.l.b16 %v266
  %v1298 = vunpack.c.l.b16 %v267
  %v1299 = vunpack.c.l.b16 %v268
  %v1300 = vunpack.c.l.b16 %v269
  %v1301 = vunpack.c.l.b16 %v270
  %v1302 = vunpack.c.l.b16 %v271
  %v1303 = vunpack.c.l.b16 %v272
  %v1304 = vunpack.c.l.b16 %v273
  %v1305 = vunpack.c.l.b16 %v274
  %v1306 = vunpack.c.l.b16 %v275
  %v1307 = vunpack.c.l.b16 %v276
  %v1308 = vunpack.c.l.b16 %v277
  %v1309 = vunpack.c.l.b16 %v278
  %v1310 = vunpack.c.l.b16 %v279
  %v1311 = vunpack.c.l.b16 %v280
  %v1312 = vunpack.c.l.b16 %v281
  %v1313 = vunpack.c.l.b16 %v282
  %v1314 = vunpack.c.l.b16 %v283
  %v1315 = vunpack.c.l.b16 %v284
  %v1316 = vunpack.c.l.b16 %v285
  %v1317 = vunpack.c.l.b16 %v286
  %v1318 = vunpack.c.l.b16 %v287
  %v1319 = vunpack.c.l.b16 %v288
  %v1320 = vunpack.c.l.b16 %v289
  %v1321 = vunpack.c.l.b16 %v290
  %v1322 = vunpack.c.l.b16 %v291
  %v1323 = vunpack.c.l.b16 %v292
  %v1324 = vunpack.c.l.b16 %v293
  %v1325 = vunpack.c.l.b16 %v294
  %v1326 = vunpack.c.l.b16 %v295
  %v1327 = vunpack.c.l.b16 %v296
  %v1328 = vunpack.c.l.b16 %v297
  %v1329 = vunpack.c.l.b16 %v298
  %v1330 = vunpack.c.l.b16 %v299
  %v1331 = vunpack.c.l.b16 %v300
  %v1332 = vunpack.c.l.b16 %v301
  %v1333 = vunpack.c.l.b16 %v302
  %v1334 = vunpack.c.l.b16 %v303
  %v1335 = vunpack.c.l.b16 %v304
  %v1336 = vunpack.c.l.b16 %v305
  %v1337 = vunpack.c.l.b16 %v306
  %v1338 = vunpack.c.l.b16 %v307
  %v1339 = vunpack.c.l.b16 %v308
  %v1340 = vunpack.c.l.b16 %v309
  %v1341 = vunpack.c.l.b16 %v310
  %v1342 = vunpack.c.l.b16 %v311
  %v1343 = vunpack.c.l.b16 %v312
  %v1344 = vunpack.c.l.b16 %v313
  %v1345 = vunpack.c.l.b16 %v314
  %v1346 = vunpack.c.l.b16 %v315
  %v1347 = vunpack.c.l.b16 %v316
  %v1348 = vunpack.c.l.b16 %v317
  %v1349 = vunpack.c.l.b16 %v318
  %v1350 = vpack.c.b16 %v1207, %v1206
  %v1351 = vpack.c.b16 %v1209, %v1208
  %v1352 = vpack.c.b16 %v1211, %v1210
  %v1353 = vpack.c.b16 %v1213, %v1212
  %v1354 = vpack.c.b16 %v1215, %v1214
  %v1355 = vpack.c.b16 %v1217, %v1216
  %v1356 = vpack.c.b16 %v1219, %v1218
  %v1357 = vpack.c.b16 %v1221, %v1220
  %v1358 = vpack.c.b16 %v1223, %v1222
  %v1359 = vpack.c.b16 %v1225, %v1224
  %v1360 = vpack.c.b16 %v1227, %v1226
  %v1361 = vpack.c.b16 %v1229, %v1228
  %v1362 = vpack.c.b16 %v1231, %v1230
  %v1363 = vpack.c.b16 %v1233, %v1232
  %v1364 = vpack.c.b16 %v1235, %v1234
  %v1365 = vpack.c.b16 %v1237, %v1236
  %v1366 = vpack.c.b16 %v1239, %v1238
  %v1367 = vpack.c.b16 %v1241, %v1240
  %v1368 = vpack.c.b16 %v1243, %v1242
  %v1369 = vpack.c.b16 %v1245, %v1244
  %v1370 = vpack.c.b16 %v1247, %v1246
  %v1371 = vpack.c.b16 %v1249, %v1248
  %v1372 = vpack.c.b16 %v1251, %v1250
  %v1373 = vpack.c.b16 %v1253, %v1252
  %v1374 = vpack.c.b16 %v1255, %v1254
  %v1375 = vpack.c.b16 %v1257, %v1256
  %v1376 = vpack.c.b16 %v1259, %v1258
  %v1377 = vpack.c.b16 %v1261, %v1260
  %v1378 = vpack.c.b16 %v1263, %v1262
  %v1379 = vpack.c.b16 %v1265, %v1264
  %v1380 = vpack.c.b16 %v1267, %v1266
  %v1381 = vpack.c.b16 %v1269, %v1268
  %v1382 = vpack.c.b16 %v1271, %v1270
  %v1383 = vpack.c.b16 %v1273, %v1272
  %v1384 = vpack.c.b16 %v1275, %v1274
  %v1385 = vpack.c.b16 %v1277, %v1276
  %v1386 = vpack.c.b16 %v1279, %v1278
  %v1387 = vpack.c.b16 %v1281, %v1280
  %v1388 = vpack.c.b16 %v1283, %v1282
  %v1389 = vpack.c.b16 %v1285, %v1284
  %v1390 = vpack.c.b16 %v1287, %v1286
  %v1391 = vpack.c.b16 %v1289, %v1288
  %v1392 = vpack.c.b16 %v1291, %v1290
  %v1393 = vpack.c.b16 %v1293, %v1292
  %v1394 = vpack.c.b16 %v1295, %v1294
  %v1395 = vpack.c.b16 %v1297, %v1296
  %v1396 = vpack.c.b16 %v1299, %v1298
  %v1397 = vpack.c.b16 %v1301, %v1300
  %v1398 = vpack.c.b16 %v1303, %v1302
  %v1399 = vpack.c.b16 %v1305, %v1304
  %v1400 = vpack.c.b16 %v1307, %v1306
  %v1401 = vpack.c.b16 %v1309, %v1308
  %v1402 = vpack.c.b16 %v1311, %v1310
  %v1403 = vpack.c.b16 %v1313, %v1312
  %v1404 = vpack.c.b16 %v1315, %v1314
  %v1405 = vpack.c.b16 %v1317, %v1316
  %v1406 = vpack.c.b16 %v1319, %v1318
  %v1407 = vpack.c.b16 %v1321, %v1320
  %v1408 = vpack.c.b16 %v1323, %v1322
  %v1409 = vpack.c.b16 %v1325, %v1324
  %v1410 = vpack.c.b16 %v1327, %v1326
  %v1411 = vpack.c.b16 %v1329, %v1328
  %v1412 = vpack.c.b16 %v1331, %v1330
  %v1413 = vpack.c.b16 %v1333, %v1332
  %v1414 = vpack.c.b16 %v1335, %v1334
  %v1415 = vpack.c.b16 %v1337, %v1336
  %v1416 = vpack.c.b16 %v1339, %v1338
  %v1417 = vpack.c.b16 %v1341, %v1340
  %v1418 = vpack.c.b16 %v1343, %v1342
  %v1419 = vpack.c.b16 %v1345, %v1344
  %v1420 = vpack.c.b16 %v1347, %v1346
  %v1421 = vpack.c.b16 %v1349, %v1348
  %1494 = vmatprep.subr.bf16.mxu0 0
  %1495 = vmatpush1.bf16.msra.mxu0 %v1350
  %1496 = vmatprep.subr.bf16.mxu0 0
  %1497 = vmatpush1.bf16.msra.mxu0 %v1351
  %1498 = vmatprep.subr.bf16.mxu0 0
  %1499 = vmatpush1.bf16.msra.mxu0 %v1352
  %1500 = vmatprep.subr.bf16.mxu0 0
  %1501 = vmatpush1.bf16.msra.mxu0 %v1353
  %1502 = vmatprep.subr.bf16.mxu0 0
  %1503 = vmatpush1.bf16.msra.mxu0 %v1354
  %1504 = vmatprep.subr.bf16.mxu0 0
  %1505 = vmatpush1.bf16.msra.mxu0 %v1355
  %1506 = vmatprep.subr.bf16.mxu0 0
  %1507 = vmatpush1.bf16.msra.mxu0 %v1356
  %1508 = vmatprep.subr.bf16.mxu0 0
  %1509 = vmatpush1.bf16.msra.mxu0 %v1357
  %1510 = vmatprep.subr.bf16.mxu0 0
  %1511 = vmatpush1.bf16.msra.mxu0 %v1358
  %1512 = vmatprep.subr.bf16.mxu0 0
  %1513 = vmatpush1.bf16.msra.mxu0 %v1359
  %1514 = vmatprep.subr.bf16.mxu0 0
  %1515 = vmatpush1.bf16.msra.mxu0 %v1360
  %1516 = vmatprep.subr.bf16.mxu0 0
  %1517 = vmatpush1.bf16.msra.mxu0 %v1361
  %1518 = vmatprep.subr.bf16.mxu0 0
  %1519 = vmatpush1.bf16.msra.mxu0 %v1362
  %1520 = vmatprep.subr.bf16.mxu0 0
  %1521 = vmatpush1.bf16.msra.mxu0 %v1363
  %1522 = vmatprep.subr.bf16.mxu0 0
  %1523 = vmatpush1.bf16.msra.mxu0 %v1364
  %1524 = vmatprep.subr.bf16.mxu0 0
  %1525 = vmatpush1.bf16.msra.mxu0 %v1365
  %1526 = vmatprep.mubr.bf16.mxu0 %v775
  %1527 = vmatmul.mubr.bf16.gmra.mrb[0].mxu0 %v774
  %v1528 = vpop.f32.mrb[0].mxu0
  %v1529 = vadd.f32 %v324, %v1528
  %v1530 = vpop.f32.mrb[0].mxu0
  %v1531 = vpop.f32.mrb[0].mxu0
  %v1532 = vadd.f32 %v324, %v1531
  %v1533 = vpop.f32.mrb[0].mxu0
  %1534 = vmatprep.mubr.bf16.mxu0 %v784
  %1535 = vmatmul.mubr.bf16.gmra.mrb[0].mxu0 %v783
  %v1536 = vpop.f32.mrb[0].mxu0
  %v1537 = vadd.f32 %v324, %v1536
  %v1538 = vpop.f32.mrb[0].mxu0
  %v1539 = vpop.f32.mrb[0].mxu0
  %v1540 = vadd.f32 %v324, %v1539
  %v1541 = vpop.f32.mrb[0].mxu0
  %1542 = vmatprep.mubr.bf16.mxu0 %v793
  %1543 = vmatmul.mubr.bf16.gmra.mrb[0].mxu0 %v792
  %v1544 = vpop.f32.mrb[0].mxu0
  %v1545 = vadd.f32 %v324, %v1544
  %v1546 = vpop.f32.mrb[0].mxu0
  %v1547 = vpop.f32.mrb[0].mxu0
  %v1548 = vadd.f32 %v324, %v1547
  %v1549 = vpop.f32.mrb[0].mxu0
  %1550 = vmatprep.mubr.bf16.mxu0 %v802
  %1551 = vmatmul.mubr.bf16.gmra.mrb[0].mxu0 %v801
  %v1552 = vpop.f32.mrb[0].mxu0
  %v1553 = vadd.f32 %v324, %v1552
  %v1554 = vpop.f32.mrb[0].mxu0
  %v1555 = vpop.f32.mrb[0].mxu0
  %v1556 = vadd.f32 %v324, %v1555
  %v1557 = vpop.f32.mrb[0].mxu0
  %1558 = vmatprep.mubr.bf16.mxu0 %v811
  %1559 = vmatmul.mubr.bf16.gmra.mrb[0].mxu0 %v810
  %v1560 = vpop.f32.mrb[0].mxu0
  %v1561 = vadd.f32 %v324, %v1560
  %v1562 = vpop.f32.mrb[0].mxu0
  %v1563 = vpop.f32.mrb[0].mxu0
  %v1564 = vadd.f32 %v324, %v1563
  %v1565 = vpop.f32.mrb[0].mxu0
  %1566 = vmatprep.mubr.bf16.mxu0 %v820
  %1567 = vmatmul.mubr.bf16.gmra.mrb[0].mxu0 %v819
  %v1568 = vpop.f32.mrb[0].mxu0
  %v1569 = vadd.f32 %v324, %v1568
  %v1570 = vpop.f32.mrb[0].mxu0
  %v1571 = vpop.f32.mrb[0].mxu0
  %v1572 = vadd.f32 %v324, %v1571
  %v1573 = vpop.f32.mrb[0].mxu0
  %1574 = vmatprep.mubr.bf16.mxu0 %v829
  %1575 = vmatmul.mubr.bf16.gmra.mrb[0].mxu0 %v828
  %v1576 = vpop.f32.mrb[0].mxu0
  %v1577 = vadd.f32 %v324, %v1576
  %v1578 = vpop.f32.mrb[0].mxu0
  %v1579 = vpop.f32.mrb[0].mxu0
  %v1580 = vadd.f32 %v324, %v1579
  %v1581 = vpop.f32.mrb[0].mxu0
  %1582 = vmatprep.mubr.bf16.mxu0 %v838
  %1583 = vmatmul.mubr.bf16.gmra.mrb[0].mxu0 %v837
  %v1584 = vpop.f32.mrb[0].mxu0
  %v1585 = vadd.f32 %v324, %v1584
  %v1586 = vpop.f32.mrb[0].mxu0
  %v1587 = vpop.f32.mrb[0].mxu0
  %v1588 = vadd.f32 %v324, %v1587
  %v1589 = vpop.f32.mrb[0].mxu0
  %1590 = vmatprep.mubr.bf16.mxu0 %v847
  %1591 = vmatmul.mubr.bf16.gmra.mrb[0].mxu0 %v846
  %v1592 = vpop.f32.mrb[0].mxu0
  %v1593 = vadd.f32 %v324, %v1592
  %v1594 = vpop.f32.mrb[0].mxu0
  %v1595 = vpop.f32.mrb[0].mxu0
  %v1596 = vadd.f32 %v324, %v1595
  %v1597 = vpop.f32.mrb[0].mxu0
  %1598 = vmatprep.mubr.bf16.mxu0 %v856
  %1599 = vmatmul.mubr.bf16.gmra.mrb[0].mxu0 %v855
  %v1600 = vpop.f32.mrb[0].mxu0
  %v1601 = vadd.f32 %v324, %v1600
  %v1602 = vpop.f32.mrb[0].mxu0
  %v1603 = vpop.f32.mrb[0].mxu0
  %v1604 = vadd.f32 %v324, %v1603
  %v1605 = vpop.f32.mrb[0].mxu0
  %1606 = vmatprep.mubr.bf16.mxu0 %v865
  %1607 = vmatmul.mubr.bf16.gmra.mrb[0].mxu0 %v864
  %v1608 = vpop.f32.mrb[0].mxu0
  %v1609 = vadd.f32 %v324, %v1608
  %v1610 = vpop.f32.mrb[0].mxu0
  %v1611 = vpop.f32.mrb[0].mxu0
  %v1612 = vadd.f32 %v324, %v1611
  %v1613 = vpop.f32.mrb[0].mxu0
  %1614 = vmatprep.mubr.bf16.mxu0 %v874
  %1615 = vmatmul.mubr.bf16.gmra.mrb[0].mxu0 %v873
  %v1616 = vpop.f32.mrb[0].mxu0
  %v1617 = vadd.f32 %v324, %v1616
  %v1618 = vpop.f32.mrb[0].mxu0
  %v1619 = vpop.f32.mrb[0].mxu0
  %v1620 = vadd.f32 %v324, %v1619
  %v1621 = vpop.f32.mrb[0].mxu0
  %1622 = vmatprep.mubr.bf16.mxu0 %v883
  %1623 = vmatmul.mubr.bf16.gmra.mrb[0].mxu0 %v882
  %v1624 = vpop.f32.mrb[0].mxu0
  %v1625 = vadd.f32 %v324, %v1624
  %v1626 = vpop.f32.mrb[0].mxu0
  %v1627 = vpop.f32.mrb[0].mxu0
  %v1628 = vadd.f32 %v324, %v1627
  %v1629 = vpop.f32.mrb[0].mxu0
  %1630 = vmatprep.mubr.bf16.mxu0 %v892
  %1631 = vmatmul.mubr.bf16.gmra.mrb[0].mxu0 %v891
  %v1632 = vpop.f32.mrb[0].mxu0
  %v1633 = vadd.f32 %v324, %v1632
  %v1634 = vpop.f32.mrb[0].mxu0
  %v1635 = vpop.f32.mrb[0].mxu0
  %v1636 = vadd.f32 %v324, %v1635
  %v1637 = vpop.f32.mrb[0].mxu0
  %1638 = vmatprep.mubr.bf16.mxu0 %v901
  %1639 = vmatmul.mubr.bf16.gmra.mrb[0].mxu0 %v900
  %v1640 = vpop.f32.mrb[0].mxu0
  %v1641 = vadd.f32 %v324, %v1640
  %v1642 = vpop.f32.mrb[0].mxu0
  %v1643 = vpop.f32.mrb[0].mxu0
  %v1644 = vadd.f32 %v324, %v1643
  %v1645 = vpop.f32.mrb[0].mxu0
  %1646 = vmatprep.mubr.bf16.mxu0 %v910
  %1647 = vmatmul.mubr.bf16.gmra.mrb[0].mxu0 %v909
  %v1648 = vpop.f32.mrb[0].mxu0
  %v1649 = vadd.f32 %v324, %v1648
  %v1650 = vpop.f32.mrb[0].mxu0
  %v1651 = vpop.f32.mrb[0].mxu0
  %v1652 = vadd.f32 %v324, %v1651
  %v1653 = vpop.f32.mrb[0].mxu0
  %1654 = vdwg.mxu0
  %1655 = vmatprep.subr.bf16.mxu0 0
  %1656 = vmatpush1.bf16.msra.mxu0 %v1366
  %1657 = vmatprep.subr.bf16.mxu0 0
  %1658 = vmatpush1.bf16.msra.mxu0 %v1367
  %1659 = vmatprep.subr.bf16.mxu0 0
  %1660 = vmatpush1.bf16.msra.mxu0 %v1368
  %1661 = vmatprep.subr.bf16.mxu0 0
  %1662 = vmatpush1.bf16.msra.mxu0 %v1369
  %1663 = vmatprep.subr.bf16.mxu0 0
  %1664 = vmatpush1.bf16.msra.mxu0 %v1370
  %1665 = vmatprep.subr.bf16.mxu0 0
  %1666 = vmatpush1.bf16.msra.mxu0 %v1371
  %1667 = vmatprep.subr.bf16.mxu0 0
  %1668 = vmatpush1.bf16.msra.mxu0 %v1372
  %1669 = vmatprep.subr.bf16.mxu0 0
  %1670 = vmatpush1.bf16.msra.mxu0 %v1373
  %1671 = vmatprep.subr.bf16.mxu0 0
  %1672 = vmatpush1.bf16.msra.mxu0 %v1374
  %1673 = vmatprep.subr.bf16.mxu0 0
  %1674 = vmatpush1.bf16.msra.mxu0 %v1375
  %1675 = vmatprep.subr.bf16.mxu0 0
  %1676 = vmatpush1.bf16.msra.mxu0 %v1376
  %1677 = vmatprep.subr.bf16.mxu0 0
  %1678 = vmatpush1.bf16.msra.mxu0 %v1377
  %1679 = vmatprep.subr.bf16.mxu0 0
  %1680 = vmatpush1.bf16.msra.mxu0 %v1378
  %1681 = vmatprep.subr.bf16.mxu0 0
  %1682 = vmatpush1.bf16.msra.mxu0 %v1379
  %1683 = vmatprep.subr.bf16.mxu0 0
  %1684 = vmatpush1.bf16.msra.mxu0 %v1380
  %1685 = vmatprep.subr.bf16.mxu0 0
  %1686 = vmatpush1.bf16.msra.mxu0 %v1381
  %1687 = vmatprep.mubr.bf16.mxu0 %v777
  %1688 = vmatmul.mubr.bf16.gmra.mrb[0].mxu0 %v776
  %v1689 = vpop.f32.mrb[0].mxu0
  %v1690 = vadd.f32 %v1529, %v1689
  %v1691 = vpop.f32.mrb[0].mxu0
  %v1692 = vpop.f32.mrb[0].mxu0
  %v1693 = vadd.f32 %v1532, %v1692
  %v1694 = vpop.f32.mrb[0].mxu0
  %1695 = vmatprep.mubr.bf16.mxu0 %v786
  %1696 = vmatmul.mubr.bf16.gmra.mrb[0].mxu0 %v785
  %v1697 = vpop.f32.mrb[0].mxu0
  %v1698 = vadd.f32 %v1537, %v1697
  %v1699 = vpop.f32.mrb[0].mxu0
  %v1700 = vpop.f32.mrb[0].mxu0
  %v1701 = vadd.f32 %v1540, %v1700
  %v1702 = vpop.f32.mrb[0].mxu0
  %1703 = vmatprep.mubr.bf16.mxu0 %v795
  %1704 = vmatmul.mubr.bf16.gmra.mrb[0].mxu0 %v794
  %v1705 = vpop.f32.mrb[0].mxu0
  %v1706 = vadd.f32 %v1545, %v1705
  %v1707 = vpop.f32.mrb[0].mxu0
  %v1708 = vpop.f32.mrb[0].mxu0
  %v1709 = vadd.f32 %v1548, %v1708
  %v1710 = vpop.f32.mrb[0].mxu0
  %1711 = vmatprep.mubr.bf16.mxu0 %v804
  %1712 = vmatmul.mubr.bf16.gmra.mrb[0].mxu0 %v803
  %v1713 = vpop.f32.mrb[0].mxu0
  %v1714 = vadd.f32 %v1553, %v1713
  %v1715 = vpop.f32.mrb[0].mxu0
  %v1716 = vpop.f32.mrb[0].mxu0
  %v1717 = vadd.f32 %v1556, %v1716
  %v1718 = vpop.f32.mrb[0].mxu0
  %1719 = vmatprep.mubr.bf16.mxu0 %v813
  %1720 = vmatmul.mubr.bf16.gmra.mrb[0].mxu0 %v812
  %v1721 = vpop.f32.mrb[0].mxu0
  %v1722 = vadd.f32 %v1561, %v1721
  %v1723 = vpop.f32.mrb[0].mxu0
  %v1724 = vpop.f32.mrb[0].mxu0
  %v1725 = vadd.f32 %v1564, %v1724
  %v1726 = vpop.f32.mrb[0].mxu0
  %1727 = vmatprep.mubr.bf16.mxu0 %v822
  %1728 = vmatmul.mubr.bf16.gmra.mrb[0].mxu0 %v821
  %v1729 = vpop.f32.mrb[0].mxu0
  %v1730 = vadd.f32 %v1569, %v1729
  %v1731 = vpop.f32.mrb[0].mxu0
  %v1732 = vpop.f32.mrb[0].mxu0
  %v1733 = vadd.f32 %v1572, %v1732
  %v1734 = vpop.f32.mrb[0].mxu0
  %1735 = vmatprep.mubr.bf16.mxu0 %v831
  %1736 = vmatmul.mubr.bf16.gmra.mrb[0].mxu0 %v830
  %v1737 = vpop.f32.mrb[0].mxu0
  %v1738 = vadd.f32 %v1577, %v1737
  %v1739 = vpop.f32.mrb[0].mxu0
  %v1740 = vpop.f32.mrb[0].mxu0
  %v1741 = vadd.f32 %v1580, %v1740
  %v1742 = vpop.f32.mrb[0].mxu0
  %1743 = vmatprep.mubr.bf16.mxu0 %v840
  %1744 = vmatmul.mubr.bf16.gmra.mrb[0].mxu0 %v839
  %v1745 = vpop.f32.mrb[0].mxu0
  %v1746 = vadd.f32 %v1585, %v1745
  %v1747 = vpop.f32.mrb[0].mxu0
  %v1748 = vpop.f32.mrb[0].mxu0
  %v1749 = vadd.f32 %v1588, %v1748
  %v1750 = vpop.f32.mrb[0].mxu0
  %1751 = vmatprep.mubr.bf16.mxu0 %v849
  %1752 = vmatmul.mubr.bf16.gmra.mrb[0].mxu0 %v848
  %v1753 = vpop.f32.mrb[0].mxu0
  %v1754 = vadd.f32 %v1593, %v1753
  %v1755 = vpop.f32.mrb[0].mxu0
  %v1756 = vpop.f32.mrb[0].mxu0
  %v1757 = vadd.f32 %v1596, %v1756
  %v1758 = vpop.f32.mrb[0].mxu0
  %1759 = vmatprep.mubr.bf16.mxu0 %v858
  %1760 = vmatmul.mubr.bf16.gmra.mrb[0].mxu0 %v857
  %v1761 = vpop.f32.mrb[0].mxu0
  %v1762 = vadd.f32 %v1601, %v1761
  %v1763 = vpop.f32.mrb[0].mxu0
  %v1764 = vpop.f32.mrb[0].mxu0
  %v1765 = vadd.f32 %v1604, %v1764
  %v1766 = vpop.f32.mrb[0].mxu0
  %1767 = vmatprep.mubr.bf16.mxu0 %v867
  %1768 = vmatmul.mubr.bf16.gmra.mrb[0].mxu0 %v866
  %v1769 = vpop.f32.mrb[0].mxu0
  %v1770 = vadd.f32 %v1609, %v1769
  %v1771 = vpop.f32.mrb[0].mxu0
  %v1772 = vpop.f32.mrb[0].mxu0
  %v1773 = vadd.f32 %v1612, %v1772
  %v1774 = vpop.f32.mrb[0].mxu0
  %1775 = vmatprep.mubr.bf16.mxu0 %v876
  %1776 = vmatmul.mubr.bf16.gmra.mrb[0].mxu0 %v875
  %v1777 = vpop.f32.mrb[0].mxu0
  %v1778 = vadd.f32 %v1617, %v1777
  %v1779 = vpop.f32.mrb[0].mxu0
  %v1780 = vpop.f32.mrb[0].mxu0
  %v1781 = vadd.f32 %v1620, %v1780
  %v1782 = vpop.f32.mrb[0].mxu0
  %1783 = vmatprep.mubr.bf16.mxu0 %v885
  %1784 = vmatmul.mubr.bf16.gmra.mrb[0].mxu0 %v884
  %v1785 = vpop.f32.mrb[0].mxu0
  %v1786 = vadd.f32 %v1625, %v1785
  %v1787 = vpop.f32.mrb[0].mxu0
  %v1788 = vpop.f32.mrb[0].mxu0
  %v1789 = vadd.f32 %v1628, %v1788
  %v1790 = vpop.f32.mrb[0].mxu0
  %1791 = vmatprep.mubr.bf16.mxu0 %v894
  %1792 = vmatmul.mubr.bf16.gmra.mrb[0].mxu0 %v893
  %v1793 = vpop.f32.mrb[0].mxu0
  %v1794 = vadd.f32 %v1633, %v1793
  %v1795 = vpop.f32.mrb[0].mxu0
  %v1796 = vpop.f32.mrb[0].mxu0
  %v1797 = vadd.f32 %v1636, %v1796
  %v1798 = vpop.f32.mrb[0].mxu0
  %1799 = vmatprep.mubr.bf16.mxu0 %v903
  %1800 = vmatmul.mubr.bf16.gmra.mrb[0].mxu0 %v902
  %v1801 = vpop.f32.mrb[0].mxu0
  %v1802 = vadd.f32 %v1641, %v1801
  %v1803 = vpop.f32.mrb[0].mxu0
  %v1804 = vpop.f32.mrb[0].mxu0
  %v1805 = vadd.f32 %v1644, %v1804
  %v1806 = vpop.f32.mrb[0].mxu0
  %1807 = vmatprep.mubr.bf16.mxu0 %v912
  %1808 = vmatmul.mubr.bf16.gmra.mrb[0].mxu0 %v911
  %v1809 = vpop.f32.mrb[0].mxu0
  %v1810 = vadd.f32 %v1649, %v1809
  %v1811 = vpop.f32.mrb[0].mxu0
  %v1812 = vpop.f32.mrb[0].mxu0
  %v1813 = vadd.f32 %v1652, %v1812
  %v1814 = vpop.f32.mrb[0].mxu0
  %1815 = vdwg.mxu0
  %1816 = vmatprep.subr.bf16.mxu0 0
  %1817 = vmatpush1.bf16.msra.mxu0 %v1382
  %1818 = vmatprep.subr.bf16.mxu0 0
  %1819 = vmatpush1.bf16.msra.mxu0 %v1383
  %1820 = vmatprep.subr.bf16.mxu0 0
  %1821 = vmatpush1.bf16.msra.mxu0 %v1384
  %1822 = vmatprep.subr.bf16.mxu0 0
  %1823 = vmatpush1.bf16.msra.mxu0 %v1385
  %1824 = vmatprep.subr.bf16.mxu0 0
  %1825 = vmatpush1.bf16.msra.mxu0 %v1386
  %1826 = vmatprep.subr.bf16.mxu0 0
  %1827 = vmatpush1.bf16.msra.mxu0 %v1387
  %1828 = vmatprep.subr.bf16.mxu0 0
  %1829 = vmatpush1.bf16.msra.mxu0 %v1388
  %1830 = vmatprep.subr.bf16.mxu0 0
  %1831 = vmatpush1.bf16.msra.mxu0 %v1389
  %1832 = vmatprep.subr.bf16.mxu0 0
  %1833 = vmatpush1.bf16.msra.mxu0 %v1390
  %1834 = vmatprep.subr.bf16.mxu0 0
  %1835 = vmatpush1.bf16.msra.mxu0 %v1391
  %1836 = vmatprep.subr.bf16.mxu0 0
  %1837 = vmatpush1.bf16.msra.mxu0 %v1392
  %1838 = vmatprep.subr.bf16.mxu0 0
  %1839 = vmatpush1.bf16.msra.mxu0 %v1393
  %1840 = vmatprep.subr.bf16.mxu0 0
  %1841 = vmatpush1.bf16.msra.mxu0 %v1394
  %1842 = vmatprep.subr.bf16.mxu0 0
  %1843 = vmatpush1.bf16.msra.mxu0 %v1395
  %1844 = vmatprep.subr.bf16.mxu0 0
  %1845 = vmatpush1.bf16.msra.mxu0 %v1396
  %1846 = vmatprep.subr.bf16.mxu0 0
  %1847 = vmatpush1.bf16.msra.mxu0 %v1397
  %1848 = vmatprep.mubr.bf16.mxu0 %v779
  %1849 = vmatmul.mubr.bf16.gmra.mrb[0].mxu0 %v778
  %v1850 = vpop.f32.mrb[0].mxu0
  %v1851 = vadd.f32 %v1690, %v1850
  %v1852 = vpop.f32.mrb[0].mxu0
  %v1853 = vpop.f32.mrb[0].mxu0
  %v1854 = vadd.f32 %v1693, %v1853
  %v1855 = vpop.f32.mrb[0].mxu0
  %1856 = vmatprep.mubr.bf16.mxu0 %v788
  %1857 = vmatmul.mubr.bf16.gmra.mrb[0].mxu0 %v787
  %v1858 = vpop.f32.mrb[0].mxu0
  %v1859 = vadd.f32 %v1698, %v1858
  %v1860 = vpop.f32.mrb[0].mxu0
  %v1861 = vpop.f32.mrb[0].mxu0
  %v1862 = vadd.f32 %v1701, %v1861
  %v1863 = vpop.f32.mrb[0].mxu0
  %1864 = vmatprep.mubr.bf16.mxu0 %v797
  %1865 = vmatmul.mubr.bf16.gmra.mrb[0].mxu0 %v796
  %v1866 = vpop.f32.mrb[0].mxu0
  %v1867 = vadd.f32 %v1706, %v1866
  %v1868 = vpop.f32.mrb[0].mxu0
  %v1869 = vpop.f32.mrb[0].mxu0
  %v1870 = vadd.f32 %v1709, %v1869
  %v1871 = vpop.f32.mrb[0].mxu0
  %1872 = vmatprep.mubr.bf16.mxu0 %v806
  %1873 = vmatmul.mubr.bf16.gmra.mrb[0].mxu0 %v805
  %v1874 = vpop.f32.mrb[0].mxu0
  %v1875 = vadd.f32 %v1714, %v1874
  %v1876 = vpop.f32.mrb[0].mxu0
  %v1877 = vpop.f32.mrb[0].mxu0
  %v1878 = vadd.f32 %v1717, %v1877
  %v1879 = vpop.f32.mrb[0].mxu0
  %1880 = vmatprep.mubr.bf16.mxu0 %v815
  %1881 = vmatmul.mubr.bf16.gmra.mrb[0].mxu0 %v814
  %v1882 = vpop.f32.mrb[0].mxu0
  %v1883 = vadd.f32 %v1722, %v1882
  %v1884 = vpop.f32.mrb[0].mxu0
  %v1885 = vpop.f32.mrb[0].mxu0
  %v1886 = vadd.f32 %v1725, %v1885
  %v1887 = vpop.f32.mrb[0].mxu0
  %1888 = vmatprep.mubr.bf16.mxu0 %v824
  %1889 = vmatmul.mubr.bf16.gmra.mrb[0].mxu0 %v823
  %v1890 = vpop.f32.mrb[0].mxu0
  %v1891 = vadd.f32 %v1730, %v1890
  %v1892 = vpop.f32.mrb[0].mxu0
  %v1893 = vpop.f32.mrb[0].mxu0
  %v1894 = vadd.f32 %v1733, %v1893
  %v1895 = vpop.f32.mrb[0].mxu0
  %1896 = vmatprep.mubr.bf16.mxu0 %v833
  %1897 = vmatmul.mubr.bf16.gmra.mrb[0].mxu0 %v832
  %v1898 = vpop.f32.mrb[0].mxu0
  %v1899 = vadd.f32 %v1738, %v1898
  %v1900 = vpop.f32.mrb[0].mxu0
  %v1901 = vpop.f32.mrb[0].mxu0
  %v1902 = vadd.f32 %v1741, %v1901
  %v1903 = vpop.f32.mrb[0].mxu0
  %1904 = vmatprep.mubr.bf16.mxu0 %v842
  %1905 = vmatmul.mubr.bf16.gmra.mrb[0].mxu0 %v841
  %v1906 = vpop.f32.mrb[0].mxu0
  %v1907 = vadd.f32 %v1746, %v1906
  %v1908 = vpop.f32.mrb[0].mxu0
  %v1909 = vpop.f32.mrb[0].mxu0
  %v1910 = vadd.f32 %v1749, %v1909
  %v1911 = vpop.f32.mrb[0].mxu0
  %1912 = vmatprep.mubr.bf16.mxu0 %v851
  %1913 = vmatmul.mubr.bf16.gmra.mrb[0].mxu0 %v850
  %v1914 = vpop.f32.mrb[0].mxu0
  %v1915 = vadd.f32 %v1754, %v1914
  %v1916 = vpop.f32.mrb[0].mxu0
  %v1917 = vpop.f32.mrb[0].mxu0
  %v1918 = vadd.f32 %v1757, %v1917
  %v1919 = vpop.f32.mrb[0].mxu0
  %1920 = vmatprep.mubr.bf16.mxu0 %v860
  %1921 = vmatmul.mubr.bf16.gmra.mrb[0].mxu0 %v859
  %v1922 = vpop.f32.mrb[0].mxu0
  %v1923 = vadd.f32 %v1762, %v1922
  %v1924 = vpop.f32.mrb[0].mxu0
  %v1925 = vpop.f32.mrb[0].mxu0
  %v1926 = vadd.f32 %v1765, %v1925
  %v1927 = vpop.f32.mrb[0].mxu0
  %1928 = vmatprep.mubr.bf16.mxu0 %v869
  %1929 = vmatmul.mubr.bf16.gmra.mrb[0].mxu0 %v868
  %v1930 = vpop.f32.mrb[0].mxu0
  %v1931 = vadd.f32 %v1770, %v1930
  %v1932 = vpop.f32.mrb[0].mxu0
  %v1933 = vpop.f32.mrb[0].mxu0
  %v1934 = vadd.f32 %v1773, %v1933
  %v1935 = vpop.f32.mrb[0].mxu0
  %1936 = vmatprep.mubr.bf16.mxu0 %v878
  %1937 = vmatmul.mubr.bf16.gmra.mrb[0].mxu0 %v877
  %v1938 = vpop.f32.mrb[0].mxu0
  %v1939 = vadd.f32 %v1778, %v1938
  %v1940 = vpop.f32.mrb[0].mxu0
  %v1941 = vpop.f32.mrb[0].mxu0
  %v1942 = vadd.f32 %v1781, %v1941
  %v1943 = vpop.f32.mrb[0].mxu0
  %1944 = vmatprep.mubr.bf16.mxu0 %v887
  %1945 = vmatmul.mubr.bf16.gmra.mrb[0].mxu0 %v886
  %v1946 = vpop.f32.mrb[0].mxu0
  %v1947 = vadd.f32 %v1786, %v1946
  %v1948 = vpop.f32.mrb[0].mxu0
  %v1949 = vpop.f32.mrb[0].mxu0
  %v1950 = vadd.f32 %v1789, %v1949
  %v1951 = vpop.f32.mrb[0].mxu0
  %1952 = vmatprep.mubr.bf16.mxu0 %v896
  %1953 = vmatmul.mubr.bf16.gmra.mrb[0].mxu0 %v895
  %v1954 = vpop.f32.mrb[0].mxu0
  %v1955 = vadd.f32 %v1794, %v1954
  %v1956 = vpop.f32.mrb[0].mxu0
  %v1957 = vpop.f32.mrb[0].mxu0
  %v1958 = vadd.f32 %v1797, %v1957
  %v1959 = vpop.f32.mrb[0].mxu0
  %1960 = vmatprep.mubr.bf16.mxu0 %v905
  %1961 = vmatmul.mubr.bf16.gmra.mrb[0].mxu0 %v904
  %v1962 = vpop.f32.mrb[0].mxu0
  %v1963 = vadd.f32 %v1802, %v1962
  %v1964 = vpop.f32.mrb[0].mxu0
  %v1965 = vpop.f32.mrb[0].mxu0
  %v1966 = vadd.f32 %v1805, %v1965
  %v1967 = vpop.f32.mrb[0].mxu0
  %1968 = vmatprep.mubr.bf16.mxu0 %v914
  %1969 = vmatmul.mubr.bf16.gmra.mrb[0].mxu0 %v913
  %v1970 = vpop.f32.mrb[0].mxu0
  %v1971 = vadd.f32 %v1810, %v1970
  %v1972 = vpop.f32.mrb[0].mxu0
  %v1973 = vpop.f32.mrb[0].mxu0
  %v1974 = vadd.f32 %v1813, %v1973
  %v1975 = vpop.f32.mrb[0].mxu0
  %1976 = vdwg.mxu0
  %1977 = vmatprep.subr.bf16.mxu0 0
  %1978 = vmatpush1.bf16.msra.mxu0 %v1398
  %1979 = vmatprep.subr.bf16.mxu0 0
  %1980 = vmatpush1.bf16.msra.mxu0 %v1399
  %1981 = vmatprep.subr.bf16.mxu0 0
  %1982 = vmatpush1.bf16.msra.mxu0 %v1400
  %1983 = vmatprep.subr.bf16.mxu0 0
  %1984 = vmatpush1.bf16.msra.mxu0 %v1401
  %1985 = vmatprep.subr.bf16.mxu0 0
  %1986 = vmatpush1.bf16.msra.mxu0 %v1402
  %1987 = vmatprep.subr.bf16.mxu0 0
  %1988 = vmatpush1.bf16.msra.mxu0 %v1403
  %1989 = vmatprep.subr.bf16.mxu0 0
  %1990 = vmatpush1.bf16.msra.mxu0 %v1404
  %1991 = vmatprep.subr.bf16.mxu0 0
  %1992 = vmatpush1.bf16.msra.mxu0 %v1405
  %1993 = vmatprep.subr.bf16.mxu0 0
  %1994 = vmatpush1.bf16.msra.mxu0 %v1406
  %1995 = vmatprep.subr.bf16.mxu0 0
  %1996 = vmatpush1.bf16.msra.mxu0 %v1407
  %1997 = vmatprep.subr.bf16.mxu0 0
  %1998 = vmatpush1.bf16.msra.mxu0 %v1408
  %1999 = vmatprep.subr.bf16.mxu0 0
  %2000 = vmatpush1.bf16.msra.mxu0 %v1409
  %2001 = vmatprep.subr.bf16.mxu0 0
  %2002 = vmatpush1.bf16.msra.mxu0 %v1410
  %2003 = vmatprep.subr.bf16.mxu0 0
  %2004 = vmatpush1.bf16.msra.mxu0 %v1411
  %2005 = vmatprep.subr.bf16.mxu0 0
  %2006 = vmatpush1.bf16.msra.mxu0 %v1412
  %2007 = vmatprep.subr.bf16.mxu0 0
  %2008 = vmatpush1.bf16.msra.mxu0 %v1413
  %2009 = vmatprep.mubr.bf16.mxu0 %v781
  %2010 = vmatmul.mubr.bf16.gmra.mrb[0].mxu0 %v780
  %v2011 = vpop.f32.mrb[0].mxu0
  %v2012 = vadd.f32 %v1851, %v2011
  %v2013 = vpop.f32.mrb[0].mxu0
  %v2014 = vpop.f32.mrb[0].mxu0
  %v2015 = vadd.f32 %v1854, %v2014
  %v2016 = vpop.f32.mrb[0].mxu0
  %2017 = vmatprep.mubr.bf16.mxu0 %v790
  %2018 = vmatmul.mubr.bf16.gmra.mrb[0].mxu0 %v789
  %v2019 = vpop.f32.mrb[0].mxu0
  %v2020 = vadd.f32 %v1859, %v2019
  %v2021 = vpop.f32.mrb[0].mxu0
  %v2022 = vpop.f32.mrb[0].mxu0
  %v2023 = vadd.f32 %v1862, %v2022
  %v2024 = vpop.f32.mrb[0].mxu0
  %2025 = vmatprep.mubr.bf16.mxu0 %v799
  %2026 = vmatmul.mubr.bf16.gmra.mrb[0].mxu0 %v798
  %v2027 = vpop.f32.mrb[0].mxu0
  %v2028 = vadd.f32 %v1867, %v2027
  %v2029 = vpop.f32.mrb[0].mxu0
  %v2030 = vpop.f32.mrb[0].mxu0
  %v2031 = vadd.f32 %v1870, %v2030
  %v2032 = vpop.f32.mrb[0].mxu0
  %2033 = vmatprep.mubr.bf16.mxu0 %v808
  %2034 = vmatmul.mubr.bf16.gmra.mrb[0].mxu0 %v807
  %v2035 = vpop.f32.mrb[0].mxu0
  %v2036 = vadd.f32 %v1875, %v2035
  %v2037 = vpop.f32.mrb[0].mxu0
  %v2038 = vpop.f32.mrb[0].mxu0
  %v2039 = vadd.f32 %v1878, %v2038
  %v2040 = vpop.f32.mrb[0].mxu0
  %2041 = vmatprep.mubr.bf16.mxu0 %v817
  %2042 = vmatmul.mubr.bf16.gmra.mrb[0].mxu0 %v816
  %v2043 = vpop.f32.mrb[0].mxu0
  %v2044 = vadd.f32 %v1883, %v2043
  %v2045 = vpop.f32.mrb[0].mxu0
  %v2046 = vpop.f32.mrb[0].mxu0
  %v2047 = vadd.f32 %v1886, %v2046
  %v2048 = vpop.f32.mrb[0].mxu0
  %2049 = vmatprep.mubr.bf16.mxu0 %v826
  %2050 = vmatmul.mubr.bf16.gmra.mrb[0].mxu0 %v825
  %v2051 = vpop.f32.mrb[0].mxu0
  %v2052 = vadd.f32 %v1891, %v2051
  %v2053 = vpop.f32.mrb[0].mxu0
  %v2054 = vpop.f32.mrb[0].mxu0
  %v2055 = vadd.f32 %v1894, %v2054
  %v2056 = vpop.f32.mrb[0].mxu0
  %2057 = vmatprep.mubr.bf16.mxu0 %v835
  %2058 = vmatmul.mubr.bf16.gmra.mrb[0].mxu0 %v834
  %v2059 = vpop.f32.mrb[0].mxu0
  %v2060 = vadd.f32 %v1899, %v2059
  %v2061 = vpop.f32.mrb[0].mxu0
  %v2062 = vpop.f32.mrb[0].mxu0
  %v2063 = vadd.f32 %v1902, %v2062
  %v2064 = vpop.f32.mrb[0].mxu0
  %2065 = vmatprep.mubr.bf16.mxu0 %v844
  %2066 = vmatmul.mubr.bf16.gmra.mrb[0].mxu0 %v843
  %v2067 = vpop.f32.mrb[0].mxu0
  %v2068 = vadd.f32 %v1907, %v2067
  %v2069 = vpop.f32.mrb[0].mxu0
  %v2070 = vpop.f32.mrb[0].mxu0
  %v2071 = vadd.f32 %v1910, %v2070
  %v2072 = vpop.f32.mrb[0].mxu0
  %2073 = vmatprep.mubr.bf16.mxu0 %v853
  %2074 = vmatmul.mubr.bf16.gmra.mrb[0].mxu0 %v852
  %v2075 = vpop.f32.mrb[0].mxu0
  %v2076 = vadd.f32 %v1915, %v2075
  %v2077 = vpop.f32.mrb[0].mxu0
  %v2078 = vpop.f32.mrb[0].mxu0
  %v2079 = vadd.f32 %v1918, %v2078
  %v2080 = vpop.f32.mrb[0].mxu0
  %2081 = vmatprep.mubr.bf16.mxu0 %v862
  %2082 = vmatmul.mubr.bf16.gmra.mrb[0].mxu0 %v861
  %v2083 = vpop.f32.mrb[0].mxu0
  %v2084 = vadd.f32 %v1923, %v2083
  %v2085 = vpop.f32.mrb[0].mxu0
  %v2086 = vpop.f32.mrb[0].mxu0
  %v2087 = vadd.f32 %v1926, %v2086
  %v2088 = vpop.f32.mrb[0].mxu0
  %2089 = vmatprep.mubr.bf16.mxu0 %v871
  %2090 = vmatmul.mubr.bf16.gmra.mrb[0].mxu0 %v870
  %v2091 = vpop.f32.mrb[0].mxu0
  %v2092 = vadd.f32 %v1931, %v2091
  %v2093 = vpop.f32.mrb[0].mxu0
  %v2094 = vpop.f32.mrb[0].mxu0
  %v2095 = vadd.f32 %v1934, %v2094
  %v2096 = vpop.f32.mrb[0].mxu0
  %2097 = vmatprep.mubr.bf16.mxu0 %v880
  %2098 = vmatmul.mubr.bf16.gmra.mrb[0].mxu0 %v879
  %v2099 = vpop.f32.mrb[0].mxu0
  %v2100 = vadd.f32 %v1939, %v2099
  %v2101 = vpop.f32.mrb[0].mxu0
  %v2102 = vpop.f32.mrb[0].mxu0
  %v2103 = vadd.f32 %v1942, %v2102
  %v2104 = vpop.f32.mrb[0].mxu0
  %2105 = vmatprep.mubr.bf16.mxu0 %v889
  %2106 = vmatmul.mubr.bf16.gmra.mrb[0].mxu0 %v888
  %v2107 = vpop.f32.mrb[0].mxu0
  %v2108 = vadd.f32 %v1947, %v2107
  %v2109 = vpop.f32.mrb[0].mxu0
  %v2110 = vpop.f32.mrb[0].mxu0
  %v2111 = vadd.f32 %v1950, %v2110
  %v2112 = vpop.f32.mrb[0].mxu0
  %2113 = vmatprep.mubr.bf16.mxu0 %v898
  %2114 = vmatmul.mubr.bf16.gmra.mrb[0].mxu0 %v897
  %v2115 = vpop.f32.mrb[0].mxu0
  %v2116 = vadd.f32 %v1955, %v2115
  %v2117 = vpop.f32.mrb[0].mxu0
  %v2118 = vpop.f32.mrb[0].mxu0
  %v2119 = vadd.f32 %v1958, %v2118
  %v2120 = vpop.f32.mrb[0].mxu0
  %2121 = vmatprep.mubr.bf16.mxu0 %v907
  %2122 = vmatmul.mubr.bf16.gmra.mrb[0].mxu0 %v906
  %v2123 = vpop.f32.mrb[0].mxu0
  %v2124 = vadd.f32 %v1963, %v2123
  %v2125 = vpop.f32.mrb[0].mxu0
  %v2126 = vpop.f32.mrb[0].mxu0
  %v2127 = vadd.f32 %v1966, %v2126
  %v2128 = vpop.f32.mrb[0].mxu0
  %2129 = vmatprep.mubr.bf16.mxu0 %v916
  %2130 = vmatmul.mubr.bf16.gmra.mrb[0].mxu0 %v915
  %v2131 = vpop.f32.mrb[0].mxu0
  %v2132 = vadd.f32 %v1971, %v2131
  %v2133 = vpop.f32.mrb[0].mxu0
  %v2134 = vpop.f32.mrb[0].mxu0
  %v2135 = vadd.f32 %v1974, %v2134
  %v2136 = vpop.f32.mrb[0].mxu0
  %2137 = vdwg.mxu0
  %2138 = vmatprep.subr.bf16.mxu0 0
  %2139 = vmatpush1.bf16.msra.mxu0 %v1414
  %2140 = vmatprep.subr.bf16.mxu0 0
  %2141 = vmatpush1.bf16.msra.mxu0 %v1415
  %2142 = vmatprep.subr.bf16.mxu0 0
  %2143 = vmatpush1.bf16.msra.mxu0 %v1416
  %2144 = vmatprep.subr.bf16.mxu0 0
  %2145 = vmatpush1.bf16.msra.mxu0 %v1417
  %2146 = vmatprep.subr.bf16.mxu0 0
  %2147 = vmatpush1.bf16.msra.mxu0 %v1418
  %2148 = vmatprep.subr.bf16.mxu0 0
  %2149 = vmatpush1.bf16.msra.mxu0 %v1419
  %2150 = vmatprep.subr.bf16.mxu0 0
  %2151 = vmatpush1.bf16.msra.mxu0 %v1420
  %2152 = vmatprep.subr.bf16.mxu0 0
  %2153 = vmatpush1.bf16.msra.mxu0 %v1421
  %2154 = vmatprep.subr.bf16.mxu0 0
  %2155 = vmatpush1.bf16.msra.mxu0 0
  %2156 = vmatprep.subr.bf16.mxu0 0
  %2157 = vmatpush1.bf16.msra.mxu0 0
  %2158 = vmatprep.subr.bf16.mxu0 0
  %2159 = vmatpush1.bf16.msra.mxu0 0
  %2160 = vmatprep.subr.bf16.mxu0 0
  %2161 = vmatpush1.bf16.msra.mxu0 0
  %2162 = vmatprep.subr.bf16.mxu0 0
  %2163 = vmatpush1.bf16.msra.mxu0 0
  %2164 = vmatprep.subr.bf16.mxu0 0
  %2165 = vmatpush1.bf16.msra.mxu0 0
  %2166 = vmatprep.subr.bf16.mxu0 0
  %2167 = vmatpush1.bf16.msra.mxu0 0
  %2168 = vmatprep.subr.bf16.mxu0 0
  %2169 = vmatpush1.bf16.msra.mxu0 0
  %2170 = vmatprep.mubr.bf16.mxu0 0
  %2171 = vmatmul.mubr.bf16.gmra.mrb[0].mxu0 %v782
  %v2172 = vpop.f32.mrb[0].mxu0
  %v2173 = vadd.f32 %v2012, %v2172
  %v2174 = vpop.f32.mrb[0].mxu0
  %v2175 = vpop.f32.mrb[0].mxu0
  %v2176 = vadd.f32 %v2015, %v2175
  %v2177 = vpop.f32.mrb[0].mxu0
  %2178 = vmatprep.mubr.bf16.mxu0 0
  %2179 = vmatmul.mubr.bf16.gmra.mrb[0].mxu0 %v791
  %v2180 = vpop.f32.mrb[0].mxu0
  %v2181 = vadd.f32 %v2020, %v2180
  %v2182 = vpop.f32.mrb[0].mxu0
  %v2183 = vpop.f32.mrb[0].mxu0
  %v2184 = vadd.f32 %v2023, %v2183
  %v2185 = vpop.f32.mrb[0].mxu0
  %2186 = vmatprep.mubr.bf16.mxu0 0
  %2187 = vmatmul.mubr.bf16.gmra.mrb[0].mxu0 %v800
  %v2188 = vpop.f32.mrb[0].mxu0
  %v2189 = vadd.f32 %v2028, %v2188
  %v2190 = vpop.f32.mrb[0].mxu0
  %v2191 = vpop.f32.mrb[0].mxu0
  %v2192 = vadd.f32 %v2031, %v2191
  %v2193 = vpop.f32.mrb[0].mxu0
  %2194 = vmatprep.mubr.bf16.mxu0 0
  %2195 = vmatmul.mubr.bf16.gmra.mrb[0].mxu0 %v809
  %v2196 = vpop.f32.mrb[0].mxu0
  %v2197 = vadd.f32 %v2036, %v2196
  %v2198 = vpop.f32.mrb[0].mxu0
  %v2199 = vpop.f32.mrb[0].mxu0
  %v2200 = vadd.f32 %v2039, %v2199
  %v2201 = vpop.f32.mrb[0].mxu0
  %2202 = vmatprep.mubr.bf16.mxu0 0
  %2203 = vmatmul.mubr.bf16.gmra.mrb[0].mxu0 %v818
  %v2204 = vpop.f32.mrb[0].mxu0
  %v2205 = vadd.f32 %v2044, %v2204
  %v2206 = vpop.f32.mrb[0].mxu0
  %v2207 = vpop.f32.mrb[0].mxu0
  %v2208 = vadd.f32 %v2047, %v2207
  %v2209 = vpop.f32.mrb[0].mxu0
  %2210 = vmatprep.mubr.bf16.mxu0 0
  %2211 = vmatmul.mubr.bf16.gmra.mrb[0].mxu0 %v827
  %v2212 = vpop.f32.mrb[0].mxu0
  %v2213 = vadd.f32 %v2052, %v2212
  %v2214 = vpop.f32.mrb[0].mxu0
  %v2215 = vpop.f32.mrb[0].mxu0
  %v2216 = vadd.f32 %v2055, %v2215
  %v2217 = vpop.f32.mrb[0].mxu0
  %2218 = vmatprep.mubr.bf16.mxu0 0
  %2219 = vmatmul.mubr.bf16.gmra.mrb[0].mxu0 %v836
  %v2220 = vpop.f32.mrb[0].mxu0
  %v2221 = vadd.f32 %v2060, %v2220
  %v2222 = vpop.f32.mrb[0].mxu0
  %v2223 = vpop.f32.mrb[0].mxu0
  %v2224 = vadd.f32 %v2063, %v2223
  %v2225 = vpop.f32.mrb[0].mxu0
  %2226 = vmatprep.mubr.bf16.mxu0 0
  %2227 = vmatmul.mubr.bf16.gmra.mrb[0].mxu0 %v845
  %v2228 = vpop.f32.mrb[0].mxu0
  %v2229 = vadd.f32 %v2068, %v2228
  %v2230 = vpop.f32.mrb[0].mxu0
  %v2231 = vpop.f32.mrb[0].mxu0
  %v2232 = vadd.f32 %v2071, %v2231
  %v2233 = vpop.f32.mrb[0].mxu0
  %2234 = vmatprep.mubr.bf16.mxu0 0
  %2235 = vmatmul.mubr.bf16.gmra.mrb[0].mxu0 %v854
  %v2236 = vpop.f32.mrb[0].mxu0
  %v2237 = vadd.f32 %v2076, %v2236
  %v2238 = vpop.f32.mrb[0].mxu0
  %v2239 = vpop.f32.mrb[0].mxu0
  %v2240 = vadd.f32 %v2079, %v2239
  %v2241 = vpop.f32.mrb[0].mxu0
  %2242 = vmatprep.mubr.bf16.mxu0 0
  %2243 = vmatmul.mubr.bf16.gmra.mrb[0].mxu0 %v863
  %v2244 = vpop.f32.mrb[0].mxu0
  %v2245 = vadd.f32 %v2084, %v2244
  %v2246 = vpop.f32.mrb[0].mxu0
  %v2247 = vpop.f32.mrb[0].mxu0
  %v2248 = vadd.f32 %v2087, %v2247
  %v2249 = vpop.f32.mrb[0].mxu0
  %2250 = vmatprep.mubr.bf16.mxu0 0
  %2251 = vmatmul.mubr.bf16.gmra.mrb[0].mxu0 %v872
  %v2252 = vpop.f32.mrb[0].mxu0
  %v2253 = vadd.f32 %v2092, %v2252
  %v2254 = vpop.f32.mrb[0].mxu0
  %v2255 = vpop.f32.mrb[0].mxu0
  %v2256 = vadd.f32 %v2095, %v2255
  %v2257 = vpop.f32.mrb[0].mxu0
  %2258 = vmatprep.mubr.bf16.mxu0 0
  %2259 = vmatmul.mubr.bf16.gmra.mrb[0].mxu0 %v881
  %v2260 = vpop.f32.mrb[0].mxu0
  %v2261 = vadd.f32 %v2100, %v2260
  %v2262 = vpop.f32.mrb[0].mxu0
  %v2263 = vpop.f32.mrb[0].mxu0
  %v2264 = vadd.f32 %v2103, %v2263
  %v2265 = vpop.f32.mrb[0].mxu0
  %2266 = vmatprep.mubr.bf16.mxu0 0
  %2267 = vmatmul.mubr.bf16.gmra.mrb[0].mxu0 %v890
  %v2268 = vpop.f32.mrb[0].mxu0
  %v2269 = vadd.f32 %v2108, %v2268
  %v2270 = vpop.f32.mrb[0].mxu0
  %v2271 = vpop.f32.mrb[0].mxu0
  %v2272 = vadd.f32 %v2111, %v2271
  %v2273 = vpop.f32.mrb[0].mxu0
  %2274 = vmatprep.mubr.bf16.mxu0 0
  %2275 = vmatmul.mubr.bf16.gmra.mrb[0].mxu0 %v899
  %v2276 = vpop.f32.mrb[0].mxu0
  %v2277 = vadd.f32 %v2116, %v2276
  %v2278 = vpop.f32.mrb[0].mxu0
  %v2279 = vpop.f32.mrb[0].mxu0
  %v2280 = vadd.f32 %v2119, %v2279
  %v2281 = vpop.f32.mrb[0].mxu0
  %2282 = vmatprep.mubr.bf16.mxu0 0
  %2283 = vmatmul.mubr.bf16.gmra.mrb[0].mxu0 %v908
  %v2284 = vpop.f32.mrb[0].mxu0
  %v2285 = vadd.f32 %v2124, %v2284
  %v2286 = vpop.f32.mrb[0].mxu0
  %v2287 = vpop.f32.mrb[0].mxu0
  %v2288 = vadd.f32 %v2127, %v2287
  %v2289 = vpop.f32.mrb[0].mxu0
  %2290 = vmatprep.mubr.bf16.mxu0 0
  %2291 = vmatmul.mubr.bf16.gmra.mrb[0].mxu0 %v917
  %v2292 = vpop.f32.mrb[0].mxu0
  %v2293 = vadd.f32 %v2132, %v2292
  %v2294 = vpop.f32.mrb[0].mxu0
  %v2295 = vpop.f32.mrb[0].mxu0
  %v2296 = vadd.f32 %v2135, %v2295
  %v2297 = vpop.f32.mrb[0].mxu0
  %2298 = vdwg.mxu0
  %vm2299 = vcmp.ge.f32.partialorder %v2173, 0.0
  %vm2300 = vcmp.ge.f32.partialorder %v2176, 0.0
  %vm2301 = vcmp.ge.f32.partialorder %v2181, 0.0
  %vm2302 = vcmp.ge.f32.partialorder %v2184, 0.0
  %vm2303 = vcmp.ge.f32.partialorder %v2189, 0.0
  %vm2304 = vcmp.ge.f32.partialorder %v2192, 0.0
  %vm2305 = vcmp.ge.f32.partialorder %v2197, 0.0
  %vm2306 = vcmp.ge.f32.partialorder %v2200, 0.0
  %vm2307 = vcmp.ge.f32.partialorder %v2205, 0.0
  %vm2308 = vcmp.ge.f32.partialorder %v2208, 0.0
  %vm2309 = vcmp.ge.f32.partialorder %v2213, 0.0
  %vm2310 = vcmp.ge.f32.partialorder %v2216, 0.0
  %vm2311 = vcmp.ge.f32.partialorder %v2221, 0.0
  %vm2312 = vcmp.ge.f32.partialorder %v2224, 0.0
  %vm2313 = vcmp.ge.f32.partialorder %v2229, 0.0
  %vm2314 = vcmp.ge.f32.partialorder %v2232, 0.0
  %vm2315 = vcmp.ge.f32.partialorder %v2237, 0.0
  %vm2316 = vcmp.ge.f32.partialorder %v2240, 0.0
  %vm2317 = vcmp.ge.f32.partialorder %v2245, 0.0
  %vm2318 = vcmp.ge.f32.partialorder %v2248, 0.0
  %vm2319 = vcmp.ge.f32.partialorder %v2253, 0.0
  %vm2320 = vcmp.ge.f32.partialorder %v2256, 0.0
  %vm2321 = vcmp.ge.f32.partialorder %v2261, 0.0
  %vm2322 = vcmp.ge.f32.partialorder %v2264, 0.0
  %vm2323 = vcmp.ge.f32.partialorder %v2269, 0.0
  %vm2324 = vcmp.ge.f32.partialorder %v2272, 0.0
  %vm2325 = vcmp.ge.f32.partialorder %v2277, 0.0
  %vm2326 = vcmp.ge.f32.partialorder %v2280, 0.0
  %vm2327 = vcmp.ge.f32.partialorder %v2285, 0.0
  %vm2328 = vcmp.ge.f32.partialorder %v2288, 0.0
  %vm2329 = vcmp.ge.f32.partialorder %v2293, 0.0
  %vm2330 = vcmp.ge.f32.partialorder %v2296, 0.0
  %v2331 = vmul.f32 %v2173, 0.2
  %v2332 = vmul.f32 %v2176, 0.2
  %v2333 = vmul.f32 %v2181, 0.2
  %v2334 = vmul.f32 %v2184, 0.2
  %v2335 = vmul.f32 %v2189, 0.2
  %v2336 = vmul.f32 %v2192, 0.2
  %v2337 = vmul.f32 %v2197, 0.2
  %v2338 = vmul.f32 %v2200, 0.2
  %v2339 = vmul.f32 %v2205, 0.2
  %v2340 = vmul.f32 %v2208, 0.2
  %v2341 = vmul.f32 %v2213, 0.2
  %v2342 = vmul.f32 %v2216, 0.2
  %v2343 = vmul.f32 %v2221, 0.2
  %v2344 = vmul.f32 %v2224, 0.2
  %v2345 = vmul.f32 %v2229, 0.2
  %v2346 = vmul.f32 %v2232, 0.2
  %v2347 = vmul.f32 %v2237, 0.2
  %v2348 = vmul.f32 %v2240, 0.2
  %v2349 = vmul.f32 %v2245, 0.2
  %v2350 = vmul.f32 %v2248, 0.2
  %v2351 = vmul.f32 %v2253, 0.2
  %v2352 = vmul.f32 %v2256, 0.2
  %v2353 = vmul.f32 %v2261, 0.2
  %v2354 = vmul.f32 %v2264, 0.2
  %v2355 = vmul.f32 %v2269, 0.2
  %v2356 = vmul.f32 %v2272, 0.2
  %v2357 = vmul.f32 %v2277, 0.2
  %v2358 = vmul.f32 %v2280, 0.2
  %v2359 = vmul.f32 %v2285, 0.2
  %v2360 = vmul.f32 %v2288, 0.2
  %v2361 = vmul.f32 %v2293, 0.2
  %v2362 = vmul.f32 %v2296, 0.2
  %v2363 = vsel %vm2299, %v2173, %v2331
  %v2364 = vsel %vm2300, %v2176, %v2332
  %v2365 = vsel %vm2301, %v2181, %v2333
  %v2366 = vsel %vm2302, %v2184, %v2334
  %v2367 = vsel %vm2303, %v2189, %v2335
  %v2368 = vsel %vm2304, %v2192, %v2336
  %v2369 = vsel %vm2305, %v2197, %v2337
  %v2370 = vsel %vm2306, %v2200, %v2338
  %v2371 = vsel %vm2307, %v2205, %v2339
  %v2372 = vsel %vm2308, %v2208, %v2340
  %v2373 = vsel %vm2309, %v2213, %v2341
  %v2374 = vsel %vm2310, %v2216, %v2342
  %v2375 = vsel %vm2311, %v2221, %v2343
  %v2376 = vsel %vm2312, %v2224, %v2344
  %v2377 = vsel %vm2313, %v2229, %v2345
  %v2378 = vsel %vm2314, %v2232, %v2346
  %v2379 = vsel %vm2315, %v2237, %v2347
  %v2380 = vsel %vm2316, %v2240, %v2348
  %v2381 = vsel %vm2317, %v2245, %v2349
  %v2382 = vsel %vm2318, %v2248, %v2350
  %v2383 = vsel %vm2319, %v2253, %v2351
  %v2384 = vsel %vm2320, %v2256, %v2352
  %v2385 = vsel %vm2321, %v2261, %v2353
  %v2386 = vsel %vm2322, %v2264, %v2354
  %v2387 = vsel %vm2323, %v2269, %v2355
  %v2388 = vsel %vm2324, %v2272, %v2356
  %v2389 = vsel %vm2325, %v2277, %v2357
  %v2390 = vsel %vm2326, %v2280, %v2358
  %v2391 = vsel %vm2327, %v2285, %v2359
  %v2392 = vsel %vm2328, %v2288, %v2360
  %v2393 = vsel %vm2329, %v2293, %v2361
  %v2394 = vsel %vm2330, %v2296, %v2362
  %v2395 = vpack.c.bf16 %v2364, %v2363
  %v2396 = vpack.c.bf16 %v2366, %v2365
  %v2397 = vpack.c.bf16 %v2368, %v2367
  %v2398 = vpack.c.bf16 %v2370, %v2369
  %v2399 = vpack.c.bf16 %v2372, %v2371
  %v2400 = vpack.c.bf16 %v2374, %v2373
  %v2401 = vpack.c.bf16 %v2376, %v2375
  %v2402 = vpack.c.bf16 %v2378, %v2377
  %v2403 = vpack.c.bf16 %v2380, %v2379
  %v2404 = vpack.c.bf16 %v2382, %v2381
  %v2405 = vpack.c.bf16 %v2384, %v2383
  %v2406 = vpack.c.bf16 %v2386, %v2385
  %v2407 = vpack.c.bf16 %v2388, %v2387
  %v2408 = vpack.c.bf16 %v2390, %v2389
  %v2409 = vpack.c.bf16 %v2392, %v2391
  %v2410 = vpack.c.bf16 %v2394, %v2393
  %v2427 = vunpack.c.l.b16 %v2395
  %v2428 = vunpack.c.h.b16 %v2395
  %v2429 = vunpack.c.l.b16 %v2396
  %v2430 = vunpack.c.h.b16 %v2396
  %v2431 = vunpack.c.l.b16 %v2397
  %v2432 = vunpack.c.h.b16 %v2397
  %v2433 = vunpack.c.l.b16 %v2398
  %v2434 = vunpack.c.h.b16 %v2398
  %v2435 = vunpack.c.l.b16 %v2399
  %v2436 = vunpack.c.h.b16 %v2399
  %v2437 = vunpack.c.l.b16 %v2400
  %v2438 = vunpack.c.h.b16 %v2400
  %v2439 = vunpack.c.l.b16 %v2401
  %v2440 = vunpack.c.h.b16 %v2401
  %v2441 = vunpack.c.l.b16 %v2402
  %v2442 = vunpack.c.h.b16 %v2402
  %v2443 = vunpack.c.l.b16 %v2403
  %v2444 = vunpack.c.h.b16 %v2403
  %v2445 = vunpack.c.l.b16 %v2404
  %v2446 = vunpack.c.h.b16 %v2404
  %v2447 = vunpack.c.l.b16 %v2405
  %v2448 = vunpack.c.h.b16 %v2405
  %v2449 = vunpack.c.l.b16 %v2406
  %v2450 = vunpack.c.h.b16 %v2406
  %v2451 = vunpack.c.l.b16 %v2407
  %v2452 = vunpack.c.h.b16 %v2407
  %v2453 = vunpack.c.l.b16 %v2408
  %v2454 = vunpack.c.h.b16 %v2408
  %v2455 = vunpack.c.l.b16 %v2409
  %v2456 = vunpack.c.h.b16 %v2409
  %v2457 = vunpack.c.l.b16 %v2410
  %v2458 = vunpack.c.h.b16 %v2410
  %v2459 = vpack.c.b16 %v2427, %v2427
  %v2460 = vpack.c.b16 %v2428, %v2428
  %v2461 = vpack.c.b16 %v2429, %v2429
  %v2462 = vpack.c.b16 %v2430, %v2430
  %v2463 = vpack.c.b16 %v2431, %v2431
  %v2464 = vpack.c.b16 %v2432, %v2432
  %v2465 = vpack.c.b16 %v2433, %v2433
  %v2466 = vpack.c.b16 %v2434, %v2434
  %v2467 = vpack.c.b16 %v2435, %v2435
  %v2468 = vpack.c.b16 %v2436, %v2436
  %v2469 = vpack.c.b16 %v2437, %v2437
  %v2470 = vpack.c.b16 %v2438, %v2438
  %v2471 = vpack.c.b16 %v2439, %v2439
  %v2472 = vpack.c.b16 %v2440, %v2440
  %v2473 = vpack.c.b16 %v2441, %v2441
  %v2474 = vpack.c.b16 %v2442, %v2442
  %v2475 = vpack.c.b16 %v2443, %v2443
  %v2476 = vpack.c.b16 %v2444, %v2444
  %v2477 = vpack.c.b16 %v2445, %v2445
  %v2478 = vpack.c.b16 %v2446, %v2446
  %v2479 = vpack.c.b16 %v2447, %v2447
  %v2480 = vpack.c.b16 %v2448, %v2448
  %v2481 = vpack.c.b16 %v2449, %v2449
  %v2482 = vpack.c.b16 %v2450, %v2450
  %v2483 = vpack.c.b16 %v2451, %v2451
  %v2484 = vpack.c.b16 %v2452, %v2452
  %v2485 = vpack.c.b16 %v2453, %v2453
  %v2486 = vpack.c.b16 %v2454, %v2454
  %v2487 = vpack.c.b16 %v2455, %v2455
  %v2488 = vpack.c.b16 %v2456, %v2456
  %v2489 = vpack.c.b16 %v2457, %v2457
  %v2490 = vpack.c.b16 %v2458, %v2458
  %2523 = vst [vmem:[%s3] sm:$0xf] %v2459
  %2524 = vst [vmem:[%s3 + $0x4] sm:$0xf] %v2460
  %2525 = vst [vmem:[%s3 + $0x8] sm:$0xf] %v2461
  %2526 = vst [vmem:[%s3 + $0xc] sm:$0xf] %v2462
  %2527 = vst [vmem:[%s3 + $0x10] sm:$0xf] %v2463
  %2528 = vst [vmem:[%s3 + $0x14] sm:$0xf] %v2464
  %2529 = vst [vmem:[%s3 + $0x18] sm:$0xf] %v2465
  %2530 = vst [vmem:[%s3 + $0x1c] sm:$0xf] %v2466
  %2531 = vst [vmem:[%s3 + $0x20] sm:$0xf] %v2467
  %2532 = vst [vmem:[%s3 + $0x24] sm:$0xf] %v2468
  %2533 = vst [vmem:[%s3 + $0x28] sm:$0xf] %v2469
  %2534 = vst [vmem:[%s3 + $0x2c] sm:$0xf] %v2470
  %2535 = vst [vmem:[%s3 + $0x30] sm:$0xf] %v2471
  %2536 = vst [vmem:[%s3 + $0x34] sm:$0xf] %v2472
  %2537 = vst [vmem:[%s3 + $0x38] sm:$0xf] %v2473
  %2538 = vst [vmem:[%s3 + $0x3c] sm:$0xf] %v2474
  %2539 = vst [vmem:[%s3 + $0x40] sm:$0xf] %v2475
  %2540 = vst [vmem:[%s3 + $0x44] sm:$0xf] %v2476
  %2541 = vst [vmem:[%s3 + $0x48] sm:$0xf] %v2477
  %2542 = vst [vmem:[%s3 + $0x4c] sm:$0xf] %v2478
  %2543 = vst [vmem:[%s3 + $0x50] sm:$0xf] %v2479
  %2544 = vst [vmem:[%s3 + $0x54] sm:$0xf] %v2480
  %2545 = vst [vmem:[%s3 + $0x58] sm:$0xf] %v2481
  %2546 = vst [vmem:[%s3 + $0x5c] sm:$0xf] %v2482
  %2547 = vst [vmem:[%s3 + $0x60] sm:$0xf] %v2483
  %2548 = vst [vmem:[%s3 + $0x64] sm:$0xf] %v2484
  %2549 = vst [vmem:[%s3 + $0x68] sm:$0xf] %v2485
  %2550 = vst [vmem:[%s3 + $0x6c] sm:$0xf] %v2486
  %2551 = vst [vmem:[%s3 + $0x70] sm:$0xf] %v2487
  %2552 = vst [vmem:[%s3 + $0x74] sm:$0xf] %v2488
  %2553 = vst [vmem:[%s3 + $0x78] sm:$0xf] %v2489
  %2554 = vst [vmem:[%s3 + $0x7c] sm:$0xf] %v2490
  // Predicated region
  $region14: #{forward.5} parent=0 // pred_check
    _
  $region15: #{forward.5} parent=0 // pred_check_branch
    %2556 = sbr.rel (0) target = $region17
  $region16: #{forward.5} parent=0 // pred_region
    _
  $region17: #{forward.5} parent=0 // pred_fallthru
    _
  // Predicated region
  $region18: #{forward.5} parent=0 // pred_check
    _
  $region19: #{forward.5} parent=0 // pred_check_branch
    %2558 = sbr.rel (0) target = $region21
  $region20: #{forward.5} parent=0 // pred_region
    _
  $region21: #{forward.5} parent=0 // pred_fallthru
    _

// kernel: forward.7
$region0: #{forward.7}
  #allocation0 [shape = 'u32[]', space=smem, size = 0x4, offset = 0x4, fixed_abs, tag = 'smem constant byte address 0x4 - core index']
  #allocation1 [shape = 'u32[144,128]{1,0:T(1,128)}', space=vmem, size = 0x12000, scoped, tag = 'internal scratch']
  %s0 = inlined_call_operand.vmem [shape: bf16[4,4,1152], index: 0, kind: input, shape index: {}]
  %s1 = inlined_call_operand.vmem [shape: bf16[1152,128], index: 1, kind: input, shape index: {}]
  %s2 = inlined_call_operand.vmem [shape: f32[1,128], index: 2, kind: input, shape index: {}]
  %s3 = inlined_call_operand.vmem [shape: bf16[4,128,128], index: 3, kind: input, shape index: {}]
  %s4 = inlined_call_operand.vmem [shape: f32[1,128], index: 4, kind: input, shape index: {}]
  %s5 = inlined_call_operand.vmem [shape: f32[4,128], index: 5, kind: output, shape index: {}]
  %s6 = sld [smem:[#allocation0]]
  $region30: #{forward.7} parent=0
    _
  %s8 = ssub.s32 1, %s6
  %s9 = scalar_select 0, %s8, %s6
  // Predicated region
  $region2: #{forward.7} parent=0 // pred_check
    _
  $region3: #{forward.7} parent=0 // pred_check_branch
    %11 = sbr.rel (0) target = $region5
  $region4: #{forward.7} parent=0 // pred_region
    _
  $region5: #{forward.7} parent=0 // pred_fallthru
    _
  // Predicated region
  $region6: #{forward.7} parent=0 // pred_check
    _
  $region7: #{forward.7} parent=0 // pred_check_branch
    %13 = sbr.rel (0) target = $region9
  $region8: #{forward.7} parent=0 // pred_region
    _
  $region9: #{forward.7} parent=0 // pred_fallthru
    _
  // Predicated region
  $region10: #{forward.7} parent=0 // pred_check
    _
  $region11: #{forward.7} parent=0 // pred_check_branch
    %15 = sbr.rel (0) target = $region13
  $region12: #{forward.7} parent=0 // pred_region
    _
  $region13: #{forward.7} parent=0 // pred_fallthru
    _
  // Predicated region
  $region14: #{forward.7} parent=0 // pred_check
    _
  $region15: #{forward.7} parent=0 // pred_check_branch
    %17 = sbr.rel (0) target = $region17
  $region16: #{forward.7} parent=0 // pred_region
    _
  $region17: #{forward.7} parent=0 // pred_fallthru
    _
  // Predicated region
  $region18: #{forward.7} parent=0 // pred_check
    _
  $region19: #{forward.7} parent=0 // pred_check_branch
    %19 = sbr.rel (0) target = $region21
  $region20: #{forward.7} parent=0 // pred_region
    _
  $region21: #{forward.7} parent=0 // pred_fallthru
    _
  %v21 = vld [vmem:[%s0] sm:$0xff]
  %v22 = vld [vmem:[%s0 + $0x8] sm:$0xff]
  %v23 = vld [vmem:[%s0 + $0x10] sm:$0x3]
  %v24 = vld [vmem:[%s1] sm:$0xf]
  %v25 = vld [vmem:[%s1 + $0x4] sm:$0xf]
  %v26 = vld [vmem:[%s1 + $0x8] sm:$0xf]
  %v27 = vld [vmem:[%s1 + $0xc] sm:$0xf]
  %v28 = vld [vmem:[%s1 + $0x10] sm:$0xf]
  %v29 = vld [vmem:[%s1 + $0x14] sm:$0xf]
  %v30 = vld [vmem:[%s1 + $0x18] sm:$0xf]
  %v31 = vld [vmem:[%s1 + $0x1c] sm:$0xf]
  %v32 = vld [vmem:[%s1 + $0x20] sm:$0xf]
  %v33 = vld [vmem:[%s1 + $0x24] sm:$0xf]
  %v34 = vld [vmem:[%s1 + $0x28] sm:$0xf]
  %v35 = vld [vmem:[%s1 + $0x2c] sm:$0xf]
  %v36 = vld [vmem:[%s1 + $0x30] sm:$0xf]
  %v37 = vld [vmem:[%s1 + $0x34] sm:$0xf]
  %v38 = vld [vmem:[%s1 + $0x38] sm:$0xf]
  %v39 = vld [vmem:[%s1 + $0x3c] sm:$0xf]
  %v40 = vld [vmem:[%s1 + $0x40] sm:$0xf]
  %v41 = vld [vmem:[%s1 + $0x44] sm:$0xf]
  %v42 = vld [vmem:[%s1 + $0x48] sm:$0xf]
  %v43 = vld [vmem:[%s1 + $0x4c] sm:$0xf]
  %v44 = vld [vmem:[%s1 + $0x50] sm:$0xf]
  %v45 = vld [vmem:[%s1 + $0x54] sm:$0xf]
  %v46 = vld [vmem:[%s1 + $0x58] sm:$0xf]
  %v47 = vld [vmem:[%s1 + $0x5c] sm:$0xf]
  %v48 = vld [vmem:[%s1 + $0x60] sm:$0xf]
  %v49 = vld [vmem:[%s1 + $0x64] sm:$0xf]
  %v50 = vld [vmem:[%s1 + $0x68] sm:$0xf]
  %v51 = vld [vmem:[%s1 + $0x6c] sm:$0xf]
  %v52 = vld [vmem:[%s1 + $0x70] sm:$0xf]
  %v53 = vld [vmem:[%s1 + $0x74] sm:$0xf]
  %v54 = vld [vmem:[%s1 + $0x78] sm:$0xf]
  %v55 = vld [vmem:[%s1 + $0x7c] sm:$0xf]
  %v56 = vld [vmem:[%s1 + $0x80] sm:$0xf]
  %v57 = vld [vmem:[%s1 + $0x84] sm:$0xf]
  %v58 = vld [vmem:[%s1 + $0x88] sm:$0xf]
  %v59 = vld [vmem:[%s1 + $0x8c] sm:$0xf]
  %v60 = vld [vmem:[%s1 + $0x90] sm:$0xf]
  %v61 = vld [vmem:[%s1 + $0x94] sm:$0xf]
  %v62 = vld [vmem:[%s1 + $0x98] sm:$0xf]
  %v63 = vld [vmem:[%s1 + $0x9c] sm:$0xf]
  %v64 = vld [vmem:[%s1 + $0xa0] sm:$0xf]
  %v65 = vld [vmem:[%s1 + $0xa4] sm:$0xf]
  %v66 = vld [vmem:[%s1 + $0xa8] sm:$0xf]
  %v67 = vld [vmem:[%s1 + $0xac] sm:$0xf]
  %v68 = vld [vmem:[%s1 + $0xb0] sm:$0xf]
  %v69 = vld [vmem:[%s1 + $0xb4] sm:$0xf]
  %v70 = vld [vmem:[%s1 + $0xb8] sm:$0xf]
  %v71 = vld [vmem:[%s1 + $0xbc] sm:$0xf]
  %v72 = vld [vmem:[%s1 + $0xc0] sm:$0xf]
  %v73 = vld [vmem:[%s1 + $0xc4] sm:$0xf]
  %v74 = vld [vmem:[%s1 + $0xc8] sm:$0xf]
  %v75 = vld [vmem:[%s1 + $0xcc] sm:$0xf]
  %v76 = vld [vmem:[%s1 + $0xd0] sm:$0xf]
  %v77 = vld [vmem:[%s1 + $0xd4] sm:$0xf]
  %v78 = vld [vmem:[%s1 + $0xd8] sm:$0xf]
  %v79 = vld [vmem:[%s1 + $0xdc] sm:$0xf]
  %v80 = vld [vmem:[%s1 + $0xe0] sm:$0xf]
  %v81 = vld [vmem:[%s1 + $0xe4] sm:$0xf]
  %v82 = vld [vmem:[%s1 + $0xe8] sm:$0xf]
  %v83 = vld [vmem:[%s1 + $0xec] sm:$0xf]
  %v84 = vld [vmem:[%s1 + $0xf0] sm:$0xf]
  %v85 = vld [vmem:[%s1 + $0xf4] sm:$0xf]
  %v86 = vld [vmem:[%s1 + $0xf8] sm:$0xf]
  %v87 = vld [vmem:[%s1 + $0xfc] sm:$0xf]
  %v88 = vld [vmem:[%s1 + $0x100] sm:$0xf]
  %v89 = vld [vmem:[%s1 + $0x104] sm:$0xf]
  %v90 = vld [vmem:[%s1 + $0x108] sm:$0xf]
  %v91 = vld [vmem:[%s1 + $0x10c] sm:$0xf]
  %v92 = vld [vmem:[%s1 + $0x110] sm:$0xf]
  %v93 = vld [vmem:[%s1 + $0x114] sm:$0xf]
  %v94 = vld [vmem:[%s1 + $0x118] sm:$0xf]
  %v95 = vld [vmem:[%s1 + $0x11c] sm:$0xf]
  %v96 = vld [vmem:[%s1 + $0x120] sm:$0xf]
  %v97 = vld [vmem:[%s1 + $0x124] sm:$0xf]
  %v98 = vld [vmem:[%s1 + $0x128] sm:$0xf]
  %v99 = vld [vmem:[%s1 + $0x12c] sm:$0xf]
  %v100 = vld [vmem:[%s1 + $0x130] sm:$0xf]
  %v101 = vld [vmem:[%s1 + $0x134] sm:$0xf]
  %v102 = vld [vmem:[%s1 + $0x138] sm:$0xf]
  %v103 = vld [vmem:[%s1 + $0x13c] sm:$0xf]
  %v104 = vld [vmem:[%s1 + $0x140] sm:$0xf]
  %v105 = vld [vmem:[%s1 + $0x144] sm:$0xf]
  %v106 = vld [vmem:[%s1 + $0x148] sm:$0xf]
  %v107 = vld [vmem:[%s1 + $0x14c] sm:$0xf]
  %v108 = vld [vmem:[%s1 + $0x150] sm:$0xf]
  %v109 = vld [vmem:[%s1 + $0x154] sm:$0xf]
  %v110 = vld [vmem:[%s1 + $0x158] sm:$0xf]
  %v111 = vld [vmem:[%s1 + $0x15c] sm:$0xf]
  %v112 = vld [vmem:[%s1 + $0x160] sm:$0xf]
  %v113 = vld [vmem:[%s1 + $0x164] sm:$0xf]
  %v114 = vld [vmem:[%s1 + $0x168] sm:$0xf]
  %v115 = vld [vmem:[%s1 + $0x16c] sm:$0xf]
  %v116 = vld [vmem:[%s1 + $0x170] sm:$0xf]
  %v117 = vld [vmem:[%s1 + $0x174] sm:$0xf]
  %v118 = vld [vmem:[%s1 + $0x178] sm:$0xf]
  %v119 = vld [vmem:[%s1 + $0x17c] sm:$0xf]
  %v120 = vld [vmem:[%s1 + $0x180] sm:$0xf]
  %v121 = vld [vmem:[%s1 + $0x184] sm:$0xf]
  %v122 = vld [vmem:[%s1 + $0x188] sm:$0xf]
  %v123 = vld [vmem:[%s1 + $0x18c] sm:$0xf]
  %v124 = vld [vmem:[%s1 + $0x190] sm:$0xf]
  %v125 = vld [vmem:[%s1 + $0x194] sm:$0xf]
  %v126 = vld [vmem:[%s1 + $0x198] sm:$0xf]
  %v127 = vld [vmem:[%s1 + $0x19c] sm:$0xf]
  %v128 = vld [vmem:[%s1 + $0x1a0] sm:$0xf]
  %v129 = vld [vmem:[%s1 + $0x1a4] sm:$0xf]
  %v130 = vld [vmem:[%s1 + $0x1a8] sm:$0xf]
  %v131 = vld [vmem:[%s1 + $0x1ac] sm:$0xf]
  %v132 = vld [vmem:[%s1 + $0x1b0] sm:$0xf]
  %v133 = vld [vmem:[%s1 + $0x1b4] sm:$0xf]
  %v134 = vld [vmem:[%s1 + $0x1b8] sm:$0xf]
  %v135 = vld [vmem:[%s1 + $0x1bc] sm:$0xf]
  %v136 = vld [vmem:[%s1 + $0x1c0] sm:$0xf]
  %v137 = vld [vmem:[%s1 + $0x1c4] sm:$0xf]
  %v138 = vld [vmem:[%s1 + $0x1c8] sm:$0xf]
  %v139 = vld [vmem:[%s1 + $0x1cc] sm:$0xf]
  %v140 = vld [vmem:[%s1 + $0x1d0] sm:$0xf]
  %v141 = vld [vmem:[%s1 + $0x1d4] sm:$0xf]
  %v142 = vld [vmem:[%s1 + $0x1d8] sm:$0xf]
  %v143 = vld [vmem:[%s1 + $0x1dc] sm:$0xf]
  %v144 = vld [vmem:[%s1 + $0x1e0] sm:$0xf]
  %v145 = vld [vmem:[%s1 + $0x1e4] sm:$0xf]
  %v146 = vld [vmem:[%s1 + $0x1e8] sm:$0xf]
  %v147 = vld [vmem:[%s1 + $0x1ec] sm:$0xf]
  %v148 = vld [vmem:[%s1 + $0x1f0] sm:$0xf]
  %v149 = vld [vmem:[%s1 + $0x1f4] sm:$0xf]
  %v150 = vld [vmem:[%s1 + $0x1f8] sm:$0xf]
  %v151 = vld [vmem:[%s1 + $0x1fc] sm:$0xf]
  %v152 = vld [vmem:[%s1 + $0x200] sm:$0xf]
  %v153 = vld [vmem:[%s1 + $0x204] sm:$0xf]
  %v154 = vld [vmem:[%s1 + $0x208] sm:$0xf]
  %v155 = vld [vmem:[%s1 + $0x20c] sm:$0xf]
  %v156 = vld [vmem:[%s1 + $0x210] sm:$0xf]
  %v157 = vld [vmem:[%s1 + $0x214] sm:$0xf]
  %v158 = vld [vmem:[%s1 + $0x218] sm:$0xf]
  %v159 = vld [vmem:[%s1 + $0x21c] sm:$0xf]
  %v160 = vld [vmem:[%s1 + $0x220] sm:$0xf]
  %v161 = vld [vmem:[%s1 + $0x224] sm:$0xf]
  %v162 = vld [vmem:[%s1 + $0x228] sm:$0xf]
  %v163 = vld [vmem:[%s1 + $0x22c] sm:$0xf]
  %v164 = vld [vmem:[%s1 + $0x230] sm:$0xf]
  %v165 = vld [vmem:[%s1 + $0x234] sm:$0xf]
  %v166 = vld [vmem:[%s1 + $0x238] sm:$0xf]
  %v167 = vld [vmem:[%s1 + $0x23c] sm:$0xf]
  %v168 = vld [vmem:[%s2] sm:$0x1]
  %v170 = vlaneseq
  %v171 = vshrl.u32 %v170, 7
  %v172 = vsub.s32 0, %v171
  %v173 = vrot.slane %v168, %v172
  %v178 = vcombine.high %v21, %v21
  %v180 = vunpack.c.l.s4 1983009808
  %v181 = vunpack.c.0.s8 %v180
  %v182 = vlaneseq
  %v183 = vshrl.u32 %v182, 7
  %v184 = vsub.s32 %v181, %v183
  %v185 = vrot.slane %v21, %v184
  %v187 = vunpack.c.l.s4 1983009808
  %v188 = vunpack.c.0.s8 %v187
  %v189 = vlaneseq
  %v190 = vshrl.u32 %v189, 7
  %v191 = vsub.s32 %v188, %v190
  %v192 = vrot.slane %v178, %v191
  %v193 = vcombine.high %v185, %v185
  %v194 = vcombine.high %v192, %v192
  %v195 = vcombine.high %v22, %v22
  %v197 = vunpack.c.l.s4 1983009808
  %v198 = vunpack.c.0.s8 %v197
  %v199 = vlaneseq
  %v200 = vshrl.u32 %v199, 7
  %v201 = vsub.s32 %v198, %v200
  %v202 = vrot.slane %v22, %v201
  %v204 = vunpack.c.l.s4 1983009808
  %v205 = vunpack.c.0.s8 %v204
  %v206 = vlaneseq
  %v207 = vshrl.u32 %v206, 7
  %v208 = vsub.s32 %v205, %v207
  %v209 = vrot.slane %v195, %v208
  %v210 = vcombine.high %v202, %v202
  %v211 = vcombine.high %v209, %v209
  %v213 = vunpack.c.l.s4 1983009808
  %v214 = vunpack.c.0.s8 %v213
  %v215 = vlaneseq
  %v216 = vshrl.u32 %v215, 7
  %v217 = vsub.s32 %v214, %v216
  %v218 = vrot.slane %v23, %v217
  %v372 = vunpack.c.l.b16 %v24
  %v373 = vunpack.c.l.b16 %v25
  %v374 = vunpack.c.l.b16 %v26
  %v375 = vunpack.c.l.b16 %v27
  %v376 = vunpack.c.l.b16 %v28
  %v377 = vunpack.c.l.b16 %v29
  %v378 = vunpack.c.l.b16 %v30
  %v379 = vunpack.c.l.b16 %v31
  %v380 = vunpack.c.l.b16 %v32
  %v381 = vunpack.c.l.b16 %v33
  %v382 = vunpack.c.l.b16 %v34
  %v383 = vunpack.c.l.b16 %v35
  %v384 = vunpack.c.l.b16 %v36
  %v385 = vunpack.c.l.b16 %v37
  %v386 = vunpack.c.l.b16 %v38
  %v387 = vunpack.c.l.b16 %v39
  %v388 = vunpack.c.l.b16 %v40
  %v389 = vunpack.c.l.b16 %v41
  %v390 = vunpack.c.l.b16 %v42
  %v391 = vunpack.c.l.b16 %v43
  %v392 = vunpack.c.l.b16 %v44
  %v393 = vunpack.c.l.b16 %v45
  %v394 = vunpack.c.l.b16 %v46
  %v395 = vunpack.c.l.b16 %v47
  %v396 = vunpack.c.l.b16 %v48
  %v397 = vunpack.c.l.b16 %v49
  %v398 = vunpack.c.l.b16 %v50
  %v399 = vunpack.c.l.b16 %v51
  %v400 = vunpack.c.l.b16 %v52
  %v401 = vunpack.c.l.b16 %v53
  %v402 = vunpack.c.l.b16 %v54
  %v403 = vunpack.c.l.b16 %v55
  %v404 = vunpack.c.l.b16 %v56
  %v405 = vunpack.c.l.b16 %v57
  %v406 = vunpack.c.l.b16 %v58
  %v407 = vunpack.c.l.b16 %v59
  %v408 = vunpack.c.l.b16 %v60
  %v409 = vunpack.c.l.b16 %v61
  %v410 = vunpack.c.l.b16 %v62
  %v411 = vunpack.c.l.b16 %v63
  %v412 = vunpack.c.l.b16 %v64
  %v413 = vunpack.c.l.b16 %v65
  %v414 = vunpack.c.l.b16 %v66
  %v415 = vunpack.c.l.b16 %v67
  %v416 = vunpack.c.l.b16 %v68
  %v417 = vunpack.c.l.b16 %v69
  %v418 = vunpack.c.l.b16 %v70
  %v419 = vunpack.c.l.b16 %v71
  %v420 = vunpack.c.l.b16 %v72
  %v421 = vunpack.c.l.b16 %v73
  %v422 = vunpack.c.l.b16 %v74
  %v423 = vunpack.c.l.b16 %v75
  %v424 = vunpack.c.l.b16 %v76
  %v425 = vunpack.c.l.b16 %v77
  %v426 = vunpack.c.l.b16 %v78
  %v427 = vunpack.c.l.b16 %v79
  %v428 = vunpack.c.l.b16 %v80
  %v429 = vunpack.c.l.b16 %v81
  %v430 = vunpack.c.l.b16 %v82
  %v431 = vunpack.c.l.b16 %v83
  %v432 = vunpack.c.l.b16 %v84
  %v433 = vunpack.c.l.b16 %v85
  %v434 = vunpack.c.l.b16 %v86
  %v435 = vunpack.c.l.b16 %v87
  %v436 = vunpack.c.l.b16 %v88
  %v437 = vunpack.c.l.b16 %v89
  %v438 = vunpack.c.l.b16 %v90
  %v439 = vunpack.c.l.b16 %v91
  %v440 = vunpack.c.l.b16 %v92
  %v441 = vunpack.c.l.b16 %v93
  %v442 = vunpack.c.l.b16 %v94
  %v443 = vunpack.c.l.b16 %v95
  %v444 = vunpack.c.l.b16 %v96
  %v445 = vunpack.c.l.b16 %v97
  %v446 = vunpack.c.l.b16 %v98
  %v447 = vunpack.c.l.b16 %v99
  %v448 = vunpack.c.l.b16 %v100
  %v449 = vunpack.c.l.b16 %v101
  %v450 = vunpack.c.l.b16 %v102
  %v451 = vunpack.c.l.b16 %v103
  %v452 = vunpack.c.l.b16 %v104
  %v453 = vunpack.c.l.b16 %v105
  %v454 = vunpack.c.l.b16 %v106
  %v455 = vunpack.c.l.b16 %v107
  %v456 = vunpack.c.l.b16 %v108
  %v457 = vunpack.c.l.b16 %v109
  %v458 = vunpack.c.l.b16 %v110
  %v459 = vunpack.c.l.b16 %v111
  %v460 = vunpack.c.l.b16 %v112
  %v461 = vunpack.c.l.b16 %v113
  %v462 = vunpack.c.l.b16 %v114
  %v463 = vunpack.c.l.b16 %v115
  %v464 = vunpack.c.l.b16 %v116
  %v465 = vunpack.c.l.b16 %v117
  %v466 = vunpack.c.l.b16 %v118
  %v467 = vunpack.c.l.b16 %v119
  %v468 = vunpack.c.l.b16 %v120
  %v469 = vunpack.c.l.b16 %v121
  %v470 = vunpack.c.l.b16 %v122
  %v471 = vunpack.c.l.b16 %v123
  %v472 = vunpack.c.l.b16 %v124
  %v473 = vunpack.c.l.b16 %v125
  %v474 = vunpack.c.l.b16 %v126
  %v475 = vunpack.c.l.b16 %v127
  %v476 = vunpack.c.l.b16 %v128
  %v477 = vunpack.c.l.b16 %v129
  %v478 = vunpack.c.l.b16 %v130
  %v479 = vunpack.c.l.b16 %v131
  %v480 = vunpack.c.l.b16 %v132
  %v481 = vunpack.c.l.b16 %v133
  %v482 = vunpack.c.l.b16 %v134
  %v483 = vunpack.c.l.b16 %v135
  %v484 = vunpack.c.l.b16 %v136
  %v485 = vunpack.c.l.b16 %v137
  %v486 = vunpack.c.l.b16 %v138
  %v487 = vunpack.c.l.b16 %v139
  %v488 = vunpack.c.l.b16 %v140
  %v489 = vunpack.c.l.b16 %v141
  %v490 = vunpack.c.l.b16 %v142
  %v491 = vunpack.c.l.b16 %v143
  %v492 = vunpack.c.l.b16 %v144
  %v493 = vunpack.c.l.b16 %v145
  %v494 = vunpack.c.l.b16 %v146
  %v495 = vunpack.c.l.b16 %v147
  %v496 = vunpack.c.l.b16 %v148
  %v497 = vunpack.c.l.b16 %v149
  %v498 = vunpack.c.l.b16 %v150
  %v499 = vunpack.c.l.b16 %v151
  %v500 = vunpack.c.l.b16 %v152
  %v501 = vunpack.c.l.b16 %v153
  %v502 = vunpack.c.l.b16 %v154
  %v503 = vunpack.c.l.b16 %v155
  %v504 = vunpack.c.l.b16 %v156
  %v505 = vunpack.c.l.b16 %v157
  %v506 = vunpack.c.l.b16 %v158
  %v507 = vunpack.c.l.b16 %v159
  %v508 = vunpack.c.l.b16 %v160
  %v509 = vunpack.c.l.b16 %v161
  %v510 = vunpack.c.l.b16 %v162
  %v511 = vunpack.c.l.b16 %v163
  %v512 = vunpack.c.l.b16 %v164
  %v513 = vunpack.c.l.b16 %v165
  %v514 = vunpack.c.l.b16 %v166
  %v515 = vunpack.c.l.b16 %v167
  %v516 = vpack.c.b16 %v373, %v372
  %v517 = vpack.c.b16 %v375, %v374
  %v518 = vpack.c.b16 %v377, %v376
  %v519 = vpack.c.b16 %v379, %v378
  %v520 = vpack.c.b16 %v381, %v380
  %v521 = vpack.c.b16 %v383, %v382
  %v522 = vpack.c.b16 %v385, %v384
  %v523 = vpack.c.b16 %v387, %v386
  %v524 = vpack.c.b16 %v389, %v388
  %v525 = vpack.c.b16 %v391, %v390
  %v526 = vpack.c.b16 %v393, %v392
  %v527 = vpack.c.b16 %v395, %v394
  %v528 = vpack.c.b16 %v397, %v396
  %v529 = vpack.c.b16 %v399, %v398
  %v530 = vpack.c.b16 %v401, %v400
  %v531 = vpack.c.b16 %v403, %v402
  %v532 = vpack.c.b16 %v405, %v404
  %v533 = vpack.c.b16 %v407, %v406
  %v534 = vpack.c.b16 %v409, %v408
  %v535 = vpack.c.b16 %v411, %v410
  %v536 = vpack.c.b16 %v413, %v412
  %v537 = vpack.c.b16 %v415, %v414
  %v538 = vpack.c.b16 %v417, %v416
  %v539 = vpack.c.b16 %v419, %v418
  %v540 = vpack.c.b16 %v421, %v420
  %v541 = vpack.c.b16 %v423, %v422
  %v542 = vpack.c.b16 %v425, %v424
  %v543 = vpack.c.b16 %v427, %v426
  %v544 = vpack.c.b16 %v429, %v428
  %v545 = vpack.c.b16 %v431, %v430
  %v546 = vpack.c.b16 %v433, %v432
  %v547 = vpack.c.b16 %v435, %v434
  %v548 = vpack.c.b16 %v437, %v436
  %v549 = vpack.c.b16 %v439, %v438
  %v550 = vpack.c.b16 %v441, %v440
  %v551 = vpack.c.b16 %v443, %v442
  %v552 = vpack.c.b16 %v445, %v444
  %v553 = vpack.c.b16 %v447, %v446
  %v554 = vpack.c.b16 %v449, %v448
  %v555 = vpack.c.b16 %v451, %v450
  %v556 = vpack.c.b16 %v453, %v452
  %v557 = vpack.c.b16 %v455, %v454
  %v558 = vpack.c.b16 %v457, %v456
  %v559 = vpack.c.b16 %v459, %v458
  %v560 = vpack.c.b16 %v461, %v460
  %v561 = vpack.c.b16 %v463, %v462
  %v562 = vpack.c.b16 %v465, %v464
  %v563 = vpack.c.b16 %v467, %v466
  %v564 = vpack.c.b16 %v469, %v468
  %v565 = vpack.c.b16 %v471, %v470
  %v566 = vpack.c.b16 %v473, %v472
  %v567 = vpack.c.b16 %v475, %v474
  %v568 = vpack.c.b16 %v477, %v476
  %v569 = vpack.c.b16 %v479, %v478
  %v570 = vpack.c.b16 %v481, %v480
  %v571 = vpack.c.b16 %v483, %v482
  %v572 = vpack.c.b16 %v485, %v484
  %v573 = vpack.c.b16 %v487, %v486
  %v574 = vpack.c.b16 %v489, %v488
  %v575 = vpack.c.b16 %v491, %v490
  %v576 = vpack.c.b16 %v493, %v492
  %v577 = vpack.c.b16 %v495, %v494
  %v578 = vpack.c.b16 %v497, %v496
  %v579 = vpack.c.b16 %v499, %v498
  %v580 = vpack.c.b16 %v501, %v500
  %v581 = vpack.c.b16 %v503, %v502
  %v582 = vpack.c.b16 %v505, %v504
  %v583 = vpack.c.b16 %v507, %v506
  %v584 = vpack.c.b16 %v509, %v508
  %v585 = vpack.c.b16 %v511, %v510
  %v586 = vpack.c.b16 %v513, %v512
  %v587 = vpack.c.b16 %v515, %v514
  %660 = vmatprep.subr.bf16.mxu0 0
  %661 = vmatpush1.bf16.msra.mxu0 %v516
  %662 = vmatprep.subr.bf16.mxu0 0
  %663 = vmatpush1.bf16.msra.mxu0 %v517
  %664 = vmatprep.subr.bf16.mxu0 0
  %665 = vmatpush1.bf16.msra.mxu0 %v518
  %666 = vmatprep.subr.bf16.mxu0 0
  %667 = vmatpush1.bf16.msra.mxu0 %v519
  %668 = vmatprep.subr.bf16.mxu0 0
  %669 = vmatpush1.bf16.msra.mxu0 %v520
  %670 = vmatprep.subr.bf16.mxu0 0
  %671 = vmatpush1.bf16.msra.mxu0 %v521
  %672 = vmatprep.subr.bf16.mxu0 0
  %673 = vmatpush1.bf16.msra.mxu0 %v522
  %674 = vmatprep.subr.bf16.mxu0 0
  %675 = vmatpush1.bf16.msra.mxu0 %v523
  %676 = vmatprep.subr.bf16.mxu0 0
  %677 = vmatpush1.bf16.msra.mxu0 %v524
  %678 = vmatprep.subr.bf16.mxu0 0
  %679 = vmatpush1.bf16.msra.mxu0 %v525
  %680 = vmatprep.subr.bf16.mxu0 0
  %681 = vmatpush1.bf16.msra.mxu0 %v526
  %682 = vmatprep.subr.bf16.mxu0 0
  %683 = vmatpush1.bf16.msra.mxu0 %v527
  %684 = vmatprep.subr.bf16.mxu0 0
  %685 = vmatpush1.bf16.msra.mxu0 %v528
  %686 = vmatprep.subr.bf16.mxu0 0
  %687 = vmatpush1.bf16.msra.mxu0 %v529
  %688 = vmatprep.subr.bf16.mxu0 0
  %689 = vmatpush1.bf16.msra.mxu0 %v530
  %690 = vmatprep.subr.bf16.mxu0 0
  %691 = vmatpush1.bf16.msra.mxu0 %v531
  %692 = vmatprep.mubr.bf16.mxu0 %v193
  %693 = vmatmul.mubr.bf16.gmra.mrb[0].mxu0 %v185
  %v694 = vpop.f32.mrb[0].mxu0
  %v695 = vadd.f32 %v173, %v694
  %v696 = vpop.f32.mrb[0].mxu0
  %v697 = vpop.f32.mrb[0].mxu0
  %v698 = vpop.f32.mrb[0].mxu0
  %699 = vdwg.mxu0
  %700 = vmatprep.subr.bf16.mxu0 0
  %701 = vmatpush1.bf16.msra.mxu0 %v532
  %702 = vmatprep.subr.bf16.mxu0 0
  %703 = vmatpush1.bf16.msra.mxu0 %v533
  %704 = vmatprep.subr.bf16.mxu0 0
  %705 = vmatpush1.bf16.msra.mxu0 %v534
  %706 = vmatprep.subr.bf16.mxu0 0
  %707 = vmatpush1.bf16.msra.mxu0 %v535
  %708 = vmatprep.subr.bf16.mxu0 0
  %709 = vmatpush1.bf16.msra.mxu0 %v536
  %710 = vmatprep.subr.bf16.mxu0 0
  %711 = vmatpush1.bf16.msra.mxu0 %v537
  %712 = vmatprep.subr.bf16.mxu0 0
  %713 = vmatpush1.bf16.msra.mxu0 %v538
  %714 = vmatprep.subr.bf16.mxu0 0
  %715 = vmatpush1.bf16.msra.mxu0 %v539
  %716 = vmatprep.subr.bf16.mxu0 0
  %717 = vmatpush1.bf16.msra.mxu0 %v540
  %718 = vmatprep.subr.bf16.mxu0 0
  %719 = vmatpush1.bf16.msra.mxu0 %v541
  %720 = vmatprep.subr.bf16.mxu0 0
  %721 = vmatpush1.bf16.msra.mxu0 %v542
  %722 = vmatprep.subr.bf16.mxu0 0
  %723 = vmatpush1.bf16.msra.mxu0 %v543
  %724 = vmatprep.subr.bf16.mxu0 0
  %725 = vmatpush1.bf16.msra.mxu0 %v544
  %726 = vmatprep.subr.bf16.mxu0 0
  %727 = vmatpush1.bf16.msra.mxu0 %v545
  %728 = vmatprep.subr.bf16.mxu0 0
  %729 = vmatpush1.bf16.msra.mxu0 %v546
  %730 = vmatprep.subr.bf16.mxu0 0
  %731 = vmatpush1.bf16.msra.mxu0 %v547
  %732 = vmatprep.mubr.bf16.mxu0 %v194
  %733 = vmatmul.mubr.bf16.gmra.mrb[0].mxu0 %v192
  %v734 = vpop.f32.mrb[0].mxu0
  %v735 = vadd.f32 %v695, %v734
  %v736 = vpop.f32.mrb[0].mxu0
  %v737 = vpop.f32.mrb[0].mxu0
  %v738 = vpop.f32.mrb[0].mxu0
  %739 = vdwg.mxu0
  %740 = vmatprep.subr.bf16.mxu0 0
  %741 = vmatpush1.bf16.msra.mxu0 %v548
  %742 = vmatprep.subr.bf16.mxu0 0
  %743 = vmatpush1.bf16.msra.mxu0 %v549
  %744 = vmatprep.subr.bf16.mxu0 0
  %745 = vmatpush1.bf16.msra.mxu0 %v550
  %746 = vmatprep.subr.bf16.mxu0 0
  %747 = vmatpush1.bf16.msra.mxu0 %v551
  %748 = vmatprep.subr.bf16.mxu0 0
  %749 = vmatpush1.bf16.msra.mxu0 %v552
  %750 = vmatprep.subr.bf16.mxu0 0
  %751 = vmatpush1.bf16.msra.mxu0 %v553
  %752 = vmatprep.subr.bf16.mxu0 0
  %753 = vmatpush1.bf16.msra.mxu0 %v554
  %754 = vmatprep.subr.bf16.mxu0 0
  %755 = vmatpush1.bf16.msra.mxu0 %v555
  %756 = vmatprep.subr.bf16.mxu0 0
  %757 = vmatpush1.bf16.msra.mxu0 %v556
  %758 = vmatprep.subr.bf16.mxu0 0
  %759 = vmatpush1.bf16.msra.mxu0 %v557
  %760 = vmatprep.subr.bf16.mxu0 0
  %761 = vmatpush1.bf16.msra.mxu0 %v558
  %762 = vmatprep.subr.bf16.mxu0 0
  %763 = vmatpush1.bf16.msra.mxu0 %v559
  %764 = vmatprep.subr.bf16.mxu0 0
  %765 = vmatpush1.bf16.msra.mxu0 %v560
  %766 = vmatprep.subr.bf16.mxu0 0
  %767 = vmatpush1.bf16.msra.mxu0 %v561
  %768 = vmatprep.subr.bf16.mxu0 0
  %769 = vmatpush1.bf16.msra.mxu0 %v562
  %770 = vmatprep.subr.bf16.mxu0 0
  %771 = vmatpush1.bf16.msra.mxu0 %v563
  %772 = vmatprep.mubr.bf16.mxu0 %v210
  %773 = vmatmul.mubr.bf16.gmra.mrb[0].mxu0 %v202
  %v774 = vpop.f32.mrb[0].mxu0
  %v775 = vadd.f32 %v735, %v774
  %v776 = vpop.f32.mrb[0].mxu0
  %v777 = vpop.f32.mrb[0].mxu0
  %v778 = vpop.f32.mrb[0].mxu0
  %779 = vdwg.mxu0
  %780 = vmatprep.subr.bf16.mxu0 0
  %781 = vmatpush1.bf16.msra.mxu0 %v564
  %782 = vmatprep.subr.bf16.mxu0 0
  %783 = vmatpush1.bf16.msra.mxu0 %v565
  %784 = vmatprep.subr.bf16.mxu0 0
  %785 = vmatpush1.bf16.msra.mxu0 %v566
  %786 = vmatprep.subr.bf16.mxu0 0
  %787 = vmatpush1.bf16.msra.mxu0 %v567
  %788 = vmatprep.subr.bf16.mxu0 0
  %789 = vmatpush1.bf16.msra.mxu0 %v568
  %790 = vmatprep.subr.bf16.mxu0 0
  %791 = vmatpush1.bf16.msra.mxu0 %v569
  %792 = vmatprep.subr.bf16.mxu0 0
  %793 = vmatpush1.bf16.msra.mxu0 %v570
  %794 = vmatprep.subr.bf16.mxu0 0
  %795 = vmatpush1.bf16.msra.mxu0 %v571
  %796 = vmatprep.subr.bf16.mxu0 0
  %797 = vmatpush1.bf16.msra.mxu0 %v572
  %798 = vmatprep.subr.bf16.mxu0 0
  %799 = vmatpush1.bf16.msra.mxu0 %v573
  %800 = vmatprep.subr.bf16.mxu0 0
  %801 = vmatpush1.bf16.msra.mxu0 %v574
  %802 = vmatprep.subr.bf16.mxu0 0
  %803 = vmatpush1.bf16.msra.mxu0 %v575
  %804 = vmatprep.subr.bf16.mxu0 0
  %805 = vmatpush1.bf16.msra.mxu0 %v576
  %806 = vmatprep.subr.bf16.mxu0 0
  %807 = vmatpush1.bf16.msra.mxu0 %v577
  %808 = vmatprep.subr.bf16.mxu0 0
  %809 = vmatpush1.bf16.msra.mxu0 %v578
  %810 = vmatprep.subr.bf16.mxu0 0
  %811 = vmatpush1.bf16.msra.mxu0 %v579
  %812 = vmatprep.mubr.bf16.mxu0 %v211
  %813 = vmatmul.mubr.bf16.gmra.mrb[0].mxu0 %v209
  %v814 = vpop.f32.mrb[0].mxu0
  %v815 = vadd.f32 %v775, %v814
  %v816 = vpop.f32.mrb[0].mxu0
  %v817 = vpop.f32.mrb[0].mxu0
  %v818 = vpop.f32.mrb[0].mxu0
  %819 = vdwg.mxu0
  %820 = vmatprep.subr.bf16.mxu0 0
  %821 = vmatpush1.bf16.msra.mxu0 %v580
  %822 = vmatprep.subr.bf16.mxu0 0
  %823 = vmatpush1.bf16.msra.mxu0 %v581
  %824 = vmatprep.subr.bf16.mxu0 0
  %825 = vmatpush1.bf16.msra.mxu0 %v582
  %826 = vmatprep.subr.bf16.mxu0 0
  %827 = vmatpush1.bf16.msra.mxu0 %v583
  %828 = vmatprep.subr.bf16.mxu0 0
  %829 = vmatpush1.bf16.msra.mxu0 %v584
  %830 = vmatprep.subr.bf16.mxu0 0
  %831 = vmatpush1.bf16.msra.mxu0 %v585
  %832 = vmatprep.subr.bf16.mxu0 0
  %833 = vmatpush1.bf16.msra.mxu0 %v586
  %834 = vmatprep.subr.bf16.mxu0 0
  %835 = vmatpush1.bf16.msra.mxu0 %v587
  %836 = vmatprep.subr.bf16.mxu0 0
  %837 = vmatpush1.bf16.msra.mxu0 0
  %838 = vmatprep.subr.bf16.mxu0 0
  %839 = vmatpush1.bf16.msra.mxu0 0
  %840 = vmatprep.subr.bf16.mxu0 0
  %841 = vmatpush1.bf16.msra.mxu0 0
  %842 = vmatprep.subr.bf16.mxu0 0
  %843 = vmatpush1.bf16.msra.mxu0 0
  %844 = vmatprep.subr.bf16.mxu0 0
  %845 = vmatpush1.bf16.msra.mxu0 0
  %846 = vmatprep.subr.bf16.mxu0 0
  %847 = vmatpush1.bf16.msra.mxu0 0
  %848 = vmatprep.subr.bf16.mxu0 0
  %849 = vmatpush1.bf16.msra.mxu0 0
  %850 = vmatprep.subr.bf16.mxu0 0
  %851 = vmatpush1.bf16.msra.mxu0 0
  %852 = vmatprep.mubr.bf16.mxu0 0
  %853 = vmatmul.mubr.bf16.gmra.mrb[0].mxu0 %v218
  %v854 = vpop.f32.mrb[0].mxu0
  %v855 = vadd.f32 %v815, %v854
  %v856 = vpop.f32.mrb[0].mxu0
  %v857 = vpop.f32.mrb[0].mxu0
  %v858 = vpop.f32.mrb[0].mxu0
  %859 = vdwg.mxu0
  %vm860 = vcmp.ge.f32.partialorder %v855, 0.0
  %v861 = vmul.f32 %v855, 0.2
  %v862 = vsel %vm860, %v855, %v861
  %v863 = vpack.c.bf16 %v862, %v862
  %v864 = vld [vmem:[%s3] sm:$0xf]
  %v865 = vld [vmem:[%s3 + $0x4] sm:$0xf]
  %v866 = vld [vmem:[%s3 + $0x8] sm:$0xf]
  %v867 = vld [vmem:[%s3 + $0xc] sm:$0xf]
  %v868 = vld [vmem:[%s3 + $0x10] sm:$0xf]
  %v869 = vld [vmem:[%s3 + $0x14] sm:$0xf]
  %v870 = vld [vmem:[%s3 + $0x18] sm:$0xf]
  %v871 = vld [vmem:[%s3 + $0x1c] sm:$0xf]
  %v872 = vld [vmem:[%s3 + $0x20] sm:$0xf]
  %v873 = vld [vmem:[%s3 + $0x24] sm:$0xf]
  %v874 = vld [vmem:[%s3 + $0x28] sm:$0xf]
  %v875 = vld [vmem:[%s3 + $0x2c] sm:$0xf]
  %v876 = vld [vmem:[%s3 + $0x30] sm:$0xf]
  %v877 = vld [vmem:[%s3 + $0x34] sm:$0xf]
  %v878 = vld [vmem:[%s3 + $0x38] sm:$0xf]
  %v879 = vld [vmem:[%s3 + $0x3c] sm:$0xf]
  %s880 = scalar_lea.vmem %s0, 18
  %v881 = vld [vmem:[%s880] sm:$0xff]
  %v882 = vld [vmem:[%s880 + $0x8] sm:$0xff]
  %v883 = vld [vmem:[%s880 + $0x10] sm:$0x3]
  %v887 = vcombine.high %v881, %v881
  %v889 = vunpack.c.l.s4 1983009808
  %v890 = vunpack.c.0.s8 %v889
  %v891 = vlaneseq
  %v892 = vshrl.u32 %v891, 7
  %v893 = vsub.s32 %v890, %v892
  %v894 = vrot.slane %v881, %v893
  %v896 = vunpack.c.l.s4 1983009808
  %v897 = vunpack.c.0.s8 %v896
  %v898 = vlaneseq
  %v899 = vshrl.u32 %v898, 7
  %v900 = vsub.s32 %v897, %v899
  %v901 = vrot.slane %v887, %v900
  %v902 = vcombine.high %v894, %v894
  %v903 = vcombine.high %v901, %v901
  %v904 = vcombine.high %v882, %v882
  %v906 = vunpack.c.l.s4 1983009808
  %v907 = vunpack.c.0.s8 %v906
  %v908 = vlaneseq
  %v909 = vshrl.u32 %v908, 7
  %v910 = vsub.s32 %v907, %v909
  %v911 = vrot.slane %v882, %v910
  %v913 = vunpack.c.l.s4 1983009808
  %v914 = vunpack.c.0.s8 %v913
  %v915 = vlaneseq
  %v916 = vshrl.u32 %v915, 7
  %v917 = vsub.s32 %v914, %v916
  %v918 = vrot.slane %v904, %v917
  %v919 = vcombine.high %v911, %v911
  %v920 = vcombine.high %v918, %v918
  %v922 = vunpack.c.l.s4 1983009808
  %v923 = vunpack.c.0.s8 %v922
  %v924 = vlaneseq
  %v925 = vshrl.u32 %v924, 7
  %v926 = vsub.s32 %v923, %v925
  %v927 = vrot.slane %v883, %v926
  %937 = vmatprep.subr.bf16.mxu0 0
  %938 = vmatpush1.bf16.msra.mxu0 %v516
  %939 = vmatprep.subr.bf16.mxu0 0
  %940 = vmatpush1.bf16.msra.mxu0 %v517
  %941 = vmatprep.subr.bf16.mxu0 0
  %942 = vmatpush1.bf16.msra.mxu0 %v518
  %943 = vmatprep.subr.bf16.mxu0 0
  %944 = vmatpush1.bf16.msra.mxu0 %v519
  %945 = vmatprep.subr.bf16.mxu0 0
  %946 = vmatpush1.bf16.msra.mxu0 %v520
  %947 = vmatprep.subr.bf16.mxu0 0
  %948 = vmatpush1.bf16.msra.mxu0 %v521
  %949 = vmatprep.subr.bf16.mxu0 0
  %950 = vmatpush1.bf16.msra.mxu0 %v522
  %951 = vmatprep.subr.bf16.mxu0 0
  %952 = vmatpush1.bf16.msra.mxu0 %v523
  %953 = vmatprep.subr.bf16.mxu0 0
  %954 = vmatpush1.bf16.msra.mxu0 %v524
  %955 = vmatprep.subr.bf16.mxu0 0
  %956 = vmatpush1.bf16.msra.mxu0 %v525
  %957 = vmatprep.subr.bf16.mxu0 0
  %958 = vmatpush1.bf16.msra.mxu0 %v526
  %959 = vmatprep.subr.bf16.mxu0 0
  %960 = vmatpush1.bf16.msra.mxu0 %v527
  %961 = vmatprep.subr.bf16.mxu0 0
  %962 = vmatpush1.bf16.msra.mxu0 %v528
  %963 = vmatprep.subr.bf16.mxu0 0
  %964 = vmatpush1.bf16.msra.mxu0 %v529
  %965 = vmatprep.subr.bf16.mxu0 0
  %966 = vmatpush1.bf16.msra.mxu0 %v530
  %967 = vmatprep.subr.bf16.mxu0 0
  %968 = vmatpush1.bf16.msra.mxu0 %v531
  %969 = vmatprep.mubr.bf16.mxu0 %v902
  %970 = vmatmul.mubr.bf16.gmra.mrb[0].mxu0 %v894
  %v971 = vpop.f32.mrb[0].mxu0
  %v972 = vadd.f32 %v173, %v971
  %v973 = vpop.f32.mrb[0].mxu0
  %v974 = vpop.f32.mrb[0].mxu0
  %v975 = vpop.f32.mrb[0].mxu0
  %976 = vdwg.mxu0
  %977 = vmatprep.subr.bf16.mxu0 0
  %978 = vmatpush1.bf16.msra.mxu0 %v532
  %979 = vmatprep.subr.bf16.mxu0 0
  %980 = vmatpush1.bf16.msra.mxu0 %v533
  %981 = vmatprep.subr.bf16.mxu0 0
  %982 = vmatpush1.bf16.msra.mxu0 %v534
  %983 = vmatprep.subr.bf16.mxu0 0
  %984 = vmatpush1.bf16.msra.mxu0 %v535
  %985 = vmatprep.subr.bf16.mxu0 0
  %986 = vmatpush1.bf16.msra.mxu0 %v536
  %987 = vmatprep.subr.bf16.mxu0 0
  %988 = vmatpush1.bf16.msra.mxu0 %v537
  %989 = vmatprep.subr.bf16.mxu0 0
  %990 = vmatpush1.bf16.msra.mxu0 %v538
  %991 = vmatprep.subr.bf16.mxu0 0
  %992 = vmatpush1.bf16.msra.mxu0 %v539
  %993 = vmatprep.subr.bf16.mxu0 0
  %994 = vmatpush1.bf16.msra.mxu0 %v540
  %995 = vmatprep.subr.bf16.mxu0 0
  %996 = vmatpush1.bf16.msra.mxu0 %v541
  %997 = vmatprep.subr.bf16.mxu0 0
  %998 = vmatpush1.bf16.msra.mxu0 %v542
  %999 = vmatprep.subr.bf16.mxu0 0
  %1000 = vmatpush1.bf16.msra.mxu0 %v543
  %1001 = vmatprep.subr.bf16.mxu0 0
  %1002 = vmatpush1.bf16.msra.mxu0 %v544
  %1003 = vmatprep.subr.bf16.mxu0 0
  %1004 = vmatpush1.bf16.msra.mxu0 %v545
  %1005 = vmatprep.subr.bf16.mxu0 0
  %1006 = vmatpush1.bf16.msra.mxu0 %v546
  %1007 = vmatprep.subr.bf16.mxu0 0
  %1008 = vmatpush1.bf16.msra.mxu0 %v547
  %1009 = vmatprep.mubr.bf16.mxu0 %v903
  %1010 = vmatmul.mubr.bf16.gmra.mrb[0].mxu0 %v901
  %v1011 = vpop.f32.mrb[0].mxu0
  %v1012 = vadd.f32 %v972, %v1011
  %v1013 = vpop.f32.mrb[0].mxu0
  %v1014 = vpop.f32.mrb[0].mxu0
  %v1015 = vpop.f32.mrb[0].mxu0
  %1016 = vdwg.mxu0
  %1017 = vmatprep.subr.bf16.mxu0 0
  %1018 = vmatpush1.bf16.msra.mxu0 %v548
  %1019 = vmatprep.subr.bf16.mxu0 0
  %1020 = vmatpush1.bf16.msra.mxu0 %v549
  %1021 = vmatprep.subr.bf16.mxu0 0
  %1022 = vmatpush1.bf16.msra.mxu0 %v550
  %1023 = vmatprep.subr.bf16.mxu0 0
  %1024 = vmatpush1.bf16.msra.mxu0 %v551
  %1025 = vmatprep.subr.bf16.mxu0 0
  %1026 = vmatpush1.bf16.msra.mxu0 %v552
  %1027 = vmatprep.subr.bf16.mxu0 0
  %1028 = vmatpush1.bf16.msra.mxu0 %v553
  %1029 = vmatprep.subr.bf16.mxu0 0
  %1030 = vmatpush1.bf16.msra.mxu0 %v554
  %1031 = vmatprep.subr.bf16.mxu0 0
  %1032 = vmatpush1.bf16.msra.mxu0 %v555
  %1033 = vmatprep.subr.bf16.mxu0 0
  %1034 = vmatpush1.bf16.msra.mxu0 %v556
  %1035 = vmatprep.subr.bf16.mxu0 0
  %1036 = vmatpush1.bf16.msra.mxu0 %v557
  %1037 = vmatprep.subr.bf16.mxu0 0
  %1038 = vmatpush1.bf16.msra.mxu0 %v558
  %1039 = vmatprep.subr.bf16.mxu0 0
  %1040 = vmatpush1.bf16.msra.mxu0 %v559
  %1041 = vmatprep.subr.bf16.mxu0 0
  %1042 = vmatpush1.bf16.msra.mxu0 %v560
  %1043 = vmatprep.subr.bf16.mxu0 0
  %1044 = vmatpush1.bf16.msra.mxu0 %v561
  %1045 = vmatprep.subr.bf16.mxu0 0
  %1046 = vmatpush1.bf16.msra.mxu0 %v562
  %1047 = vmatprep.subr.bf16.mxu0 0
  %1048 = vmatpush1.bf16.msra.mxu0 %v563
  %1049 = vmatprep.mubr.bf16.mxu0 %v919
  %1050 = vmatmul.mubr.bf16.gmra.mrb[0].mxu0 %v911
  %v1051 = vpop.f32.mrb[0].mxu0
  %v1052 = vadd.f32 %v1012, %v1051
  %v1053 = vpop.f32.mrb[0].mxu0
  %v1054 = vpop.f32.mrb[0].mxu0
  %v1055 = vpop.f32.mrb[0].mxu0
  %1056 = vdwg.mxu0
  %1057 = vmatprep.subr.bf16.mxu0 0
  %1058 = vmatpush1.bf16.msra.mxu0 %v564
  %1059 = vmatprep.subr.bf16.mxu0 0
  %1060 = vmatpush1.bf16.msra.mxu0 %v565
  %1061 = vmatprep.subr.bf16.mxu0 0
  %1062 = vmatpush1.bf16.msra.mxu0 %v566
  %1063 = vmatprep.subr.bf16.mxu0 0
  %1064 = vmatpush1.bf16.msra.mxu0 %v567
  %1065 = vmatprep.subr.bf16.mxu0 0
  %1066 = vmatpush1.bf16.msra.mxu0 %v568
  %1067 = vmatprep.subr.bf16.mxu0 0
  %1068 = vmatpush1.bf16.msra.mxu0 %v569
  %1069 = vmatprep.subr.bf16.mxu0 0
  %1070 = vmatpush1.bf16.msra.mxu0 %v570
  %1071 = vmatprep.subr.bf16.mxu0 0
  %1072 = vmatpush1.bf16.msra.mxu0 %v571
  %1073 = vmatprep.subr.bf16.mxu0 0
  %1074 = vmatpush1.bf16.msra.mxu0 %v572
  %1075 = vmatprep.subr.bf16.mxu0 0
  %1076 = vmatpush1.bf16.msra.mxu0 %v573
  %1077 = vmatprep.subr.bf16.mxu0 0
  %1078 = vmatpush1.bf16.msra.mxu0 %v574
  %1079 = vmatprep.subr.bf16.mxu0 0
  %1080 = vmatpush1.bf16.msra.mxu0 %v575
  %1081 = vmatprep.subr.bf16.mxu0 0
  %1082 = vmatpush1.bf16.msra.mxu0 %v576
  %1083 = vmatprep.subr.bf16.mxu0 0
  %1084 = vmatpush1.bf16.msra.mxu0 %v577
  %1085 = vmatprep.subr.bf16.mxu0 0
  %1086 = vmatpush1.bf16.msra.mxu0 %v578
  %1087 = vmatprep.subr.bf16.mxu0 0
  %1088 = vmatpush1.bf16.msra.mxu0 %v579
  %1089 = vmatprep.mubr.bf16.mxu0 %v920
  %1090 = vmatmul.mubr.bf16.gmra.mrb[0].mxu0 %v918
  %v1091 = vpop.f32.mrb[0].mxu0
  %v1092 = vadd.f32 %v1052, %v1091
  %v1093 = vpop.f32.mrb[0].mxu0
  %v1094 = vpop.f32.mrb[0].mxu0
  %v1095 = vpop.f32.mrb[0].mxu0
  %1096 = vdwg.mxu0
  %1097 = vmatprep.subr.bf16.mxu0 0
  %1098 = vmatpush1.bf16.msra.mxu0 %v580
  %1099 = vmatprep.subr.bf16.mxu0 0
  %1100 = vmatpush1.bf16.msra.mxu0 %v581
  %1101 = vmatprep.subr.bf16.mxu0 0
  %1102 = vmatpush1.bf16.msra.mxu0 %v582
  %1103 = vmatprep.subr.bf16.mxu0 0
  %1104 = vmatpush1.bf16.msra.mxu0 %v583
  %1105 = vmatprep.subr.bf16.mxu0 0
  %1106 = vmatpush1.bf16.msra.mxu0 %v584
  %1107 = vmatprep.subr.bf16.mxu0 0
  %1108 = vmatpush1.bf16.msra.mxu0 %v585
  %1109 = vmatprep.subr.bf16.mxu0 0
  %1110 = vmatpush1.bf16.msra.mxu0 %v586
  %1111 = vmatprep.subr.bf16.mxu0 0
  %1112 = vmatpush1.bf16.msra.mxu0 %v587
  %1113 = vmatprep.subr.bf16.mxu0 0
  %1114 = vmatpush1.bf16.msra.mxu0 0
  %1115 = vmatprep.subr.bf16.mxu0 0
  %1116 = vmatpush1.bf16.msra.mxu0 0
  %1117 = vmatprep.subr.bf16.mxu0 0
  %1118 = vmatpush1.bf16.msra.mxu0 0
  %1119 = vmatprep.subr.bf16.mxu0 0
  %1120 = vmatpush1.bf16.msra.mxu0 0
  %1121 = vmatprep.subr.bf16.mxu0 0
  %1122 = vmatpush1.bf16.msra.mxu0 0
  %1123 = vmatprep.subr.bf16.mxu0 0
  %1124 = vmatpush1.bf16.msra.mxu0 0
  %1125 = vmatprep.subr.bf16.mxu0 0
  %1126 = vmatpush1.bf16.msra.mxu0 0
  %1127 = vmatprep.subr.bf16.mxu0 0
  %1128 = vmatpush1.bf16.msra.mxu0 0
  %1129 = vmatprep.mubr.bf16.mxu0 0
  %1130 = vmatmul.mubr.bf16.gmra.mrb[0].mxu0 %v927
  %v1131 = vpop.f32.mrb[0].mxu0
  %v1132 = vadd.f32 %v1092, %v1131
  %v1133 = vpop.f32.mrb[0].mxu0
  %v1134 = vpop.f32.mrb[0].mxu0
  %v1135 = vpop.f32.mrb[0].mxu0
  %1136 = vdwg.mxu0
  %vm1137 = vcmp.ge.f32.partialorder %v1132, 0.0
  %v1138 = vmul.f32 %v1132, 0.2
  %v1139 = vsel %vm1137, %v1132, %v1138
  %v1140 = vpack.c.bf16 %v1139, %v1139
  %s1141 = scalar_lea.vmem %s3, 64
  %v1142 = vld [vmem:[%s1141] sm:$0xf]
  %v1143 = vld [vmem:[%s1141 + $0x4] sm:$0xf]
  %v1144 = vld [vmem:[%s1141 + $0x8] sm:$0xf]
  %v1145 = vld [vmem:[%s1141 + $0xc] sm:$0xf]
  %v1146 = vld [vmem:[%s1141 + $0x10] sm:$0xf]
  %v1147 = vld [vmem:[%s1141 + $0x14] sm:$0xf]
  %v1148 = vld [vmem:[%s1141 + $0x18] sm:$0xf]
  %v1149 = vld [vmem:[%s1141 + $0x1c] sm:$0xf]
  %v1150 = vld [vmem:[%s1141 + $0x20] sm:$0xf]
  %v1151 = vld [vmem:[%s1141 + $0x24] sm:$0xf]
  %v1152 = vld [vmem:[%s1141 + $0x28] sm:$0xf]
  %v1153 = vld [vmem:[%s1141 + $0x2c] sm:$0xf]
  %v1154 = vld [vmem:[%s1141 + $0x30] sm:$0xf]
  %v1155 = vld [vmem:[%s1141 + $0x34] sm:$0xf]
  %v1156 = vld [vmem:[%s1141 + $0x38] sm:$0xf]
  %v1157 = vld [vmem:[%s1141 + $0x3c] sm:$0xf]
  %v1174 = vunpack.c.l.b16 %v1142
  %v1175 = vunpack.c.l.b16 %v1143
  %v1176 = vunpack.c.l.b16 %v1144
  %v1177 = vunpack.c.l.b16 %v1145
  %v1178 = vunpack.c.l.b16 %v1146
  %v1179 = vunpack.c.l.b16 %v1147
  %v1180 = vunpack.c.l.b16 %v1148
  %v1181 = vunpack.c.l.b16 %v1149
  %v1182 = vunpack.c.l.b16 %v1150
  %v1183 = vunpack.c.l.b16 %v1151
  %v1184 = vunpack.c.l.b16 %v1152
  %v1185 = vunpack.c.l.b16 %v1153
  %v1186 = vunpack.c.l.b16 %v1154
  %v1187 = vunpack.c.l.b16 %v1155
  %v1188 = vunpack.c.l.b16 %v1156
  %v1189 = vunpack.c.l.b16 %v1157
  %v1190 = vpack.c.b16 %v1175, %v1174
  %v1191 = vpack.c.b16 %v1177, %v1176
  %v1192 = vpack.c.b16 %v1179, %v1178
  %v1193 = vpack.c.b16 %v1181, %v1180
  %v1194 = vpack.c.b16 %v1183, %v1182
  %v1195 = vpack.c.b16 %v1185, %v1184
  %v1196 = vpack.c.b16 %v1187, %v1186
  %v1197 = vpack.c.b16 %v1189, %v1188
  %1206 = vmatprep.subr.bf16.mxu0 0
  %1207 = vmatpush1.bf16.msra.mxu0 %v1190
  %1208 = vmatprep.subr.bf16.mxu0 0
  %1209 = vmatpush1.bf16.msra.mxu0 %v1191
  %1210 = vmatprep.subr.bf16.mxu0 0
  %1211 = vmatpush1.bf16.msra.mxu0 %v1192
  %1212 = vmatprep.subr.bf16.mxu0 0
  %1213 = vmatpush1.bf16.msra.mxu0 %v1193
  %1214 = vmatprep.subr.bf16.mxu0 0
  %1215 = vmatpush1.bf16.msra.mxu0 %v1194
  %1216 = vmatprep.subr.bf16.mxu0 0
  %1217 = vmatpush1.bf16.msra.mxu0 %v1195
  %1218 = vmatprep.subr.bf16.mxu0 0
  %1219 = vmatpush1.bf16.msra.mxu0 %v1196
  %1220 = vmatprep.subr.bf16.mxu0 0
  %1221 = vmatpush1.bf16.msra.mxu0 %v1197
  %1222 = vmatprep.subr.bf16.mxu0 0
  %1223 = vmatpush1.bf16.msra.mxu0 0
  %1224 = vmatprep.subr.bf16.mxu0 0
  %1225 = vmatpush1.bf16.msra.mxu0 0
  %1226 = vmatprep.subr.bf16.mxu0 0
  %1227 = vmatpush1.bf16.msra.mxu0 0
  %1228 = vmatprep.subr.bf16.mxu0 0
  %1229 = vmatpush1.bf16.msra.mxu0 0
  %1230 = vmatprep.subr.bf16.mxu0 0
  %1231 = vmatpush1.bf16.msra.mxu0 0
  %1232 = vmatprep.subr.bf16.mxu0 0
  %1233 = vmatpush1.bf16.msra.mxu0 0
  %1234 = vmatprep.subr.bf16.mxu0 0
  %1235 = vmatpush1.bf16.msra.mxu0 0
  %1236 = vmatprep.subr.bf16.mxu0 0
  %1237 = vmatpush1.bf16.msra.mxu0 0
  %1238 = vmatprep.mubr.bf16.mxu0 0
  %1239 = vmatmul.mubr.bf16.gmra.mrb[0].mxu0 %v1140
  %v1240 = vpop.f32.mrb[0].mxu0
  %v1241 = vadd.f32 0.0, %v1240
  %v1242 = vpop.f32.mrb[0].mxu0
  %v1243 = vpop.f32.mrb[0].mxu0
  %v1244 = vpop.f32.mrb[0].mxu0
  %1245 = vdwg.mxu0
  %v1262 = vunpack.c.l.b16 %v864
  %v1263 = vunpack.c.l.b16 %v865
  %v1264 = vunpack.c.l.b16 %v866
  %v1265 = vunpack.c.l.b16 %v867
  %v1266 = vunpack.c.l.b16 %v868
  %v1267 = vunpack.c.l.b16 %v869
  %v1268 = vunpack.c.l.b16 %v870
  %v1269 = vunpack.c.l.b16 %v871
  %v1270 = vunpack.c.l.b16 %v872
  %v1271 = vunpack.c.l.b16 %v873
  %v1272 = vunpack.c.l.b16 %v874
  %v1273 = vunpack.c.l.b16 %v875
  %v1274 = vunpack.c.l.b16 %v876
  %v1275 = vunpack.c.l.b16 %v877
  %v1276 = vunpack.c.l.b16 %v878
  %v1277 = vunpack.c.l.b16 %v879
  %v1278 = vpack.c.b16 %v1263, %v1262
  %v1279 = vpack.c.b16 %v1265, %v1264
  %v1280 = vpack.c.b16 %v1267, %v1266
  %v1281 = vpack.c.b16 %v1269, %v1268
  %v1282 = vpack.c.b16 %v1271, %v1270
  %v1283 = vpack.c.b16 %v1273, %v1272
  %v1284 = vpack.c.b16 %v1275, %v1274
  %v1285 = vpack.c.b16 %v1277, %v1276
  %1294 = vmatprep.subr.bf16.mxu0 0
  %1295 = vmatpush1.bf16.msra.mxu0 %v1278
  %1296 = vmatprep.subr.bf16.mxu0 0
  %1297 = vmatpush1.bf16.msra.mxu0 %v1279
  %1298 = vmatprep.subr.bf16.mxu0 0
  %1299 = vmatpush1.bf16.msra.mxu0 %v1280
  %1300 = vmatprep.subr.bf16.mxu0 0
  %1301 = vmatpush1.bf16.msra.mxu0 %v1281
  %1302 = vmatprep.subr.bf16.mxu0 0
  %1303 = vmatpush1.bf16.msra.mxu0 %v1282
  %1304 = vmatprep.subr.bf16.mxu0 0
  %1305 = vmatpush1.bf16.msra.mxu0 %v1283
  %1306 = vmatprep.subr.bf16.mxu0 0
  %1307 = vmatpush1.bf16.msra.mxu0 %v1284
  %1308 = vmatprep.subr.bf16.mxu0 0
  %1309 = vmatpush1.bf16.msra.mxu0 %v1285
  %1310 = vmatprep.subr.bf16.mxu0 0
  %1311 = vmatpush1.bf16.msra.mxu0 0
  %1312 = vmatprep.subr.bf16.mxu0 0
  %1313 = vmatpush1.bf16.msra.mxu0 0
  %1314 = vmatprep.subr.bf16.mxu0 0
  %1315 = vmatpush1.bf16.msra.mxu0 0
  %1316 = vmatprep.subr.bf16.mxu0 0
  %1317 = vmatpush1.bf16.msra.mxu0 0
  %1318 = vmatprep.subr.bf16.mxu0 0
  %1319 = vmatpush1.bf16.msra.mxu0 0
  %1320 = vmatprep.subr.bf16.mxu0 0
  %1321 = vmatpush1.bf16.msra.mxu0 0
  %1322 = vmatprep.subr.bf16.mxu0 0
  %1323 = vmatpush1.bf16.msra.mxu0 0
  %1324 = vmatprep.subr.bf16.mxu0 0
  %1325 = vmatpush1.bf16.msra.mxu0 0
  %1326 = vmatprep.mubr.bf16.mxu0 0
  %1327 = vmatmul.mubr.bf16.gmra.mrb[0].mxu0 %v863
  %v1328 = vpop.f32.mrb[0].mxu0
  %v1329 = vadd.f32 %v1241, %v1328
  %v1330 = vpop.f32.mrb[0].mxu0
  %v1331 = vpop.f32.mrb[0].mxu0
  %v1332 = vpop.f32.mrb[0].mxu0
  %1333 = vdwg.mxu0
  %s1334 = scalar_lea.vmem %s0, 36
  %v1335 = vld [vmem:[%s1334] sm:$0xff]
  %v1336 = vld [vmem:[%s1334 + $0x8] sm:$0xff]
  %v1337 = vld [vmem:[%s1334 + $0x10] sm:$0x3]
  %v1341 = vcombine.high %v1335, %v1335
  %v1343 = vunpack.c.l.s4 1983009808
  %v1344 = vunpack.c.0.s8 %v1343
  %v1345 = vlaneseq
  %v1346 = vshrl.u32 %v1345, 7
  %v1347 = vsub.s32 %v1344, %v1346
  %v1348 = vrot.slane %v1335, %v1347
  %v1350 = vunpack.c.l.s4 1983009808
  %v1351 = vunpack.c.0.s8 %v1350
  %v1352 = vlaneseq
  %v1353 = vshrl.u32 %v1352, 7
  %v1354 = vsub.s32 %v1351, %v1353
  %v1355 = vrot.slane %v1341, %v1354
  %v1356 = vcombine.high %v1348, %v1348
  %v1357 = vcombine.high %v1355, %v1355
  %v1358 = vcombine.high %v1336, %v1336
  %v1360 = vunpack.c.l.s4 1983009808
  %v1361 = vunpack.c.0.s8 %v1360
  %v1362 = vlaneseq
  %v1363 = vshrl.u32 %v1362, 7
  %v1364 = vsub.s32 %v1361, %v1363
  %v1365 = vrot.slane %v1336, %v1364
  %v1367 = vunpack.c.l.s4 1983009808
  %v1368 = vunpack.c.0.s8 %v1367
  %v1369 = vlaneseq
  %v1370 = vshrl.u32 %v1369, 7
  %v1371 = vsub.s32 %v1368, %v1370
  %v1372 = vrot.slane %v1358, %v1371
  %v1373 = vcombine.high %v1365, %v1365
  %v1374 = vcombine.high %v1372, %v1372
  %v1376 = vunpack.c.l.s4 1983009808
  %v1377 = vunpack.c.0.s8 %v1376
  %v1378 = vlaneseq
  %v1379 = vshrl.u32 %v1378, 7
  %v1380 = vsub.s32 %v1377, %v1379
  %v1381 = vrot.slane %v1337, %v1380
  %1391 = vmatprep.subr.bf16.mxu0 0
  %1392 = vmatpush1.bf16.msra.mxu0 %v516
  %1393 = vmatprep.subr.bf16.mxu0 0
  %1394 = vmatpush1.bf16.msra.mxu0 %v517
  %1395 = vmatprep.subr.bf16.mxu0 0
  %1396 = vmatpush1.bf16.msra.mxu0 %v518
  %1397 = vmatprep.subr.bf16.mxu0 0
  %1398 = vmatpush1.bf16.msra.mxu0 %v519
  %1399 = vmatprep.subr.bf16.mxu0 0
  %1400 = vmatpush1.bf16.msra.mxu0 %v520
  %1401 = vmatprep.subr.bf16.mxu0 0
  %1402 = vmatpush1.bf16.msra.mxu0 %v521
  %1403 = vmatprep.subr.bf16.mxu0 0
  %1404 = vmatpush1.bf16.msra.mxu0 %v522
  %1405 = vmatprep.subr.bf16.mxu0 0
  %1406 = vmatpush1.bf16.msra.mxu0 %v523
  %1407 = vmatprep.subr.bf16.mxu0 0
  %1408 = vmatpush1.bf16.msra.mxu0 %v524
  %1409 = vmatprep.subr.bf16.mxu0 0
  %1410 = vmatpush1.bf16.msra.mxu0 %v525
  %1411 = vmatprep.subr.bf16.mxu0 0
  %1412 = vmatpush1.bf16.msra.mxu0 %v526
  %1413 = vmatprep.subr.bf16.mxu0 0
  %1414 = vmatpush1.bf16.msra.mxu0 %v527
  %1415 = vmatprep.subr.bf16.mxu0 0
  %1416 = vmatpush1.bf16.msra.mxu0 %v528
  %1417 = vmatprep.subr.bf16.mxu0 0
  %1418 = vmatpush1.bf16.msra.mxu0 %v529
  %1419 = vmatprep.subr.bf16.mxu0 0
  %1420 = vmatpush1.bf16.msra.mxu0 %v530
  %1421 = vmatprep.subr.bf16.mxu0 0
  %1422 = vmatpush1.bf16.msra.mxu0 %v531
  %1423 = vmatprep.mubr.bf16.mxu0 %v1356
  %1424 = vmatmul.mubr.bf16.gmra.mrb[0].mxu0 %v1348
  %v1425 = vpop.f32.mrb[0].mxu0
  %v1426 = vadd.f32 %v173, %v1425
  %v1427 = vpop.f32.mrb[0].mxu0
  %v1428 = vpop.f32.mrb[0].mxu0
  %v1429 = vpop.f32.mrb[0].mxu0
  %1430 = vdwg.mxu0
  %1431 = vmatprep.subr.bf16.mxu0 0
  %1432 = vmatpush1.bf16.msra.mxu0 %v532
  %1433 = vmatprep.subr.bf16.mxu0 0
  %1434 = vmatpush1.bf16.msra.mxu0 %v533
  %1435 = vmatprep.subr.bf16.mxu0 0
  %1436 = vmatpush1.bf16.msra.mxu0 %v534
  %1437 = vmatprep.subr.bf16.mxu0 0
  %1438 = vmatpush1.bf16.msra.mxu0 %v535
  %1439 = vmatprep.subr.bf16.mxu0 0
  %1440 = vmatpush1.bf16.msra.mxu0 %v536
  %1441 = vmatprep.subr.bf16.mxu0 0
  %1442 = vmatpush1.bf16.msra.mxu0 %v537
  %1443 = vmatprep.subr.bf16.mxu0 0
  %1444 = vmatpush1.bf16.msra.mxu0 %v538
  %1445 = vmatprep.subr.bf16.mxu0 0
  %1446 = vmatpush1.bf16.msra.mxu0 %v539
  %1447 = vmatprep.subr.bf16.mxu0 0
  %1448 = vmatpush1.bf16.msra.mxu0 %v540
  %1449 = vmatprep.subr.bf16.mxu0 0
  %1450 = vmatpush1.bf16.msra.mxu0 %v541
  %1451 = vmatprep.subr.bf16.mxu0 0
  %1452 = vmatpush1.bf16.msra.mxu0 %v542
  %1453 = vmatprep.subr.bf16.mxu0 0
  %1454 = vmatpush1.bf16.msra.mxu0 %v543
  %1455 = vmatprep.subr.bf16.mxu0 0
  %1456 = vmatpush1.bf16.msra.mxu0 %v544
  %1457 = vmatprep.subr.bf16.mxu0 0
  %1458 = vmatpush1.bf16.msra.mxu0 %v545
  %1459 = vmatprep.subr.bf16.mxu0 0
  %1460 = vmatpush1.bf16.msra.mxu0 %v546
  %1461 = vmatprep.subr.bf16.mxu0 0
  %1462 = vmatpush1.bf16.msra.mxu0 %v547
  %1463 = vmatprep.mubr.bf16.mxu0 %v1357
  %1464 = vmatmul.mubr.bf16.gmra.mrb[0].mxu0 %v1355
  %v1465 = vpop.f32.mrb[0].mxu0
  %v1466 = vadd.f32 %v1426, %v1465
  %v1467 = vpop.f32.mrb[0].mxu0
  %v1468 = vpop.f32.mrb[0].mxu0
  %v1469 = vpop.f32.mrb[0].mxu0
  %1470 = vdwg.mxu0
  %1471 = vmatprep.subr.bf16.mxu0 0
  %1472 = vmatpush1.bf16.msra.mxu0 %v548
  %1473 = vmatprep.subr.bf16.mxu0 0
  %1474 = vmatpush1.bf16.msra.mxu0 %v549
  %1475 = vmatprep.subr.bf16.mxu0 0
  %1476 = vmatpush1.bf16.msra.mxu0 %v550
  %1477 = vmatprep.subr.bf16.mxu0 0
  %1478 = vmatpush1.bf16.msra.mxu0 %v551
  %1479 = vmatprep.subr.bf16.mxu0 0
  %1480 = vmatpush1.bf16.msra.mxu0 %v552
  %1481 = vmatprep.subr.bf16.mxu0 0
  %1482 = vmatpush1.bf16.msra.mxu0 %v553
  %1483 = vmatprep.subr.bf16.mxu0 0
  %1484 = vmatpush1.bf16.msra.mxu0 %v554
  %1485 = vmatprep.subr.bf16.mxu0 0
  %1486 = vmatpush1.bf16.msra.mxu0 %v555
  %1487 = vmatprep.subr.bf16.mxu0 0
  %1488 = vmatpush1.bf16.msra.mxu0 %v556
  %1489 = vmatprep.subr.bf16.mxu0 0
  %1490 = vmatpush1.bf16.msra.mxu0 %v557
  %1491 = vmatprep.subr.bf16.mxu0 0
  %1492 = vmatpush1.bf16.msra.mxu0 %v558
  %1493 = vmatprep.subr.bf16.mxu0 0
  %1494 = vmatpush1.bf16.msra.mxu0 %v559
  %1495 = vmatprep.subr.bf16.mxu0 0
  %1496 = vmatpush1.bf16.msra.mxu0 %v560
  %1497 = vmatprep.subr.bf16.mxu0 0
  %1498 = vmatpush1.bf16.msra.mxu0 %v561
  %1499 = vmatprep.subr.bf16.mxu0 0
  %1500 = vmatpush1.bf16.msra.mxu0 %v562
  %1501 = vmatprep.subr.bf16.mxu0 0
  %1502 = vmatpush1.bf16.msra.mxu0 %v563
  %1503 = vmatprep.mubr.bf16.mxu0 %v1373
  %1504 = vmatmul.mubr.bf16.gmra.mrb[0].mxu0 %v1365
  %v1505 = vpop.f32.mrb[0].mxu0
  %v1506 = vadd.f32 %v1466, %v1505
  %v1507 = vpop.f32.mrb[0].mxu0
  %v1508 = vpop.f32.mrb[0].mxu0
  %v1509 = vpop.f32.mrb[0].mxu0
  %1510 = vdwg.mxu0
  %1511 = vmatprep.subr.bf16.mxu0 0
  %1512 = vmatpush1.bf16.msra.mxu0 %v564
  %1513 = vmatprep.subr.bf16.mxu0 0
  %1514 = vmatpush1.bf16.msra.mxu0 %v565
  %1515 = vmatprep.subr.bf16.mxu0 0
  %1516 = vmatpush1.bf16.msra.mxu0 %v566
  %1517 = vmatprep.subr.bf16.mxu0 0
  %1518 = vmatpush1.bf16.msra.mxu0 %v567
  %1519 = vmatprep.subr.bf16.mxu0 0
  %1520 = vmatpush1.bf16.msra.mxu0 %v568
  %1521 = vmatprep.subr.bf16.mxu0 0
  %1522 = vmatpush1.bf16.msra.mxu0 %v569
  %1523 = vmatprep.subr.bf16.mxu0 0
  %1524 = vmatpush1.bf16.msra.mxu0 %v570
  %1525 = vmatprep.subr.bf16.mxu0 0
  %1526 = vmatpush1.bf16.msra.mxu0 %v571
  %1527 = vmatprep.subr.bf16.mxu0 0
  %1528 = vmatpush1.bf16.msra.mxu0 %v572
  %1529 = vmatprep.subr.bf16.mxu0 0
  %1530 = vmatpush1.bf16.msra.mxu0 %v573
  %1531 = vmatprep.subr.bf16.mxu0 0
  %1532 = vmatpush1.bf16.msra.mxu0 %v574
  %1533 = vmatprep.subr.bf16.mxu0 0
  %1534 = vmatpush1.bf16.msra.mxu0 %v575
  %1535 = vmatprep.subr.bf16.mxu0 0
  %1536 = vmatpush1.bf16.msra.mxu0 %v576
  %1537 = vmatprep.subr.bf16.mxu0 0
  %1538 = vmatpush1.bf16.msra.mxu0 %v577
  %1539 = vmatprep.subr.bf16.mxu0 0
  %1540 = vmatpush1.bf16.msra.mxu0 %v578
  %1541 = vmatprep.subr.bf16.mxu0 0
  %1542 = vmatpush1.bf16.msra.mxu0 %v579
  %1543 = vmatprep.mubr.bf16.mxu0 %v1374
  %1544 = vmatmul.mubr.bf16.gmra.mrb[0].mxu0 %v1372
  %v1545 = vpop.f32.mrb[0].mxu0
  %v1546 = vadd.f32 %v1506, %v1545
  %v1547 = vpop.f32.mrb[0].mxu0
  %v1548 = vpop.f32.mrb[0].mxu0
  %v1549 = vpop.f32.mrb[0].mxu0
  %1550 = vdwg.mxu0
  %1551 = vmatprep.subr.bf16.mxu0 0
  %1552 = vmatpush1.bf16.msra.mxu0 %v580
  %1553 = vmatprep.subr.bf16.mxu0 0
  %1554 = vmatpush1.bf16.msra.mxu0 %v581
  %1555 = vmatprep.subr.bf16.mxu0 0
  %1556 = vmatpush1.bf16.msra.mxu0 %v582
  %1557 = vmatprep.subr.bf16.mxu0 0
  %1558 = vmatpush1.bf16.msra.mxu0 %v583
  %1559 = vmatprep.subr.bf16.mxu0 0
  %1560 = vmatpush1.bf16.msra.mxu0 %v584
  %1561 = vmatprep.subr.bf16.mxu0 0
  %1562 = vmatpush1.bf16.msra.mxu0 %v585
  %1563 = vmatprep.subr.bf16.mxu0 0
  %1564 = vmatpush1.bf16.msra.mxu0 %v586
  %1565 = vmatprep.subr.bf16.mxu0 0
  %1566 = vmatpush1.bf16.msra.mxu0 %v587
  %1567 = vmatprep.subr.bf16.mxu0 0
  %1568 = vmatpush1.bf16.msra.mxu0 0
  %1569 = vmatprep.subr.bf16.mxu0 0
  %1570 = vmatpush1.bf16.msra.mxu0 0
  %1571 = vmatprep.subr.bf16.mxu0 0
  %1572 = vmatpush1.bf16.msra.mxu0 0
  %1573 = vmatprep.subr.bf16.mxu0 0
  %1574 = vmatpush1.bf16.msra.mxu0 0
  %1575 = vmatprep.subr.bf16.mxu0 0
  %1576 = vmatpush1.bf16.msra.mxu0 0
  %1577 = vmatprep.subr.bf16.mxu0 0
  %1578 = vmatpush1.bf16.msra.mxu0 0
  %1579 = vmatprep.subr.bf16.mxu0 0
  %1580 = vmatpush1.bf16.msra.mxu0 0
  %1581 = vmatprep.subr.bf16.mxu0 0
  %1582 = vmatpush1.bf16.msra.mxu0 0
  %1583 = vmatprep.mubr.bf16.mxu0 0
  %1584 = vmatmul.mubr.bf16.gmra.mrb[0].mxu0 %v1381
  %v1585 = vpop.f32.mrb[0].mxu0
  %v1586 = vadd.f32 %v1546, %v1585
  %v1587 = vpop.f32.mrb[0].mxu0
  %v1588 = vpop.f32.mrb[0].mxu0
  %v1589 = vpop.f32.mrb[0].mxu0
  %1590 = vdwg.mxu0
  %vm1591 = vcmp.ge.f32.partialorder %v1586, 0.0
  %v1592 = vmul.f32 %v1586, 0.2
  %v1593 = vsel %vm1591, %v1586, %v1592
  %v1594 = vpack.c.bf16 %v1593, %v1593
  %s1595 = scalar_lea.vmem %s3, 128
  %v1596 = vld [vmem:[%s1595] sm:$0xf]
  %v1597 = vld [vmem:[%s1595 + $0x4] sm:$0xf]
  %v1598 = vld [vmem:[%s1595 + $0x8] sm:$0xf]
  %v1599 = vld [vmem:[%s1595 + $0xc] sm:$0xf]
  %v1600 = vld [vmem:[%s1595 + $0x10] sm:$0xf]
  %v1601 = vld [vmem:[%s1595 + $0x14] sm:$0xf]
  %v1602 = vld [vmem:[%s1595 + $0x18] sm:$0xf]
  %v1603 = vld [vmem:[%s1595 + $0x1c] sm:$0xf]
  %v1604 = vld [vmem:[%s1595 + $0x20] sm:$0xf]
  %v1605 = vld [vmem:[%s1595 + $0x24] sm:$0xf]
  %v1606 = vld [vmem:[%s1595 + $0x28] sm:$0xf]
  %v1607 = vld [vmem:[%s1595 + $0x2c] sm:$0xf]
  %v1608 = vld [vmem:[%s1595 + $0x30] sm:$0xf]
  %v1609 = vld [vmem:[%s1595 + $0x34] sm:$0xf]
  %v1610 = vld [vmem:[%s1595 + $0x38] sm:$0xf]
  %v1611 = vld [vmem:[%s1595 + $0x3c] sm:$0xf]
  %v1628 = vunpack.c.l.b16 %v1596
  %v1629 = vunpack.c.l.b16 %v1597
  %v1630 = vunpack.c.l.b16 %v1598
  %v1631 = vunpack.c.l.b16 %v1599
  %v1632 = vunpack.c.l.b16 %v1600
  %v1633 = vunpack.c.l.b16 %v1601
  %v1634 = vunpack.c.l.b16 %v1602
  %v1635 = vunpack.c.l.b16 %v1603
  %v1636 = vunpack.c.l.b16 %v1604
  %v1637 = vunpack.c.l.b16 %v1605
  %v1638 = vunpack.c.l.b16 %v1606
  %v1639 = vunpack.c.l.b16 %v1607
  %v1640 = vunpack.c.l.b16 %v1608
  %v1641 = vunpack.c.l.b16 %v1609
  %v1642 = vunpack.c.l.b16 %v1610
  %v1643 = vunpack.c.l.b16 %v1611
  %v1644 = vpack.c.b16 %v1629, %v1628
  %v1645 = vpack.c.b16 %v1631, %v1630
  %v1646 = vpack.c.b16 %v1633, %v1632
  %v1647 = vpack.c.b16 %v1635, %v1634
  %v1648 = vpack.c.b16 %v1637, %v1636
  %v1649 = vpack.c.b16 %v1639, %v1638
  %v1650 = vpack.c.b16 %v1641, %v1640
  %v1651 = vpack.c.b16 %v1643, %v1642
  %1660 = vmatprep.subr.bf16.mxu0 0
  %1661 = vmatpush1.bf16.msra.mxu0 %v1644
  %1662 = vmatprep.subr.bf16.mxu0 0
  %1663 = vmatpush1.bf16.msra.mxu0 %v1645
  %1664 = vmatprep.subr.bf16.mxu0 0
  %1665 = vmatpush1.bf16.msra.mxu0 %v1646
  %1666 = vmatprep.subr.bf16.mxu0 0
  %1667 = vmatpush1.bf16.msra.mxu0 %v1647
  %1668 = vmatprep.subr.bf16.mxu0 0
  %1669 = vmatpush1.bf16.msra.mxu0 %v1648
  %1670 = vmatprep.subr.bf16.mxu0 0
  %1671 = vmatpush1.bf16.msra.mxu0 %v1649
  %1672 = vmatprep.subr.bf16.mxu0 0
  %1673 = vmatpush1.bf16.msra.mxu0 %v1650
  %1674 = vmatprep.subr.bf16.mxu0 0
  %1675 = vmatpush1.bf16.msra.mxu0 %v1651
  %1676 = vmatprep.subr.bf16.mxu0 0
  %1677 = vmatpush1.bf16.msra.mxu0 0
  %1678 = vmatprep.subr.bf16.mxu0 0
  %1679 = vmatpush1.bf16.msra.mxu0 0
  %1680 = vmatprep.subr.bf16.mxu0 0
  %1681 = vmatpush1.bf16.msra.mxu0 0
  %1682 = vmatprep.subr.bf16.mxu0 0
  %1683 = vmatpush1.bf16.msra.mxu0 0
  %1684 = vmatprep.subr.bf16.mxu0 0
  %1685 = vmatpush1.bf16.msra.mxu0 0
  %1686 = vmatprep.subr.bf16.mxu0 0
  %1687 = vmatpush1.bf16.msra.mxu0 0
  %1688 = vmatprep.subr.bf16.mxu0 0
  %1689 = vmatpush1.bf16.msra.mxu0 0
  %1690 = vmatprep.subr.bf16.mxu0 0
  %1691 = vmatpush1.bf16.msra.mxu0 0
  %1692 = vmatprep.mubr.bf16.mxu0 0
  %1693 = vmatmul.mubr.bf16.gmra.mrb[0].mxu0 %v1594
  %v1694 = vpop.f32.mrb[0].mxu0
  %v1695 = vadd.f32 0.0, %v1694
  %v1696 = vpop.f32.mrb[0].mxu0
  %v1697 = vpop.f32.mrb[0].mxu0
  %v1698 = vpop.f32.mrb[0].mxu0
  %1699 = vdwg.mxu0
  %v1700 = vadd.f32 %v1329, %v1695
  %s1701 = scalar_lea.vmem %s0, 54
  %v1702 = vld [vmem:[%s1701] sm:$0xff]
  %v1703 = vld [vmem:[%s1701 + $0x8] sm:$0xff]
  %v1704 = vld [vmem:[%s1701 + $0x10] sm:$0x3]
  %v1708 = vcombine.high %v1702, %v1702
  %v1710 = vunpack.c.l.s4 1983009808
  %v1711 = vunpack.c.0.s8 %v1710
  %v1712 = vlaneseq
  %v1713 = vshrl.u32 %v1712, 7
  %v1714 = vsub.s32 %v1711, %v1713
  %v1715 = vrot.slane %v1702, %v1714
  %v1717 = vunpack.c.l.s4 1983009808
  %v1718 = vunpack.c.0.s8 %v1717
  %v1719 = vlaneseq
  %v1720 = vshrl.u32 %v1719, 7
  %v1721 = vsub.s32 %v1718, %v1720
  %v1722 = vrot.slane %v1708, %v1721
  %v1723 = vcombine.high %v1715, %v1715
  %v1724 = vcombine.high %v1722, %v1722
  %v1725 = vcombine.high %v1703, %v1703
  %v1727 = vunpack.c.l.s4 1983009808
  %v1728 = vunpack.c.0.s8 %v1727
  %v1729 = vlaneseq
  %v1730 = vshrl.u32 %v1729, 7
  %v1731 = vsub.s32 %v1728, %v1730
  %v1732 = vrot.slane %v1703, %v1731
  %v1734 = vunpack.c.l.s4 1983009808
  %v1735 = vunpack.c.0.s8 %v1734
  %v1736 = vlaneseq
  %v1737 = vshrl.u32 %v1736, 7
  %v1738 = vsub.s32 %v1735, %v1737
  %v1739 = vrot.slane %v1725, %v1738
  %v1740 = vcombine.high %v1732, %v1732
  %v1741 = vcombine.high %v1739, %v1739
  %v1743 = vunpack.c.l.s4 1983009808
  %v1744 = vunpack.c.0.s8 %v1743
  %v1745 = vlaneseq
  %v1746 = vshrl.u32 %v1745, 7
  %v1747 = vsub.s32 %v1744, %v1746
  %v1748 = vrot.slane %v1704, %v1747
  %1758 = vmatprep.subr.bf16.mxu0 0
  %1759 = vmatpush1.bf16.msra.mxu0 %v516
  %1760 = vmatprep.subr.bf16.mxu0 0
  %1761 = vmatpush1.bf16.msra.mxu0 %v517
  %1762 = vmatprep.subr.bf16.mxu0 0
  %1763 = vmatpush1.bf16.msra.mxu0 %v518
  %1764 = vmatprep.subr.bf16.mxu0 0
  %1765 = vmatpush1.bf16.msra.mxu0 %v519
  %1766 = vmatprep.subr.bf16.mxu0 0
  %1767 = vmatpush1.bf16.msra.mxu0 %v520
  %1768 = vmatprep.subr.bf16.mxu0 0
  %1769 = vmatpush1.bf16.msra.mxu0 %v521
  %1770 = vmatprep.subr.bf16.mxu0 0
  %1771 = vmatpush1.bf16.msra.mxu0 %v522
  %1772 = vmatprep.subr.bf16.mxu0 0
  %1773 = vmatpush1.bf16.msra.mxu0 %v523
  %1774 = vmatprep.subr.bf16.mxu0 0
  %1775 = vmatpush1.bf16.msra.mxu0 %v524
  %1776 = vmatprep.subr.bf16.mxu0 0
  %1777 = vmatpush1.bf16.msra.mxu0 %v525
  %1778 = vmatprep.subr.bf16.mxu0 0
  %1779 = vmatpush1.bf16.msra.mxu0 %v526
  %1780 = vmatprep.subr.bf16.mxu0 0
  %1781 = vmatpush1.bf16.msra.mxu0 %v527
  %1782 = vmatprep.subr.bf16.mxu0 0
  %1783 = vmatpush1.bf16.msra.mxu0 %v528
  %1784 = vmatprep.subr.bf16.mxu0 0
  %1785 = vmatpush1.bf16.msra.mxu0 %v529
  %1786 = vmatprep.subr.bf16.mxu0 0
  %1787 = vmatpush1.bf16.msra.mxu0 %v530
  %1788 = vmatprep.subr.bf16.mxu0 0
  %1789 = vmatpush1.bf16.msra.mxu0 %v531
  %1790 = vmatprep.mubr.bf16.mxu0 %v1723
  %1791 = vmatmul.mubr.bf16.gmra.mrb[0].mxu0 %v1715
  %v1792 = vpop.f32.mrb[0].mxu0
  %v1793 = vadd.f32 %v173, %v1792
  %v1794 = vpop.f32.mrb[0].mxu0
  %v1795 = vpop.f32.mrb[0].mxu0
  %v1796 = vpop.f32.mrb[0].mxu0
  %1797 = vdwg.mxu0
  %1798 = vmatprep.subr.bf16.mxu0 0
  %1799 = vmatpush1.bf16.msra.mxu0 %v532
  %1800 = vmatprep.subr.bf16.mxu0 0
  %1801 = vmatpush1.bf16.msra.mxu0 %v533
  %1802 = vmatprep.subr.bf16.mxu0 0
  %1803 = vmatpush1.bf16.msra.mxu0 %v534
  %1804 = vmatprep.subr.bf16.mxu0 0
  %1805 = vmatpush1.bf16.msra.mxu0 %v535
  %1806 = vmatprep.subr.bf16.mxu0 0
  %1807 = vmatpush1.bf16.msra.mxu0 %v536
  %1808 = vmatprep.subr.bf16.mxu0 0
  %1809 = vmatpush1.bf16.msra.mxu0 %v537
  %1810 = vmatprep.subr.bf16.mxu0 0
  %1811 = vmatpush1.bf16.msra.mxu0 %v538
  %1812 = vmatprep.subr.bf16.mxu0 0
  %1813 = vmatpush1.bf16.msra.mxu0 %v539
  %1814 = vmatprep.subr.bf16.mxu0 0
  %1815 = vmatpush1.bf16.msra.mxu0 %v540
  %1816 = vmatprep.subr.bf16.mxu0 0
  %1817 = vmatpush1.bf16.msra.mxu0 %v541
  %1818 = vmatprep.subr.bf16.mxu0 0
  %1819 = vmatpush1.bf16.msra.mxu0 %v542
  %1820 = vmatprep.subr.bf16.mxu0 0
  %1821 = vmatpush1.bf16.msra.mxu0 %v543
  %1822 = vmatprep.subr.bf16.mxu0 0
  %1823 = vmatpush1.bf16.msra.mxu0 %v544
  %1824 = vmatprep.subr.bf16.mxu0 0
  %1825 = vmatpush1.bf16.msra.mxu0 %v545
  %1826 = vmatprep.subr.bf16.mxu0 0
  %1827 = vmatpush1.bf16.msra.mxu0 %v546
  %1828 = vmatprep.subr.bf16.mxu0 0
  %1829 = vmatpush1.bf16.msra.mxu0 %v547
  %1830 = vmatprep.mubr.bf16.mxu0 %v1724
  %1831 = vmatmul.mubr.bf16.gmra.mrb[0].mxu0 %v1722
  %v1832 = vpop.f32.mrb[0].mxu0
  %v1833 = vadd.f32 %v1793, %v1832
  %v1834 = vpop.f32.mrb[0].mxu0
  %v1835 = vpop.f32.mrb[0].mxu0
  %v1836 = vpop.f32.mrb[0].mxu0
  %1837 = vdwg.mxu0
  %1838 = vmatprep.subr.bf16.mxu0 0
  %1839 = vmatpush1.bf16.msra.mxu0 %v548
  %1840 = vmatprep.subr.bf16.mxu0 0
  %1841 = vmatpush1.bf16.msra.mxu0 %v549
  %1842 = vmatprep.subr.bf16.mxu0 0
  %1843 = vmatpush1.bf16.msra.mxu0 %v550
  %1844 = vmatprep.subr.bf16.mxu0 0
  %1845 = vmatpush1.bf16.msra.mxu0 %v551
  %1846 = vmatprep.subr.bf16.mxu0 0
  %1847 = vmatpush1.bf16.msra.mxu0 %v552
  %1848 = vmatprep.subr.bf16.mxu0 0
  %1849 = vmatpush1.bf16.msra.mxu0 %v553
  %1850 = vmatprep.subr.bf16.mxu0 0
  %1851 = vmatpush1.bf16.msra.mxu0 %v554
  %1852 = vmatprep.subr.bf16.mxu0 0
  %1853 = vmatpush1.bf16.msra.mxu0 %v555
  %1854 = vmatprep.subr.bf16.mxu0 0
  %1855 = vmatpush1.bf16.msra.mxu0 %v556
  %1856 = vmatprep.subr.bf16.mxu0 0
  %1857 = vmatpush1.bf16.msra.mxu0 %v557
  %1858 = vmatprep.subr.bf16.mxu0 0
  %1859 = vmatpush1.bf16.msra.mxu0 %v558
  %1860 = vmatprep.subr.bf16.mxu0 0
  %1861 = vmatpush1.bf16.msra.mxu0 %v559
  %1862 = vmatprep.subr.bf16.mxu0 0
  %1863 = vmatpush1.bf16.msra.mxu0 %v560
  %1864 = vmatprep.subr.bf16.mxu0 0
  %1865 = vmatpush1.bf16.msra.mxu0 %v561
  %1866 = vmatprep.subr.bf16.mxu0 0
  %1867 = vmatpush1.bf16.msra.mxu0 %v562
  %1868 = vmatprep.subr.bf16.mxu0 0
  %1869 = vmatpush1.bf16.msra.mxu0 %v563
  %1870 = vmatprep.mubr.bf16.mxu0 %v1740
  %1871 = vmatmul.mubr.bf16.gmra.mrb[0].mxu0 %v1732
  %v1872 = vpop.f32.mrb[0].mxu0
  %v1873 = vadd.f32 %v1833, %v1872
  %v1874 = vpop.f32.mrb[0].mxu0
  %v1875 = vpop.f32.mrb[0].mxu0
  %v1876 = vpop.f32.mrb[0].mxu0
  %1877 = vdwg.mxu0
  %1878 = vmatprep.subr.bf16.mxu0 0
  %1879 = vmatpush1.bf16.msra.mxu0 %v564
  %1880 = vmatprep.subr.bf16.mxu0 0
  %1881 = vmatpush1.bf16.msra.mxu0 %v565
  %1882 = vmatprep.subr.bf16.mxu0 0
  %1883 = vmatpush1.bf16.msra.mxu0 %v566
  %1884 = vmatprep.subr.bf16.mxu0 0
  %1885 = vmatpush1.bf16.msra.mxu0 %v567
  %1886 = vmatprep.subr.bf16.mxu0 0
  %1887 = vmatpush1.bf16.msra.mxu0 %v568
  %1888 = vmatprep.subr.bf16.mxu0 0
  %1889 = vmatpush1.bf16.msra.mxu0 %v569
  %1890 = vmatprep.subr.bf16.mxu0 0
  %1891 = vmatpush1.bf16.msra.mxu0 %v570
  %1892 = vmatprep.subr.bf16.mxu0 0
  %1893 = vmatpush1.bf16.msra.mxu0 %v571
  %1894 = vmatprep.subr.bf16.mxu0 0
  %1895 = vmatpush1.bf16.msra.mxu0 %v572
  %1896 = vmatprep.subr.bf16.mxu0 0
  %1897 = vmatpush1.bf16.msra.mxu0 %v573
  %1898 = vmatprep.subr.bf16.mxu0 0
  %1899 = vmatpush1.bf16.msra.mxu0 %v574
  %1900 = vmatprep.subr.bf16.mxu0 0
  %1901 = vmatpush1.bf16.msra.mxu0 %v575
  %1902 = vmatprep.subr.bf16.mxu0 0
  %1903 = vmatpush1.bf16.msra.mxu0 %v576
  %1904 = vmatprep.subr.bf16.mxu0 0
  %1905 = vmatpush1.bf16.msra.mxu0 %v577
  %1906 = vmatprep.subr.bf16.mxu0 0
  %1907 = vmatpush1.bf16.msra.mxu0 %v578
  %1908 = vmatprep.subr.bf16.mxu0 0
  %1909 = vmatpush1.bf16.msra.mxu0 %v579
  %1910 = vmatprep.mubr.bf16.mxu0 %v1741
  %1911 = vmatmul.mubr.bf16.gmra.mrb[0].mxu0 %v1739
  %v1912 = vpop.f32.mrb[0].mxu0
  %v1913 = vadd.f32 %v1873, %v1912
  %v1914 = vpop.f32.mrb[0].mxu0
  %v1915 = vpop.f32.mrb[0].mxu0
  %v1916 = vpop.f32.mrb[0].mxu0
  %1917 = vdwg.mxu0
  %1918 = vmatprep.subr.bf16.mxu0 0
  %1919 = vmatpush1.bf16.msra.mxu0 %v580
  %1920 = vmatprep.subr.bf16.mxu0 0
  %1921 = vmatpush1.bf16.msra.mxu0 %v581
  %1922 = vmatprep.subr.bf16.mxu0 0
  %1923 = vmatpush1.bf16.msra.mxu0 %v582
  %1924 = vmatprep.subr.bf16.mxu0 0
  %1925 = vmatpush1.bf16.msra.mxu0 %v583
  %1926 = vmatprep.subr.bf16.mxu0 0
  %1927 = vmatpush1.bf16.msra.mxu0 %v584
  %1928 = vmatprep.subr.bf16.mxu0 0
  %1929 = vmatpush1.bf16.msra.mxu0 %v585
  %1930 = vmatprep.subr.bf16.mxu0 0
  %1931 = vmatpush1.bf16.msra.mxu0 %v586
  %1932 = vmatprep.subr.bf16.mxu0 0
  %1933 = vmatpush1.bf16.msra.mxu0 %v587
  %1934 = vmatprep.subr.bf16.mxu0 0
  %1935 = vmatpush1.bf16.msra.mxu0 0
  %1936 = vmatprep.subr.bf16.mxu0 0
  %1937 = vmatpush1.bf16.msra.mxu0 0
  %1938 = vmatprep.subr.bf16.mxu0 0
  %1939 = vmatpush1.bf16.msra.mxu0 0
  %1940 = vmatprep.subr.bf16.mxu0 0
  %1941 = vmatpush1.bf16.msra.mxu0 0
  %1942 = vmatprep.subr.bf16.mxu0 0
  %1943 = vmatpush1.bf16.msra.mxu0 0
  %1944 = vmatprep.subr.bf16.mxu0 0
  %1945 = vmatpush1.bf16.msra.mxu0 0
  %1946 = vmatprep.subr.bf16.mxu0 0
  %1947 = vmatpush1.bf16.msra.mxu0 0
  %1948 = vmatprep.subr.bf16.mxu0 0
  %1949 = vmatpush1.bf16.msra.mxu0 0
  %1950 = vmatprep.mubr.bf16.mxu0 0
  %1951 = vmatmul.mubr.bf16.gmra.mrb[0].mxu0 %v1748
  %v1952 = vpop.f32.mrb[0].mxu0
  %v1953 = vadd.f32 %v1913, %v1952
  %v1954 = vpop.f32.mrb[0].mxu0
  %v1955 = vpop.f32.mrb[0].mxu0
  %v1956 = vpop.f32.mrb[0].mxu0
  %1957 = vdwg.mxu0
  %vm1958 = vcmp.ge.f32.partialorder %v1953, 0.0
  %v1959 = vmul.f32 %v1953, 0.2
  %v1960 = vsel %vm1958, %v1953, %v1959
  %v1961 = vpack.c.bf16 %v1960, %v1960
  %s1962 = scalar_lea.vmem %s3, 192
  %v1963 = vld [vmem:[%s1962] sm:$0xf]
  %v1964 = vld [vmem:[%s1962 + $0x4] sm:$0xf]
  %v1965 = vld [vmem:[%s1962 + $0x8] sm:$0xf]
  %v1966 = vld [vmem:[%s1962 + $0xc] sm:$0xf]
  %v1967 = vld [vmem:[%s1962 + $0x10] sm:$0xf]
  %v1968 = vld [vmem:[%s1962 + $0x14] sm:$0xf]
  %v1969 = vld [vmem:[%s1962 + $0x18] sm:$0xf]
  %v1970 = vld [vmem:[%s1962 + $0x1c] sm:$0xf]
  %v1971 = vld [vmem:[%s1962 + $0x20] sm:$0xf]
  %v1972 = vld [vmem:[%s1962 + $0x24] sm:$0xf]
  %v1973 = vld [vmem:[%s1962 + $0x28] sm:$0xf]
  %v1974 = vld [vmem:[%s1962 + $0x2c] sm:$0xf]
  %v1975 = vld [vmem:[%s1962 + $0x30] sm:$0xf]
  %v1976 = vld [vmem:[%s1962 + $0x34] sm:$0xf]
  %v1977 = vld [vmem:[%s1962 + $0x38] sm:$0xf]
  %v1978 = vld [vmem:[%s1962 + $0x3c] sm:$0xf]
  %v1995 = vunpack.c.l.b16 %v1963
  %v1996 = vunpack.c.l.b16 %v1964
  %v1997 = vunpack.c.l.b16 %v1965
  %v1998 = vunpack.c.l.b16 %v1966
  %v1999 = vunpack.c.l.b16 %v1967
  %v2000 = vunpack.c.l.b16 %v1968
  %v2001 = vunpack.c.l.b16 %v1969
  %v2002 = vunpack.c.l.b16 %v1970
  %v2003 = vunpack.c.l.b16 %v1971
  %v2004 = vunpack.c.l.b16 %v1972
  %v2005 = vunpack.c.l.b16 %v1973
  %v2006 = vunpack.c.l.b16 %v1974
  %v2007 = vunpack.c.l.b16 %v1975
  %v2008 = vunpack.c.l.b16 %v1976
  %v2009 = vunpack.c.l.b16 %v1977
  %v2010 = vunpack.c.l.b16 %v1978
  %v2011 = vpack.c.b16 %v1996, %v1995
  %v2012 = vpack.c.b16 %v1998, %v1997
  %v2013 = vpack.c.b16 %v2000, %v1999
  %v2014 = vpack.c.b16 %v2002, %v2001
  %v2015 = vpack.c.b16 %v2004, %v2003
  %v2016 = vpack.c.b16 %v2006, %v2005
  %v2017 = vpack.c.b16 %v2008, %v2007
  %v2018 = vpack.c.b16 %v2010, %v2009
  %2027 = vmatprep.subr.bf16.mxu0 0
  %2028 = vmatpush1.bf16.msra.mxu0 %v2011
  %2029 = vmatprep.subr.bf16.mxu0 0
  %2030 = vmatpush1.bf16.msra.mxu0 %v2012
  %2031 = vmatprep.subr.bf16.mxu0 0
  %2032 = vmatpush1.bf16.msra.mxu0 %v2013
  %2033 = vmatprep.subr.bf16.mxu0 0
  %2034 = vmatpush1.bf16.msra.mxu0 %v2014
  %2035 = vmatprep.subr.bf16.mxu0 0
  %2036 = vmatpush1.bf16.msra.mxu0 %v2015
  %2037 = vmatprep.subr.bf16.mxu0 0
  %2038 = vmatpush1.bf16.msra.mxu0 %v2016
  %2039 = vmatprep.subr.bf16.mxu0 0
  %2040 = vmatpush1.bf16.msra.mxu0 %v2017
  %2041 = vmatprep.subr.bf16.mxu0 0
  %2042 = vmatpush1.bf16.msra.mxu0 %v2018
  %2043 = vmatprep.subr.bf16.mxu0 0
  %2044 = vmatpush1.bf16.msra.mxu0 0
  %2045 = vmatprep.subr.bf16.mxu0 0
  %2046 = vmatpush1.bf16.msra.mxu0 0
  %2047 = vmatprep.subr.bf16.mxu0 0
  %2048 = vmatpush1.bf16.msra.mxu0 0
  %2049 = vmatprep.subr.bf16.mxu0 0
  %2050 = vmatpush1.bf16.msra.mxu0 0
  %2051 = vmatprep.subr.bf16.mxu0 0
  %2052 = vmatpush1.bf16.msra.mxu0 0
  %2053 = vmatprep.subr.bf16.mxu0 0
  %2054 = vmatpush1.bf16.msra.mxu0 0
  %2055 = vmatprep.subr.bf16.mxu0 0
  %2056 = vmatpush1.bf16.msra.mxu0 0
  %2057 = vmatprep.subr.bf16.mxu0 0
  %2058 = vmatpush1.bf16.msra.mxu0 0
  %2059 = vmatprep.mubr.bf16.mxu0 0
  %2060 = vmatmul.mubr.bf16.gmra.mrb[0].mxu0 %v1961
  %v2061 = vpop.f32.mrb[0].mxu0
  %v2062 = vadd.f32 0.0, %v2061
  %v2063 = vpop.f32.mrb[0].mxu0
  %v2064 = vpop.f32.mrb[0].mxu0
  %v2065 = vpop.f32.mrb[0].mxu0
  %2066 = vdwg.mxu0
  %v2067 = vadd.f32 %v1700, %v2062
  %v2068 = vld [vmem:[%s4] sm:$0x1]
  %v2070 = vlaneseq
  %v2071 = vshrl.u32 %v2070, 7
  %v2072 = vsub.s32 0, %v2071
  %v2073 = vrot.slane %v2068, %v2072
  %v2075 = vadd.f32 %v2067, %v2073
  %2076 = vst [vmem:[%s5] sm:$0xf] %v2075
  // Predicated region
  $region22: #{forward.7} parent=0 // pred_check
    _
  $region23: #{forward.7} parent=0 // pred_check_branch
    %2078 = sbr.rel (0) target = $region25
  $region24: #{forward.7} parent=0 // pred_region
    _
  $region25: #{forward.7} parent=0 // pred_fallthru
    _
  // Predicated region
  $region26: #{forward.7} parent=0 // pred_check
    _
  $region27: #{forward.7} parent=0 // pred_check_branch
    %2080 = sbr.rel (0) target = $region29
  $region28: #{forward.7} parent=0 // pred_region
    _
  $region29: #{forward.7} parent=0 // pred_fallthru
    _

</llo_original>
